<compile_context>
chip_gen: v6e
topology: v6e:2x2x1
jax: 0.10.0
libtpu: 0.0.40
codegen_flags: <defaults>
</compile_context>

<pallas_src>
import functools
import math

import jax
import jax.numpy as jnp
from jax.experimental import pallas as pl
from jax.experimental.pallas import tpu as pltpu


_VMEM_LIMIT_BYTES = 32 * 1024 * 1024          # <= v7x physical (64 MiB); plenty for <=9 MiB blocks
_DENSE_WEIGHT_BYTES_CAP = 8 * 1024 * 1024     # densify block-diag weight only below this size


# ----------------------------------------------------------------------------
# Pallas kernels (one (batch,) block each; all groups handled inside the block).
# ----------------------------------------------------------------------------
def _dense_conv_kernel(a_ref, w_ref, b_ref, o_ref, *, lrelu_slope):
    # a_ref: (1, T_out, GJ) im2col patches   w_ref: (GJ, C_out) block-diag dense weight
    # b_ref: (1, C_out)                      o_ref: (1, T_out, C_out) channels-last output
    acc = jnp.dot(a_ref[0], w_ref[...], preferred_element_type=jnp.float32)
    acc = acc + b_ref[...]
    if lrelu_slope is not None:
        acc = jnp.where(acc >= 0.0, acc, lrelu_slope * acc)
    o_ref[0] = acc.astype(o_ref.dtype)


def _grouped_ew_conv_kernel(p_ref, w_ref, b_ref, o_ref, *, lrelu_slope):
    # p_ref: (1, T_out, J, C_out) group-replicated patches   w_ref: (J, C_out)
    # b_ref: (1, C_out)                                      o_ref: (1, T_out, C_out)
    w = w_ref[...]
    t_out = o_ref.shape[1]
    rows = [jnp.sum(p_ref[0, t] * w, axis=0, keepdims=True) for t in range(t_out)]  # (1, C) each
    acc = jnp.concatenate(rows, axis=0)                                              # (T_out, C)
    acc = acc + b_ref[...]
    if lrelu_slope is not None:
        acc = jnp.where(acc >= 0.0, acc, lrelu_slope * acc)
    o_ref[0] = acc.astype(o_ref.dtype)


# ----------------------------------------------------------------------------
# Grouped, strided 1-D conv (channels-last), semantics of F.conv1d(..., groups=groups).
# ----------------------------------------------------------------------------
def _tap_range(k_size, stride, padding, t_in, t_out):
    # Taps outside [k_lo, k_hi] only ever see zero padding -> dropped at trace time.
    k_lo = max(0, padding - (t_out - 1) * stride)
    k_hi = min(k_size - 1, padding + t_in - 1)
    return k_lo, k_hi


def pallas_grouped_conv1d_nlc(h, w, b, *, stride, padding, groups, lrelu_slope=None):
    """h: (n, T, C_in) channels-last.  w: (C_out, in_pg, K).  Returns (n, T_out, C_out) f32."""
    n, t_in, c_in = h.shape
    c_out, in_pg, k_size = w.shape
    assert c_in == in_pg * groups and c_out % groups == 0
    out_pg = c_out // groups
    t_out = (t_in + 2 * padding - k_size) // stride + 1
    assert t_out >= 1

    k_lo, k_hi = _tap_range(k_size, stride, padding, t_in, t_out)
    kp = k_hi - k_lo + 1
    w_trim = w[:, :, k_lo:k_hi + 1]                                  # (C_out, in_pg, Kp)

    pad_left = padding - k_lo
    needed = (t_out - 1) * stride + kp
    pad_right = max(0, needed - (pad_left + t_in))
    h_pad = jnp.pad(h, ((0, 0), (pad_left, pad_right), (0, 0)))

    # wins[:, t, c, k] = h_pad[:, t*stride + k, c]   (static strided slices, built in XLA glue)
    wins = jnp.stack(
        [h_pad[:, k:k + (t_out - 1) * stride + 1:stride, :] for k in range(kp)],
        axis=-1)                                                     # (n, T_out, C_in, Kp)

    j = in_pg * kp
    bias2d = b.reshape(1, c_out).astype(jnp.float32)
    compiler_params = pltpu.CompilerParams(
        dimension_semantics=("parallel",),
        vmem_limit_bytes=_VMEM_LIMIT_BYTES,
    )

    dense_weight_bytes = groups * j * c_out * 4
    if dense_weight_bytes <= _DENSE_WEIGHT_BYTES_CAP:
        # -------- im2col MXU matmul with a block-diagonal (densified) weight --------
        a = wins.reshape(n, t_out, groups * j).astype(jnp.float32)   # cols ordered (g, ci, k)
        blocks = w_trim.reshape(groups, out_pg, j).transpose(0, 2, 1)  # (G, J, out_pg)
        wd = jnp.zeros((groups * j, c_out), jnp.float32)
        for g in range(groups):                                      # exact, no matmul rounding
            wd = wd.at[g * j:(g + 1) * j, g * out_pg:(g + 1) * out_pg].set(
                blocks[g].astype(jnp.float32))

        kern = functools.partial(_dense_conv_kernel, lrelu_slope=lrelu_slope)
        out = pl.pallas_call(
            kern,
            out_shape=jax.ShapeDtypeStruct((n, t_out, c_out), jnp.float32),
            grid_spec=pltpu.PrefetchScalarGridSpec(
                num_scalar_prefetch=0,
                grid=(n,),
                in_specs=[
                    pl.BlockSpec((1, t_out, groups * j), lambda i: (i, 0, 0)),
                    pl.BlockSpec((groups * j, c_out), lambda i: (0, 0)),
                    pl.BlockSpec((1, c_out), lambda i: (0, 0)),
                ],
                out_specs=pl.BlockSpec((1, t_out, c_out), lambda i: (i, 0, 0)),
            ),
            compiler_params=compiler_params,
        )(a, wd, bias2d)
    else:
        # -------- many small groups: VPU multiply-reduce over group-replicated patches --------
        p = wins.reshape(n, t_out, groups, in_pg, kp)
        p = p.transpose(0, 1, 3, 4, 2).reshape(n, t_out, j, groups)  # j = ci*Kp + k
        p = jnp.repeat(p, out_pg, axis=-1).astype(jnp.float32)       # (n, T_out, J, C_out)
        wr = w_trim.reshape(c_out, j).T.astype(jnp.float32)          # (J, C_out)

        kern = functools.partial(_grouped_ew_conv_kernel, lrelu_slope=lrelu_slope)
        out = pl.pallas_call(
            kern,
            out_shape=jax.ShapeDtypeStruct((n, t_out, c_out), jnp.float32),
            grid_spec=pltpu.PrefetchScalarGridSpec(
                num_scalar_prefetch=0,
                grid=(n,),
                in_specs=[
                    pl.BlockSpec((1, t_out, j, c_out), lambda i: (i, 0, 0, 0)),
                    pl.BlockSpec((j, c_out), lambda i: (0, 0)),
                    pl.BlockSpec((1, c_out), lambda i: (0, 0)),
                ],
                out_specs=pl.BlockSpec((1, t_out, c_out), lambda i: (i, 0, 0)),
            ),
            compiler_params=compiler_params,
        )(p, wr, bias2d)
    return out


# ----------------------------------------------------------------------------
# Parameter construction (deterministic, synthetic).
# ----------------------------------------------------------------------------
_CONV_CFG = [
    # (c_in, c_out, kernel, stride, groups, padding)
    (1,    16,   15, 1, 1,   7),
    (16,   64,   41, 4, 4,   20),
    (64,   256,  41, 4, 16,  20),
    (256,  1024, 41, 4, 64,  20),
    (1024, 1024, 41, 4, 256, 20),
    (1024, 1024, 5,  1, 1,   2),
]
_POST_CFG = (1024, 1, 3, 1, 1, 1)  # c_in, c_out, k, stride, groups, padding


def _init_weight_norm_conv(key, c_out, c_in_pg, k_size):
    kv, kb = jax.random.split(key)
    fan_in = c_in_pg * k_size
    v = jax.random.normal(kv, (c_out, c_in_pg, k_size), jnp.float32) / math.sqrt(fan_in)
    # weight_norm reparametrization: w = g * v / ||v||, with g initialized to ||v|| (dim=0).
    v_norm = jnp.sqrt(jnp.sum(v * v, axis=(1, 2), keepdims=True)).clip(1e-12)
    g = v_norm
    w = g * v / v_norm
    b = jax.random.normal(kb, (c_out,), jnp.float32) * 0.01
    return w, b


def init_discriminator_s_params(key):
    params = {"convs": []}
    keys = jax.random.split(key, len(_CONV_CFG) + 1)
    for cfg, k in zip(_CONV_CFG, keys[:-1]):
        c_in, c_out, ks, _, groups, _ = cfg
        w, b = _init_weight_norm_conv(k, c_out, c_in // groups, ks)
        params["convs"].append({"w": w, "b": b})

    # SANConv1d(1024, 1, 3, 1, padding=1)
    c_in, c_out, ks = _POST_CFG[0], _POST_CFG[1], _POST_CFG[2]
    kw, kb = jax.random.split(keys[-1])
    w = jax.random.normal(kw, (c_out, c_in, ks), jnp.float32) / math.sqrt(c_in * ks)
    b = jax.random.normal(kb, (c_out,), jnp.float32) * 0.01
    scale = jnp.sqrt(jnp.sum(w * w, axis=(1, 2))).clip(1e-12)  # per-out-channel ||w||
    params["conv_post"] = {"w": w, "b": b, "scale": scale}
    return params


def _san_effective_weight(pp):
    w_norm = pp["w"] / jnp.sqrt(jnp.sum(pp["w"] ** 2, axis=(1, 2), keepdims=True)).clip(1e-12)
    return w_norm * pp["scale"][:, None, None]


# ----------------------------------------------------------------------------
# Forward pass (matches DiscriminatorS.forward semantics).
# ----------------------------------------------------------------------------
def discriminator_s_forward(params, x, flg_train=False):
    n = x.shape[0]
    h = jnp.transpose(x, (0, 2, 1))                      # NCT -> NTC (channels-last internally)
    fmap = []
    for cfg, p in zip(_CONV_CFG, params["convs"]):
        _, _, _, stride, groups, padding = cfg
        h = pallas_grouped_conv1d_nlc(
            h, p["w"], p["b"], stride=stride, padding=padding, groups=groups,
            lrelu_slope=0.1,
        )
        fmap.append(jnp.transpose(h, (0, 2, 1)))         # feature maps reported in NCT

    # SANConv1d inference path: conv with L2-normalized weight scaled per out channel.
    pp = params["conv_post"]
    w_eff = _san_effective_weight(pp)
    _, _, _, stride, groups, padding = _POST_CFG
    h = pallas_grouped_conv1d_nlc(
        h, w_eff, pp["b"], stride=stride, padding=padding, groups=groups,
        lrelu_slope=None,
    )
    x_out = jnp.transpose(h, (0, 2, 1))                  # (n, 1, T_post)
    fmap.append(x_out)

    if flg_train:
        # Forward values of (x_fun, x_dir) are identical; only autograd detach placement differs.
        x_flat = x_out.reshape(n, -1)
        return (x_flat, x_flat), fmap
    return x_out.reshape(n, -1), fmap


# ----------------------------------------------------------------------------
# Pure-JAX reference (lax.conv_general_dilated) for a numerical sanity check.
# ----------------------------------------------------------------------------
def _ref_conv1d(x_nct, w, b, stride, padding, groups):
    out = jax.lax.conv_general_dilated(
        x_nct, w, window_strides=(stride,), padding=[(padding, padding)],
        dimension_numbers=("NCH", "OIH", "NCH"), feature_group_count=groups,
        precision=jax.lax.Precision.HIGHEST)
    return out + b[None, :, None]


def reference_forward(params, x):
    fmap = []
    h = x
    for cfg, p in zip(_CONV_CFG, params["convs"]):
        _, _, _, stride, groups, padding = cfg
        h = _ref_conv1d(h, p["w"], p["b"], stride, padding, groups)
        h = jnp.where(h >= 0.0, h, 0.1 * h)
        fmap.append(h)
    pp = params["conv_post"]
    w_eff = _san_effective_weight(pp)
    _, _, _, stride, groups, padding = _POST_CFG
    h = _ref_conv1d(h, w_eff, pp["b"], stride, padding, groups)
    fmap.append(h)
    return h.reshape(h.shape[0], -1), fmap


if __name__ == "__main__":
    key = jax.random.PRNGKey(0)
    k_param, k_input = jax.random.split(key)

    params = init_discriminator_s_params(k_param)

    # Input: (batch=2, channels=1, time=256) raw-waveform style, NCT layout.
    x = jax.random.normal(k_input, (2, 1, 256), jnp.float32)

    fwd = jax.jit(discriminator_s_forward, static_argnames=("flg_train",))
    out, fmap = fwd(params, x)
    out = jax.block_until_ready(out)
    fmap = jax.block_until_ready(fmap)

    # Shape sanity: 256 -> 256 -> 64 -> 16 -> 4 -> 1 -> 1 -> 1.
    expected_channels = [16, 64, 256, 1024, 1024, 1024, 1]
    expected_times = [256, 64, 16, 4, 1, 1, 1]
    assert len(fmap) == 7
    for f, c, t in zip(fmap, expected_channels, expected_times):
        assert f.shape == (2, c, t), f.shape
    assert out.shape == (2, 1), out.shape

    # Numerical sanity against a pure-JAX reference (loose tol: MXU f32 vs XLA conv rounding).
    ref_out, ref_fmap = jax.jit(reference_forward)(params, x)
    ref_out = jax.block_until_ready(ref_out)
    for got, ref in list(zip(fmap, ref_fmap)) + [(out, ref_out)]:
        denom = jnp.maximum(jnp.max(jnp.abs(ref)), 1e-3)
        err = jnp.max(jnp.abs(got - ref)) / denom
        assert float(err) < 3e-2, float(err)

    print("KERNEL_OK")
</pallas_src>

<mosaic_0001>
module attributes {stable_mosaic.version = 11 : i64} {
  func.func @_dense_conv_kernel(%arg0: i32, %arg1: memref<1x256x15xf32, #tpu.memory_space<vmem>>, %arg2: memref<15x16xf32, #tpu.memory_space<vmem>>, %arg3: memref<1x16xf32, #tpu.memory_space<vmem>>, %arg4: memref<1x256x16xf32, #tpu.memory_space<vmem>>) attributes {dimension_semantics = [#tpu.dimension_semantics<parallel>], iteration_bounds = array<i64: 2>, scalar_prefetch = 0 : i64, scratch_operands = 0 : i64, tpu.core_type = #tpu.core_type<tc>, window_params = [{transform_indices = @transform_0, window_bounds = array<i64: 1, 256, 15>}, {pipeline_mode = #tpu.pipeline_mode<synchronous>, transform_indices = @transform_1, window_bounds = array<i64: 15, 16>}, {pipeline_mode = #tpu.pipeline_mode<synchronous>, transform_indices = @transform_2, window_bounds = array<i64: 1, 16>}, {transform_indices = @transform_3, window_bounds = array<i64: 1, 256, 16>}]} {
    %c0 = arith.constant 0 : index
    %c0_0 = arith.constant 0 : index
    %c0_1 = arith.constant 0 : index
    %0 = vector.load %arg1[%c0, %c0_0, %c0_1] : memref<1x256x15xf32, #tpu.memory_space<vmem>>, vector<1x256x15xf32>
    %1 = vector.shape_cast %0 : vector<1x256x15xf32> to vector<256x15xf32>
    %c0_2 = arith.constant 0 : index
    %c0_3 = arith.constant 0 : index
    %2 = vector.load %arg2[%c0_2, %c0_3] : memref<15x16xf32, #tpu.memory_space<vmem>>, vector<15x16xf32>
    %cst = arith.constant dense<0.000000e+00> : vector<256x16xf32>
    %3 = tpu.matmul %1, %2, %cst {dimension_numbers = #tpu.dot_dimension_numbers<[1], [0], [0], [1], [0, 0, 1, 1], [], []>} : vector<256x15xf32>, vector<15x16xf32>, vector<256x16xf32> -> vector<256x16xf32>
    %c0_4 = arith.constant 0 : index
    %c0_5 = arith.constant 0 : index
    %4 = vector.load %arg3[%c0_4, %c0_5] : memref<1x16xf32, #tpu.memory_space<vmem>>, vector<1x16xf32>
    %5 = vector.broadcast %4 : vector<1x16xf32> to vector<256x16xf32>
    %6 = arith.addf %3, %5 : vector<256x16xf32>
    %cst_6 = arith.constant 0.000000e+00 : f32
    %7 = vector.broadcast %cst_6 : f32 to vector<256x16xf32>
    %8 = arith.cmpf oge, %6, %7 : vector<256x16xf32>
    %cst_7 = arith.constant 1.000000e-01 : f32
    %9 = vector.broadcast %cst_7 : f32 to vector<256x16xf32>
    %10 = arith.mulf %9, %6 : vector<256x16xf32>
    %11 = arith.select %8, %6, %10 : vector<256x16xi1>, vector<256x16xf32>
    %c0_8 = arith.constant 0 : index
    %c0_9 = arith.constant 0 : index
    %c0_10 = arith.constant 0 : index
    %12 = vector.load %arg4[%c0_8, %c0_9, %c0_10] : memref<1x256x16xf32, #tpu.memory_space<vmem>>, vector<1x256x16xf32>
    %13 = vector.shape_cast %12 : vector<1x256x16xf32> to vector<256x16xf32>
    %14 = vector.shape_cast %11 : vector<256x16xf32> to vector<1x256x16xf32>
    tpu.vector_store %arg4[%c0_8, %c0_9, %c0_10], %14 {strides = array<i32>} : memref<1x256x16xf32, #tpu.memory_space<vmem>>, vector<1x256x16xf32>,
    return
  }
  func.func @transform_0(%arg0: i32) -> (i32, i32, i32) {
    %c0_i32 = arith.constant 0 : i32
    %c0_i32_0 = arith.constant 0 : i32
    %c0_i32_1 = arith.constant 0 : i32
    return %arg0, %c0_i32, %c0_i32_0 : i32, i32, i32
  }
  func.func @transform_1(%arg0: i32) -> (i32, i32) {
    %c0_i32 = arith.constant 0 : i32
    %c0_i32_0 = arith.constant 0 : i32
    %c0_i32_1 = arith.constant 0 : i32
    return %c0_i32, %c0_i32_0 : i32, i32
  }
  func.func @transform_2(%arg0: i32) -> (i32, i32) {
    %c0_i32 = arith.constant 0 : i32
    %c0_i32_0 = arith.constant 0 : i32
    %c0_i32_1 = arith.constant 0 : i32
    return %c0_i32, %c0_i32_0 : i32, i32
  }
  func.func @transform_3(%arg0: i32) -> (i32, i32, i32) {
    %c0_i32 = arith.constant 0 : i32
    %c0_i32_0 = arith.constant 0 : i32
    %c0_i32_1 = arith.constant 0 : i32
    return %arg0, %c0_i32, %c0_i32_0 : i32, i32, i32
  }
}

module attributes {stable_mosaic.version = 11 : i64} {
  func.func @_dense_conv_kernel(%arg0: i32, %arg1: memref<1x64x656xf32, #tpu.memory_space<vmem>>, %arg2: memref<656x64xf32, #tpu.memory_space<vmem>>, %arg3: memref<1x64xf32, #tpu.memory_space<vmem>>, %arg4: memref<1x64x64xf32, #tpu.memory_space<vmem>>) attributes {dimension_semantics = [#tpu.dimension_semantics<parallel>], iteration_bounds = array<i64: 2>, scalar_prefetch = 0 : i64, scratch_operands = 0 : i64, tpu.core_type = #tpu.core_type<tc>, window_params = [{transform_indices = @transform_0, window_bounds = array<i64: 1, 64, 656>}, {pipeline_mode = #tpu.pipeline_mode<synchronous>, transform_indices = @transform_1, window_bounds = array<i64: 656, 64>}, {pipeline_mode = #tpu.pipeline_mode<synchronous>, transform_indices = @transform_2, window_bounds = array<i64: 1, 64>}, {transform_indices = @transform_3, window_bounds = array<i64: 1, 64, 64>}]} {
    %c0 = arith.constant 0 : index
    %c0_0 = arith.constant 0 : index
    %c0_1 = arith.constant 0 : index
    %0 = vector.load %arg1[%c0, %c0_0, %c0_1] : memref<1x64x656xf32, #tpu.memory_space<vmem>>, vector<1x64x656xf32>
    %1 = vector.shape_cast %0 : vector<1x64x656xf32> to vector<64x656xf32>
    %c0_2 = arith.constant 0 : index
    %c0_3 = arith.constant 0 : index
    %2 = vector.load %arg2[%c0_2, %c0_3] : memref<656x64xf32, #tpu.memory_space<vmem>>, vector<656x64xf32>
    %cst = arith.constant dense<0.000000e+00> : vector<64x64xf32>
    %3 = tpu.matmul %1, %2, %cst {dimension_numbers = #tpu.dot_dimension_numbers<[1], [0], [0], [1], [0, 0, 1, 1], [], []>} : vector<64x656xf32>, vector<656x64xf32>, vector<64x64xf32> -> vector<64x64xf32>
    %c0_4 = arith.constant 0 : index
    %c0_5 = arith.constant 0 : index
    %4 = vector.load %arg3[%c0_4, %c0_5] : memref<1x64xf32, #tpu.memory_space<vmem>>, vector<1x64xf32>
    %5 = vector.broadcast %4 : vector<1x64xf32> to vector<64x64xf32>
    %6 = arith.addf %3, %5 : vector<64x64xf32>
    %cst_6 = arith.constant 0.000000e+00 : f32
    %7 = vector.broadcast %cst_6 : f32 to vector<64x64xf32>
    %8 = arith.cmpf oge, %6, %7 : vector<64x64xf32>
    %cst_7 = arith.constant 1.000000e-01 : f32
    %9 = vector.broadcast %cst_7 : f32 to vector<64x64xf32>
    %10 = arith.mulf %9, %6 : vector<64x64xf32>
    %11 = arith.select %8, %6, %10 : vector<64x64xi1>, vector<64x64xf32>
    %c0_8 = arith.constant 0 : index
    %c0_9 = arith.constant 0 : index
    %c0_10 = arith.constant 0 : index
    %12 = vector.load %arg4[%c0_8, %c0_9, %c0_10] : memref<1x64x64xf32, #tpu.memory_space<vmem>>, vector<1x64x64xf32>
    %13 = vector.shape_cast %12 : vector<1x64x64xf32> to vector<64x64xf32>
    %14 = vector.shape_cast %11 : vector<64x64xf32> to vector<1x64x64xf32>
    tpu.vector_store %arg4[%c0_8, %c0_9, %c0_10], %14 {strides = array<i32>} : memref<1x64x64xf32, #tpu.memory_space<vmem>>, vector<1x64x64xf32>,
    return
  }
  func.func @transform_0(%arg0: i32) -> (i32, i32, i32) {
    %c0_i32 = arith.constant 0 : i32
    %c0_i32_0 = arith.constant 0 : i32
    %c0_i32_1 = arith.constant 0 : i32
    return %arg0, %c0_i32, %c0_i32_0 : i32, i32, i32
  }
  func.func @transform_1(%arg0: i32) -> (i32, i32) {
    %c0_i32 = arith.constant 0 : i32
    %c0_i32_0 = arith.constant 0 : i32
    %c0_i32_1 = arith.constant 0 : i32
    return %c0_i32, %c0_i32_0 : i32, i32
  }
  func.func @transform_2(%arg0: i32) -> (i32, i32) {
    %c0_i32 = arith.constant 0 : i32
    %c0_i32_0 = arith.constant 0 : i32
    %c0_i32_1 = arith.constant 0 : i32
    return %c0_i32, %c0_i32_0 : i32, i32
  }
  func.func @transform_3(%arg0: i32) -> (i32, i32, i32) {
    %c0_i32 = arith.constant 0 : i32
    %c0_i32_0 = arith.constant 0 : i32
    %c0_i32_1 = arith.constant 0 : i32
    return %arg0, %c0_i32, %c0_i32_0 : i32, i32, i32
  }
}

module attributes {stable_mosaic.version = 11 : i64} {
  func.func @_dense_conv_kernel(%arg0: i32, %arg1: memref<1x16x2624xf32, #tpu.memory_space<vmem>>, %arg2: memref<2624x256xf32, #tpu.memory_space<vmem>>, %arg3: memref<1x256xf32, #tpu.memory_space<vmem>>, %arg4: memref<1x16x256xf32, #tpu.memory_space<vmem>>) attributes {dimension_semantics = [#tpu.dimension_semantics<parallel>], iteration_bounds = array<i64: 2>, scalar_prefetch = 0 : i64, scratch_operands = 0 : i64, tpu.core_type = #tpu.core_type<tc>, window_params = [{transform_indices = @transform_0, window_bounds = array<i64: 1, 16, 2624>}, {pipeline_mode = #tpu.pipeline_mode<synchronous>, transform_indices = @transform_1, window_bounds = array<i64: 2624, 256>}, {pipeline_mode = #tpu.pipeline_mode<synchronous>, transform_indices = @transform_2, window_bounds = array<i64: 1, 256>}, {transform_indices = @transform_3, window_bounds = array<i64: 1, 16, 256>}]} {
    %c0 = arith.constant 0 : index
    %c0_0 = arith.constant 0 : index
    %c0_1 = arith.constant 0 : index
    %0 = vector.load %arg1[%c0, %c0_0, %c0_1] : memref<1x16x2624xf32, #tpu.memory_space<vmem>>, vector<1x16x2624xf32>
    %1 = vector.shape_cast %0 : vector<1x16x2624xf32> to vector<16x2624xf32>
    %c0_2 = arith.constant 0 : index
    %c0_3 = arith.constant 0 : index
    %2 = vector.load %arg2[%c0_2, %c0_3] : memref<2624x256xf32, #tpu.memory_space<vmem>>, vector<2624x256xf32>
    %cst = arith.constant dense<0.000000e+00> : vector<16x256xf32>
    %3 = tpu.matmul %1, %2, %cst {dimension_numbers = #tpu.dot_dimension_numbers<[1], [0], [0], [1], [0, 0, 1, 1], [], []>} : vector<16x2624xf32>, vector<2624x256xf32>, vector<16x256xf32> -> vector<16x256xf32>
    %c0_4 = arith.constant 0 : index
    %c0_5 = arith.constant 0 : index
    %4 = vector.load %arg3[%c0_4, %c0_5] : memref<1x256xf32, #tpu.memory_space<vmem>>, vector<1x256xf32>
    %5 = vector.broadcast %4 : vector<1x256xf32> to vector<16x256xf32>
    %6 = arith.addf %3, %5 : vector<16x256xf32>
    %cst_6 = arith.constant 0.000000e+00 : f32
    %7 = vector.broadcast %cst_6 : f32 to vector<16x256xf32>
    %8 = arith.cmpf oge, %6, %7 : vector<16x256xf32>
    %cst_7 = arith.constant 1.000000e-01 : f32
    %9 = vector.broadcast %cst_7 : f32 to vector<16x256xf32>
    %10 = arith.mulf %9, %6 : vector<16x256xf32>
    %11 = arith.select %8, %6, %10 : vector<16x256xi1>, vector<16x256xf32>
    %c0_8 = arith.constant 0 : index
    %c0_9 = arith.constant 0 : index
    %c0_10 = arith.constant 0 : index
    %12 = vector.load %arg4[%c0_8, %c0_9, %c0_10] : memref<1x16x256xf32, #tpu.memory_space<vmem>>, vector<1x16x256xf32>
    %13 = vector.shape_cast %12 : vector<1x16x256xf32> to vector<16x256xf32>
    %14 = vector.shape_cast %11 : vector<16x256xf32> to vector<1x16x256xf32>
    tpu.vector_store %arg4[%c0_8, %c0_9, %c0_10], %14 {strides = array<i32>} : memref<1x16x256xf32, #tpu.memory_space<vmem>>, vector<1x16x256xf32>,
    return
  }
  func.func @transform_0(%arg0: i32) -> (i32, i32, i32) {
    %c0_i32 = arith.constant 0 : i32
    %c0_i32_0 = arith.constant 0 : i32
    %c0_i32_1 = arith.constant 0 : i32
    return %arg0, %c0_i32, %c0_i32_0 : i32, i32, i32
  }
  func.func @transform_1(%arg0: i32) -> (i32, i32) {
    %c0_i32 = arith.constant 0 : i32
    %c0_i32_0 = arith.constant 0 : i32
    %c0_i32_1 = arith.constant 0 : i32
    return %c0_i32, %c0_i32_0 : i32, i32
  }
  func.func @transform_2(%arg0: i32) -> (i32, i32) {
    %c0_i32 = arith.constant 0 : i32
    %c0_i32_0 = arith.constant 0 : i32
    %c0_i32_1 = arith.constant 0 : i32
    return %c0_i32, %c0_i32_0 : i32, i32
  }
  func.func @transform_3(%arg0: i32) -> (i32, i32, i32) {
    %c0_i32 = arith.constant 0 : i32
    %c0_i32_0 = arith.constant 0 : i32
    %c0_i32_1 = arith.constant 0 : i32
    return %arg0, %c0_i32, %c0_i32_0 : i32, i32, i32
  }
}

module attributes {stable_mosaic.version = 11 : i64} {
  func.func @_grouped_ew_conv_kernel(%arg0: i32, %arg1: memref<1x4x112x1024xf32, #tpu.memory_space<vmem>>, %arg2: memref<112x1024xf32, #tpu.memory_space<vmem>>, %arg3: memref<1x1024xf32, #tpu.memory_space<vmem>>, %arg4: memref<1x4x1024xf32, #tpu.memory_space<vmem>>) attributes {dimension_semantics = [#tpu.dimension_semantics<parallel>], iteration_bounds = array<i64: 2>, scalar_prefetch = 0 : i64, scratch_operands = 0 : i64, tpu.core_type = #tpu.core_type<tc>, window_params = [{transform_indices = @transform_0, window_bounds = array<i64: 1, 4, 112, 1024>}, {pipeline_mode = #tpu.pipeline_mode<synchronous>, transform_indices = @transform_1, window_bounds = array<i64: 112, 1024>}, {pipeline_mode = #tpu.pipeline_mode<synchronous>, transform_indices = @transform_2, window_bounds = array<i64: 1, 1024>}, {transform_indices = @transform_3, window_bounds = array<i64: 1, 4, 1024>}]} {
    %c0 = arith.constant 0 : index
    %c0_0 = arith.constant 0 : index
    %0 = vector.load %arg2[%c0, %c0_0] : memref<112x1024xf32, #tpu.memory_space<vmem>>, vector<112x1024xf32>
    %c0_1 = arith.constant 0 : index
    %c0_2 = arith.constant 0 : index
    %c0_3 = arith.constant 0 : index
    %c0_4 = arith.constant 0 : index
    %1 = vector.load %arg1[%c0_1, %c0_2, %c0_3, %c0_4] : memref<1x4x112x1024xf32, #tpu.memory_space<vmem>>, vector<1x1x112x1024xf32>
    %2 = vector.shape_cast %1 : vector<1x1x112x1024xf32> to vector<112x1024xf32>
    %3 = arith.mulf %2, %0 : vector<112x1024xf32>
    %cst = arith.constant dense<0.000000e+00> : vector<1024xf32>
    %4 = vector.multi_reduction <add>, %3, %cst [0] : vector<112x1024xf32> to vector<1024xf32>
    %5 = vector.shape_cast %4 : vector<1024xf32> to vector<1x1024xf32>
    %c0_5 = arith.constant 0 : index
    %c1 = arith.constant 1 : index
    %c0_6 = arith.constant 0 : index
    %c0_7 = arith.constant 0 : index
    %6 = vector.load %arg1[%c0_5, %c1, %c0_6, %c0_7] : memref<1x4x112x1024xf32, #tpu.memory_space<vmem>>, vector<1x1x112x1024xf32>
    %7 = vector.shape_cast %6 : vector<1x1x112x1024xf32> to vector<112x1024xf32>
    %8 = arith.mulf %7, %0 : vector<112x1024xf32>
    %cst_8 = arith.constant dense<0.000000e+00> : vector<1024xf32>
    %9 = vector.multi_reduction <add>, %8, %cst_8 [0] : vector<112x1024xf32> to vector<1024xf32>
    %10 = vector.shape_cast %9 : vector<1024xf32> to vector<1x1024xf32>
    %c0_9 = arith.constant 0 : index
    %c2 = arith.constant 2 : index
    %c0_10 = arith.constant 0 : index
    %c0_11 = arith.constant 0 : index
    %11 = vector.load %arg1[%c0_9, %c2, %c0_10, %c0_11] : memref<1x4x112x1024xf32, #tpu.memory_space<vmem>>, vector<1x1x112x1024xf32>
    %12 = vector.shape_cast %11 : vector<1x1x112x1024xf32> to vector<112x1024xf32>
    %13 = arith.mulf %12, %0 : vector<112x1024xf32>
    %cst_12 = arith.constant dense<0.000000e+00> : vector<1024xf32>
    %14 = vector.multi_reduction <add>, %13, %cst_12 [0] : vector<112x1024xf32> to vector<1024xf32>
    %15 = vector.shape_cast %14 : vector<1024xf32> to vector<1x1024xf32>
    %c0_13 = arith.constant 0 : index
    %c3 = arith.constant 3 : index
    %c0_14 = arith.constant 0 : index
    %c0_15 = arith.constant 0 : index
    %16 = vector.load %arg1[%c0_13, %c3, %c0_14, %c0_15] : memref<1x4x112x1024xf32, #tpu.memory_space<vmem>>, vector<1x1x112x1024xf32>
    %17 = vector.shape_cast %16 : vector<1x1x112x1024xf32> to vector<112x1024xf32>
    %18 = arith.mulf %17, %0 : vector<112x1024xf32>
    %cst_16 = arith.constant dense<0.000000e+00> : vector<1024xf32>
    %19 = vector.multi_reduction <add>, %18, %cst_16 [0] : vector<112x1024xf32> to vector<1024xf32>
    %20 = vector.shape_cast %19 : vector<1024xf32> to vector<1x1024xf32>
    %21 = tpu.concatenate %5, %10, %15, %20 in 0 : vector<1x1024xf32>, vector<1x1024xf32>, vector<1x1024xf32>, vector<1x1024xf32> -> vector<4x1024xf32>
    %c0_17 = arith.constant 0 : index
    %c0_18 = arith.constant 0 : index
    %22 = vector.load %arg3[%c0_17, %c0_18] : memref<1x1024xf32, #tpu.memory_space<vmem>>, vector<1x1024xf32>
    %23 = vector.broadcast %22 : vector<1x1024xf32> to vector<4x1024xf32>
    %24 = arith.addf %21, %23 : vector<4x1024xf32>
    %cst_19 = arith.constant 0.000000e+00 : f32
    %25 = vector.broadcast %cst_19 : f32 to vector<4x1024xf32>
    %26 = arith.cmpf oge, %24, %25 : vector<4x1024xf32>
    %cst_20 = arith.constant 1.000000e-01 : f32
    %27 = vector.broadcast %cst_20 : f32 to vector<4x1024xf32>
    %28 = arith.mulf %27, %24 : vector<4x1024xf32>
    %29 = arith.select %26, %24, %28 : vector<4x1024xi1>, vector<4x1024xf32>
    %c0_21 = arith.constant 0 : index
    %c0_22 = arith.constant 0 : index
    %c0_23 = arith.constant 0 : index
    %30 = vector.load %arg4[%c0_21, %c0_22, %c0_23] : memref<1x4x1024xf32, #tpu.memory_space<vmem>>, vector<1x4x1024xf32>
    %31 = vector.shape_cast %30 : vector<1x4x1024xf32> to vector<4x1024xf32>
    %32 = vector.shape_cast %29 : vector<4x1024xf32> to vector<1x4x1024xf32>
    tpu.vector_store %arg4[%c0_21, %c0_22, %c0_23], %32 {strides = array<i32>} : memref<1x4x1024xf32, #tpu.memory_space<vmem>>, vector<1x4x1024xf32>,
    return
  }
  func.func @transform_0(%arg0: i32) -> (i32, i32, i32, i32) {
    %c0_i32 = arith.constant 0 : i32
    %c0_i32_0 = arith.constant 0 : i32
    %c0_i32_1 = arith.constant 0 : i32
    %c0_i32_2 = arith.constant 0 : i32
    return %arg0, %c0_i32, %c0_i32_0, %c0_i32_1 : i32, i32, i32, i32
  }
  func.func @transform_1(%arg0: i32) -> (i32, i32) {
    %c0_i32 = arith.constant 0 : i32
    %c0_i32_0 = arith.constant 0 : i32
    %c0_i32_1 = arith.constant 0 : i32
    return %c0_i32, %c0_i32_0 : i32, i32
  }
  func.func @transform_2(%arg0: i32) -> (i32, i32) {
    %c0_i32 = arith.constant 0 : i32
    %c0_i32_0 = arith.constant 0 : i32
    %c0_i32_1 = arith.constant 0 : i32
    return %c0_i32, %c0_i32_0 : i32, i32
  }
  func.func @transform_3(%arg0: i32) -> (i32, i32, i32) {
    %c0_i32 = arith.constant 0 : i32
    %c0_i32_0 = arith.constant 0 : i32
    %c0_i32_1 = arith.constant 0 : i32
    return %arg0, %c0_i32, %c0_i32_0 : i32, i32, i32
  }
}

module attributes {stable_mosaic.version = 11 : i64} {
  func.func @_grouped_ew_conv_kernel(%arg0: i32, %arg1: memref<1x1x16x1024xf32, #tpu.memory_space<vmem>>, %arg2: memref<16x1024xf32, #tpu.memory_space<vmem>>, %arg3: memref<1x1024xf32, #tpu.memory_space<vmem>>, %arg4: memref<1x1x1024xf32, #tpu.memory_space<vmem>>) attributes {dimension_semantics = [#tpu.dimension_semantics<parallel>], iteration_bounds = array<i64: 2>, scalar_prefetch = 0 : i64, scratch_operands = 0 : i64, tpu.core_type = #tpu.core_type<tc>, window_params = [{transform_indices = @transform_0, window_bounds = array<i64: 1, 1, 16, 1024>}, {pipeline_mode = #tpu.pipeline_mode<synchronous>, transform_indices = @transform_1, window_bounds = array<i64: 16, 1024>}, {pipeline_mode = #tpu.pipeline_mode<synchronous>, transform_indices = @transform_2, window_bounds = array<i64: 1, 1024>}, {transform_indices = @transform_3, window_bounds = array<i64: 1, 1, 1024>}]} {
    %c0 = arith.constant 0 : index
    %c0_0 = arith.constant 0 : index
    %0 = vector.load %arg2[%c0, %c0_0] : memref<16x1024xf32, #tpu.memory_space<vmem>>, vector<16x1024xf32>
    %c0_1 = arith.constant 0 : index
    %c0_2 = arith.constant 0 : index
    %c0_3 = arith.constant 0 : index
    %c0_4 = arith.constant 0 : index
    %1 = vector.load %arg1[%c0_1, %c0_2, %c0_3, %c0_4] : memref<1x1x16x1024xf32, #tpu.memory_space<vmem>>, vector<1x1x16x1024xf32>
    %2 = vector.shape_cast %1 : vector<1x1x16x1024xf32> to vector<16x1024xf32>
    %3 = arith.mulf %2, %0 : vector<16x1024xf32>
    %cst = arith.constant dense<0.000000e+00> : vector<1024xf32>
    %4 = vector.multi_reduction <add>, %3, %cst [0] : vector<16x1024xf32> to vector<1024xf32>
    %5 = vector.shape_cast %4 : vector<1024xf32> to vector<1x1024xf32>
    %c0_5 = arith.constant 0 : index
    %c0_6 = arith.constant 0 : index
    %6 = vector.load %arg3[%c0_5, %c0_6] : memref<1x1024xf32, #tpu.memory_space<vmem>>, vector<1x1024xf32>
    %7 = arith.addf %5, %6 : vector<1x1024xf32>
    %cst_7 = arith.constant 0.000000e+00 : f32
    %8 = vector.broadcast %cst_7 : f32 to vector<1x1024xf32>
    %9 = arith.cmpf oge, %7, %8 : vector<1x1024xf32>
    %cst_8 = arith.constant 1.000000e-01 : f32
    %10 = vector.broadcast %cst_8 : f32 to vector<1x1024xf32>
    %11 = arith.mulf %10, %7 : vector<1x1024xf32>
    %12 = arith.select %9, %7, %11 : vector<1x1024xi1>, vector<1x1024xf32>
    %c0_9 = arith.constant 0 : index
    %c0_10 = arith.constant 0 : index
    %c0_11 = arith.constant 0 : index
    %13 = vector.load %arg4[%c0_9, %c0_10, %c0_11] : memref<1x1x1024xf32, #tpu.memory_space<vmem>>, vector<1x1x1024xf32>
    %14 = vector.shape_cast %13 : vector<1x1x1024xf32> to vector<1x1024xf32>
    %15 = vector.shape_cast %12 : vector<1x1024xf32> to vector<1x1x1024xf32>
    tpu.vector_store %arg4[%c0_9, %c0_10, %c0_11], %15 {strides = array<i32>} : memref<1x1x1024xf32, #tpu.memory_space<vmem>>, vector<1x1x1024xf32>,
    return
  }
  func.func @transform_0(%arg0: i32) -> (i32, i32, i32, i32) {
    %c0_i32 = arith.constant 0 : i32
    %c0_i32_0 = arith.constant 0 : i32
    %c0_i32_1 = arith.constant 0 : i32
    %c0_i32_2 = arith.constant 0 : i32
    return %arg0, %c0_i32, %c0_i32_0, %c0_i32_1 : i32, i32, i32, i32
  }
  func.func @transform_1(%arg0: i32) -> (i32, i32) {
    %c0_i32 = arith.constant 0 : i32
    %c0_i32_0 = arith.constant 0 : i32
    %c0_i32_1 = arith.constant 0 : i32
    return %c0_i32, %c0_i32_0 : i32, i32
  }
  func.func @transform_2(%arg0: i32) -> (i32, i32) {
    %c0_i32 = arith.constant 0 : i32
    %c0_i32_0 = arith.constant 0 : i32
    %c0_i32_1 = arith.constant 0 : i32
    return %c0_i32, %c0_i32_0 : i32, i32
  }
  func.func @transform_3(%arg0: i32) -> (i32, i32, i32) {
    %c0_i32 = arith.constant 0 : i32
    %c0_i32_0 = arith.constant 0 : i32
    %c0_i32_1 = arith.constant 0 : i32
    return %arg0, %c0_i32, %c0_i32_0 : i32, i32, i32
  }
}

module attributes {stable_mosaic.version = 11 : i64} {
  func.func @_dense_conv_kernel(%arg0: i32, %arg1: memref<1x1x1024xf32, #tpu.memory_space<vmem>>, %arg2: memref<1024x1024xf32, #tpu.memory_space<vmem>>, %arg3: memref<1x1024xf32, #tpu.memory_space<vmem>>, %arg4: memref<1x1x1024xf32, #tpu.memory_space<vmem>>) attributes {dimension_semantics = [#tpu.dimension_semantics<parallel>], iteration_bounds = array<i64: 2>, scalar_prefetch = 0 : i64, scratch_operands = 0 : i64, tpu.core_type = #tpu.core_type<tc>, window_params = [{transform_indices = @transform_0, window_bounds = array<i64: 1, 1, 1024>}, {pipeline_mode = #tpu.pipeline_mode<synchronous>, transform_indices = @transform_1, window_bounds = array<i64: 1024, 1024>}, {pipeline_mode = #tpu.pipeline_mode<synchronous>, transform_indices = @transform_2, window_bounds = array<i64: 1, 1024>}, {transform_indices = @transform_3, window_bounds = array<i64: 1, 1, 1024>}]} {
    %c0 = arith.constant 0 : index
    %c0_0 = arith.constant 0 : index
    %c0_1 = arith.constant 0 : index
    %0 = vector.load %arg1[%c0, %c0_0, %c0_1] : memref<1x1x1024xf32, #tpu.memory_space<vmem>>, vector<1x1x1024xf32>
    %1 = vector.shape_cast %0 : vector<1x1x1024xf32> to vector<1x1024xf32>
    %c0_2 = arith.constant 0 : index
    %c0_3 = arith.constant 0 : index
    %2 = vector.load %arg2[%c0_2, %c0_3] : memref<1024x1024xf32, #tpu.memory_space<vmem>>, vector<1024x1024xf32>
    %cst = arith.constant dense<0.000000e+00> : vector<1x1024xf32>
    %3 = tpu.matmul %1, %2, %cst {dimension_numbers = #tpu.dot_dimension_numbers<[1], [0], [0], [1], [0, 0, 1, 1], [], []>} : vector<1x1024xf32>, vector<1024x1024xf32>, vector<1x1024xf32> -> vector<1x1024xf32>
    %c0_4 = arith.constant 0 : index
    %c0_5 = arith.constant 0 : index
    %4 = vector.load %arg3[%c0_4, %c0_5] : memref<1x1024xf32, #tpu.memory_space<vmem>>, vector<1x1024xf32>
    %5 = arith.addf %3, %4 : vector<1x1024xf32>
    %cst_6 = arith.constant 0.000000e+00 : f32
    %6 = vector.broadcast %cst_6 : f32 to vector<1x1024xf32>
    %7 = arith.cmpf oge, %5, %6 : vector<1x1024xf32>
    %cst_7 = arith.constant 1.000000e-01 : f32
    %8 = vector.broadcast %cst_7 : f32 to vector<1x1024xf32>
    %9 = arith.mulf %8, %5 : vector<1x1024xf32>
    %10 = arith.select %7, %5, %9 : vector<1x1024xi1>, vector<1x1024xf32>
    %c0_8 = arith.constant 0 : index
    %c0_9 = arith.constant 0 : index
    %c0_10 = arith.constant 0 : index
    %11 = vector.load %arg4[%c0_8, %c0_9, %c0_10] : memref<1x1x1024xf32, #tpu.memory_space<vmem>>, vector<1x1x1024xf32>
    %12 = vector.shape_cast %11 : vector<1x1x1024xf32> to vector<1x1024xf32>
    %13 = vector.shape_cast %10 : vector<1x1024xf32> to vector<1x1x1024xf32>
    tpu.vector_store %arg4[%c0_8, %c0_9, %c0_10], %13 {strides = array<i32>} : memref<1x1x1024xf32, #tpu.memory_space<vmem>>, vector<1x1x1024xf32>,
    return
  }
  func.func @transform_0(%arg0: i32) -> (i32, i32, i32) {
    %c0_i32 = arith.constant 0 : i32
    %c0_i32_0 = arith.constant 0 : i32
    %c0_i32_1 = arith.constant 0 : i32
    return %arg0, %c0_i32, %c0_i32_0 : i32, i32, i32
  }
  func.func @transform_1(%arg0: i32) -> (i32, i32) {
    %c0_i32 = arith.constant 0 : i32
    %c0_i32_0 = arith.constant 0 : i32
    %c0_i32_1 = arith.constant 0 : i32
    return %c0_i32, %c0_i32_0 : i32, i32
  }
  func.func @transform_2(%arg0: i32) -> (i32, i32) {
    %c0_i32 = arith.constant 0 : i32
    %c0_i32_0 = arith.constant 0 : i32
    %c0_i32_1 = arith.constant 0 : i32
    return %c0_i32, %c0_i32_0 : i32, i32
  }
  func.func @transform_3(%arg0: i32) -> (i32, i32, i32) {
    %c0_i32 = arith.constant 0 : i32
    %c0_i32_0 = arith.constant 0 : i32
    %c0_i32_1 = arith.constant 0 : i32
    return %arg0, %c0_i32, %c0_i32_0 : i32, i32, i32
  }
}

module attributes {stable_mosaic.version = 11 : i64} {
  func.func @_dense_conv_kernel(%arg0: i32, %arg1: memref<1x1x1024xf32, #tpu.memory_space<vmem>>, %arg2: memref<1024x1xf32, #tpu.memory_space<vmem>>, %arg3: memref<1x1xf32, #tpu.memory_space<vmem>>, %arg4: memref<1x1x1xf32, #tpu.memory_space<vmem>>) attributes {dimension_semantics = [#tpu.dimension_semantics<parallel>], iteration_bounds = array<i64: 2>, scalar_prefetch = 0 : i64, scratch_operands = 0 : i64, tpu.core_type = #tpu.core_type<tc>, window_params = [{transform_indices = @transform_0, window_bounds = array<i64: 1, 1, 1024>}, {pipeline_mode = #tpu.pipeline_mode<synchronous>, transform_indices = @transform_1, window_bounds = array<i64: 1024, 1>}, {pipeline_mode = #tpu.pipeline_mode<synchronous>, transform_indices = @transform_2, window_bounds = array<i64: 1, 1>}, {transform_indices = @transform_3, window_bounds = array<i64: 1, 1, 1>}]} {
    %c0 = arith.constant 0 : index
    %c0_0 = arith.constant 0 : index
    %c0_1 = arith.constant 0 : index
    %0 = vector.load %arg1[%c0, %c0_0, %c0_1] : memref<1x1x1024xf32, #tpu.memory_space<vmem>>, vector<1x1x1024xf32>
    %1 = vector.shape_cast %0 : vector<1x1x1024xf32> to vector<1x1024xf32>
    %c0_2 = arith.constant 0 : index
    %c0_3 = arith.constant 0 : index
    %2 = vector.load %arg2[%c0_2, %c0_3] : memref<1024x1xf32, #tpu.memory_space<vmem>>, vector<1024x1xf32>
    %cst = arith.constant dense<0.000000e+00> : vector<1x1xf32>
    %3 = tpu.matmul %1, %2, %cst {dimension_numbers = #tpu.dot_dimension_numbers<[1], [0], [0], [1], [0, 0, 1, 1], [], []>} : vector<1x1024xf32>, vector<1024x1xf32>, vector<1x1xf32> -> vector<1x1xf32>
    %c0_4 = arith.constant 0 : index
    %c0_5 = arith.constant 0 : index
    %4 = vector.load %arg3[%c0_4, %c0_5] : memref<1x1xf32, #tpu.memory_space<vmem>>, vector<1x1xf32>
    %5 = arith.addf %3, %4 : vector<1x1xf32>
    %c0_6 = arith.constant 0 : index
    %c0_7 = arith.constant 0 : index
    %c0_8 = arith.constant 0 : index
    %6 = vector.load %arg4[%c0_6, %c0_7, %c0_8] : memref<1x1x1xf32, #tpu.memory_space<vmem>>, vector<1x1x1xf32>
    %7 = vector.shape_cast %6 : vector<1x1x1xf32> to vector<1x1xf32>
    %8 = vector.shape_cast %5 : vector<1x1xf32> to vector<1x1x1xf32>
    tpu.vector_store %arg4[%c0_6, %c0_7, %c0_8], %8 {strides = array<i32>} : memref<1x1x1xf32, #tpu.memory_space<vmem>>, vector<1x1x1xf32>,
    return
  }
  func.func @transform_0(%arg0: i32) -> (i32, i32, i32) {
    %c0_i32 = arith.constant 0 : i32
    %c0_i32_0 = arith.constant 0 : i32
    %c0_i32_1 = arith.constant 0 : i32
    return %arg0, %c0_i32, %c0_i32_0 : i32, i32, i32
  }
  func.func @transform_1(%arg0: i32) -> (i32, i32) {
    %c0_i32 = arith.constant 0 : i32
    %c0_i32_0 = arith.constant 0 : i32
    %c0_i32_1 = arith.constant 0 : i32
    return %c0_i32, %c0_i32_0 : i32, i32
  }
  func.func @transform_2(%arg0: i32) -> (i32, i32) {
    %c0_i32 = arith.constant 0 : i32
    %c0_i32_0 = arith.constant 0 : i32
    %c0_i32_1 = arith.constant 0 : i32
    return %c0_i32, %c0_i32_0 : i32, i32
  }
  func.func @transform_3(%arg0: i32) -> (i32, i32, i32) {
    %c0_i32 = arith.constant 0 : i32
    %c0_i32_0 = arith.constant 0 : i32
    %c0_i32_1 = arith.constant 0 : i32
    return %arg0, %c0_i32, %c0_i32_0 : i32, i32, i32
  }
}

</mosaic_0001>

<llo_original>
// kernel: discriminator_s_forward.7
$region0: #{discriminator_s_forward.7}
  #allocation0 [shape = 'u32[]', space=smem, size = 0x4, offset = 0x4, fixed_abs, tag = 'smem constant byte address 0x4 - core index']
  #allocation1 [shape = 'u32[144,128]{1,0:T(1,128)}', space=vmem, size = 0x12000, scoped, tag = 'internal scratch']
  %s0 = inlined_call_operand.vmem [shape: f32[2,256,15], index: 0, kind: input, shape index: {}]
  %s1 = inlined_call_operand.vmem [shape: f32[15,16], index: 1, kind: input, shape index: {}]
  %s2 = inlined_call_operand.hbm [shape: f32[1,16], index: 2, kind: input, shape index: {}]
  %s3 = inlined_call_operand.vmem [shape: f32[2,256,16], index: 3, kind: output, shape index: {}]
  %s4 = sld [smem:[#allocation0]]
  $region49: #{discriminator_s_forward.7} parent=0
    _
  %s6 = ssub.s32 1, %s4
  %s7 = scalar_select 0, %s6, %s4
  $region1: #{discriminator_s_forward.7} parent=0
    #allocation2 [shape = 'u8[512]{0}', space=vmem, size = 0x400, scoped, tag = 'input window, operand 2, single buffered']
    #allocation3 [shape = 's32[2]{0}', space=sflag, size = 0x8, scoped, tag = 'scoped memory for discriminator_s_forward.7']
    %8 = vsyncpa [#allocation3], 0
    loop: start=0, step=1, limit=4
    $region2: #{discriminator_s_forward.7} parent=1 // loop_pre_header
      _
    $region3: #{discriminator_s_forward.7} parent=1 // loop_header
      %s10 = sphi 0, %s14
      %p11 = scmp.ge.s32.totalorder %s10, 4
      %s20 = sphi 0, %s22
      %s23 = sphi 0, %s20
      %s24 = sphi 0, %s23
      %s40 = sphi 0, %s24
      %s44 = sphi 0, %s44
      %s46 = sphi 0, %s44
      %s47 = sphi 0, %s46
      %s61 = sphi 0, %s47
      %s65 = sphi 0, %s65
      %s67 = sphi 0, %s65
      %s68 = sphi 0, %s67
      %s82 = sphi 0, %s68
      %s88 = sphi 0, %s90
      %s91 = sphi 0, %s88
      %s92 = sphi 0, %s91
      %s108 = sphi 0, %s92
    $region4: #{discriminator_s_forward.7} parent=1 // loop_header_branch
      %13 = sbr.rel (%p11) target = $region8
    $region5: #{discriminator_s_forward.7} parent=1 // loop_body
      %s15 = ssub.s32 %s10, 1
      %s16 = ssub.s32 %s10, 2
      %s17 = sadd.s32 %s10, 1
      %s18 = ssub.s32 %s10, %s17
      %p19 = scmp.eq.s32.totalorder %s18, 0
      %s21 = sadd.s32 %s20, 1
      %s22 = scalar_select %p19, %s20, %s21
      %p25 = pneg %p19
      %p26 = scmp.eq.s32.totalorder %s10, 1
      %p27 = por %p25, %p26
      %p28 = scmp.ne.s32.totalorder %s20, %s23
      %p29 = scmp.eq.s32.totalorder %s10, 0
      %p30 = por %p28, %p29
      %p31 = scmp.ne.s32.totalorder %s20, %s23
      %p32 = scmp.eq.s32.totalorder %s15, 1
      %p33 = por %p31, %p32
      %p34 = scmp.ne.s32.totalorder %s23, %s24
      %p35 = scmp.eq.s32.totalorder %s15, 0
      %p36 = por %p34, %p35
      %p37 = scmp.ne.s32.totalorder %s23, %s24
      %p38 = scmp.eq.s32.totalorder %s16, 1
      %p39 = por %p37, %p38
      %p41 = scmp.ne.s32.totalorder %s24, %s40
      %p42 = scmp.eq.s32.totalorder %s16, 0
      %p43 = por %p41, %p42
      %s45 = sadd.s32 %s44, 1
      %p48 = scmp.eq.s32.totalorder %s10, 1
      %p49 = scmp.ne.s32.totalorder %s44, %s46
      %p50 = scmp.eq.s32.totalorder %s10, 0
      %p51 = por %p49, %p50
      %p52 = scmp.ne.s32.totalorder %s44, %s46
      %p53 = scmp.eq.s32.totalorder %s15, 1
      %p54 = por %p52, %p53
      %p55 = scmp.ne.s32.totalorder %s46, %s47
      %p56 = scmp.eq.s32.totalorder %s15, 0
      %p57 = por %p55, %p56
      %p58 = scmp.ne.s32.totalorder %s46, %s47
      %p59 = scmp.eq.s32.totalorder %s16, 1
      %p60 = por %p58, %p59
      %p62 = scmp.ne.s32.totalorder %s47, %s61
      %p63 = scmp.eq.s32.totalorder %s16, 0
      %p64 = por %p62, %p63
      %s66 = sadd.s32 %s65, 1
      %p69 = scmp.eq.s32.totalorder %s10, 1
      %p70 = scmp.ne.s32.totalorder %s65, %s67
      %p71 = scmp.eq.s32.totalorder %s10, 0
      %p72 = por %p70, %p71
      %p73 = scmp.ne.s32.totalorder %s65, %s67
      %p74 = scmp.eq.s32.totalorder %s15, 1
      %p75 = por %p73, %p74
      %p76 = scmp.ne.s32.totalorder %s67, %s68
      %p77 = scmp.eq.s32.totalorder %s15, 0
      %p78 = por %p76, %p77
      %p79 = scmp.ne.s32.totalorder %s67, %s68
      %p80 = scmp.eq.s32.totalorder %s16, 1
      %p81 = por %p79, %p80
      %p83 = scmp.ne.s32.totalorder %s68, %s82
      %p84 = scmp.eq.s32.totalorder %s16, 0
      %p85 = por %p83, %p84
      %s86 = ssub.s32 %s10, %s17
      %p87 = scmp.eq.s32.totalorder %s86, 0
      %s89 = sadd.s32 %s88, 1
      %s90 = scalar_select %p87, %s88, %s89
      %p93 = pneg %p87
      %p94 = scmp.eq.s32.totalorder %s10, 1
      %p95 = por %p93, %p94
      %p96 = scmp.ne.s32.totalorder %s88, %s91
      %p97 = scmp.eq.s32.totalorder %s10, 0
      %p98 = por %p96, %p97
      %p99 = scmp.ne.s32.totalorder %s88, %s91
      %p100 = scmp.eq.s32.totalorder %s15, 1
      %p101 = por %p99, %p100
      %p102 = scmp.ne.s32.totalorder %s91, %s92
      %p103 = scmp.eq.s32.totalorder %s15, 0
      %p104 = por %p102, %p103
      %p105 = scmp.ne.s32.totalorder %s91, %s92
      %p106 = scmp.eq.s32.totalorder %s16, 1
      %p107 = por %p105, %p106
      %p109 = scmp.ne.s32.totalorder %s92, %s108
      %p110 = scmp.eq.s32.totalorder %s16, 0
      %p111 = por %p109, %p110
      %p112 = scmp.le.s32.totalorder 1, %s10
      %p113 = scmp.lt.s32.totalorder %s10, 3
      %p114 = pnand %p112, %p113
      %p115 = pneg %p114
      // Predicated region
      $region9: #{discriminator_s_forward.7} parent=5 // pred_check
        _
      $region10: #{discriminator_s_forward.7} parent=5 // pred_check_branch
        %117 = sbr.rel (%p114) target = $region12
      $region11: #{discriminator_s_forward.7} parent=5 // pred_region
        %s118 = ssub.s32 %s10, 1
        // Predicated region
        $region13: #{discriminator_s_forward.7} parent=11 // pred_check
          %p119 = pneg %p57
        $region14: #{discriminator_s_forward.7} parent=11 // pred_check_branch
          %121 = sbr.rel (%p119) target = $region16
        $region15: #{discriminator_s_forward.7} parent=11 // pred_region
          _
        $region16: #{discriminator_s_forward.7} parent=11 // pred_fallthru
          _
        // Predicated region
        $region17: #{discriminator_s_forward.7} parent=11 // pred_check
          %p122 = pneg %p78
        $region18: #{discriminator_s_forward.7} parent=11 // pred_check_branch
          %124 = sbr.rel (%p122) target = $region20
        $region19: #{discriminator_s_forward.7} parent=11 // pred_region
          %s126 = ssub.s32 16, 16
          %127 = vsyncadd [#allocation3], %s126
          %s129 = sshll.u32 [#allocation2], 4
          %s130 = int_to_ptr.vmem [resolvable:$true] %s129
          %132 = dma.hbm_to_vmem [thread:$0]  %s2, 16, %s130, [#allocation3]
        $region20: #{discriminator_s_forward.7} parent=11 // pred_fallthru
          _
      $region12: #{discriminator_s_forward.7} parent=5 // pred_fallthru
        _
      %p133 = scmp.lt.s32.totalorder %s10, 2
      // Predicated region
      $region21: #{discriminator_s_forward.7} parent=5 // pred_check
        %p134 = pneg %p133
      $region22: #{discriminator_s_forward.7} parent=5 // pred_check_branch
        %136 = sbr.rel (%p134) target = $region24
      $region23: #{discriminator_s_forward.7} parent=5 // pred_region
        // Predicated region
        $region25: #{discriminator_s_forward.7} parent=23 // pred_check
          %p137 = pneg %p30
        $region26: #{discriminator_s_forward.7} parent=23 // pred_check_branch
          %139 = sbr.rel (%p137) target = $region28
        $region27: #{discriminator_s_forward.7} parent=23 // pred_region
          %p140 = scmp.lt.s32.totalorder %s10, 1
          %s141 = scalar_select %p140, %s10, 1
          %s142 = smul.addr %s141, 32
          %s143 = smul.addr %s142, 8
          %s144 = scalar_lea.vmem %s0, %s143
        $region28: #{discriminator_s_forward.7} parent=23 // pred_fallthru
          _
      $region24: #{discriminator_s_forward.7} parent=5 // pred_fallthru
        _
      %p145 = scmp.le.s32.totalorder 1, %s10
      %p146 = scmp.lt.s32.totalorder %s10, 3
      %p147 = pnand %p145, %p146
      %p148 = pneg %p147
      // Predicated region
      $region29: #{discriminator_s_forward.7} parent=5 // pred_check
        _
      $region30: #{discriminator_s_forward.7} parent=5 // pred_check_branch
        %150 = sbr.rel (%p147) target = $region32
      $region31: #{discriminator_s_forward.7} parent=5 // pred_region
        %s151 = ssub.s32 %s10, 1
        // Predicated region
        $region33: #{discriminator_s_forward.7} parent=31 // pred_check
          %p152 = pneg %p78
        $region34: #{discriminator_s_forward.7} parent=31 // pred_check_branch
          %154 = sbr.rel (%p152) target = $region36
        $region35: #{discriminator_s_forward.7} parent=31 // pred_region
          %155 = dma.done [#allocation3], 16
        $region36: #{discriminator_s_forward.7} parent=31 // pred_fallthru
          _
        %p156 = scmp.lt.s32.totalorder %s15, 1
        %s157 = scalar_select %p156, %s15, 1
        %s158 = smul.addr %s157, 32
        %s159 = smul.addr %s158, 8
        %s160 = scalar_lea.vmem %s0, %s159
        %p161 = pneg %p36
        %p162 = pneg %p33
        %p163 = pneg %p57
        %p164 = pneg %p54
        %p165 = pneg %p78
        %p166 = pneg %p75
        %p167 = pneg %p104
        %p168 = pneg %p101
        %p169 = scmp.lt.s32.totalorder %s15, 1
        %s170 = scalar_select %p169, %s15, 1
        %s171 = smul.addr %s170, 32
        %s172 = smul.addr %s171, 8
        %s173 = scalar_lea.vmem %s3, %s172
        %p174 = scmp.lt.s32.totalorder %s15, 1
        %s175 = scalar_select %p174, %s15, 1
        %s176 = smul.addr %s175, 32
        %s177 = smul.addr %s176, 8
        %s178 = scalar_lea.vmem %s0, %s177
        %p179 = scmp.lt.s32.totalorder %s15, 1
        %s180 = scalar_select %p179, %s15, 1
        %s181 = smul.addr %s180, 32
        %s182 = smul.addr %s181, 8
        %s183 = scalar_lea.vmem %s3, %s182
        %v184 = vld [vmem:[%s178] sm:$0xff]
        %v185 = vld [vmem:[%s178 + $0x8] sm:$0xff]
        %v186 = vld [vmem:[%s178 + $0x10] sm:$0xff]
        %v187 = vld [vmem:[%s178 + $0x18] sm:$0xff]
        %v188 = vld [vmem:[%s178 + $0x20] sm:$0xff]
        %v189 = vld [vmem:[%s178 + $0x28] sm:$0xff]
        %v190 = vld [vmem:[%s178 + $0x30] sm:$0xff]
        %v191 = vld [vmem:[%s178 + $0x38] sm:$0xff]
        %v192 = vld [vmem:[%s178 + $0x40] sm:$0xff]
        %v193 = vld [vmem:[%s178 + $0x48] sm:$0xff]
        %v194 = vld [vmem:[%s178 + $0x50] sm:$0xff]
        %v195 = vld [vmem:[%s178 + $0x58] sm:$0xff]
        %v196 = vld [vmem:[%s178 + $0x60] sm:$0xff]
        %v197 = vld [vmem:[%s178 + $0x68] sm:$0xff]
        %v198 = vld [vmem:[%s178 + $0x70] sm:$0xff]
        %v199 = vld [vmem:[%s178 + $0x78] sm:$0xff]
        %v200 = vld [vmem:[%s178 + $0x80] sm:$0xff]
        %v201 = vld [vmem:[%s178 + $0x88] sm:$0xff]
        %v202 = vld [vmem:[%s178 + $0x90] sm:$0xff]
        %v203 = vld [vmem:[%s178 + $0x98] sm:$0xff]
        %v204 = vld [vmem:[%s178 + $0xa0] sm:$0xff]
        %v205 = vld [vmem:[%s178 + $0xa8] sm:$0xff]
        %v206 = vld [vmem:[%s178 + $0xb0] sm:$0xff]
        %v207 = vld [vmem:[%s178 + $0xb8] sm:$0xff]
        %v208 = vld [vmem:[%s178 + $0xc0] sm:$0xff]
        %v209 = vld [vmem:[%s178 + $0xc8] sm:$0xff]
        %v210 = vld [vmem:[%s178 + $0xd0] sm:$0xff]
        %v211 = vld [vmem:[%s178 + $0xd8] sm:$0xff]
        %v212 = vld [vmem:[%s178 + $0xe0] sm:$0xff]
        %v213 = vld [vmem:[%s178 + $0xe8] sm:$0xff]
        %v214 = vld [vmem:[%s178 + $0xf0] sm:$0xff]
        %v215 = vld [vmem:[%s178 + $0xf8] sm:$0xff]
        %v216 = vld [vmem:[%s1] sm:$0xff]
        %v217 = vld [vmem:[%s1 + $0x8] sm:$0x7f]
        %v218 = vld [vmem:[#allocation2] sm:$0x1]
        %v220 = vlaneseq
        %v221 = vshrl.u32 %v220, 7
        %v222 = vsub.s32 0, %v221
        %v223 = vrot.slane %v218, %v222
        %vm225 = vcmask 121856
        %v227 = vsel %vm225, %v184, 0
        %v230 = vsel %vm225, %v185, 0
        %v233 = vsel %vm225, %v186, 0
        %v236 = vsel %vm225, %v187, 0
        %v239 = vsel %vm225, %v188, 0
        %v242 = vsel %vm225, %v189, 0
        %v245 = vsel %vm225, %v190, 0
        %v248 = vsel %vm225, %v191, 0
        %v251 = vsel %vm225, %v192, 0
        %v254 = vsel %vm225, %v193, 0
        %v257 = vsel %vm225, %v194, 0
        %v260 = vsel %vm225, %v195, 0
        %v263 = vsel %vm225, %v196, 0
        %v266 = vsel %vm225, %v197, 0
        %v269 = vsel %vm225, %v198, 0
        %v272 = vsel %vm225, %v199, 0
        %v275 = vsel %vm225, %v200, 0
        %v278 = vsel %vm225, %v201, 0
        %v281 = vsel %vm225, %v202, 0
        %v284 = vsel %vm225, %v203, 0
        %v287 = vsel %vm225, %v204, 0
        %v290 = vsel %vm225, %v205, 0
        %v293 = vsel %vm225, %v206, 0
        %v296 = vsel %vm225, %v207, 0
        %v299 = vsel %vm225, %v208, 0
        %v302 = vsel %vm225, %v209, 0
        %v305 = vsel %vm225, %v210, 0
        %v308 = vsel %vm225, %v211, 0
        %v311 = vsel %vm225, %v212, 0
        %v314 = vsel %vm225, %v213, 0
        %v317 = vsel %vm225, %v214, 0
        %v320 = vsel %vm225, %v215, 0
        %vm322 = vcmask 1046528
        %v324 = vsel %vm322, %v217, 0
        %326 = vmatprep.subr.mxu0 0.0
        %327 = vmatpush1.msra.mxu0 0.0
        %328 = vmatprep.subr.mxu0 0.0
        %329 = vmatpush1.msra.mxu0 0.0
        %330 = vmatprep.subr.mxu0 0.0
        %331 = vmatpush1.msra.mxu0 0.0
        %332 = vmatprep.subr.mxu0 0.0
        %333 = vmatpush1.msra.mxu0 0.0
        %334 = vmatprep.subr.mxu0 0.0
        %335 = vmatpush1.msra.mxu0 0.0
        %336 = vmatprep.subr.mxu0 0.0
        %337 = vmatpush1.msra.mxu0 0.0
        %338 = vmatprep.subr.mxu0 0.0
        %339 = vmatpush1.msra.mxu0 0.0
        %340 = vmatprep.subr.mxu0 0.0
        %341 = vmatpush1.msra.mxu0 0.0
        %342 = vmatprep.subr.mxu0 0.0
        %343 = vmatpush1.msra.mxu0 0.0
        %344 = vmatprep.subr.mxu0 0.0
        %345 = vmatpush1.msra.mxu0 0.0
        %346 = vmatprep.subr.mxu0 0.0
        %347 = vmatpush1.msra.mxu0 0.0
        %348 = vmatprep.subr.mxu0 0.0
        %349 = vmatpush1.msra.mxu0 0.0
        %350 = vmatprep.subr.mxu0 0.0
        %351 = vmatpush1.msra.mxu0 0.0
        %352 = vmatprep.subr.mxu0 0.0
        %353 = vmatpush1.msra.mxu0 0.0
        %354 = vmatprep.subr.mxu0 0.0
        %355 = vmatpush1.msra.mxu0 %v324
        %356 = vmatprep.subr.mxu0 0.0
        %357 = vmatpush1.msra.mxu0 %v216
        %358 = vmatprep.subr.mxu0 0.0
        %359 = vmatpush2.msra.mxu0 0.0
        %360 = vmatprep.subr.mxu0 0.0
        %361 = vmatpush2.msra.mxu0 0.0
        %362 = vmatprep.subr.mxu0 0.0
        %363 = vmatpush2.msra.mxu0 0.0
        %364 = vmatprep.subr.mxu0 0.0
        %365 = vmatpush2.msra.mxu0 0.0
        %366 = vmatprep.subr.mxu0 0.0
        %367 = vmatpush2.msra.mxu0 0.0
        %368 = vmatprep.subr.mxu0 0.0
        %369 = vmatpush2.msra.mxu0 0.0
        %370 = vmatprep.subr.mxu0 0.0
        %371 = vmatpush2.msra.mxu0 0.0
        %372 = vmatprep.subr.mxu0 0.0
        %373 = vmatpush2.msra.mxu0 0.0
        %374 = vmatprep.subr.mxu0 0.0
        %375 = vmatpush2.msra.mxu0 0.0
        %376 = vmatprep.subr.mxu0 0.0
        %377 = vmatpush2.msra.mxu0 0.0
        %378 = vmatprep.subr.mxu0 0.0
        %379 = vmatpush2.msra.mxu0 0.0
        %380 = vmatprep.subr.mxu0 0.0
        %381 = vmatpush2.msra.mxu0 0.0
        %382 = vmatprep.subr.mxu0 0.0
        %383 = vmatpush2.msra.mxu0 0.0
        %384 = vmatprep.subr.mxu0 0.0
        %385 = vmatpush2.msra.mxu0 0.0
        %386 = vmatprep.subr.mxu0 0.0
        %387 = vmatpush2.msra.mxu0 0.0
        %388 = vmatprep.subr.mxu0 0.0
        %389 = vmatpush2.msra.mxu0 0.0
        %390 = vmatprep.mubr.f32.mxu0 0.0
        %391 = vmatmul.mubr.f32.gmra.mxu0 %v227
        %v392 = vpop.f32.mrf.mxu0
        %v393 = vadd.f32 %v223, %v392
        %v394 = vpop.f32.mrf.mxu0
        %395 = vmatprep.mubr.f32.mxu0 0.0
        %396 = vmatmul.mubr.f32.gmra.mxu0 %v230
        %v397 = vpop.f32.mrf.mxu0
        %v398 = vadd.f32 %v223, %v397
        %v399 = vpop.f32.mrf.mxu0
        %400 = vmatprep.mubr.f32.mxu0 0.0
        %401 = vmatmul.mubr.f32.gmra.mxu0 %v233
        %v402 = vpop.f32.mrf.mxu0
        %v403 = vadd.f32 %v223, %v402
        %v404 = vpop.f32.mrf.mxu0
        %405 = vmatprep.mubr.f32.mxu0 0.0
        %406 = vmatmul.mubr.f32.gmra.mxu0 %v236
        %v407 = vpop.f32.mrf.mxu0
        %v408 = vadd.f32 %v223, %v407
        %v409 = vpop.f32.mrf.mxu0
        %410 = vmatprep.mubr.f32.mxu0 0.0
        %411 = vmatmul.mubr.f32.gmra.mxu0 %v239
        %v412 = vpop.f32.mrf.mxu0
        %v413 = vadd.f32 %v223, %v412
        %v414 = vpop.f32.mrf.mxu0
        %415 = vmatprep.mubr.f32.mxu0 0.0
        %416 = vmatmul.mubr.f32.gmra.mxu0 %v242
        %v417 = vpop.f32.mrf.mxu0
        %v418 = vadd.f32 %v223, %v417
        %v419 = vpop.f32.mrf.mxu0
        %420 = vmatprep.mubr.f32.mxu0 0.0
        %421 = vmatmul.mubr.f32.gmra.mxu0 %v245
        %v422 = vpop.f32.mrf.mxu0
        %v423 = vadd.f32 %v223, %v422
        %v424 = vpop.f32.mrf.mxu0
        %425 = vmatprep.mubr.f32.mxu0 0.0
        %426 = vmatmul.mubr.f32.gmra.mxu0 %v248
        %v427 = vpop.f32.mrf.mxu0
        %v428 = vadd.f32 %v223, %v427
        %v429 = vpop.f32.mrf.mxu0
        %430 = vmatprep.mubr.f32.mxu0 0.0
        %431 = vmatmul.mubr.f32.gmra.mxu0 %v251
        %v432 = vpop.f32.mrf.mxu0
        %v433 = vadd.f32 %v223, %v432
        %v434 = vpop.f32.mrf.mxu0
        %435 = vmatprep.mubr.f32.mxu0 0.0
        %436 = vmatmul.mubr.f32.gmra.mxu0 %v254
        %v437 = vpop.f32.mrf.mxu0
        %v438 = vadd.f32 %v223, %v437
        %v439 = vpop.f32.mrf.mxu0
        %440 = vmatprep.mubr.f32.mxu0 0.0
        %441 = vmatmul.mubr.f32.gmra.mxu0 %v257
        %v442 = vpop.f32.mrf.mxu0
        %v443 = vadd.f32 %v223, %v442
        %v444 = vpop.f32.mrf.mxu0
        %445 = vmatprep.mubr.f32.mxu0 0.0
        %446 = vmatmul.mubr.f32.gmra.mxu0 %v260
        %v447 = vpop.f32.mrf.mxu0
        %v448 = vadd.f32 %v223, %v447
        %v449 = vpop.f32.mrf.mxu0
        %450 = vmatprep.mubr.f32.mxu0 0.0
        %451 = vmatmul.mubr.f32.gmra.mxu0 %v263
        %v452 = vpop.f32.mrf.mxu0
        %v453 = vadd.f32 %v223, %v452
        %v454 = vpop.f32.mrf.mxu0
        %455 = vmatprep.mubr.f32.mxu0 0.0
        %456 = vmatmul.mubr.f32.gmra.mxu0 %v266
        %v457 = vpop.f32.mrf.mxu0
        %v458 = vadd.f32 %v223, %v457
        %v459 = vpop.f32.mrf.mxu0
        %460 = vmatprep.mubr.f32.mxu0 0.0
        %461 = vmatmul.mubr.f32.gmra.mxu0 %v269
        %v462 = vpop.f32.mrf.mxu0
        %v463 = vadd.f32 %v223, %v462
        %v464 = vpop.f32.mrf.mxu0
        %465 = vmatprep.mubr.f32.mxu0 0.0
        %466 = vmatmul.mubr.f32.gmra.mxu0 %v272
        %v467 = vpop.f32.mrf.mxu0
        %v468 = vadd.f32 %v223, %v467
        %v469 = vpop.f32.mrf.mxu0
        %470 = vmatprep.mubr.f32.mxu0 0.0
        %471 = vmatmul.mubr.f32.gmra.mxu0 %v275
        %v472 = vpop.f32.mrf.mxu0
        %v473 = vadd.f32 %v223, %v472
        %v474 = vpop.f32.mrf.mxu0
        %475 = vmatprep.mubr.f32.mxu0 0.0
        %476 = vmatmul.mubr.f32.gmra.mxu0 %v278
        %v477 = vpop.f32.mrf.mxu0
        %v478 = vadd.f32 %v223, %v477
        %v479 = vpop.f32.mrf.mxu0
        %480 = vmatprep.mubr.f32.mxu0 0.0
        %481 = vmatmul.mubr.f32.gmra.mxu0 %v281
        %v482 = vpop.f32.mrf.mxu0
        %v483 = vadd.f32 %v223, %v482
        %v484 = vpop.f32.mrf.mxu0
        %485 = vmatprep.mubr.f32.mxu0 0.0
        %486 = vmatmul.mubr.f32.gmra.mxu0 %v284
        %v487 = vpop.f32.mrf.mxu0
        %v488 = vadd.f32 %v223, %v487
        %v489 = vpop.f32.mrf.mxu0
        %490 = vmatprep.mubr.f32.mxu0 0.0
        %491 = vmatmul.mubr.f32.gmra.mxu0 %v287
        %v492 = vpop.f32.mrf.mxu0
        %v493 = vadd.f32 %v223, %v492
        %v494 = vpop.f32.mrf.mxu0
        %495 = vmatprep.mubr.f32.mxu0 0.0
        %496 = vmatmul.mubr.f32.gmra.mxu0 %v290
        %v497 = vpop.f32.mrf.mxu0
        %v498 = vadd.f32 %v223, %v497
        %v499 = vpop.f32.mrf.mxu0
        %500 = vmatprep.mubr.f32.mxu0 0.0
        %501 = vmatmul.mubr.f32.gmra.mxu0 %v293
        %v502 = vpop.f32.mrf.mxu0
        %v503 = vadd.f32 %v223, %v502
        %v504 = vpop.f32.mrf.mxu0
        %505 = vmatprep.mubr.f32.mxu0 0.0
        %506 = vmatmul.mubr.f32.gmra.mxu0 %v296
        %v507 = vpop.f32.mrf.mxu0
        %v508 = vadd.f32 %v223, %v507
        %v509 = vpop.f32.mrf.mxu0
        %510 = vmatprep.mubr.f32.mxu0 0.0
        %511 = vmatmul.mubr.f32.gmra.mxu0 %v299
        %v512 = vpop.f32.mrf.mxu0
        %v513 = vadd.f32 %v223, %v512
        %v514 = vpop.f32.mrf.mxu0
        %515 = vmatprep.mubr.f32.mxu0 0.0
        %516 = vmatmul.mubr.f32.gmra.mxu0 %v302
        %v517 = vpop.f32.mrf.mxu0
        %v518 = vadd.f32 %v223, %v517
        %v519 = vpop.f32.mrf.mxu0
        %520 = vmatprep.mubr.f32.mxu0 0.0
        %521 = vmatmul.mubr.f32.gmra.mxu0 %v305
        %v522 = vpop.f32.mrf.mxu0
        %v523 = vadd.f32 %v223, %v522
        %v524 = vpop.f32.mrf.mxu0
        %525 = vmatprep.mubr.f32.mxu0 0.0
        %526 = vmatmul.mubr.f32.gmra.mxu0 %v308
        %v527 = vpop.f32.mrf.mxu0
        %v528 = vadd.f32 %v223, %v527
        %v529 = vpop.f32.mrf.mxu0
        %530 = vmatprep.mubr.f32.mxu0 0.0
        %531 = vmatmul.mubr.f32.gmra.mxu0 %v311
        %v532 = vpop.f32.mrf.mxu0
        %v533 = vadd.f32 %v223, %v532
        %v534 = vpop.f32.mrf.mxu0
        %535 = vmatprep.mubr.f32.mxu0 0.0
        %536 = vmatmul.mubr.f32.gmra.mxu0 %v314
        %v537 = vpop.f32.mrf.mxu0
        %v538 = vadd.f32 %v223, %v537
        %v539 = vpop.f32.mrf.mxu0
        %540 = vmatprep.mubr.f32.mxu0 0.0
        %541 = vmatmul.mubr.f32.gmra.mxu0 %v317
        %v542 = vpop.f32.mrf.mxu0
        %v543 = vadd.f32 %v223, %v542
        %v544 = vpop.f32.mrf.mxu0
        %545 = vmatprep.mubr.f32.mxu0 0.0
        %546 = vmatmul.mubr.f32.gmra.mxu0 %v320
        %v547 = vpop.f32.mrf.mxu0
        %v548 = vadd.f32 %v223, %v547
        %v549 = vpop.f32.mrf.mxu0
        %550 = vdwg.mxu0
        %vm551 = vcmp.ge.f32.partialorder %v393, 0.0
        %vm552 = vcmp.ge.f32.partialorder %v398, 0.0
        %vm553 = vcmp.ge.f32.partialorder %v403, 0.0
        %vm554 = vcmp.ge.f32.partialorder %v408, 0.0
        %vm555 = vcmp.ge.f32.partialorder %v413, 0.0
        %vm556 = vcmp.ge.f32.partialorder %v418, 0.0
        %vm557 = vcmp.ge.f32.partialorder %v423, 0.0
        %vm558 = vcmp.ge.f32.partialorder %v428, 0.0
        %vm559 = vcmp.ge.f32.partialorder %v433, 0.0
        %vm560 = vcmp.ge.f32.partialorder %v438, 0.0
        %vm561 = vcmp.ge.f32.partialorder %v443, 0.0
        %vm562 = vcmp.ge.f32.partialorder %v448, 0.0
        %vm563 = vcmp.ge.f32.partialorder %v453, 0.0
        %vm564 = vcmp.ge.f32.partialorder %v458, 0.0
        %vm565 = vcmp.ge.f32.partialorder %v463, 0.0
        %vm566 = vcmp.ge.f32.partialorder %v468, 0.0
        %vm567 = vcmp.ge.f32.partialorder %v473, 0.0
        %vm568 = vcmp.ge.f32.partialorder %v478, 0.0
        %vm569 = vcmp.ge.f32.partialorder %v483, 0.0
        %vm570 = vcmp.ge.f32.partialorder %v488, 0.0
        %vm571 = vcmp.ge.f32.partialorder %v493, 0.0
        %vm572 = vcmp.ge.f32.partialorder %v498, 0.0
        %vm573 = vcmp.ge.f32.partialorder %v503, 0.0
        %vm574 = vcmp.ge.f32.partialorder %v508, 0.0
        %vm575 = vcmp.ge.f32.partialorder %v513, 0.0
        %vm576 = vcmp.ge.f32.partialorder %v518, 0.0
        %vm577 = vcmp.ge.f32.partialorder %v523, 0.0
        %vm578 = vcmp.ge.f32.partialorder %v528, 0.0
        %vm579 = vcmp.ge.f32.partialorder %v533, 0.0
        %vm580 = vcmp.ge.f32.partialorder %v538, 0.0
        %vm581 = vcmp.ge.f32.partialorder %v543, 0.0
        %vm582 = vcmp.ge.f32.partialorder %v548, 0.0
        %v583 = vmul.f32 %v393, 0.1
        %v584 = vmul.f32 %v398, 0.1
        %v585 = vmul.f32 %v403, 0.1
        %v586 = vmul.f32 %v408, 0.1
        %v587 = vmul.f32 %v413, 0.1
        %v588 = vmul.f32 %v418, 0.1
        %v589 = vmul.f32 %v423, 0.1
        %v590 = vmul.f32 %v428, 0.1
        %v591 = vmul.f32 %v433, 0.1
        %v592 = vmul.f32 %v438, 0.1
        %v593 = vmul.f32 %v443, 0.1
        %v594 = vmul.f32 %v448, 0.1
        %v595 = vmul.f32 %v453, 0.1
        %v596 = vmul.f32 %v458, 0.1
        %v597 = vmul.f32 %v463, 0.1
        %v598 = vmul.f32 %v468, 0.1
        %v599 = vmul.f32 %v473, 0.1
        %v600 = vmul.f32 %v478, 0.1
        %v601 = vmul.f32 %v483, 0.1
        %v602 = vmul.f32 %v488, 0.1
        %v603 = vmul.f32 %v493, 0.1
        %v604 = vmul.f32 %v498, 0.1
        %v605 = vmul.f32 %v503, 0.1
        %v606 = vmul.f32 %v508, 0.1
        %v607 = vmul.f32 %v513, 0.1
        %v608 = vmul.f32 %v518, 0.1
        %v609 = vmul.f32 %v523, 0.1
        %v610 = vmul.f32 %v528, 0.1
        %v611 = vmul.f32 %v533, 0.1
        %v612 = vmul.f32 %v538, 0.1
        %v613 = vmul.f32 %v543, 0.1
        %v614 = vmul.f32 %v548, 0.1
        %v615 = vsel %vm551, %v393, %v583
        %v616 = vsel %vm552, %v398, %v584
        %v617 = vsel %vm553, %v403, %v585
        %v618 = vsel %vm554, %v408, %v586
        %v619 = vsel %vm555, %v413, %v587
        %v620 = vsel %vm556, %v418, %v588
        %v621 = vsel %vm557, %v423, %v589
        %v622 = vsel %vm558, %v428, %v590
        %v623 = vsel %vm559, %v433, %v591
        %v624 = vsel %vm560, %v438, %v592
        %v625 = vsel %vm561, %v443, %v593
        %v626 = vsel %vm562, %v448, %v594
        %v627 = vsel %vm563, %v453, %v595
        %v628 = vsel %vm564, %v458, %v596
        %v629 = vsel %vm565, %v463, %v597
        %v630 = vsel %vm566, %v468, %v598
        %v631 = vsel %vm567, %v473, %v599
        %v632 = vsel %vm568, %v478, %v600
        %v633 = vsel %vm569, %v483, %v601
        %v634 = vsel %vm570, %v488, %v602
        %v635 = vsel %vm571, %v493, %v603
        %v636 = vsel %vm572, %v498, %v604
        %v637 = vsel %vm573, %v503, %v605
        %v638 = vsel %vm574, %v508, %v606
        %v639 = vsel %vm575, %v513, %v607
        %v640 = vsel %vm576, %v518, %v608
        %v641 = vsel %vm577, %v523, %v609
        %v642 = vsel %vm578, %v528, %v610
        %v643 = vsel %vm579, %v533, %v611
        %v644 = vsel %vm580, %v538, %v612
        %v645 = vsel %vm581, %v543, %v613
        %v646 = vsel %vm582, %v548, %v614
        %vm647 = vcmask 130048
        %648 = vst.msk [vmem:[%s183] sm:$0xff] %vm647, %v615
        %649 = vst.msk [vmem:[%s183 + $0x8] sm:$0xff] %vm647, %v616
        %650 = vst.msk [vmem:[%s183 + $0x10] sm:$0xff] %vm647, %v617
        %651 = vst.msk [vmem:[%s183 + $0x18] sm:$0xff] %vm647, %v618
        %652 = vst.msk [vmem:[%s183 + $0x20] sm:$0xff] %vm647, %v619
        %653 = vst.msk [vmem:[%s183 + $0x28] sm:$0xff] %vm647, %v620
        %654 = vst.msk [vmem:[%s183 + $0x30] sm:$0xff] %vm647, %v621
        %655 = vst.msk [vmem:[%s183 + $0x38] sm:$0xff] %vm647, %v622
        %656 = vst.msk [vmem:[%s183 + $0x40] sm:$0xff] %vm647, %v623
        %657 = vst.msk [vmem:[%s183 + $0x48] sm:$0xff] %vm647, %v624
        %658 = vst.msk [vmem:[%s183 + $0x50] sm:$0xff] %vm647, %v625
        %659 = vst.msk [vmem:[%s183 + $0x58] sm:$0xff] %vm647, %v626
        %660 = vst.msk [vmem:[%s183 + $0x60] sm:$0xff] %vm647, %v627
        %661 = vst.msk [vmem:[%s183 + $0x68] sm:$0xff] %vm647, %v628
        %662 = vst.msk [vmem:[%s183 + $0x70] sm:$0xff] %vm647, %v629
        %663 = vst.msk [vmem:[%s183 + $0x78] sm:$0xff] %vm647, %v630
        %664 = vst.msk [vmem:[%s183 + $0x80] sm:$0xff] %vm647, %v631
        %665 = vst.msk [vmem:[%s183 + $0x88] sm:$0xff] %vm647, %v632
        %666 = vst.msk [vmem:[%s183 + $0x90] sm:$0xff] %vm647, %v633
        %667 = vst.msk [vmem:[%s183 + $0x98] sm:$0xff] %vm647, %v634
        %668 = vst.msk [vmem:[%s183 + $0xa0] sm:$0xff] %vm647, %v635
        %669 = vst.msk [vmem:[%s183 + $0xa8] sm:$0xff] %vm647, %v636
        %670 = vst.msk [vmem:[%s183 + $0xb0] sm:$0xff] %vm647, %v637
        %671 = vst.msk [vmem:[%s183 + $0xb8] sm:$0xff] %vm647, %v638
        %672 = vst.msk [vmem:[%s183 + $0xc0] sm:$0xff] %vm647, %v639
        %673 = vst.msk [vmem:[%s183 + $0xc8] sm:$0xff] %vm647, %v640
        %674 = vst.msk [vmem:[%s183 + $0xd0] sm:$0xff] %vm647, %v641
        %675 = vst.msk [vmem:[%s183 + $0xd8] sm:$0xff] %vm647, %v642
        %676 = vst.msk [vmem:[%s183 + $0xe0] sm:$0xff] %vm647, %v643
        %677 = vst.msk [vmem:[%s183 + $0xe8] sm:$0xff] %vm647, %v644
        %678 = vst.msk [vmem:[%s183 + $0xf0] sm:$0xff] %vm647, %v645
        %679 = vst.msk [vmem:[%s183 + $0xf8] sm:$0xff] %vm647, %v646
        %p680 = scmp.lt.s32.totalorder %s15, 1
        %s681 = scalar_select %p680, %s15, 1
        %s682 = smul.addr %s681, 32
        %s683 = smul.addr %s682, 8
        %s684 = scalar_lea.vmem %s3, %s683
        // Predicated region
        $region37: #{discriminator_s_forward.7} parent=31 // pred_check
          %p685 = pneg %p101
        $region38: #{discriminator_s_forward.7} parent=31 // pred_check_branch
          %687 = sbr.rel (%p685) target = $region40
        $region39: #{discriminator_s_forward.7} parent=31 // pred_region
          _
        $region40: #{discriminator_s_forward.7} parent=31 // pred_fallthru
          _
      $region32: #{discriminator_s_forward.7} parent=5 // pred_fallthru
        _
      %p688 = scmp.le.s32.totalorder 2, %s10
      // Predicated region
      $region41: #{discriminator_s_forward.7} parent=5 // pred_check
        %p689 = pneg %p688
      $region42: #{discriminator_s_forward.7} parent=5 // pred_check_branch
        %691 = sbr.rel (%p689) target = $region44
      $region43: #{discriminator_s_forward.7} parent=5 // pred_region
        %s692 = ssub.s32 %s10, 2
        // Predicated region
        $region45: #{discriminator_s_forward.7} parent=43 // pred_check
          %p693 = pneg %p107
        $region46: #{discriminator_s_forward.7} parent=43 // pred_check_branch
          %695 = sbr.rel (%p693) target = $region48
        $region47: #{discriminator_s_forward.7} parent=43 // pred_region
          %p696 = scmp.lt.s32.totalorder %s16, 1
          %s697 = scalar_select %p696, %s16, 1
          %s698 = smul.addr %s697, 32
          %s699 = smul.addr %s698, 8
          %s700 = scalar_lea.vmem %s3, %s699
        $region48: #{discriminator_s_forward.7} parent=43 // pred_fallthru
          _
      $region44: #{discriminator_s_forward.7} parent=5 // pred_fallthru
        _
    $region6: #{discriminator_s_forward.7} parent=1 // loop_footer
      %s14 = sadd.s32 1, %s10
    $region7: #{discriminator_s_forward.7} parent=1 // loop_footer_branch
      %9 = sbr.rel target = $region3
    $region8: #{discriminator_s_forward.7} parent=1 // loop_exit
      _
    %701 = vsyncpa [#allocation3], 1
    %s702 = scalar_lea.sflag [#allocation3], 1
    %703 = vsyncpa %s702, 1

// kernel: discriminator_s_forward.8
$region0: #{discriminator_s_forward.8}
  #allocation0 [shape = 'u32[]', space=smem, size = 0x4, offset = 0x4, fixed_abs, tag = 'smem constant byte address 0x4 - core index']
  #allocation1 [shape = 'u32[144,128]{1,0:T(1,128)}', space=vmem, size = 0x12000, scoped, tag = 'internal scratch']
  %s0 = inlined_call_operand.vmem [shape: f32[2,64,656], index: 0, kind: input, shape index: {}]
  %s1 = inlined_call_operand.vmem [shape: f32[656,64], index: 1, kind: input, shape index: {}]
  %s2 = inlined_call_operand.vmem [shape: f32[1,64], index: 2, kind: input, shape index: {}]
  %s3 = inlined_call_operand.vmem [shape: f32[2,64,64], index: 3, kind: output, shape index: {}]
  %s4 = sld [smem:[#allocation0]]
  $region45: #{discriminator_s_forward.8} parent=0
    _
  %s6 = ssub.s32 1, %s4
  %s7 = scalar_select 0, %s6, %s4
  loop: start=0, step=1, limit=4
  $region2: #{discriminator_s_forward.8} parent=0 // loop_pre_header
    _
  $region3: #{discriminator_s_forward.8} parent=0 // loop_header
    %s9 = sphi 0, %s13
    %p10 = scmp.ge.s32.totalorder %s9, 4
    %s19 = sphi 0, %s21
    %s22 = sphi 0, %s19
    %s23 = sphi 0, %s22
    %s39 = sphi 0, %s23
    %s43 = sphi 0, %s43
    %s45 = sphi 0, %s43
    %s46 = sphi 0, %s45
    %s60 = sphi 0, %s46
    %s64 = sphi 0, %s64
    %s66 = sphi 0, %s64
    %s67 = sphi 0, %s66
    %s81 = sphi 0, %s67
    %s87 = sphi 0, %s89
    %s90 = sphi 0, %s87
    %s91 = sphi 0, %s90
    %s107 = sphi 0, %s91
  $region4: #{discriminator_s_forward.8} parent=0 // loop_header_branch
    %12 = sbr.rel (%p10) target = $region8
  $region5: #{discriminator_s_forward.8} parent=0 // loop_body
    %s14 = ssub.s32 %s9, 1
    %s15 = ssub.s32 %s9, 2
    %s16 = sadd.s32 %s9, 1
    %s17 = ssub.s32 %s9, %s16
    %p18 = scmp.eq.s32.totalorder %s17, 0
    %s20 = sadd.s32 %s19, 1
    %s21 = scalar_select %p18, %s19, %s20
    %p24 = pneg %p18
    %p25 = scmp.eq.s32.totalorder %s9, 1
    %p26 = por %p24, %p25
    %p27 = scmp.ne.s32.totalorder %s19, %s22
    %p28 = scmp.eq.s32.totalorder %s9, 0
    %p29 = por %p27, %p28
    %p30 = scmp.ne.s32.totalorder %s19, %s22
    %p31 = scmp.eq.s32.totalorder %s14, 1
    %p32 = por %p30, %p31
    %p33 = scmp.ne.s32.totalorder %s22, %s23
    %p34 = scmp.eq.s32.totalorder %s14, 0
    %p35 = por %p33, %p34
    %p36 = scmp.ne.s32.totalorder %s22, %s23
    %p37 = scmp.eq.s32.totalorder %s15, 1
    %p38 = por %p36, %p37
    %p40 = scmp.ne.s32.totalorder %s23, %s39
    %p41 = scmp.eq.s32.totalorder %s15, 0
    %p42 = por %p40, %p41
    %s44 = sadd.s32 %s43, 1
    %p47 = scmp.eq.s32.totalorder %s9, 1
    %p48 = scmp.ne.s32.totalorder %s43, %s45
    %p49 = scmp.eq.s32.totalorder %s9, 0
    %p50 = por %p48, %p49
    %p51 = scmp.ne.s32.totalorder %s43, %s45
    %p52 = scmp.eq.s32.totalorder %s14, 1
    %p53 = por %p51, %p52
    %p54 = scmp.ne.s32.totalorder %s45, %s46
    %p55 = scmp.eq.s32.totalorder %s14, 0
    %p56 = por %p54, %p55
    %p57 = scmp.ne.s32.totalorder %s45, %s46
    %p58 = scmp.eq.s32.totalorder %s15, 1
    %p59 = por %p57, %p58
    %p61 = scmp.ne.s32.totalorder %s46, %s60
    %p62 = scmp.eq.s32.totalorder %s15, 0
    %p63 = por %p61, %p62
    %s65 = sadd.s32 %s64, 1
    %p68 = scmp.eq.s32.totalorder %s9, 1
    %p69 = scmp.ne.s32.totalorder %s64, %s66
    %p70 = scmp.eq.s32.totalorder %s9, 0
    %p71 = por %p69, %p70
    %p72 = scmp.ne.s32.totalorder %s64, %s66
    %p73 = scmp.eq.s32.totalorder %s14, 1
    %p74 = por %p72, %p73
    %p75 = scmp.ne.s32.totalorder %s66, %s67
    %p76 = scmp.eq.s32.totalorder %s14, 0
    %p77 = por %p75, %p76
    %p78 = scmp.ne.s32.totalorder %s66, %s67
    %p79 = scmp.eq.s32.totalorder %s15, 1
    %p80 = por %p78, %p79
    %p82 = scmp.ne.s32.totalorder %s67, %s81
    %p83 = scmp.eq.s32.totalorder %s15, 0
    %p84 = por %p82, %p83
    %s85 = ssub.s32 %s9, %s16
    %p86 = scmp.eq.s32.totalorder %s85, 0
    %s88 = sadd.s32 %s87, 1
    %s89 = scalar_select %p86, %s87, %s88
    %p92 = pneg %p86
    %p93 = scmp.eq.s32.totalorder %s9, 1
    %p94 = por %p92, %p93
    %p95 = scmp.ne.s32.totalorder %s87, %s90
    %p96 = scmp.eq.s32.totalorder %s9, 0
    %p97 = por %p95, %p96
    %p98 = scmp.ne.s32.totalorder %s87, %s90
    %p99 = scmp.eq.s32.totalorder %s14, 1
    %p100 = por %p98, %p99
    %p101 = scmp.ne.s32.totalorder %s90, %s91
    %p102 = scmp.eq.s32.totalorder %s14, 0
    %p103 = por %p101, %p102
    %p104 = scmp.ne.s32.totalorder %s90, %s91
    %p105 = scmp.eq.s32.totalorder %s15, 1
    %p106 = por %p104, %p105
    %p108 = scmp.ne.s32.totalorder %s91, %s107
    %p109 = scmp.eq.s32.totalorder %s15, 0
    %p110 = por %p108, %p109
    %p111 = scmp.le.s32.totalorder 1, %s9
    %p112 = scmp.lt.s32.totalorder %s9, 3
    %p113 = pnand %p111, %p112
    %p114 = pneg %p113
    // Predicated region
    $region9: #{discriminator_s_forward.8} parent=5 // pred_check
      _
    $region10: #{discriminator_s_forward.8} parent=5 // pred_check_branch
      %116 = sbr.rel (%p113) target = $region12
    $region11: #{discriminator_s_forward.8} parent=5 // pred_region
      %s117 = ssub.s32 %s9, 1
      // Predicated region
      $region13: #{discriminator_s_forward.8} parent=11 // pred_check
        %p118 = pneg %p56
      $region14: #{discriminator_s_forward.8} parent=11 // pred_check_branch
        %120 = sbr.rel (%p118) target = $region16
      $region15: #{discriminator_s_forward.8} parent=11 // pred_region
        _
      $region16: #{discriminator_s_forward.8} parent=11 // pred_fallthru
        _
      // Predicated region
      $region17: #{discriminator_s_forward.8} parent=11 // pred_check
        %p121 = pneg %p77
      $region18: #{discriminator_s_forward.8} parent=11 // pred_check_branch
        %123 = sbr.rel (%p121) target = $region20
      $region19: #{discriminator_s_forward.8} parent=11 // pred_region
        _
      $region20: #{discriminator_s_forward.8} parent=11 // pred_fallthru
        _
    $region12: #{discriminator_s_forward.8} parent=5 // pred_fallthru
      _
    %p124 = scmp.lt.s32.totalorder %s9, 2
    // Predicated region
    $region21: #{discriminator_s_forward.8} parent=5 // pred_check
      %p125 = pneg %p124
    $region22: #{discriminator_s_forward.8} parent=5 // pred_check_branch
      %127 = sbr.rel (%p125) target = $region24
    $region23: #{discriminator_s_forward.8} parent=5 // pred_region
      // Predicated region
      $region25: #{discriminator_s_forward.8} parent=23 // pred_check
        %p128 = pneg %p29
      $region26: #{discriminator_s_forward.8} parent=23 // pred_check_branch
        %130 = sbr.rel (%p128) target = $region28
      $region27: #{discriminator_s_forward.8} parent=23 // pred_region
        %p131 = scmp.lt.s32.totalorder %s9, 1
        %s132 = scalar_select %p131, %s9, 1
        %s133 = smul.addr %s132, 48
        %s134 = smul.addr %s133, 8
        %s135 = scalar_lea.vmem %s0, %s134
      $region28: #{discriminator_s_forward.8} parent=23 // pred_fallthru
        _
    $region24: #{discriminator_s_forward.8} parent=5 // pred_fallthru
      _
    %p136 = scmp.le.s32.totalorder 1, %s9
    %p137 = scmp.lt.s32.totalorder %s9, 3
    %p138 = pnand %p136, %p137
    %p139 = pneg %p138
    // Predicated region
    $region29: #{discriminator_s_forward.8} parent=5 // pred_check
      _
    $region30: #{discriminator_s_forward.8} parent=5 // pred_check_branch
      %141 = sbr.rel (%p138) target = $region32
    $region31: #{discriminator_s_forward.8} parent=5 // pred_region
      %s142 = ssub.s32 %s9, 1
      %p143 = scmp.lt.s32.totalorder %s14, 1
      %s144 = scalar_select %p143, %s14, 1
      %s145 = smul.addr %s144, 48
      %s146 = smul.addr %s145, 8
      %s147 = scalar_lea.vmem %s0, %s146
      %p148 = pneg %p35
      %p149 = pneg %p32
      %p150 = pneg %p56
      %p151 = pneg %p53
      %p152 = pneg %p77
      %p153 = pneg %p74
      %p154 = pneg %p103
      %p155 = pneg %p100
      %p156 = scmp.lt.s32.totalorder %s14, 1
      %s157 = scalar_select %p156, %s14, 1
      %s158 = smul.addr %s157, 8
      %s159 = smul.addr %s158, 8
      %s160 = scalar_lea.vmem %s3, %s159
      %p161 = scmp.lt.s32.totalorder %s14, 1
      %s162 = scalar_select %p161, %s14, 1
      %s163 = smul.addr %s162, 48
      %s164 = smul.addr %s163, 8
      %s165 = scalar_lea.vmem %s0, %s164
      %p166 = scmp.lt.s32.totalorder %s14, 1
      %s167 = scalar_select %p166, %s14, 1
      %s168 = smul.addr %s167, 8
      %s169 = smul.addr %s168, 8
      %s170 = scalar_lea.vmem %s3, %s169
      %v171 = vld [vmem:[%s165] sm:$0xff]
      %v172 = vld [vmem:[%s165 + $0x8] sm:$0xff]
      %v173 = vld [vmem:[%s165 + $0x10] sm:$0xff]
      %v174 = vld [vmem:[%s165 + $0x18] sm:$0xff]
      %v175 = vld [vmem:[%s165 + $0x20] sm:$0xff]
      %v176 = vld [vmem:[%s165 + $0x28] sm:$0xff]
      %v177 = vld [vmem:[%s165 + $0x30] sm:$0xff]
      %v178 = vld [vmem:[%s165 + $0x38] sm:$0xff]
      %v179 = vld [vmem:[%s165 + $0x40] sm:$0xff]
      %v180 = vld [vmem:[%s165 + $0x48] sm:$0xff]
      %v181 = vld [vmem:[%s165 + $0x50] sm:$0xff]
      %v182 = vld [vmem:[%s165 + $0x58] sm:$0xff]
      %v183 = vld [vmem:[%s165 + $0x60] sm:$0xff]
      %v184 = vld [vmem:[%s165 + $0x68] sm:$0xff]
      %v185 = vld [vmem:[%s165 + $0x70] sm:$0xff]
      %v186 = vld [vmem:[%s165 + $0x78] sm:$0xff]
      %v187 = vld [vmem:[%s165 + $0x80] sm:$0xff]
      %v188 = vld [vmem:[%s165 + $0x88] sm:$0xff]
      %v189 = vld [vmem:[%s165 + $0x90] sm:$0xff]
      %v190 = vld [vmem:[%s165 + $0x98] sm:$0xff]
      %v191 = vld [vmem:[%s165 + $0xa0] sm:$0xff]
      %v192 = vld [vmem:[%s165 + $0xa8] sm:$0xff]
      %v193 = vld [vmem:[%s165 + $0xb0] sm:$0xff]
      %v194 = vld [vmem:[%s165 + $0xb8] sm:$0xff]
      %v195 = vld [vmem:[%s165 + $0xc0] sm:$0xff]
      %v196 = vld [vmem:[%s165 + $0xc8] sm:$0xff]
      %v197 = vld [vmem:[%s165 + $0xd0] sm:$0xff]
      %v198 = vld [vmem:[%s165 + $0xd8] sm:$0xff]
      %v199 = vld [vmem:[%s165 + $0xe0] sm:$0xff]
      %v200 = vld [vmem:[%s165 + $0xe8] sm:$0xff]
      %v201 = vld [vmem:[%s165 + $0xf0] sm:$0xff]
      %v202 = vld [vmem:[%s165 + $0xf8] sm:$0xff]
      %v203 = vld [vmem:[%s165 + $0x100] sm:$0xff]
      %v204 = vld [vmem:[%s165 + $0x108] sm:$0xff]
      %v205 = vld [vmem:[%s165 + $0x110] sm:$0xff]
      %v206 = vld [vmem:[%s165 + $0x118] sm:$0xff]
      %v207 = vld [vmem:[%s165 + $0x120] sm:$0xff]
      %v208 = vld [vmem:[%s165 + $0x128] sm:$0xff]
      %v209 = vld [vmem:[%s165 + $0x130] sm:$0xff]
      %v210 = vld [vmem:[%s165 + $0x138] sm:$0xff]
      %v211 = vld [vmem:[%s165 + $0x140] sm:$0xff]
      %v212 = vld [vmem:[%s165 + $0x148] sm:$0xff]
      %v213 = vld [vmem:[%s165 + $0x150] sm:$0xff]
      %v214 = vld [vmem:[%s165 + $0x158] sm:$0xff]
      %v215 = vld [vmem:[%s165 + $0x160] sm:$0xff]
      %v216 = vld [vmem:[%s165 + $0x168] sm:$0xff]
      %v217 = vld [vmem:[%s165 + $0x170] sm:$0xff]
      %v218 = vld [vmem:[%s165 + $0x178] sm:$0xff]
      %v219 = vld [vmem:[%s1] sm:$0xff]
      %v220 = vld [vmem:[%s1 + $0x8] sm:$0xff]
      %v221 = vld [vmem:[%s1 + $0x10] sm:$0xff]
      %v222 = vld [vmem:[%s1 + $0x18] sm:$0xff]
      %v223 = vld [vmem:[%s1 + $0x20] sm:$0xff]
      %v224 = vld [vmem:[%s1 + $0x28] sm:$0xff]
      %v225 = vld [vmem:[%s1 + $0x30] sm:$0xff]
      %v226 = vld [vmem:[%s1 + $0x38] sm:$0xff]
      %v227 = vld [vmem:[%s1 + $0x40] sm:$0xff]
      %v228 = vld [vmem:[%s1 + $0x48] sm:$0xff]
      %v229 = vld [vmem:[%s1 + $0x50] sm:$0xff]
      %v230 = vld [vmem:[%s1 + $0x58] sm:$0xff]
      %v231 = vld [vmem:[%s1 + $0x60] sm:$0xff]
      %v232 = vld [vmem:[%s1 + $0x68] sm:$0xff]
      %v233 = vld [vmem:[%s1 + $0x70] sm:$0xff]
      %v234 = vld [vmem:[%s1 + $0x78] sm:$0xff]
      %v235 = vld [vmem:[%s1 + $0x80] sm:$0xff]
      %v236 = vld [vmem:[%s1 + $0x88] sm:$0xff]
      %v237 = vld [vmem:[%s1 + $0x90] sm:$0xff]
      %v238 = vld [vmem:[%s1 + $0x98] sm:$0xff]
      %v239 = vld [vmem:[%s1 + $0xa0] sm:$0xff]
      %v240 = vld [vmem:[%s1 + $0xa8] sm:$0xff]
      %v241 = vld [vmem:[%s1 + $0xb0] sm:$0xff]
      %v242 = vld [vmem:[%s1 + $0xb8] sm:$0xff]
      %v243 = vld [vmem:[%s1 + $0xc0] sm:$0xff]
      %v244 = vld [vmem:[%s1 + $0xc8] sm:$0xff]
      %v245 = vld [vmem:[%s1 + $0xd0] sm:$0xff]
      %v246 = vld [vmem:[%s1 + $0xd8] sm:$0xff]
      %v247 = vld [vmem:[%s1 + $0xe0] sm:$0xff]
      %v248 = vld [vmem:[%s1 + $0xe8] sm:$0xff]
      %v249 = vld [vmem:[%s1 + $0xf0] sm:$0xff]
      %v250 = vld [vmem:[%s1 + $0xf8] sm:$0xff]
      %v251 = vld [vmem:[%s1 + $0x100] sm:$0xff]
      %v252 = vld [vmem:[%s1 + $0x108] sm:$0xff]
      %v253 = vld [vmem:[%s1 + $0x110] sm:$0xff]
      %v254 = vld [vmem:[%s1 + $0x118] sm:$0xff]
      %v255 = vld [vmem:[%s1 + $0x120] sm:$0xff]
      %v256 = vld [vmem:[%s1 + $0x128] sm:$0xff]
      %v257 = vld [vmem:[%s1 + $0x130] sm:$0xff]
      %v258 = vld [vmem:[%s1 + $0x138] sm:$0xff]
      %v259 = vld [vmem:[%s1 + $0x140] sm:$0xff]
      %v260 = vld [vmem:[%s1 + $0x148] sm:$0xff]
      %v261 = vld [vmem:[%s1 + $0x150] sm:$0xff]
      %v262 = vld [vmem:[%s1 + $0x158] sm:$0xff]
      %v263 = vld [vmem:[%s1 + $0x160] sm:$0xff]
      %v264 = vld [vmem:[%s1 + $0x168] sm:$0xff]
      %v265 = vld [vmem:[%s1 + $0x170] sm:$0xff]
      %v266 = vld [vmem:[%s1 + $0x178] sm:$0xff]
      %v267 = vld [vmem:[%s1 + $0x180] sm:$0xff]
      %v268 = vld [vmem:[%s1 + $0x188] sm:$0xff]
      %v269 = vld [vmem:[%s1 + $0x190] sm:$0xff]
      %v270 = vld [vmem:[%s1 + $0x198] sm:$0xff]
      %v271 = vld [vmem:[%s1 + $0x1a0] sm:$0xff]
      %v272 = vld [vmem:[%s1 + $0x1a8] sm:$0xff]
      %v273 = vld [vmem:[%s1 + $0x1b0] sm:$0xff]
      %v274 = vld [vmem:[%s1 + $0x1b8] sm:$0xff]
      %v275 = vld [vmem:[%s1 + $0x1c0] sm:$0xff]
      %v276 = vld [vmem:[%s1 + $0x1c8] sm:$0xff]
      %v277 = vld [vmem:[%s1 + $0x1d0] sm:$0xff]
      %v278 = vld [vmem:[%s1 + $0x1d8] sm:$0xff]
      %v279 = vld [vmem:[%s1 + $0x1e0] sm:$0xff]
      %v280 = vld [vmem:[%s1 + $0x1e8] sm:$0xff]
      %v281 = vld [vmem:[%s1 + $0x1f0] sm:$0xff]
      %v282 = vld [vmem:[%s1 + $0x1f8] sm:$0xff]
      %v283 = vld [vmem:[%s1 + $0x200] sm:$0xff]
      %v284 = vld [vmem:[%s1 + $0x208] sm:$0xff]
      %v285 = vld [vmem:[%s1 + $0x210] sm:$0xff]
      %v286 = vld [vmem:[%s1 + $0x218] sm:$0xff]
      %v287 = vld [vmem:[%s1 + $0x220] sm:$0xff]
      %v288 = vld [vmem:[%s1 + $0x228] sm:$0xff]
      %v289 = vld [vmem:[%s1 + $0x230] sm:$0xff]
      %v290 = vld [vmem:[%s1 + $0x238] sm:$0xff]
      %v291 = vld [vmem:[%s1 + $0x240] sm:$0xff]
      %v292 = vld [vmem:[%s1 + $0x248] sm:$0xff]
      %v293 = vld [vmem:[%s1 + $0x250] sm:$0xff]
      %v294 = vld [vmem:[%s1 + $0x258] sm:$0xff]
      %v295 = vld [vmem:[%s1 + $0x260] sm:$0xff]
      %v296 = vld [vmem:[%s1 + $0x268] sm:$0xff]
      %v297 = vld [vmem:[%s1 + $0x270] sm:$0xff]
      %v298 = vld [vmem:[%s1 + $0x278] sm:$0xff]
      %v299 = vld [vmem:[%s1 + $0x280] sm:$0xff]
      %v300 = vld [vmem:[%s1 + $0x288] sm:$0xff]
      %v301 = vld [vmem:[%s2] sm:$0x1]
      %v303 = vlaneseq
      %v304 = vshrl.u32 %v303, 7
      %v305 = vsub.s32 0, %v304
      %v306 = vrot.slane %v301, %v305
      %vm308 = vcmask 130048
      %v310 = vsel %vm308, %v176, 0
      %v313 = vsel %vm308, %v182, 0
      %v316 = vsel %vm308, %v188, 0
      %v319 = vsel %vm308, %v194, 0
      %v322 = vsel %vm308, %v200, 0
      %v325 = vsel %vm308, %v206, 0
      %v328 = vsel %vm308, %v212, 0
      %v331 = vsel %vm308, %v218, 0
      %333 = vmatprep.subr.mxu0 0.0
      %334 = vmatpush1.msra.mxu0 %v234
      %335 = vmatprep.subr.mxu0 0.0
      %336 = vmatpush1.msra.mxu0 %v233
      %337 = vmatprep.subr.mxu0 0.0
      %338 = vmatpush1.msra.mxu0 %v232
      %339 = vmatprep.subr.mxu0 0.0
      %340 = vmatpush1.msra.mxu0 %v231
      %341 = vmatprep.subr.mxu0 0.0
      %342 = vmatpush1.msra.mxu0 %v230
      %343 = vmatprep.subr.mxu0 0.0
      %344 = vmatpush1.msra.mxu0 %v229
      %345 = vmatprep.subr.mxu0 0.0
      %346 = vmatpush1.msra.mxu0 %v228
      %347 = vmatprep.subr.mxu0 0.0
      %348 = vmatpush1.msra.mxu0 %v227
      %349 = vmatprep.subr.mxu0 0.0
      %350 = vmatpush1.msra.mxu0 %v226
      %351 = vmatprep.subr.mxu0 0.0
      %352 = vmatpush1.msra.mxu0 %v225
      %353 = vmatprep.subr.mxu0 0.0
      %354 = vmatpush1.msra.mxu0 %v224
      %355 = vmatprep.subr.mxu0 0.0
      %356 = vmatpush1.msra.mxu0 %v223
      %357 = vmatprep.subr.mxu0 0.0
      %358 = vmatpush1.msra.mxu0 %v222
      %359 = vmatprep.subr.mxu0 0.0
      %360 = vmatpush1.msra.mxu0 %v221
      %361 = vmatprep.subr.mxu0 0.0
      %362 = vmatpush1.msra.mxu0 %v220
      %363 = vmatprep.subr.mxu0 0.0
      %364 = vmatpush1.msra.mxu0 %v219
      %365 = vmatprep.subr.mxu0 0.0
      %366 = vmatpush2.msra.mxu0 %v250
      %367 = vmatprep.subr.mxu0 0.0
      %368 = vmatpush2.msra.mxu0 %v249
      %369 = vmatprep.subr.mxu0 0.0
      %370 = vmatpush2.msra.mxu0 %v248
      %371 = vmatprep.subr.mxu0 0.0
      %372 = vmatpush2.msra.mxu0 %v247
      %373 = vmatprep.subr.mxu0 0.0
      %374 = vmatpush2.msra.mxu0 %v246
      %375 = vmatprep.subr.mxu0 0.0
      %376 = vmatpush2.msra.mxu0 %v245
      %377 = vmatprep.subr.mxu0 0.0
      %378 = vmatpush2.msra.mxu0 %v244
      %379 = vmatprep.subr.mxu0 0.0
      %380 = vmatpush2.msra.mxu0 %v243
      %381 = vmatprep.subr.mxu0 0.0
      %382 = vmatpush2.msra.mxu0 %v242
      %383 = vmatprep.subr.mxu0 0.0
      %384 = vmatpush2.msra.mxu0 %v241
      %385 = vmatprep.subr.mxu0 0.0
      %386 = vmatpush2.msra.mxu0 %v240
      %387 = vmatprep.subr.mxu0 0.0
      %388 = vmatpush2.msra.mxu0 %v239
      %389 = vmatprep.subr.mxu0 0.0
      %390 = vmatpush2.msra.mxu0 %v238
      %391 = vmatprep.subr.mxu0 0.0
      %392 = vmatpush2.msra.mxu0 %v237
      %393 = vmatprep.subr.mxu0 0.0
      %394 = vmatpush2.msra.mxu0 %v236
      %395 = vmatprep.subr.mxu0 0.0
      %396 = vmatpush2.msra.mxu0 %v235
      %397 = vmatprep.mubr.f32.mxu0 %v172
      %398 = vmatmul.mubr.f32.gmra.mxu0 %v171
      %v399 = vpop.f32.mrf.mxu0
      %v400 = vadd.f32 %v306, %v399
      %v401 = vpop.f32.mrf.mxu0
      %402 = vmatprep.mubr.f32.mxu0 %v178
      %403 = vmatmul.mubr.f32.gmra.mxu0 %v177
      %v404 = vpop.f32.mrf.mxu0
      %v405 = vadd.f32 %v306, %v404
      %v406 = vpop.f32.mrf.mxu0
      %407 = vmatprep.mubr.f32.mxu0 %v184
      %408 = vmatmul.mubr.f32.gmra.mxu0 %v183
      %v409 = vpop.f32.mrf.mxu0
      %v410 = vadd.f32 %v306, %v409
      %v411 = vpop.f32.mrf.mxu0
      %412 = vmatprep.mubr.f32.mxu0 %v190
      %413 = vmatmul.mubr.f32.gmra.mxu0 %v189
      %v414 = vpop.f32.mrf.mxu0
      %v415 = vadd.f32 %v306, %v414
      %v416 = vpop.f32.mrf.mxu0
      %417 = vmatprep.mubr.f32.mxu0 %v196
      %418 = vmatmul.mubr.f32.gmra.mxu0 %v195
      %v419 = vpop.f32.mrf.mxu0
      %v420 = vadd.f32 %v306, %v419
      %v421 = vpop.f32.mrf.mxu0
      %422 = vmatprep.mubr.f32.mxu0 %v202
      %423 = vmatmul.mubr.f32.gmra.mxu0 %v201
      %v424 = vpop.f32.mrf.mxu0
      %v425 = vadd.f32 %v306, %v424
      %v426 = vpop.f32.mrf.mxu0
      %427 = vmatprep.mubr.f32.mxu0 %v208
      %428 = vmatmul.mubr.f32.gmra.mxu0 %v207
      %v429 = vpop.f32.mrf.mxu0
      %v430 = vadd.f32 %v306, %v429
      %v431 = vpop.f32.mrf.mxu0
      %432 = vmatprep.mubr.f32.mxu0 %v214
      %433 = vmatmul.mubr.f32.gmra.mxu0 %v213
      %v434 = vpop.f32.mrf.mxu0
      %v435 = vadd.f32 %v306, %v434
      %v436 = vpop.f32.mrf.mxu0
      %437 = vdwg.mxu0
      %438 = vmatprep.subr.mxu0 0.0
      %439 = vmatpush1.msra.mxu0 %v266
      %440 = vmatprep.subr.mxu0 0.0
      %441 = vmatpush1.msra.mxu0 %v265
      %442 = vmatprep.subr.mxu0 0.0
      %443 = vmatpush1.msra.mxu0 %v264
      %444 = vmatprep.subr.mxu0 0.0
      %445 = vmatpush1.msra.mxu0 %v263
      %446 = vmatprep.subr.mxu0 0.0
      %447 = vmatpush1.msra.mxu0 %v262
      %448 = vmatprep.subr.mxu0 0.0
      %449 = vmatpush1.msra.mxu0 %v261
      %450 = vmatprep.subr.mxu0 0.0
      %451 = vmatpush1.msra.mxu0 %v260
      %452 = vmatprep.subr.mxu0 0.0
      %453 = vmatpush1.msra.mxu0 %v259
      %454 = vmatprep.subr.mxu0 0.0
      %455 = vmatpush1.msra.mxu0 %v258
      %456 = vmatprep.subr.mxu0 0.0
      %457 = vmatpush1.msra.mxu0 %v257
      %458 = vmatprep.subr.mxu0 0.0
      %459 = vmatpush1.msra.mxu0 %v256
      %460 = vmatprep.subr.mxu0 0.0
      %461 = vmatpush1.msra.mxu0 %v255
      %462 = vmatprep.subr.mxu0 0.0
      %463 = vmatpush1.msra.mxu0 %v254
      %464 = vmatprep.subr.mxu0 0.0
      %465 = vmatpush1.msra.mxu0 %v253
      %466 = vmatprep.subr.mxu0 0.0
      %467 = vmatpush1.msra.mxu0 %v252
      %468 = vmatprep.subr.mxu0 0.0
      %469 = vmatpush1.msra.mxu0 %v251
      %470 = vmatprep.subr.mxu0 0.0
      %471 = vmatpush2.msra.mxu0 %v282
      %472 = vmatprep.subr.mxu0 0.0
      %473 = vmatpush2.msra.mxu0 %v281
      %474 = vmatprep.subr.mxu0 0.0
      %475 = vmatpush2.msra.mxu0 %v280
      %476 = vmatprep.subr.mxu0 0.0
      %477 = vmatpush2.msra.mxu0 %v279
      %478 = vmatprep.subr.mxu0 0.0
      %479 = vmatpush2.msra.mxu0 %v278
      %480 = vmatprep.subr.mxu0 0.0
      %481 = vmatpush2.msra.mxu0 %v277
      %482 = vmatprep.subr.mxu0 0.0
      %483 = vmatpush2.msra.mxu0 %v276
      %484 = vmatprep.subr.mxu0 0.0
      %485 = vmatpush2.msra.mxu0 %v275
      %486 = vmatprep.subr.mxu0 0.0
      %487 = vmatpush2.msra.mxu0 %v274
      %488 = vmatprep.subr.mxu0 0.0
      %489 = vmatpush2.msra.mxu0 %v273
      %490 = vmatprep.subr.mxu0 0.0
      %491 = vmatpush2.msra.mxu0 %v272
      %492 = vmatprep.subr.mxu0 0.0
      %493 = vmatpush2.msra.mxu0 %v271
      %494 = vmatprep.subr.mxu0 0.0
      %495 = vmatpush2.msra.mxu0 %v270
      %496 = vmatprep.subr.mxu0 0.0
      %497 = vmatpush2.msra.mxu0 %v269
      %498 = vmatprep.subr.mxu0 0.0
      %499 = vmatpush2.msra.mxu0 %v268
      %500 = vmatprep.subr.mxu0 0.0
      %501 = vmatpush2.msra.mxu0 %v267
      %502 = vmatprep.mubr.f32.mxu0 %v174
      %503 = vmatmul.mubr.f32.gmra.mxu0 %v173
      %v504 = vpop.f32.mrf.mxu0
      %v505 = vadd.f32 %v400, %v504
      %v506 = vpop.f32.mrf.mxu0
      %507 = vmatprep.mubr.f32.mxu0 %v180
      %508 = vmatmul.mubr.f32.gmra.mxu0 %v179
      %v509 = vpop.f32.mrf.mxu0
      %v510 = vadd.f32 %v405, %v509
      %v511 = vpop.f32.mrf.mxu0
      %512 = vmatprep.mubr.f32.mxu0 %v186
      %513 = vmatmul.mubr.f32.gmra.mxu0 %v185
      %v514 = vpop.f32.mrf.mxu0
      %v515 = vadd.f32 %v410, %v514
      %v516 = vpop.f32.mrf.mxu0
      %517 = vmatprep.mubr.f32.mxu0 %v192
      %518 = vmatmul.mubr.f32.gmra.mxu0 %v191
      %v519 = vpop.f32.mrf.mxu0
      %v520 = vadd.f32 %v415, %v519
      %v521 = vpop.f32.mrf.mxu0
      %522 = vmatprep.mubr.f32.mxu0 %v198
      %523 = vmatmul.mubr.f32.gmra.mxu0 %v197
      %v524 = vpop.f32.mrf.mxu0
      %v525 = vadd.f32 %v420, %v524
      %v526 = vpop.f32.mrf.mxu0
      %527 = vmatprep.mubr.f32.mxu0 %v204
      %528 = vmatmul.mubr.f32.gmra.mxu0 %v203
      %v529 = vpop.f32.mrf.mxu0
      %v530 = vadd.f32 %v425, %v529
      %v531 = vpop.f32.mrf.mxu0
      %532 = vmatprep.mubr.f32.mxu0 %v210
      %533 = vmatmul.mubr.f32.gmra.mxu0 %v209
      %v534 = vpop.f32.mrf.mxu0
      %v535 = vadd.f32 %v430, %v534
      %v536 = vpop.f32.mrf.mxu0
      %537 = vmatprep.mubr.f32.mxu0 %v216
      %538 = vmatmul.mubr.f32.gmra.mxu0 %v215
      %v539 = vpop.f32.mrf.mxu0
      %v540 = vadd.f32 %v435, %v539
      %v541 = vpop.f32.mrf.mxu0
      %542 = vdwg.mxu0
      %543 = vmatprep.subr.mxu0 0.0
      %544 = vmatpush1.msra.mxu0 %v298
      %545 = vmatprep.subr.mxu0 0.0
      %546 = vmatpush1.msra.mxu0 %v297
      %547 = vmatprep.subr.mxu0 0.0
      %548 = vmatpush1.msra.mxu0 %v296
      %549 = vmatprep.subr.mxu0 0.0
      %550 = vmatpush1.msra.mxu0 %v295
      %551 = vmatprep.subr.mxu0 0.0
      %552 = vmatpush1.msra.mxu0 %v294
      %553 = vmatprep.subr.mxu0 0.0
      %554 = vmatpush1.msra.mxu0 %v293
      %555 = vmatprep.subr.mxu0 0.0
      %556 = vmatpush1.msra.mxu0 %v292
      %557 = vmatprep.subr.mxu0 0.0
      %558 = vmatpush1.msra.mxu0 %v291
      %559 = vmatprep.subr.mxu0 0.0
      %560 = vmatpush1.msra.mxu0 %v290
      %561 = vmatprep.subr.mxu0 0.0
      %562 = vmatpush1.msra.mxu0 %v289
      %563 = vmatprep.subr.mxu0 0.0
      %564 = vmatpush1.msra.mxu0 %v288
      %565 = vmatprep.subr.mxu0 0.0
      %566 = vmatpush1.msra.mxu0 %v287
      %567 = vmatprep.subr.mxu0 0.0
      %568 = vmatpush1.msra.mxu0 %v286
      %569 = vmatprep.subr.mxu0 0.0
      %570 = vmatpush1.msra.mxu0 %v285
      %571 = vmatprep.subr.mxu0 0.0
      %572 = vmatpush1.msra.mxu0 %v284
      %573 = vmatprep.subr.mxu0 0.0
      %574 = vmatpush1.msra.mxu0 %v283
      %575 = vmatprep.subr.mxu0 0.0
      %576 = vmatpush2.msra.mxu0 0.0
      %577 = vmatprep.subr.mxu0 0.0
      %578 = vmatpush2.msra.mxu0 0.0
      %579 = vmatprep.subr.mxu0 0.0
      %580 = vmatpush2.msra.mxu0 0.0
      %581 = vmatprep.subr.mxu0 0.0
      %582 = vmatpush2.msra.mxu0 0.0
      %583 = vmatprep.subr.mxu0 0.0
      %584 = vmatpush2.msra.mxu0 0.0
      %585 = vmatprep.subr.mxu0 0.0
      %586 = vmatpush2.msra.mxu0 0.0
      %587 = vmatprep.subr.mxu0 0.0
      %588 = vmatpush2.msra.mxu0 0.0
      %589 = vmatprep.subr.mxu0 0.0
      %590 = vmatpush2.msra.mxu0 0.0
      %591 = vmatprep.subr.mxu0 0.0
      %592 = vmatpush2.msra.mxu0 0.0
      %593 = vmatprep.subr.mxu0 0.0
      %594 = vmatpush2.msra.mxu0 0.0
      %595 = vmatprep.subr.mxu0 0.0
      %596 = vmatpush2.msra.mxu0 0.0
      %597 = vmatprep.subr.mxu0 0.0
      %598 = vmatpush2.msra.mxu0 0.0
      %599 = vmatprep.subr.mxu0 0.0
      %600 = vmatpush2.msra.mxu0 0.0
      %601 = vmatprep.subr.mxu0 0.0
      %602 = vmatpush2.msra.mxu0 0.0
      %603 = vmatprep.subr.mxu0 0.0
      %604 = vmatpush2.msra.mxu0 %v300
      %605 = vmatprep.subr.mxu0 0.0
      %606 = vmatpush2.msra.mxu0 %v299
      %607 = vmatprep.mubr.f32.mxu0 %v310
      %608 = vmatmul.mubr.f32.gmra.mxu0 %v175
      %v609 = vpop.f32.mrf.mxu0
      %v610 = vadd.f32 %v505, %v609
      %v611 = vpop.f32.mrf.mxu0
      %612 = vmatprep.mubr.f32.mxu0 %v313
      %613 = vmatmul.mubr.f32.gmra.mxu0 %v181
      %v614 = vpop.f32.mrf.mxu0
      %v615 = vadd.f32 %v510, %v614
      %v616 = vpop.f32.mrf.mxu0
      %617 = vmatprep.mubr.f32.mxu0 %v316
      %618 = vmatmul.mubr.f32.gmra.mxu0 %v187
      %v619 = vpop.f32.mrf.mxu0
      %v620 = vadd.f32 %v515, %v619
      %v621 = vpop.f32.mrf.mxu0
      %622 = vmatprep.mubr.f32.mxu0 %v319
      %623 = vmatmul.mubr.f32.gmra.mxu0 %v193
      %v624 = vpop.f32.mrf.mxu0
      %v625 = vadd.f32 %v520, %v624
      %v626 = vpop.f32.mrf.mxu0
      %627 = vmatprep.mubr.f32.mxu0 %v322
      %628 = vmatmul.mubr.f32.gmra.mxu0 %v199
      %v629 = vpop.f32.mrf.mxu0
      %v630 = vadd.f32 %v525, %v629
      %v631 = vpop.f32.mrf.mxu0
      %632 = vmatprep.mubr.f32.mxu0 %v325
      %633 = vmatmul.mubr.f32.gmra.mxu0 %v205
      %v634 = vpop.f32.mrf.mxu0
      %v635 = vadd.f32 %v530, %v634
      %v636 = vpop.f32.mrf.mxu0
      %637 = vmatprep.mubr.f32.mxu0 %v328
      %638 = vmatmul.mubr.f32.gmra.mxu0 %v211
      %v639 = vpop.f32.mrf.mxu0
      %v640 = vadd.f32 %v535, %v639
      %v641 = vpop.f32.mrf.mxu0
      %642 = vmatprep.mubr.f32.mxu0 %v331
      %643 = vmatmul.mubr.f32.gmra.mxu0 %v217
      %v644 = vpop.f32.mrf.mxu0
      %v645 = vadd.f32 %v540, %v644
      %v646 = vpop.f32.mrf.mxu0
      %647 = vdwg.mxu0
      %vm648 = vcmp.ge.f32.partialorder %v610, 0.0
      %vm649 = vcmp.ge.f32.partialorder %v615, 0.0
      %vm650 = vcmp.ge.f32.partialorder %v620, 0.0
      %vm651 = vcmp.ge.f32.partialorder %v625, 0.0
      %vm652 = vcmp.ge.f32.partialorder %v630, 0.0
      %vm653 = vcmp.ge.f32.partialorder %v635, 0.0
      %vm654 = vcmp.ge.f32.partialorder %v640, 0.0
      %vm655 = vcmp.ge.f32.partialorder %v645, 0.0
      %v656 = vmul.f32 %v610, 0.1
      %v657 = vmul.f32 %v615, 0.1
      %v658 = vmul.f32 %v620, 0.1
      %v659 = vmul.f32 %v625, 0.1
      %v660 = vmul.f32 %v630, 0.1
      %v661 = vmul.f32 %v635, 0.1
      %v662 = vmul.f32 %v640, 0.1
      %v663 = vmul.f32 %v645, 0.1
      %v664 = vsel %vm648, %v610, %v656
      %v665 = vsel %vm649, %v615, %v657
      %v666 = vsel %vm650, %v620, %v658
      %v667 = vsel %vm651, %v625, %v659
      %v668 = vsel %vm652, %v630, %v660
      %v669 = vsel %vm653, %v635, %v661
      %v670 = vsel %vm654, %v640, %v662
      %v671 = vsel %vm655, %v645, %v663
      %vm672 = vcmask 523264
      %673 = vst.msk [vmem:[%s170] sm:$0xff] %vm672, %v664
      %674 = vst.msk [vmem:[%s170 + $0x8] sm:$0xff] %vm672, %v665
      %675 = vst.msk [vmem:[%s170 + $0x10] sm:$0xff] %vm672, %v666
      %676 = vst.msk [vmem:[%s170 + $0x18] sm:$0xff] %vm672, %v667
      %677 = vst.msk [vmem:[%s170 + $0x20] sm:$0xff] %vm672, %v668
      %678 = vst.msk [vmem:[%s170 + $0x28] sm:$0xff] %vm672, %v669
      %679 = vst.msk [vmem:[%s170 + $0x30] sm:$0xff] %vm672, %v670
      %680 = vst.msk [vmem:[%s170 + $0x38] sm:$0xff] %vm672, %v671
      %p681 = scmp.lt.s32.totalorder %s14, 1
      %s682 = scalar_select %p681, %s14, 1
      %s683 = smul.addr %s682, 8
      %s684 = smul.addr %s683, 8
      %s685 = scalar_lea.vmem %s3, %s684
      // Predicated region
      $region33: #{discriminator_s_forward.8} parent=31 // pred_check
        %p686 = pneg %p100
      $region34: #{discriminator_s_forward.8} parent=31 // pred_check_branch
        %688 = sbr.rel (%p686) target = $region36
      $region35: #{discriminator_s_forward.8} parent=31 // pred_region
        _
      $region36: #{discriminator_s_forward.8} parent=31 // pred_fallthru
        _
    $region32: #{discriminator_s_forward.8} parent=5 // pred_fallthru
      _
    %p689 = scmp.le.s32.totalorder 2, %s9
    // Predicated region
    $region37: #{discriminator_s_forward.8} parent=5 // pred_check
      %p690 = pneg %p689
    $region38: #{discriminator_s_forward.8} parent=5 // pred_check_branch
      %692 = sbr.rel (%p690) target = $region40
    $region39: #{discriminator_s_forward.8} parent=5 // pred_region
      %s693 = ssub.s32 %s9, 2
      // Predicated region
      $region41: #{discriminator_s_forward.8} parent=39 // pred_check
        %p694 = pneg %p106
      $region42: #{discriminator_s_forward.8} parent=39 // pred_check_branch
        %696 = sbr.rel (%p694) target = $region44
      $region43: #{discriminator_s_forward.8} parent=39 // pred_region
        %p697 = scmp.lt.s32.totalorder %s15, 1
        %s698 = scalar_select %p697, %s15, 1
        %s699 = smul.addr %s698, 8
        %s700 = smul.addr %s699, 8
        %s701 = scalar_lea.vmem %s3, %s700
      $region44: #{discriminator_s_forward.8} parent=39 // pred_fallthru
        _
    $region40: #{discriminator_s_forward.8} parent=5 // pred_fallthru
      _
  $region6: #{discriminator_s_forward.8} parent=0 // loop_footer
    %s13 = sadd.s32 1, %s9
  $region7: #{discriminator_s_forward.8} parent=0 // loop_footer_branch
    %8 = sbr.rel target = $region3
  $region8: #{discriminator_s_forward.8} parent=0 // loop_exit
    _

// kernel: discriminator_s_forward.9
$region0: #{discriminator_s_forward.9}
  #allocation0 [shape = 'u32[]', space=smem, size = 0x4, offset = 0x4, fixed_abs, tag = 'smem constant byte address 0x4 - core index']
  #allocation1 [shape = 'u32[144,128]{1,0:T(1,128)}', space=vmem, size = 0x12000, scoped, tag = 'internal scratch']
  %s0 = inlined_call_operand.vmem [shape: f32[2,16,2624], index: 0, kind: input, shape index: {}]
  %s1 = inlined_call_operand.vmem [shape: f32[2624,256], index: 1, kind: input, shape index: {}]
  %s2 = inlined_call_operand.vmem [shape: f32[1,256], index: 2, kind: input, shape index: {}]
  %s3 = inlined_call_operand.vmem [shape: f32[2,16,256], index: 3, kind: output, shape index: {}]
  %s4 = sld [smem:[#allocation0]]
  $region45: #{discriminator_s_forward.9} parent=0
    _
  %s6 = ssub.s32 1, %s4
  %s7 = scalar_select 0, %s6, %s4
  loop: start=0, step=1, limit=4
  $region2: #{discriminator_s_forward.9} parent=0 // loop_pre_header
    _
  $region3: #{discriminator_s_forward.9} parent=0 // loop_header
    %s9 = sphi 0, %s13
    %p10 = scmp.ge.s32.totalorder %s9, 4
    %s19 = sphi 0, %s21
    %s22 = sphi 0, %s19
    %s23 = sphi 0, %s22
    %s39 = sphi 0, %s23
    %s43 = sphi 0, %s43
    %s45 = sphi 0, %s43
    %s46 = sphi 0, %s45
    %s60 = sphi 0, %s46
    %s64 = sphi 0, %s64
    %s66 = sphi 0, %s64
    %s67 = sphi 0, %s66
    %s81 = sphi 0, %s67
    %s87 = sphi 0, %s89
    %s90 = sphi 0, %s87
    %s91 = sphi 0, %s90
    %s107 = sphi 0, %s91
  $region4: #{discriminator_s_forward.9} parent=0 // loop_header_branch
    %12 = sbr.rel (%p10) target = $region8
  $region5: #{discriminator_s_forward.9} parent=0 // loop_body
    %s14 = ssub.s32 %s9, 1
    %s15 = ssub.s32 %s9, 2
    %s16 = sadd.s32 %s9, 1
    %s17 = ssub.s32 %s9, %s16
    %p18 = scmp.eq.s32.totalorder %s17, 0
    %s20 = sadd.s32 %s19, 1
    %s21 = scalar_select %p18, %s19, %s20
    %p24 = pneg %p18
    %p25 = scmp.eq.s32.totalorder %s9, 1
    %p26 = por %p24, %p25
    %p27 = scmp.ne.s32.totalorder %s19, %s22
    %p28 = scmp.eq.s32.totalorder %s9, 0
    %p29 = por %p27, %p28
    %p30 = scmp.ne.s32.totalorder %s19, %s22
    %p31 = scmp.eq.s32.totalorder %s14, 1
    %p32 = por %p30, %p31
    %p33 = scmp.ne.s32.totalorder %s22, %s23
    %p34 = scmp.eq.s32.totalorder %s14, 0
    %p35 = por %p33, %p34
    %p36 = scmp.ne.s32.totalorder %s22, %s23
    %p37 = scmp.eq.s32.totalorder %s15, 1
    %p38 = por %p36, %p37
    %p40 = scmp.ne.s32.totalorder %s23, %s39
    %p41 = scmp.eq.s32.totalorder %s15, 0
    %p42 = por %p40, %p41
    %s44 = sadd.s32 %s43, 1
    %p47 = scmp.eq.s32.totalorder %s9, 1
    %p48 = scmp.ne.s32.totalorder %s43, %s45
    %p49 = scmp.eq.s32.totalorder %s9, 0
    %p50 = por %p48, %p49
    %p51 = scmp.ne.s32.totalorder %s43, %s45
    %p52 = scmp.eq.s32.totalorder %s14, 1
    %p53 = por %p51, %p52
    %p54 = scmp.ne.s32.totalorder %s45, %s46
    %p55 = scmp.eq.s32.totalorder %s14, 0
    %p56 = por %p54, %p55
    %p57 = scmp.ne.s32.totalorder %s45, %s46
    %p58 = scmp.eq.s32.totalorder %s15, 1
    %p59 = por %p57, %p58
    %p61 = scmp.ne.s32.totalorder %s46, %s60
    %p62 = scmp.eq.s32.totalorder %s15, 0
    %p63 = por %p61, %p62
    %s65 = sadd.s32 %s64, 1
    %p68 = scmp.eq.s32.totalorder %s9, 1
    %p69 = scmp.ne.s32.totalorder %s64, %s66
    %p70 = scmp.eq.s32.totalorder %s9, 0
    %p71 = por %p69, %p70
    %p72 = scmp.ne.s32.totalorder %s64, %s66
    %p73 = scmp.eq.s32.totalorder %s14, 1
    %p74 = por %p72, %p73
    %p75 = scmp.ne.s32.totalorder %s66, %s67
    %p76 = scmp.eq.s32.totalorder %s14, 0
    %p77 = por %p75, %p76
    %p78 = scmp.ne.s32.totalorder %s66, %s67
    %p79 = scmp.eq.s32.totalorder %s15, 1
    %p80 = por %p78, %p79
    %p82 = scmp.ne.s32.totalorder %s67, %s81
    %p83 = scmp.eq.s32.totalorder %s15, 0
    %p84 = por %p82, %p83
    %s85 = ssub.s32 %s9, %s16
    %p86 = scmp.eq.s32.totalorder %s85, 0
    %s88 = sadd.s32 %s87, 1
    %s89 = scalar_select %p86, %s87, %s88
    %p92 = pneg %p86
    %p93 = scmp.eq.s32.totalorder %s9, 1
    %p94 = por %p92, %p93
    %p95 = scmp.ne.s32.totalorder %s87, %s90
    %p96 = scmp.eq.s32.totalorder %s9, 0
    %p97 = por %p95, %p96
    %p98 = scmp.ne.s32.totalorder %s87, %s90
    %p99 = scmp.eq.s32.totalorder %s14, 1
    %p100 = por %p98, %p99
    %p101 = scmp.ne.s32.totalorder %s90, %s91
    %p102 = scmp.eq.s32.totalorder %s14, 0
    %p103 = por %p101, %p102
    %p104 = scmp.ne.s32.totalorder %s90, %s91
    %p105 = scmp.eq.s32.totalorder %s15, 1
    %p106 = por %p104, %p105
    %p108 = scmp.ne.s32.totalorder %s91, %s107
    %p109 = scmp.eq.s32.totalorder %s15, 0
    %p110 = por %p108, %p109
    %p111 = scmp.le.s32.totalorder 1, %s9
    %p112 = scmp.lt.s32.totalorder %s9, 3
    %p113 = pnand %p111, %p112
    %p114 = pneg %p113
    // Predicated region
    $region9: #{discriminator_s_forward.9} parent=5 // pred_check
      _
    $region10: #{discriminator_s_forward.9} parent=5 // pred_check_branch
      %116 = sbr.rel (%p113) target = $region12
    $region11: #{discriminator_s_forward.9} parent=5 // pred_region
      %s117 = ssub.s32 %s9, 1
      // Predicated region
      $region13: #{discriminator_s_forward.9} parent=11 // pred_check
        %p118 = pneg %p56
      $region14: #{discriminator_s_forward.9} parent=11 // pred_check_branch
        %120 = sbr.rel (%p118) target = $region16
      $region15: #{discriminator_s_forward.9} parent=11 // pred_region
        _
      $region16: #{discriminator_s_forward.9} parent=11 // pred_fallthru
        _
      // Predicated region
      $region17: #{discriminator_s_forward.9} parent=11 // pred_check
        %p121 = pneg %p77
      $region18: #{discriminator_s_forward.9} parent=11 // pred_check_branch
        %123 = sbr.rel (%p121) target = $region20
      $region19: #{discriminator_s_forward.9} parent=11 // pred_region
        _
      $region20: #{discriminator_s_forward.9} parent=11 // pred_fallthru
        _
    $region12: #{discriminator_s_forward.9} parent=5 // pred_fallthru
      _
    %p124 = scmp.lt.s32.totalorder %s9, 2
    // Predicated region
    $region21: #{discriminator_s_forward.9} parent=5 // pred_check
      %p125 = pneg %p124
    $region22: #{discriminator_s_forward.9} parent=5 // pred_check_branch
      %127 = sbr.rel (%p125) target = $region24
    $region23: #{discriminator_s_forward.9} parent=5 // pred_region
      // Predicated region
      $region25: #{discriminator_s_forward.9} parent=23 // pred_check
        %p128 = pneg %p29
      $region26: #{discriminator_s_forward.9} parent=23 // pred_check_branch
        %130 = sbr.rel (%p128) target = $region28
      $region27: #{discriminator_s_forward.9} parent=23 // pred_region
        %p131 = scmp.lt.s32.totalorder %s9, 1
        %s132 = scalar_select %p131, %s9, 1
        %s133 = smul.addr %s132, 42
        %s134 = smul.addr %s133, 8
        %s135 = scalar_lea.vmem %s0, %s134
      $region28: #{discriminator_s_forward.9} parent=23 // pred_fallthru
        _
    $region24: #{discriminator_s_forward.9} parent=5 // pred_fallthru
      _
    %p136 = scmp.le.s32.totalorder 1, %s9
    %p137 = scmp.lt.s32.totalorder %s9, 3
    %p138 = pnand %p136, %p137
    %p139 = pneg %p138
    // Predicated region
    $region29: #{discriminator_s_forward.9} parent=5 // pred_check
      _
    $region30: #{discriminator_s_forward.9} parent=5 // pred_check_branch
      %141 = sbr.rel (%p138) target = $region32
    $region31: #{discriminator_s_forward.9} parent=5 // pred_region
      %s142 = ssub.s32 %s9, 1
      %p143 = scmp.lt.s32.totalorder %s14, 1
      %s144 = scalar_select %p143, %s14, 1
      %s145 = smul.addr %s144, 42
      %s146 = smul.addr %s145, 8
      %s147 = scalar_lea.vmem %s0, %s146
      %p148 = pneg %p35
      %p149 = pneg %p32
      %p150 = pneg %p56
      %p151 = pneg %p53
      %p152 = pneg %p77
      %p153 = pneg %p74
      %p154 = pneg %p103
      %p155 = pneg %p100
      %p156 = scmp.lt.s32.totalorder %s14, 1
      %s157 = scalar_select %p156, %s14, 1
      %s158 = smul.addr %s157, 4
      %s159 = smul.addr %s158, 8
      %s160 = scalar_lea.vmem %s3, %s159
      %p161 = scmp.lt.s32.totalorder %s14, 1
      %s162 = scalar_select %p161, %s14, 1
      %s163 = smul.addr %s162, 42
      %s164 = smul.addr %s163, 8
      %s165 = scalar_lea.vmem %s0, %s164
      %p166 = scmp.lt.s32.totalorder %s14, 1
      %s167 = scalar_select %p166, %s14, 1
      %s168 = smul.addr %s167, 4
      %s169 = smul.addr %s168, 8
      %s170 = scalar_lea.vmem %s3, %s169
      %v171 = vld [vmem:[%s165] sm:$0xff]
      %v172 = vld [vmem:[%s165 + $0x8] sm:$0xff]
      %v173 = vld [vmem:[%s165 + $0x10] sm:$0xff]
      %v174 = vld [vmem:[%s165 + $0x18] sm:$0xff]
      %v175 = vld [vmem:[%s165 + $0x20] sm:$0xff]
      %v176 = vld [vmem:[%s165 + $0x28] sm:$0xff]
      %v177 = vld [vmem:[%s165 + $0x30] sm:$0xff]
      %v178 = vld [vmem:[%s165 + $0x38] sm:$0xff]
      %v179 = vld [vmem:[%s165 + $0x40] sm:$0xff]
      %v180 = vld [vmem:[%s165 + $0x48] sm:$0xff]
      %v181 = vld [vmem:[%s165 + $0x50] sm:$0xff]
      %v182 = vld [vmem:[%s165 + $0x58] sm:$0xff]
      %v183 = vld [vmem:[%s165 + $0x60] sm:$0xff]
      %v184 = vld [vmem:[%s165 + $0x68] sm:$0xff]
      %v185 = vld [vmem:[%s165 + $0x70] sm:$0xff]
      %v186 = vld [vmem:[%s165 + $0x78] sm:$0xff]
      %v187 = vld [vmem:[%s165 + $0x80] sm:$0xff]
      %v188 = vld [vmem:[%s165 + $0x88] sm:$0xff]
      %v189 = vld [vmem:[%s165 + $0x90] sm:$0xff]
      %v190 = vld [vmem:[%s165 + $0x98] sm:$0xff]
      %v191 = vld [vmem:[%s165 + $0xa0] sm:$0xff]
      %v192 = vld [vmem:[%s165 + $0xa8] sm:$0xff]
      %v193 = vld [vmem:[%s165 + $0xb0] sm:$0xff]
      %v194 = vld [vmem:[%s165 + $0xb8] sm:$0xff]
      %v195 = vld [vmem:[%s165 + $0xc0] sm:$0xff]
      %v196 = vld [vmem:[%s165 + $0xc8] sm:$0xff]
      %v197 = vld [vmem:[%s165 + $0xd0] sm:$0xff]
      %v198 = vld [vmem:[%s165 + $0xd8] sm:$0xff]
      %v199 = vld [vmem:[%s165 + $0xe0] sm:$0xff]
      %v200 = vld [vmem:[%s165 + $0xe8] sm:$0xff]
      %v201 = vld [vmem:[%s165 + $0xf0] sm:$0xff]
      %v202 = vld [vmem:[%s165 + $0xf8] sm:$0xff]
      %v203 = vld [vmem:[%s165 + $0x100] sm:$0xff]
      %v204 = vld [vmem:[%s165 + $0x108] sm:$0xff]
      %v205 = vld [vmem:[%s165 + $0x110] sm:$0xff]
      %v206 = vld [vmem:[%s165 + $0x118] sm:$0xff]
      %v207 = vld [vmem:[%s165 + $0x120] sm:$0xff]
      %v208 = vld [vmem:[%s165 + $0x128] sm:$0xff]
      %v209 = vld [vmem:[%s165 + $0x130] sm:$0xff]
      %v210 = vld [vmem:[%s165 + $0x138] sm:$0xff]
      %v211 = vld [vmem:[%s165 + $0x140] sm:$0xff]
      %v212 = vld [vmem:[%s165 + $0x148] sm:$0xff]
      %v213 = vld [vmem:[%s1] sm:$0xff]
      %v214 = vld [vmem:[%s1 + $0x8] sm:$0xff]
      %v215 = vld [vmem:[%s1 + $0x10] sm:$0xff]
      %v216 = vld [vmem:[%s1 + $0x18] sm:$0xff]
      %v217 = vld [vmem:[%s1 + $0x20] sm:$0xff]
      %v218 = vld [vmem:[%s1 + $0x28] sm:$0xff]
      %v219 = vld [vmem:[%s1 + $0x30] sm:$0xff]
      %v220 = vld [vmem:[%s1 + $0x38] sm:$0xff]
      %v221 = vld [vmem:[%s1 + $0x40] sm:$0xff]
      %v222 = vld [vmem:[%s1 + $0x48] sm:$0xff]
      %v223 = vld [vmem:[%s1 + $0x50] sm:$0xff]
      %v224 = vld [vmem:[%s1 + $0x58] sm:$0xff]
      %v225 = vld [vmem:[%s1 + $0x60] sm:$0xff]
      %v226 = vld [vmem:[%s1 + $0x68] sm:$0xff]
      %v227 = vld [vmem:[%s1 + $0x70] sm:$0xff]
      %v228 = vld [vmem:[%s1 + $0x78] sm:$0xff]
      %v229 = vld [vmem:[%s1 + $0x80] sm:$0xff]
      %v230 = vld [vmem:[%s1 + $0x88] sm:$0xff]
      %v231 = vld [vmem:[%s1 + $0x90] sm:$0xff]
      %v232 = vld [vmem:[%s1 + $0x98] sm:$0xff]
      %v233 = vld [vmem:[%s1 + $0xa0] sm:$0xff]
      %v234 = vld [vmem:[%s1 + $0xa8] sm:$0xff]
      %v235 = vld [vmem:[%s1 + $0xb0] sm:$0xff]
      %v236 = vld [vmem:[%s1 + $0xb8] sm:$0xff]
      %v237 = vld [vmem:[%s1 + $0xc0] sm:$0xff]
      %v238 = vld [vmem:[%s1 + $0xc8] sm:$0xff]
      %v239 = vld [vmem:[%s1 + $0xd0] sm:$0xff]
      %v240 = vld [vmem:[%s1 + $0xd8] sm:$0xff]
      %v241 = vld [vmem:[%s1 + $0xe0] sm:$0xff]
      %v242 = vld [vmem:[%s1 + $0xe8] sm:$0xff]
      %v243 = vld [vmem:[%s1 + $0xf0] sm:$0xff]
      %v244 = vld [vmem:[%s1 + $0xf8] sm:$0xff]
      %v245 = vld [vmem:[%s1 + $0x100] sm:$0xff]
      %v246 = vld [vmem:[%s1 + $0x108] sm:$0xff]
      %v247 = vld [vmem:[%s1 + $0x110] sm:$0xff]
      %v248 = vld [vmem:[%s1 + $0x118] sm:$0xff]
      %v249 = vld [vmem:[%s1 + $0x120] sm:$0xff]
      %v250 = vld [vmem:[%s1 + $0x128] sm:$0xff]
      %v251 = vld [vmem:[%s1 + $0x130] sm:$0xff]
      %v252 = vld [vmem:[%s1 + $0x138] sm:$0xff]
      %v253 = vld [vmem:[%s1 + $0x140] sm:$0xff]
      %v254 = vld [vmem:[%s1 + $0x148] sm:$0xff]
      %v255 = vld [vmem:[%s1 + $0x150] sm:$0xff]
      %v256 = vld [vmem:[%s1 + $0x158] sm:$0xff]
      %v257 = vld [vmem:[%s1 + $0x160] sm:$0xff]
      %v258 = vld [vmem:[%s1 + $0x168] sm:$0xff]
      %v259 = vld [vmem:[%s1 + $0x170] sm:$0xff]
      %v260 = vld [vmem:[%s1 + $0x178] sm:$0xff]
      %v261 = vld [vmem:[%s1 + $0x180] sm:$0xff]
      %v262 = vld [vmem:[%s1 + $0x188] sm:$0xff]
      %v263 = vld [vmem:[%s1 + $0x190] sm:$0xff]
      %v264 = vld [vmem:[%s1 + $0x198] sm:$0xff]
      %v265 = vld [vmem:[%s1 + $0x1a0] sm:$0xff]
      %v266 = vld [vmem:[%s1 + $0x1a8] sm:$0xff]
      %v267 = vld [vmem:[%s1 + $0x1b0] sm:$0xff]
      %v268 = vld [vmem:[%s1 + $0x1b8] sm:$0xff]
      %v269 = vld [vmem:[%s1 + $0x1c0] sm:$0xff]
      %v270 = vld [vmem:[%s1 + $0x1c8] sm:$0xff]
      %v271 = vld [vmem:[%s1 + $0x1d0] sm:$0xff]
      %v272 = vld [vmem:[%s1 + $0x1d8] sm:$0xff]
      %v273 = vld [vmem:[%s1 + $0x1e0] sm:$0xff]
      %v274 = vld [vmem:[%s1 + $0x1e8] sm:$0xff]
      %v275 = vld [vmem:[%s1 + $0x1f0] sm:$0xff]
      %v276 = vld [vmem:[%s1 + $0x1f8] sm:$0xff]
      %v277 = vld [vmem:[%s1 + $0x200] sm:$0xff]
      %v278 = vld [vmem:[%s1 + $0x208] sm:$0xff]
      %v279 = vld [vmem:[%s1 + $0x210] sm:$0xff]
      %v280 = vld [vmem:[%s1 + $0x218] sm:$0xff]
      %v281 = vld [vmem:[%s1 + $0x220] sm:$0xff]
      %v282 = vld [vmem:[%s1 + $0x228] sm:$0xff]
      %v283 = vld [vmem:[%s1 + $0x230] sm:$0xff]
      %v284 = vld [vmem:[%s1 + $0x238] sm:$0xff]
      %v285 = vld [vmem:[%s1 + $0x240] sm:$0xff]
      %v286 = vld [vmem:[%s1 + $0x248] sm:$0xff]
      %v287 = vld [vmem:[%s1 + $0x250] sm:$0xff]
      %v288 = vld [vmem:[%s1 + $0x258] sm:$0xff]
      %v289 = vld [vmem:[%s1 + $0x260] sm:$0xff]
      %v290 = vld [vmem:[%s1 + $0x268] sm:$0xff]
      %v291 = vld [vmem:[%s1 + $0x270] sm:$0xff]
      %v292 = vld [vmem:[%s1 + $0x278] sm:$0xff]
      %v293 = vld [vmem:[%s1 + $0x280] sm:$0xff]
      %v294 = vld [vmem:[%s1 + $0x288] sm:$0xff]
      %v295 = vld [vmem:[%s1 + $0x290] sm:$0xff]
      %v296 = vld [vmem:[%s1 + $0x298] sm:$0xff]
      %v297 = vld [vmem:[%s1 + $0x2a0] sm:$0xff]
      %v298 = vld [vmem:[%s1 + $0x2a8] sm:$0xff]
      %v299 = vld [vmem:[%s1 + $0x2b0] sm:$0xff]
      %v300 = vld [vmem:[%s1 + $0x2b8] sm:$0xff]
      %v301 = vld [vmem:[%s1 + $0x2c0] sm:$0xff]
      %v302 = vld [vmem:[%s1 + $0x2c8] sm:$0xff]
      %v303 = vld [vmem:[%s1 + $0x2d0] sm:$0xff]
      %v304 = vld [vmem:[%s1 + $0x2d8] sm:$0xff]
      %v305 = vld [vmem:[%s1 + $0x2e0] sm:$0xff]
      %v306 = vld [vmem:[%s1 + $0x2e8] sm:$0xff]
      %v307 = vld [vmem:[%s1 + $0x2f0] sm:$0xff]
      %v308 = vld [vmem:[%s1 + $0x2f8] sm:$0xff]
      %v309 = vld [vmem:[%s1 + $0x300] sm:$0xff]
      %v310 = vld [vmem:[%s1 + $0x308] sm:$0xff]
      %v311 = vld [vmem:[%s1 + $0x310] sm:$0xff]
      %v312 = vld [vmem:[%s1 + $0x318] sm:$0xff]
      %v313 = vld [vmem:[%s1 + $0x320] sm:$0xff]
      %v314 = vld [vmem:[%s1 + $0x328] sm:$0xff]
      %v315 = vld [vmem:[%s1 + $0x330] sm:$0xff]
      %v316 = vld [vmem:[%s1 + $0x338] sm:$0xff]
      %v317 = vld [vmem:[%s1 + $0x340] sm:$0xff]
      %v318 = vld [vmem:[%s1 + $0x348] sm:$0xff]
      %v319 = vld [vmem:[%s1 + $0x350] sm:$0xff]
      %v320 = vld [vmem:[%s1 + $0x358] sm:$0xff]
      %v321 = vld [vmem:[%s1 + $0x360] sm:$0xff]
      %v322 = vld [vmem:[%s1 + $0x368] sm:$0xff]
      %v323 = vld [vmem:[%s1 + $0x370] sm:$0xff]
      %v324 = vld [vmem:[%s1 + $0x378] sm:$0xff]
      %v325 = vld [vmem:[%s1 + $0x380] sm:$0xff]
      %v326 = vld [vmem:[%s1 + $0x388] sm:$0xff]
      %v327 = vld [vmem:[%s1 + $0x390] sm:$0xff]
      %v328 = vld [vmem:[%s1 + $0x398] sm:$0xff]
      %v329 = vld [vmem:[%s1 + $0x3a0] sm:$0xff]
      %v330 = vld [vmem:[%s1 + $0x3a8] sm:$0xff]
      %v331 = vld [vmem:[%s1 + $0x3b0] sm:$0xff]
      %v332 = vld [vmem:[%s1 + $0x3b8] sm:$0xff]
      %v333 = vld [vmem:[%s1 + $0x3c0] sm:$0xff]
      %v334 = vld [vmem:[%s1 + $0x3c8] sm:$0xff]
      %v335 = vld [vmem:[%s1 + $0x3d0] sm:$0xff]
      %v336 = vld [vmem:[%s1 + $0x3d8] sm:$0xff]
      %v337 = vld [vmem:[%s1 + $0x3e0] sm:$0xff]
      %v338 = vld [vmem:[%s1 + $0x3e8] sm:$0xff]
      %v339 = vld [vmem:[%s1 + $0x3f0] sm:$0xff]
      %v340 = vld [vmem:[%s1 + $0x3f8] sm:$0xff]
      %v341 = vld [vmem:[%s1 + $0x400] sm:$0xff]
      %v342 = vld [vmem:[%s1 + $0x408] sm:$0xff]
      %v343 = vld [vmem:[%s1 + $0x410] sm:$0xff]
      %v344 = vld [vmem:[%s1 + $0x418] sm:$0xff]
      %v345 = vld [vmem:[%s1 + $0x420] sm:$0xff]
      %v346 = vld [vmem:[%s1 + $0x428] sm:$0xff]
      %v347 = vld [vmem:[%s1 + $0x430] sm:$0xff]
      %v348 = vld [vmem:[%s1 + $0x438] sm:$0xff]
      %v349 = vld [vmem:[%s1 + $0x440] sm:$0xff]
      %v350 = vld [vmem:[%s1 + $0x448] sm:$0xff]
      %v351 = vld [vmem:[%s1 + $0x450] sm:$0xff]
      %v352 = vld [vmem:[%s1 + $0x458] sm:$0xff]
      %v353 = vld [vmem:[%s1 + $0x460] sm:$0xff]
      %v354 = vld [vmem:[%s1 + $0x468] sm:$0xff]
      %v355 = vld [vmem:[%s1 + $0x470] sm:$0xff]
      %v356 = vld [vmem:[%s1 + $0x478] sm:$0xff]
      %v357 = vld [vmem:[%s1 + $0x480] sm:$0xff]
      %v358 = vld [vmem:[%s1 + $0x488] sm:$0xff]
      %v359 = vld [vmem:[%s1 + $0x490] sm:$0xff]
      %v360 = vld [vmem:[%s1 + $0x498] sm:$0xff]
      %v361 = vld [vmem:[%s1 + $0x4a0] sm:$0xff]
      %v362 = vld [vmem:[%s1 + $0x4a8] sm:$0xff]
      %v363 = vld [vmem:[%s1 + $0x4b0] sm:$0xff]
      %v364 = vld [vmem:[%s1 + $0x4b8] sm:$0xff]
      %v365 = vld [vmem:[%s1 + $0x4c0] sm:$0xff]
      %v366 = vld [vmem:[%s1 + $0x4c8] sm:$0xff]
      %v367 = vld [vmem:[%s1 + $0x4d0] sm:$0xff]
      %v368 = vld [vmem:[%s1 + $0x4d8] sm:$0xff]
      %v369 = vld [vmem:[%s1 + $0x4e0] sm:$0xff]
      %v370 = vld [vmem:[%s1 + $0x4e8] sm:$0xff]
      %v371 = vld [vmem:[%s1 + $0x4f0] sm:$0xff]
      %v372 = vld [vmem:[%s1 + $0x4f8] sm:$0xff]
      %v373 = vld [vmem:[%s1 + $0x500] sm:$0xff]
      %v374 = vld [vmem:[%s1 + $0x508] sm:$0xff]
      %v375 = vld [vmem:[%s1 + $0x510] sm:$0xff]
      %v376 = vld [vmem:[%s1 + $0x518] sm:$0xff]
      %v377 = vld [vmem:[%s1 + $0x520] sm:$0xff]
      %v378 = vld [vmem:[%s1 + $0x528] sm:$0xff]
      %v379 = vld [vmem:[%s1 + $0x530] sm:$0xff]
      %v380 = vld [vmem:[%s1 + $0x538] sm:$0xff]
      %v381 = vld [vmem:[%s1 + $0x540] sm:$0xff]
      %v382 = vld [vmem:[%s1 + $0x548] sm:$0xff]
      %v383 = vld [vmem:[%s1 + $0x550] sm:$0xff]
      %v384 = vld [vmem:[%s1 + $0x558] sm:$0xff]
      %v385 = vld [vmem:[%s1 + $0x560] sm:$0xff]
      %v386 = vld [vmem:[%s1 + $0x568] sm:$0xff]
      %v387 = vld [vmem:[%s1 + $0x570] sm:$0xff]
      %v388 = vld [vmem:[%s1 + $0x578] sm:$0xff]
      %v389 = vld [vmem:[%s1 + $0x580] sm:$0xff]
      %v390 = vld [vmem:[%s1 + $0x588] sm:$0xff]
      %v391 = vld [vmem:[%s1 + $0x590] sm:$0xff]
      %v392 = vld [vmem:[%s1 + $0x598] sm:$0xff]
      %v393 = vld [vmem:[%s1 + $0x5a0] sm:$0xff]
      %v394 = vld [vmem:[%s1 + $0x5a8] sm:$0xff]
      %v395 = vld [vmem:[%s1 + $0x5b0] sm:$0xff]
      %v396 = vld [vmem:[%s1 + $0x5b8] sm:$0xff]
      %v397 = vld [vmem:[%s1 + $0x5c0] sm:$0xff]
      %v398 = vld [vmem:[%s1 + $0x5c8] sm:$0xff]
      %v399 = vld [vmem:[%s1 + $0x5d0] sm:$0xff]
      %v400 = vld [vmem:[%s1 + $0x5d8] sm:$0xff]
      %v401 = vld [vmem:[%s1 + $0x5e0] sm:$0xff]
      %v402 = vld [vmem:[%s1 + $0x5e8] sm:$0xff]
      %v403 = vld [vmem:[%s1 + $0x5f0] sm:$0xff]
      %v404 = vld [vmem:[%s1 + $0x5f8] sm:$0xff]
      %v405 = vld [vmem:[%s1 + $0x600] sm:$0xff]
      %v406 = vld [vmem:[%s1 + $0x608] sm:$0xff]
      %v407 = vld [vmem:[%s1 + $0x610] sm:$0xff]
      %v408 = vld [vmem:[%s1 + $0x618] sm:$0xff]
      %v409 = vld [vmem:[%s1 + $0x620] sm:$0xff]
      %v410 = vld [vmem:[%s1 + $0x628] sm:$0xff]
      %v411 = vld [vmem:[%s1 + $0x630] sm:$0xff]
      %v412 = vld [vmem:[%s1 + $0x638] sm:$0xff]
      %v413 = vld [vmem:[%s1 + $0x640] sm:$0xff]
      %v414 = vld [vmem:[%s1 + $0x648] sm:$0xff]
      %v415 = vld [vmem:[%s1 + $0x650] sm:$0xff]
      %v416 = vld [vmem:[%s1 + $0x658] sm:$0xff]
      %v417 = vld [vmem:[%s1 + $0x660] sm:$0xff]
      %v418 = vld [vmem:[%s1 + $0x668] sm:$0xff]
      %v419 = vld [vmem:[%s1 + $0x670] sm:$0xff]
      %v420 = vld [vmem:[%s1 + $0x678] sm:$0xff]
      %v421 = vld [vmem:[%s1 + $0x680] sm:$0xff]
      %v422 = vld [vmem:[%s1 + $0x688] sm:$0xff]
      %v423 = vld [vmem:[%s1 + $0x690] sm:$0xff]
      %v424 = vld [vmem:[%s1 + $0x698] sm:$0xff]
      %v425 = vld [vmem:[%s1 + $0x6a0] sm:$0xff]
      %v426 = vld [vmem:[%s1 + $0x6a8] sm:$0xff]
      %v427 = vld [vmem:[%s1 + $0x6b0] sm:$0xff]
      %v428 = vld [vmem:[%s1 + $0x6b8] sm:$0xff]
      %v429 = vld [vmem:[%s1 + $0x6c0] sm:$0xff]
      %v430 = vld [vmem:[%s1 + $0x6c8] sm:$0xff]
      %v431 = vld [vmem:[%s1 + $0x6d0] sm:$0xff]
      %v432 = vld [vmem:[%s1 + $0x6d8] sm:$0xff]
      %v433 = vld [vmem:[%s1 + $0x6e0] sm:$0xff]
      %v434 = vld [vmem:[%s1 + $0x6e8] sm:$0xff]
      %v435 = vld [vmem:[%s1 + $0x6f0] sm:$0xff]
      %v436 = vld [vmem:[%s1 + $0x6f8] sm:$0xff]
      %v437 = vld [vmem:[%s1 + $0x700] sm:$0xff]
      %v438 = vld [vmem:[%s1 + $0x708] sm:$0xff]
      %v439 = vld [vmem:[%s1 + $0x710] sm:$0xff]
      %v440 = vld [vmem:[%s1 + $0x718] sm:$0xff]
      %v441 = vld [vmem:[%s1 + $0x720] sm:$0xff]
      %v442 = vld [vmem:[%s1 + $0x728] sm:$0xff]
      %v443 = vld [vmem:[%s1 + $0x730] sm:$0xff]
      %v444 = vld [vmem:[%s1 + $0x738] sm:$0xff]
      %v445 = vld [vmem:[%s1 + $0x740] sm:$0xff]
      %v446 = vld [vmem:[%s1 + $0x748] sm:$0xff]
      %v447 = vld [vmem:[%s1 + $0x750] sm:$0xff]
      %v448 = vld [vmem:[%s1 + $0x758] sm:$0xff]
      %v449 = vld [vmem:[%s1 + $0x760] sm:$0xff]
      %v450 = vld [vmem:[%s1 + $0x768] sm:$0xff]
      %v451 = vld [vmem:[%s1 + $0x770] sm:$0xff]
      %v452 = vld [vmem:[%s1 + $0x778] sm:$0xff]
      %v453 = vld [vmem:[%s1 + $0x780] sm:$0xff]
      %v454 = vld [vmem:[%s1 + $0x788] sm:$0xff]
      %v455 = vld [vmem:[%s1 + $0x790] sm:$0xff]
      %v456 = vld [vmem:[%s1 + $0x798] sm:$0xff]
      %v457 = vld [vmem:[%s1 + $0x7a0] sm:$0xff]
      %v458 = vld [vmem:[%s1 + $0x7a8] sm:$0xff]
      %v459 = vld [vmem:[%s1 + $0x7b0] sm:$0xff]
      %v460 = vld [vmem:[%s1 + $0x7b8] sm:$0xff]
      %v461 = vld [vmem:[%s1 + $0x7c0] sm:$0xff]
      %v462 = vld [vmem:[%s1 + $0x7c8] sm:$0xff]
      %v463 = vld [vmem:[%s1 + $0x7d0] sm:$0xff]
      %v464 = vld [vmem:[%s1 + $0x7d8] sm:$0xff]
      %v465 = vld [vmem:[%s1 + $0x7e0] sm:$0xff]
      %v466 = vld [vmem:[%s1 + $0x7e8] sm:$0xff]
      %v467 = vld [vmem:[%s1 + $0x7f0] sm:$0xff]
      %v468 = vld [vmem:[%s1 + $0x7f8] sm:$0xff]
      %v469 = vld [vmem:[%s1 + $0x800] sm:$0xff]
      %v470 = vld [vmem:[%s1 + $0x808] sm:$0xff]
      %v471 = vld [vmem:[%s1 + $0x810] sm:$0xff]
      %v472 = vld [vmem:[%s1 + $0x818] sm:$0xff]
      %v473 = vld [vmem:[%s1 + $0x820] sm:$0xff]
      %v474 = vld [vmem:[%s1 + $0x828] sm:$0xff]
      %v475 = vld [vmem:[%s1 + $0x830] sm:$0xff]
      %v476 = vld [vmem:[%s1 + $0x838] sm:$0xff]
      %v477 = vld [vmem:[%s1 + $0x840] sm:$0xff]
      %v478 = vld [vmem:[%s1 + $0x848] sm:$0xff]
      %v479 = vld [vmem:[%s1 + $0x850] sm:$0xff]
      %v480 = vld [vmem:[%s1 + $0x858] sm:$0xff]
      %v481 = vld [vmem:[%s1 + $0x860] sm:$0xff]
      %v482 = vld [vmem:[%s1 + $0x868] sm:$0xff]
      %v483 = vld [vmem:[%s1 + $0x870] sm:$0xff]
      %v484 = vld [vmem:[%s1 + $0x878] sm:$0xff]
      %v485 = vld [vmem:[%s1 + $0x880] sm:$0xff]
      %v486 = vld [vmem:[%s1 + $0x888] sm:$0xff]
      %v487 = vld [vmem:[%s1 + $0x890] sm:$0xff]
      %v488 = vld [vmem:[%s1 + $0x898] sm:$0xff]
      %v489 = vld [vmem:[%s1 + $0x8a0] sm:$0xff]
      %v490 = vld [vmem:[%s1 + $0x8a8] sm:$0xff]
      %v491 = vld [vmem:[%s1 + $0x8b0] sm:$0xff]
      %v492 = vld [vmem:[%s1 + $0x8b8] sm:$0xff]
      %v493 = vld [vmem:[%s1 + $0x8c0] sm:$0xff]
      %v494 = vld [vmem:[%s1 + $0x8c8] sm:$0xff]
      %v495 = vld [vmem:[%s1 + $0x8d0] sm:$0xff]
      %v496 = vld [vmem:[%s1 + $0x8d8] sm:$0xff]
      %v497 = vld [vmem:[%s1 + $0x8e0] sm:$0xff]
      %v498 = vld [vmem:[%s1 + $0x8e8] sm:$0xff]
      %v499 = vld [vmem:[%s1 + $0x8f0] sm:$0xff]
      %v500 = vld [vmem:[%s1 + $0x8f8] sm:$0xff]
      %v501 = vld [vmem:[%s1 + $0x900] sm:$0xff]
      %v502 = vld [vmem:[%s1 + $0x908] sm:$0xff]
      %v503 = vld [vmem:[%s1 + $0x910] sm:$0xff]
      %v504 = vld [vmem:[%s1 + $0x918] sm:$0xff]
      %v505 = vld [vmem:[%s1 + $0x920] sm:$0xff]
      %v506 = vld [vmem:[%s1 + $0x928] sm:$0xff]
      %v507 = vld [vmem:[%s1 + $0x930] sm:$0xff]
      %v508 = vld [vmem:[%s1 + $0x938] sm:$0xff]
      %v509 = vld [vmem:[%s1 + $0x940] sm:$0xff]
      %v510 = vld [vmem:[%s1 + $0x948] sm:$0xff]
      %v511 = vld [vmem:[%s1 + $0x950] sm:$0xff]
      %v512 = vld [vmem:[%s1 + $0x958] sm:$0xff]
      %v513 = vld [vmem:[%s1 + $0x960] sm:$0xff]
      %v514 = vld [vmem:[%s1 + $0x968] sm:$0xff]
      %v515 = vld [vmem:[%s1 + $0x970] sm:$0xff]
      %v516 = vld [vmem:[%s1 + $0x978] sm:$0xff]
      %v517 = vld [vmem:[%s1 + $0x980] sm:$0xff]
      %v518 = vld [vmem:[%s1 + $0x988] sm:$0xff]
      %v519 = vld [vmem:[%s1 + $0x990] sm:$0xff]
      %v520 = vld [vmem:[%s1 + $0x998] sm:$0xff]
      %v521 = vld [vmem:[%s1 + $0x9a0] sm:$0xff]
      %v522 = vld [vmem:[%s1 + $0x9a8] sm:$0xff]
      %v523 = vld [vmem:[%s1 + $0x9b0] sm:$0xff]
      %v524 = vld [vmem:[%s1 + $0x9b8] sm:$0xff]
      %v525 = vld [vmem:[%s1 + $0x9c0] sm:$0xff]
      %v526 = vld [vmem:[%s1 + $0x9c8] sm:$0xff]
      %v527 = vld [vmem:[%s1 + $0x9d0] sm:$0xff]
      %v528 = vld [vmem:[%s1 + $0x9d8] sm:$0xff]
      %v529 = vld [vmem:[%s1 + $0x9e0] sm:$0xff]
      %v530 = vld [vmem:[%s1 + $0x9e8] sm:$0xff]
      %v531 = vld [vmem:[%s1 + $0x9f0] sm:$0xff]
      %v532 = vld [vmem:[%s1 + $0x9f8] sm:$0xff]
      %v533 = vld [vmem:[%s1 + $0xa00] sm:$0xff]
      %v534 = vld [vmem:[%s1 + $0xa08] sm:$0xff]
      %v535 = vld [vmem:[%s1 + $0xa10] sm:$0xff]
      %v536 = vld [vmem:[%s1 + $0xa18] sm:$0xff]
      %v537 = vld [vmem:[%s1 + $0xa20] sm:$0xff]
      %v538 = vld [vmem:[%s1 + $0xa28] sm:$0xff]
      %v539 = vld [vmem:[%s1 + $0xa30] sm:$0xff]
      %v540 = vld [vmem:[%s1 + $0xa38] sm:$0xff]
      %v541 = vld [vmem:[%s1 + $0xa40] sm:$0xff]
      %v542 = vld [vmem:[%s1 + $0xa48] sm:$0xff]
      %v543 = vld [vmem:[%s1 + $0xa50] sm:$0xff]
      %v544 = vld [vmem:[%s1 + $0xa58] sm:$0xff]
      %v545 = vld [vmem:[%s1 + $0xa60] sm:$0xff]
      %v546 = vld [vmem:[%s1 + $0xa68] sm:$0xff]
      %v547 = vld [vmem:[%s1 + $0xa70] sm:$0xff]
      %v548 = vld [vmem:[%s1 + $0xa78] sm:$0xff]
      %v549 = vld [vmem:[%s1 + $0xa80] sm:$0xff]
      %v550 = vld [vmem:[%s1 + $0xa88] sm:$0xff]
      %v551 = vld [vmem:[%s1 + $0xa90] sm:$0xff]
      %v552 = vld [vmem:[%s1 + $0xa98] sm:$0xff]
      %v553 = vld [vmem:[%s1 + $0xaa0] sm:$0xff]
      %v554 = vld [vmem:[%s1 + $0xaa8] sm:$0xff]
      %v555 = vld [vmem:[%s1 + $0xab0] sm:$0xff]
      %v556 = vld [vmem:[%s1 + $0xab8] sm:$0xff]
      %v557 = vld [vmem:[%s1 + $0xac0] sm:$0xff]
      %v558 = vld [vmem:[%s1 + $0xac8] sm:$0xff]
      %v559 = vld [vmem:[%s1 + $0xad0] sm:$0xff]
      %v560 = vld [vmem:[%s1 + $0xad8] sm:$0xff]
      %v561 = vld [vmem:[%s1 + $0xae0] sm:$0xff]
      %v562 = vld [vmem:[%s1 + $0xae8] sm:$0xff]
      %v563 = vld [vmem:[%s1 + $0xaf0] sm:$0xff]
      %v564 = vld [vmem:[%s1 + $0xaf8] sm:$0xff]
      %v565 = vld [vmem:[%s1 + $0xb00] sm:$0xff]
      %v566 = vld [vmem:[%s1 + $0xb08] sm:$0xff]
      %v567 = vld [vmem:[%s1 + $0xb10] sm:$0xff]
      %v568 = vld [vmem:[%s1 + $0xb18] sm:$0xff]
      %v569 = vld [vmem:[%s1 + $0xb20] sm:$0xff]
      %v570 = vld [vmem:[%s1 + $0xb28] sm:$0xff]
      %v571 = vld [vmem:[%s1 + $0xb30] sm:$0xff]
      %v572 = vld [vmem:[%s1 + $0xb38] sm:$0xff]
      %v573 = vld [vmem:[%s1 + $0xb40] sm:$0xff]
      %v574 = vld [vmem:[%s1 + $0xb48] sm:$0xff]
      %v575 = vld [vmem:[%s1 + $0xb50] sm:$0xff]
      %v576 = vld [vmem:[%s1 + $0xb58] sm:$0xff]
      %v577 = vld [vmem:[%s1 + $0xb60] sm:$0xff]
      %v578 = vld [vmem:[%s1 + $0xb68] sm:$0xff]
      %v579 = vld [vmem:[%s1 + $0xb70] sm:$0xff]
      %v580 = vld [vmem:[%s1 + $0xb78] sm:$0xff]
      %v581 = vld [vmem:[%s1 + $0xb80] sm:$0xff]
      %v582 = vld [vmem:[%s1 + $0xb88] sm:$0xff]
      %v583 = vld [vmem:[%s1 + $0xb90] sm:$0xff]
      %v584 = vld [vmem:[%s1 + $0xb98] sm:$0xff]
      %v585 = vld [vmem:[%s1 + $0xba0] sm:$0xff]
      %v586 = vld [vmem:[%s1 + $0xba8] sm:$0xff]
      %v587 = vld [vmem:[%s1 + $0xbb0] sm:$0xff]
      %v588 = vld [vmem:[%s1 + $0xbb8] sm:$0xff]
      %v589 = vld [vmem:[%s1 + $0xbc0] sm:$0xff]
      %v590 = vld [vmem:[%s1 + $0xbc8] sm:$0xff]
      %v591 = vld [vmem:[%s1 + $0xbd0] sm:$0xff]
      %v592 = vld [vmem:[%s1 + $0xbd8] sm:$0xff]
      %v593 = vld [vmem:[%s1 + $0xbe0] sm:$0xff]
      %v594 = vld [vmem:[%s1 + $0xbe8] sm:$0xff]
      %v595 = vld [vmem:[%s1 + $0xbf0] sm:$0xff]
      %v596 = vld [vmem:[%s1 + $0xbf8] sm:$0xff]
      %v597 = vld [vmem:[%s1 + $0xc00] sm:$0xff]
      %v598 = vld [vmem:[%s1 + $0xc08] sm:$0xff]
      %v599 = vld [vmem:[%s1 + $0xc10] sm:$0xff]
      %v600 = vld [vmem:[%s1 + $0xc18] sm:$0xff]
      %v601 = vld [vmem:[%s1 + $0xc20] sm:$0xff]
      %v602 = vld [vmem:[%s1 + $0xc28] sm:$0xff]
      %v603 = vld [vmem:[%s1 + $0xc30] sm:$0xff]
      %v604 = vld [vmem:[%s1 + $0xc38] sm:$0xff]
      %v605 = vld [vmem:[%s1 + $0xc40] sm:$0xff]
      %v606 = vld [vmem:[%s1 + $0xc48] sm:$0xff]
      %v607 = vld [vmem:[%s1 + $0xc50] sm:$0xff]
      %v608 = vld [vmem:[%s1 + $0xc58] sm:$0xff]
      %v609 = vld [vmem:[%s1 + $0xc60] sm:$0xff]
      %v610 = vld [vmem:[%s1 + $0xc68] sm:$0xff]
      %v611 = vld [vmem:[%s1 + $0xc70] sm:$0xff]
      %v612 = vld [vmem:[%s1 + $0xc78] sm:$0xff]
      %v613 = vld [vmem:[%s1 + $0xc80] sm:$0xff]
      %v614 = vld [vmem:[%s1 + $0xc88] sm:$0xff]
      %v615 = vld [vmem:[%s1 + $0xc90] sm:$0xff]
      %v616 = vld [vmem:[%s1 + $0xc98] sm:$0xff]
      %v617 = vld [vmem:[%s1 + $0xca0] sm:$0xff]
      %v618 = vld [vmem:[%s1 + $0xca8] sm:$0xff]
      %v619 = vld [vmem:[%s1 + $0xcb0] sm:$0xff]
      %v620 = vld [vmem:[%s1 + $0xcb8] sm:$0xff]
      %v621 = vld [vmem:[%s1 + $0xcc0] sm:$0xff]
      %v622 = vld [vmem:[%s1 + $0xcc8] sm:$0xff]
      %v623 = vld [vmem:[%s1 + $0xcd0] sm:$0xff]
      %v624 = vld [vmem:[%s1 + $0xcd8] sm:$0xff]
      %v625 = vld [vmem:[%s1 + $0xce0] sm:$0xff]
      %v626 = vld [vmem:[%s1 + $0xce8] sm:$0xff]
      %v627 = vld [vmem:[%s1 + $0xcf0] sm:$0xff]
      %v628 = vld [vmem:[%s1 + $0xcf8] sm:$0xff]
      %v629 = vld [vmem:[%s1 + $0xd00] sm:$0xff]
      %v630 = vld [vmem:[%s1 + $0xd08] sm:$0xff]
      %v631 = vld [vmem:[%s1 + $0xd10] sm:$0xff]
      %v632 = vld [vmem:[%s1 + $0xd18] sm:$0xff]
      %v633 = vld [vmem:[%s1 + $0xd20] sm:$0xff]
      %v634 = vld [vmem:[%s1 + $0xd28] sm:$0xff]
      %v635 = vld [vmem:[%s1 + $0xd30] sm:$0xff]
      %v636 = vld [vmem:[%s1 + $0xd38] sm:$0xff]
      %v637 = vld [vmem:[%s1 + $0xd40] sm:$0xff]
      %v638 = vld [vmem:[%s1 + $0xd48] sm:$0xff]
      %v639 = vld [vmem:[%s1 + $0xd50] sm:$0xff]
      %v640 = vld [vmem:[%s1 + $0xd58] sm:$0xff]
      %v641 = vld [vmem:[%s1 + $0xd60] sm:$0xff]
      %v642 = vld [vmem:[%s1 + $0xd68] sm:$0xff]
      %v643 = vld [vmem:[%s1 + $0xd70] sm:$0xff]
      %v644 = vld [vmem:[%s1 + $0xd78] sm:$0xff]
      %v645 = vld [vmem:[%s1 + $0xd80] sm:$0xff]
      %v646 = vld [vmem:[%s1 + $0xd88] sm:$0xff]
      %v647 = vld [vmem:[%s1 + $0xd90] sm:$0xff]
      %v648 = vld [vmem:[%s1 + $0xd98] sm:$0xff]
      %v649 = vld [vmem:[%s1 + $0xda0] sm:$0xff]
      %v650 = vld [vmem:[%s1 + $0xda8] sm:$0xff]
      %v651 = vld [vmem:[%s1 + $0xdb0] sm:$0xff]
      %v652 = vld [vmem:[%s1 + $0xdb8] sm:$0xff]
      %v653 = vld [vmem:[%s1 + $0xdc0] sm:$0xff]
      %v654 = vld [vmem:[%s1 + $0xdc8] sm:$0xff]
      %v655 = vld [vmem:[%s1 + $0xdd0] sm:$0xff]
      %v656 = vld [vmem:[%s1 + $0xdd8] sm:$0xff]
      %v657 = vld [vmem:[%s1 + $0xde0] sm:$0xff]
      %v658 = vld [vmem:[%s1 + $0xde8] sm:$0xff]
      %v659 = vld [vmem:[%s1 + $0xdf0] sm:$0xff]
      %v660 = vld [vmem:[%s1 + $0xdf8] sm:$0xff]
      %v661 = vld [vmem:[%s1 + $0xe00] sm:$0xff]
      %v662 = vld [vmem:[%s1 + $0xe08] sm:$0xff]
      %v663 = vld [vmem:[%s1 + $0xe10] sm:$0xff]
      %v664 = vld [vmem:[%s1 + $0xe18] sm:$0xff]
      %v665 = vld [vmem:[%s1 + $0xe20] sm:$0xff]
      %v666 = vld [vmem:[%s1 + $0xe28] sm:$0xff]
      %v667 = vld [vmem:[%s1 + $0xe30] sm:$0xff]
      %v668 = vld [vmem:[%s1 + $0xe38] sm:$0xff]
      %v669 = vld [vmem:[%s1 + $0xe40] sm:$0xff]
      %v670 = vld [vmem:[%s1 + $0xe48] sm:$0xff]
      %v671 = vld [vmem:[%s1 + $0xe50] sm:$0xff]
      %v672 = vld [vmem:[%s1 + $0xe58] sm:$0xff]
      %v673 = vld [vmem:[%s1 + $0xe60] sm:$0xff]
      %v674 = vld [vmem:[%s1 + $0xe68] sm:$0xff]
      %v675 = vld [vmem:[%s1 + $0xe70] sm:$0xff]
      %v676 = vld [vmem:[%s1 + $0xe78] sm:$0xff]
      %v677 = vld [vmem:[%s1 + $0xe80] sm:$0xff]
      %v678 = vld [vmem:[%s1 + $0xe88] sm:$0xff]
      %v679 = vld [vmem:[%s1 + $0xe90] sm:$0xff]
      %v680 = vld [vmem:[%s1 + $0xe98] sm:$0xff]
      %v681 = vld [vmem:[%s1 + $0xea0] sm:$0xff]
      %v682 = vld [vmem:[%s1 + $0xea8] sm:$0xff]
      %v683 = vld [vmem:[%s1 + $0xeb0] sm:$0xff]
      %v684 = vld [vmem:[%s1 + $0xeb8] sm:$0xff]
      %v685 = vld [vmem:[%s1 + $0xec0] sm:$0xff]
      %v686 = vld [vmem:[%s1 + $0xec8] sm:$0xff]
      %v687 = vld [vmem:[%s1 + $0xed0] sm:$0xff]
      %v688 = vld [vmem:[%s1 + $0xed8] sm:$0xff]
      %v689 = vld [vmem:[%s1 + $0xee0] sm:$0xff]
      %v690 = vld [vmem:[%s1 + $0xee8] sm:$0xff]
      %v691 = vld [vmem:[%s1 + $0xef0] sm:$0xff]
      %v692 = vld [vmem:[%s1 + $0xef8] sm:$0xff]
      %v693 = vld [vmem:[%s1 + $0xf00] sm:$0xff]
      %v694 = vld [vmem:[%s1 + $0xf08] sm:$0xff]
      %v695 = vld [vmem:[%s1 + $0xf10] sm:$0xff]
      %v696 = vld [vmem:[%s1 + $0xf18] sm:$0xff]
      %v697 = vld [vmem:[%s1 + $0xf20] sm:$0xff]
      %v698 = vld [vmem:[%s1 + $0xf28] sm:$0xff]
      %v699 = vld [vmem:[%s1 + $0xf30] sm:$0xff]
      %v700 = vld [vmem:[%s1 + $0xf38] sm:$0xff]
      %v701 = vld [vmem:[%s1 + $0xf40] sm:$0xff]
      %v702 = vld [vmem:[%s1 + $0xf48] sm:$0xff]
      %v703 = vld [vmem:[%s1 + $0xf50] sm:$0xff]
      %v704 = vld [vmem:[%s1 + $0xf58] sm:$0xff]
      %v705 = vld [vmem:[%s1 + $0xf60] sm:$0xff]
      %v706 = vld [vmem:[%s1 + $0xf68] sm:$0xff]
      %v707 = vld [vmem:[%s1 + $0xf70] sm:$0xff]
      %v708 = vld [vmem:[%s1 + $0xf78] sm:$0xff]
      %v709 = vld [vmem:[%s1 + $0xf80] sm:$0xff]
      %v710 = vld [vmem:[%s1 + $0xf88] sm:$0xff]
      %v711 = vld [vmem:[%s1 + $0xf90] sm:$0xff]
      %v712 = vld [vmem:[%s1 + $0xf98] sm:$0xff]
      %v713 = vld [vmem:[%s1 + $0xfa0] sm:$0xff]
      %v714 = vld [vmem:[%s1 + $0xfa8] sm:$0xff]
      %v715 = vld [vmem:[%s1 + $0xfb0] sm:$0xff]
      %v716 = vld [vmem:[%s1 + $0xfb8] sm:$0xff]
      %v717 = vld [vmem:[%s1 + $0xfc0] sm:$0xff]
      %v718 = vld [vmem:[%s1 + $0xfc8] sm:$0xff]
      %v719 = vld [vmem:[%s1 + $0xfd0] sm:$0xff]
      %v720 = vld [vmem:[%s1 + $0xfd8] sm:$0xff]
      %v721 = vld [vmem:[%s1 + $0xfe0] sm:$0xff]
      %v722 = vld [vmem:[%s1 + $0xfe8] sm:$0xff]
      %v723 = vld [vmem:[%s1 + $0xff0] sm:$0xff]
      %v724 = vld [vmem:[%s1 + $0xff8] sm:$0xff]
      %v725 = vld [vmem:[%s1 + $0x1000] sm:$0xff]
      %v726 = vld [vmem:[%s1 + $0x1008] sm:$0xff]
      %v727 = vld [vmem:[%s1 + $0x1010] sm:$0xff]
      %v728 = vld [vmem:[%s1 + $0x1018] sm:$0xff]
      %v729 = vld [vmem:[%s1 + $0x1020] sm:$0xff]
      %v730 = vld [vmem:[%s1 + $0x1028] sm:$0xff]
      %v731 = vld [vmem:[%s1 + $0x1030] sm:$0xff]
      %v732 = vld [vmem:[%s1 + $0x1038] sm:$0xff]
      %v733 = vld [vmem:[%s1 + $0x1040] sm:$0xff]
      %v734 = vld [vmem:[%s1 + $0x1048] sm:$0xff]
      %v735 = vld [vmem:[%s1 + $0x1050] sm:$0xff]
      %v736 = vld [vmem:[%s1 + $0x1058] sm:$0xff]
      %v737 = vld [vmem:[%s1 + $0x1060] sm:$0xff]
      %v738 = vld [vmem:[%s1 + $0x1068] sm:$0xff]
      %v739 = vld [vmem:[%s1 + $0x1070] sm:$0xff]
      %v740 = vld [vmem:[%s1 + $0x1078] sm:$0xff]
      %v741 = vld [vmem:[%s1 + $0x1080] sm:$0xff]
      %v742 = vld [vmem:[%s1 + $0x1088] sm:$0xff]
      %v743 = vld [vmem:[%s1 + $0x1090] sm:$0xff]
      %v744 = vld [vmem:[%s1 + $0x1098] sm:$0xff]
      %v745 = vld [vmem:[%s1 + $0x10a0] sm:$0xff]
      %v746 = vld [vmem:[%s1 + $0x10a8] sm:$0xff]
      %v747 = vld [vmem:[%s1 + $0x10b0] sm:$0xff]
      %v748 = vld [vmem:[%s1 + $0x10b8] sm:$0xff]
      %v749 = vld [vmem:[%s1 + $0x10c0] sm:$0xff]
      %v750 = vld [vmem:[%s1 + $0x10c8] sm:$0xff]
      %v751 = vld [vmem:[%s1 + $0x10d0] sm:$0xff]
      %v752 = vld [vmem:[%s1 + $0x10d8] sm:$0xff]
      %v753 = vld [vmem:[%s1 + $0x10e0] sm:$0xff]
      %v754 = vld [vmem:[%s1 + $0x10e8] sm:$0xff]
      %v755 = vld [vmem:[%s1 + $0x10f0] sm:$0xff]
      %v756 = vld [vmem:[%s1 + $0x10f8] sm:$0xff]
      %v757 = vld [vmem:[%s1 + $0x1100] sm:$0xff]
      %v758 = vld [vmem:[%s1 + $0x1108] sm:$0xff]
      %v759 = vld [vmem:[%s1 + $0x1110] sm:$0xff]
      %v760 = vld [vmem:[%s1 + $0x1118] sm:$0xff]
      %v761 = vld [vmem:[%s1 + $0x1120] sm:$0xff]
      %v762 = vld [vmem:[%s1 + $0x1128] sm:$0xff]
      %v763 = vld [vmem:[%s1 + $0x1130] sm:$0xff]
      %v764 = vld [vmem:[%s1 + $0x1138] sm:$0xff]
      %v765 = vld [vmem:[%s1 + $0x1140] sm:$0xff]
      %v766 = vld [vmem:[%s1 + $0x1148] sm:$0xff]
      %v767 = vld [vmem:[%s1 + $0x1150] sm:$0xff]
      %v768 = vld [vmem:[%s1 + $0x1158] sm:$0xff]
      %v769 = vld [vmem:[%s1 + $0x1160] sm:$0xff]
      %v770 = vld [vmem:[%s1 + $0x1168] sm:$0xff]
      %v771 = vld [vmem:[%s1 + $0x1170] sm:$0xff]
      %v772 = vld [vmem:[%s1 + $0x1178] sm:$0xff]
      %v773 = vld [vmem:[%s1 + $0x1180] sm:$0xff]
      %v774 = vld [vmem:[%s1 + $0x1188] sm:$0xff]
      %v775 = vld [vmem:[%s1 + $0x1190] sm:$0xff]
      %v776 = vld [vmem:[%s1 + $0x1198] sm:$0xff]
      %v777 = vld [vmem:[%s1 + $0x11a0] sm:$0xff]
      %v778 = vld [vmem:[%s1 + $0x11a8] sm:$0xff]
      %v779 = vld [vmem:[%s1 + $0x11b0] sm:$0xff]
      %v780 = vld [vmem:[%s1 + $0x11b8] sm:$0xff]
      %v781 = vld [vmem:[%s1 + $0x11c0] sm:$0xff]
      %v782 = vld [vmem:[%s1 + $0x11c8] sm:$0xff]
      %v783 = vld [vmem:[%s1 + $0x11d0] sm:$0xff]
      %v784 = vld [vmem:[%s1 + $0x11d8] sm:$0xff]
      %v785 = vld [vmem:[%s1 + $0x11e0] sm:$0xff]
      %v786 = vld [vmem:[%s1 + $0x11e8] sm:$0xff]
      %v787 = vld [vmem:[%s1 + $0x11f0] sm:$0xff]
      %v788 = vld [vmem:[%s1 + $0x11f8] sm:$0xff]
      %v789 = vld [vmem:[%s1 + $0x1200] sm:$0xff]
      %v790 = vld [vmem:[%s1 + $0x1208] sm:$0xff]
      %v791 = vld [vmem:[%s1 + $0x1210] sm:$0xff]
      %v792 = vld [vmem:[%s1 + $0x1218] sm:$0xff]
      %v793 = vld [vmem:[%s1 + $0x1220] sm:$0xff]
      %v794 = vld [vmem:[%s1 + $0x1228] sm:$0xff]
      %v795 = vld [vmem:[%s1 + $0x1230] sm:$0xff]
      %v796 = vld [vmem:[%s1 + $0x1238] sm:$0xff]
      %v797 = vld [vmem:[%s1 + $0x1240] sm:$0xff]
      %v798 = vld [vmem:[%s1 + $0x1248] sm:$0xff]
      %v799 = vld [vmem:[%s1 + $0x1250] sm:$0xff]
      %v800 = vld [vmem:[%s1 + $0x1258] sm:$0xff]
      %v801 = vld [vmem:[%s1 + $0x1260] sm:$0xff]
      %v802 = vld [vmem:[%s1 + $0x1268] sm:$0xff]
      %v803 = vld [vmem:[%s1 + $0x1270] sm:$0xff]
      %v804 = vld [vmem:[%s1 + $0x1278] sm:$0xff]
      %v805 = vld [vmem:[%s1 + $0x1280] sm:$0xff]
      %v806 = vld [vmem:[%s1 + $0x1288] sm:$0xff]
      %v807 = vld [vmem:[%s1 + $0x1290] sm:$0xff]
      %v808 = vld [vmem:[%s1 + $0x1298] sm:$0xff]
      %v809 = vld [vmem:[%s1 + $0x12a0] sm:$0xff]
      %v810 = vld [vmem:[%s1 + $0x12a8] sm:$0xff]
      %v811 = vld [vmem:[%s1 + $0x12b0] sm:$0xff]
      %v812 = vld [vmem:[%s1 + $0x12b8] sm:$0xff]
      %v813 = vld [vmem:[%s1 + $0x12c0] sm:$0xff]
      %v814 = vld [vmem:[%s1 + $0x12c8] sm:$0xff]
      %v815 = vld [vmem:[%s1 + $0x12d0] sm:$0xff]
      %v816 = vld [vmem:[%s1 + $0x12d8] sm:$0xff]
      %v817 = vld [vmem:[%s1 + $0x12e0] sm:$0xff]
      %v818 = vld [vmem:[%s1 + $0x12e8] sm:$0xff]
      %v819 = vld [vmem:[%s1 + $0x12f0] sm:$0xff]
      %v820 = vld [vmem:[%s1 + $0x12f8] sm:$0xff]
      %v821 = vld [vmem:[%s1 + $0x1300] sm:$0xff]
      %v822 = vld [vmem:[%s1 + $0x1308] sm:$0xff]
      %v823 = vld [vmem:[%s1 + $0x1310] sm:$0xff]
      %v824 = vld [vmem:[%s1 + $0x1318] sm:$0xff]
      %v825 = vld [vmem:[%s1 + $0x1320] sm:$0xff]
      %v826 = vld [vmem:[%s1 + $0x1328] sm:$0xff]
      %v827 = vld [vmem:[%s1 + $0x1330] sm:$0xff]
      %v828 = vld [vmem:[%s1 + $0x1338] sm:$0xff]
      %v829 = vld [vmem:[%s1 + $0x1340] sm:$0xff]
      %v830 = vld [vmem:[%s1 + $0x1348] sm:$0xff]
      %v831 = vld [vmem:[%s1 + $0x1350] sm:$0xff]
      %v832 = vld [vmem:[%s1 + $0x1358] sm:$0xff]
      %v833 = vld [vmem:[%s1 + $0x1360] sm:$0xff]
      %v834 = vld [vmem:[%s1 + $0x1368] sm:$0xff]
      %v835 = vld [vmem:[%s1 + $0x1370] sm:$0xff]
      %v836 = vld [vmem:[%s1 + $0x1378] sm:$0xff]
      %v837 = vld [vmem:[%s1 + $0x1380] sm:$0xff]
      %v838 = vld [vmem:[%s1 + $0x1388] sm:$0xff]
      %v839 = vld [vmem:[%s1 + $0x1390] sm:$0xff]
      %v840 = vld [vmem:[%s1 + $0x1398] sm:$0xff]
      %v841 = vld [vmem:[%s1 + $0x13a0] sm:$0xff]
      %v842 = vld [vmem:[%s1 + $0x13a8] sm:$0xff]
      %v843 = vld [vmem:[%s1 + $0x13b0] sm:$0xff]
      %v844 = vld [vmem:[%s1 + $0x13b8] sm:$0xff]
      %v845 = vld [vmem:[%s1 + $0x13c0] sm:$0xff]
      %v846 = vld [vmem:[%s1 + $0x13c8] sm:$0xff]
      %v847 = vld [vmem:[%s1 + $0x13d0] sm:$0xff]
      %v848 = vld [vmem:[%s1 + $0x13d8] sm:$0xff]
      %v849 = vld [vmem:[%s1 + $0x13e0] sm:$0xff]
      %v850 = vld [vmem:[%s1 + $0x13e8] sm:$0xff]
      %v851 = vld [vmem:[%s1 + $0x13f0] sm:$0xff]
      %v852 = vld [vmem:[%s1 + $0x13f8] sm:$0xff]
      %v853 = vld [vmem:[%s1 + $0x1400] sm:$0xff]
      %v854 = vld [vmem:[%s1 + $0x1408] sm:$0xff]
      %v855 = vld [vmem:[%s1 + $0x1410] sm:$0xff]
      %v856 = vld [vmem:[%s1 + $0x1418] sm:$0xff]
      %v857 = vld [vmem:[%s1 + $0x1420] sm:$0xff]
      %v858 = vld [vmem:[%s1 + $0x1428] sm:$0xff]
      %v859 = vld [vmem:[%s1 + $0x1430] sm:$0xff]
      %v860 = vld [vmem:[%s1 + $0x1438] sm:$0xff]
      %v861 = vld [vmem:[%s1 + $0x1440] sm:$0xff]
      %v862 = vld [vmem:[%s1 + $0x1448] sm:$0xff]
      %v863 = vld [vmem:[%s1 + $0x1450] sm:$0xff]
      %v864 = vld [vmem:[%s1 + $0x1458] sm:$0xff]
      %v865 = vld [vmem:[%s1 + $0x1460] sm:$0xff]
      %v866 = vld [vmem:[%s1 + $0x1468] sm:$0xff]
      %v867 = vld [vmem:[%s1 + $0x1470] sm:$0xff]
      %v868 = vld [vmem:[%s1 + $0x1478] sm:$0xff]
      %v869 = vld [vmem:[%s2] sm:$0x3]
      %v871 = vlaneseq
      %v872 = vshrl.u32 %v871, 7
      %v873 = vsub.s32 0, %v872
      %v874 = vrot.slane %v869, %v873
      %v875 = vlaneseq
      %v876 = vshrl.u32 %v875, 7
      %v877 = vsub.s32 1, %v876
      %v878 = vrot.slane %v869, %v877
      %vm881 = vcmask 523264
      %v883 = vsel %vm881, %v191, 0
      %v886 = vsel %vm881, %v212, 0
      %888 = vmatprep.subr.mxu0 %v244
      %889 = vmatpush1.msra.mxu0 %v243
      %890 = vmatprep.subr.mxu0 %v242
      %891 = vmatpush1.msra.mxu0 %v241
      %892 = vmatprep.subr.mxu0 %v240
      %893 = vmatpush1.msra.mxu0 %v239
      %894 = vmatprep.subr.mxu0 %v238
      %895 = vmatpush1.msra.mxu0 %v237
      %896 = vmatprep.subr.mxu0 %v236
      %897 = vmatpush1.msra.mxu0 %v235
      %898 = vmatprep.subr.mxu0 %v234
      %899 = vmatpush1.msra.mxu0 %v233
      %900 = vmatprep.subr.mxu0 %v232
      %901 = vmatpush1.msra.mxu0 %v231
      %902 = vmatprep.subr.mxu0 %v230
      %903 = vmatpush1.msra.mxu0 %v229
      %904 = vmatprep.subr.mxu0 %v228
      %905 = vmatpush1.msra.mxu0 %v227
      %906 = vmatprep.subr.mxu0 %v226
      %907 = vmatpush1.msra.mxu0 %v225
      %908 = vmatprep.subr.mxu0 %v224
      %909 = vmatpush1.msra.mxu0 %v223
      %910 = vmatprep.subr.mxu0 %v222
      %911 = vmatpush1.msra.mxu0 %v221
      %912 = vmatprep.subr.mxu0 %v220
      %913 = vmatpush1.msra.mxu0 %v219
      %914 = vmatprep.subr.mxu0 %v218
      %915 = vmatpush1.msra.mxu0 %v217
      %916 = vmatprep.subr.mxu0 %v216
      %917 = vmatpush1.msra.mxu0 %v215
      %918 = vmatprep.subr.mxu0 %v214
      %919 = vmatpush1.msra.mxu0 %v213
      %920 = vmatprep.subr.mxu0 %v276
      %921 = vmatpush2.msra.mxu0 %v275
      %922 = vmatprep.subr.mxu0 %v274
      %923 = vmatpush2.msra.mxu0 %v273
      %924 = vmatprep.subr.mxu0 %v272
      %925 = vmatpush2.msra.mxu0 %v271
      %926 = vmatprep.subr.mxu0 %v270
      %927 = vmatpush2.msra.mxu0 %v269
      %928 = vmatprep.subr.mxu0 %v268
      %929 = vmatpush2.msra.mxu0 %v267
      %930 = vmatprep.subr.mxu0 %v266
      %931 = vmatpush2.msra.mxu0 %v265
      %932 = vmatprep.subr.mxu0 %v264
      %933 = vmatpush2.msra.mxu0 %v263
      %934 = vmatprep.subr.mxu0 %v262
      %935 = vmatpush2.msra.mxu0 %v261
      %936 = vmatprep.subr.mxu0 %v260
      %937 = vmatpush2.msra.mxu0 %v259
      %938 = vmatprep.subr.mxu0 %v258
      %939 = vmatpush2.msra.mxu0 %v257
      %940 = vmatprep.subr.mxu0 %v256
      %941 = vmatpush2.msra.mxu0 %v255
      %942 = vmatprep.subr.mxu0 %v254
      %943 = vmatpush2.msra.mxu0 %v253
      %944 = vmatprep.subr.mxu0 %v252
      %945 = vmatpush2.msra.mxu0 %v251
      %946 = vmatprep.subr.mxu0 %v250
      %947 = vmatpush2.msra.mxu0 %v249
      %948 = vmatprep.subr.mxu0 %v248
      %949 = vmatpush2.msra.mxu0 %v247
      %950 = vmatprep.subr.mxu0 %v246
      %951 = vmatpush2.msra.mxu0 %v245
      %952 = vmatprep.mubr.f32.mxu0 %v172
      %953 = vmatmul.mubr.f32.gmra.mxu0 %v171
      %v954 = vpop.f32.mrf.mxu0
      %v955 = vadd.f32 %v874, %v954
      %v956 = vpop.f32.mrf.mxu0
      %v957 = vadd.f32 %v878, %v956
      %958 = vmatprep.mubr.f32.mxu0 %v193
      %959 = vmatmul.mubr.f32.gmra.mxu0 %v192
      %v960 = vpop.f32.mrf.mxu0
      %v961 = vadd.f32 %v874, %v960
      %v962 = vpop.f32.mrf.mxu0
      %v963 = vadd.f32 %v878, %v962
      %964 = vdwg.mxu0
      %965 = vmatprep.subr.mxu0 %v308
      %966 = vmatpush1.msra.mxu0 %v307
      %967 = vmatprep.subr.mxu0 %v306
      %968 = vmatpush1.msra.mxu0 %v305
      %969 = vmatprep.subr.mxu0 %v304
      %970 = vmatpush1.msra.mxu0 %v303
      %971 = vmatprep.subr.mxu0 %v302
      %972 = vmatpush1.msra.mxu0 %v301
      %973 = vmatprep.subr.mxu0 %v300
      %974 = vmatpush1.msra.mxu0 %v299
      %975 = vmatprep.subr.mxu0 %v298
      %976 = vmatpush1.msra.mxu0 %v297
      %977 = vmatprep.subr.mxu0 %v296
      %978 = vmatpush1.msra.mxu0 %v295
      %979 = vmatprep.subr.mxu0 %v294
      %980 = vmatpush1.msra.mxu0 %v293
      %981 = vmatprep.subr.mxu0 %v292
      %982 = vmatpush1.msra.mxu0 %v291
      %983 = vmatprep.subr.mxu0 %v290
      %984 = vmatpush1.msra.mxu0 %v289
      %985 = vmatprep.subr.mxu0 %v288
      %986 = vmatpush1.msra.mxu0 %v287
      %987 = vmatprep.subr.mxu0 %v286
      %988 = vmatpush1.msra.mxu0 %v285
      %989 = vmatprep.subr.mxu0 %v284
      %990 = vmatpush1.msra.mxu0 %v283
      %991 = vmatprep.subr.mxu0 %v282
      %992 = vmatpush1.msra.mxu0 %v281
      %993 = vmatprep.subr.mxu0 %v280
      %994 = vmatpush1.msra.mxu0 %v279
      %995 = vmatprep.subr.mxu0 %v278
      %996 = vmatpush1.msra.mxu0 %v277
      %997 = vmatprep.subr.mxu0 %v340
      %998 = vmatpush2.msra.mxu0 %v339
      %999 = vmatprep.subr.mxu0 %v338
      %1000 = vmatpush2.msra.mxu0 %v337
      %1001 = vmatprep.subr.mxu0 %v336
      %1002 = vmatpush2.msra.mxu0 %v335
      %1003 = vmatprep.subr.mxu0 %v334
      %1004 = vmatpush2.msra.mxu0 %v333
      %1005 = vmatprep.subr.mxu0 %v332
      %1006 = vmatpush2.msra.mxu0 %v331
      %1007 = vmatprep.subr.mxu0 %v330
      %1008 = vmatpush2.msra.mxu0 %v329
      %1009 = vmatprep.subr.mxu0 %v328
      %1010 = vmatpush2.msra.mxu0 %v327
      %1011 = vmatprep.subr.mxu0 %v326
      %1012 = vmatpush2.msra.mxu0 %v325
      %1013 = vmatprep.subr.mxu0 %v324
      %1014 = vmatpush2.msra.mxu0 %v323
      %1015 = vmatprep.subr.mxu0 %v322
      %1016 = vmatpush2.msra.mxu0 %v321
      %1017 = vmatprep.subr.mxu0 %v320
      %1018 = vmatpush2.msra.mxu0 %v319
      %1019 = vmatprep.subr.mxu0 %v318
      %1020 = vmatpush2.msra.mxu0 %v317
      %1021 = vmatprep.subr.mxu0 %v316
      %1022 = vmatpush2.msra.mxu0 %v315
      %1023 = vmatprep.subr.mxu0 %v314
      %1024 = vmatpush2.msra.mxu0 %v313
      %1025 = vmatprep.subr.mxu0 %v312
      %1026 = vmatpush2.msra.mxu0 %v311
      %1027 = vmatprep.subr.mxu0 %v310
      %1028 = vmatpush2.msra.mxu0 %v309
      %1029 = vmatprep.mubr.f32.mxu0 %v174
      %1030 = vmatmul.mubr.f32.gmra.mxu0 %v173
      %v1031 = vpop.f32.mrf.mxu0
      %v1032 = vadd.f32 %v955, %v1031
      %v1033 = vpop.f32.mrf.mxu0
      %v1034 = vadd.f32 %v957, %v1033
      %1035 = vmatprep.mubr.f32.mxu0 %v195
      %1036 = vmatmul.mubr.f32.gmra.mxu0 %v194
      %v1037 = vpop.f32.mrf.mxu0
      %v1038 = vadd.f32 %v961, %v1037
      %v1039 = vpop.f32.mrf.mxu0
      %v1040 = vadd.f32 %v963, %v1039
      %1041 = vdwg.mxu0
      %1042 = vmatprep.subr.mxu0 %v372
      %1043 = vmatpush1.msra.mxu0 %v371
      %1044 = vmatprep.subr.mxu0 %v370
      %1045 = vmatpush1.msra.mxu0 %v369
      %1046 = vmatprep.subr.mxu0 %v368
      %1047 = vmatpush1.msra.mxu0 %v367
      %1048 = vmatprep.subr.mxu0 %v366
      %1049 = vmatpush1.msra.mxu0 %v365
      %1050 = vmatprep.subr.mxu0 %v364
      %1051 = vmatpush1.msra.mxu0 %v363
      %1052 = vmatprep.subr.mxu0 %v362
      %1053 = vmatpush1.msra.mxu0 %v361
      %1054 = vmatprep.subr.mxu0 %v360
      %1055 = vmatpush1.msra.mxu0 %v359
      %1056 = vmatprep.subr.mxu0 %v358
      %1057 = vmatpush1.msra.mxu0 %v357
      %1058 = vmatprep.subr.mxu0 %v356
      %1059 = vmatpush1.msra.mxu0 %v355
      %1060 = vmatprep.subr.mxu0 %v354
      %1061 = vmatpush1.msra.mxu0 %v353
      %1062 = vmatprep.subr.mxu0 %v352
      %1063 = vmatpush1.msra.mxu0 %v351
      %1064 = vmatprep.subr.mxu0 %v350
      %1065 = vmatpush1.msra.mxu0 %v349
      %1066 = vmatprep.subr.mxu0 %v348
      %1067 = vmatpush1.msra.mxu0 %v347
      %1068 = vmatprep.subr.mxu0 %v346
      %1069 = vmatpush1.msra.mxu0 %v345
      %1070 = vmatprep.subr.mxu0 %v344
      %1071 = vmatpush1.msra.mxu0 %v343
      %1072 = vmatprep.subr.mxu0 %v342
      %1073 = vmatpush1.msra.mxu0 %v341
      %1074 = vmatprep.subr.mxu0 %v404
      %1075 = vmatpush2.msra.mxu0 %v403
      %1076 = vmatprep.subr.mxu0 %v402
      %1077 = vmatpush2.msra.mxu0 %v401
      %1078 = vmatprep.subr.mxu0 %v400
      %1079 = vmatpush2.msra.mxu0 %v399
      %1080 = vmatprep.subr.mxu0 %v398
      %1081 = vmatpush2.msra.mxu0 %v397
      %1082 = vmatprep.subr.mxu0 %v396
      %1083 = vmatpush2.msra.mxu0 %v395
      %1084 = vmatprep.subr.mxu0 %v394
      %1085 = vmatpush2.msra.mxu0 %v393
      %1086 = vmatprep.subr.mxu0 %v392
      %1087 = vmatpush2.msra.mxu0 %v391
      %1088 = vmatprep.subr.mxu0 %v390
      %1089 = vmatpush2.msra.mxu0 %v389
      %1090 = vmatprep.subr.mxu0 %v388
      %1091 = vmatpush2.msra.mxu0 %v387
      %1092 = vmatprep.subr.mxu0 %v386
      %1093 = vmatpush2.msra.mxu0 %v385
      %1094 = vmatprep.subr.mxu0 %v384
      %1095 = vmatpush2.msra.mxu0 %v383
      %1096 = vmatprep.subr.mxu0 %v382
      %1097 = vmatpush2.msra.mxu0 %v381
      %1098 = vmatprep.subr.mxu0 %v380
      %1099 = vmatpush2.msra.mxu0 %v379
      %1100 = vmatprep.subr.mxu0 %v378
      %1101 = vmatpush2.msra.mxu0 %v377
      %1102 = vmatprep.subr.mxu0 %v376
      %1103 = vmatpush2.msra.mxu0 %v375
      %1104 = vmatprep.subr.mxu0 %v374
      %1105 = vmatpush2.msra.mxu0 %v373
      %1106 = vmatprep.mubr.f32.mxu0 %v176
      %1107 = vmatmul.mubr.f32.gmra.mxu0 %v175
      %v1108 = vpop.f32.mrf.mxu0
      %v1109 = vadd.f32 %v1032, %v1108
      %v1110 = vpop.f32.mrf.mxu0
      %v1111 = vadd.f32 %v1034, %v1110
      %1112 = vmatprep.mubr.f32.mxu0 %v197
      %1113 = vmatmul.mubr.f32.gmra.mxu0 %v196
      %v1114 = vpop.f32.mrf.mxu0
      %v1115 = vadd.f32 %v1038, %v1114
      %v1116 = vpop.f32.mrf.mxu0
      %v1117 = vadd.f32 %v1040, %v1116
      %1118 = vdwg.mxu0
      %1119 = vmatprep.subr.mxu0 %v436
      %1120 = vmatpush1.msra.mxu0 %v435
      %1121 = vmatprep.subr.mxu0 %v434
      %1122 = vmatpush1.msra.mxu0 %v433
      %1123 = vmatprep.subr.mxu0 %v432
      %1124 = vmatpush1.msra.mxu0 %v431
      %1125 = vmatprep.subr.mxu0 %v430
      %1126 = vmatpush1.msra.mxu0 %v429
      %1127 = vmatprep.subr.mxu0 %v428
      %1128 = vmatpush1.msra.mxu0 %v427
      %1129 = vmatprep.subr.mxu0 %v426
      %1130 = vmatpush1.msra.mxu0 %v425
      %1131 = vmatprep.subr.mxu0 %v424
      %1132 = vmatpush1.msra.mxu0 %v423
      %1133 = vmatprep.subr.mxu0 %v422
      %1134 = vmatpush1.msra.mxu0 %v421
      %1135 = vmatprep.subr.mxu0 %v420
      %1136 = vmatpush1.msra.mxu0 %v419
      %1137 = vmatprep.subr.mxu0 %v418
      %1138 = vmatpush1.msra.mxu0 %v417
      %1139 = vmatprep.subr.mxu0 %v416
      %1140 = vmatpush1.msra.mxu0 %v415
      %1141 = vmatprep.subr.mxu0 %v414
      %1142 = vmatpush1.msra.mxu0 %v413
      %1143 = vmatprep.subr.mxu0 %v412
      %1144 = vmatpush1.msra.mxu0 %v411
      %1145 = vmatprep.subr.mxu0 %v410
      %1146 = vmatpush1.msra.mxu0 %v409
      %1147 = vmatprep.subr.mxu0 %v408
      %1148 = vmatpush1.msra.mxu0 %v407
      %1149 = vmatprep.subr.mxu0 %v406
      %1150 = vmatpush1.msra.mxu0 %v405
      %1151 = vmatprep.subr.mxu0 %v468
      %1152 = vmatpush2.msra.mxu0 %v467
      %1153 = vmatprep.subr.mxu0 %v466
      %1154 = vmatpush2.msra.mxu0 %v465
      %1155 = vmatprep.subr.mxu0 %v464
      %1156 = vmatpush2.msra.mxu0 %v463
      %1157 = vmatprep.subr.mxu0 %v462
      %1158 = vmatpush2.msra.mxu0 %v461
      %1159 = vmatprep.subr.mxu0 %v460
      %1160 = vmatpush2.msra.mxu0 %v459
      %1161 = vmatprep.subr.mxu0 %v458
      %1162 = vmatpush2.msra.mxu0 %v457
      %1163 = vmatprep.subr.mxu0 %v456
      %1164 = vmatpush2.msra.mxu0 %v455
      %1165 = vmatprep.subr.mxu0 %v454
      %1166 = vmatpush2.msra.mxu0 %v453
      %1167 = vmatprep.subr.mxu0 %v452
      %1168 = vmatpush2.msra.mxu0 %v451
      %1169 = vmatprep.subr.mxu0 %v450
      %1170 = vmatpush2.msra.mxu0 %v449
      %1171 = vmatprep.subr.mxu0 %v448
      %1172 = vmatpush2.msra.mxu0 %v447
      %1173 = vmatprep.subr.mxu0 %v446
      %1174 = vmatpush2.msra.mxu0 %v445
      %1175 = vmatprep.subr.mxu0 %v444
      %1176 = vmatpush2.msra.mxu0 %v443
      %1177 = vmatprep.subr.mxu0 %v442
      %1178 = vmatpush2.msra.mxu0 %v441
      %1179 = vmatprep.subr.mxu0 %v440
      %1180 = vmatpush2.msra.mxu0 %v439
      %1181 = vmatprep.subr.mxu0 %v438
      %1182 = vmatpush2.msra.mxu0 %v437
      %1183 = vmatprep.mubr.f32.mxu0 %v178
      %1184 = vmatmul.mubr.f32.gmra.mxu0 %v177
      %v1185 = vpop.f32.mrf.mxu0
      %v1186 = vadd.f32 %v1109, %v1185
      %v1187 = vpop.f32.mrf.mxu0
      %v1188 = vadd.f32 %v1111, %v1187
      %1189 = vmatprep.mubr.f32.mxu0 %v199
      %1190 = vmatmul.mubr.f32.gmra.mxu0 %v198
      %v1191 = vpop.f32.mrf.mxu0
      %v1192 = vadd.f32 %v1115, %v1191
      %v1193 = vpop.f32.mrf.mxu0
      %v1194 = vadd.f32 %v1117, %v1193
      %1195 = vdwg.mxu0
      %1196 = vmatprep.subr.mxu0 %v500
      %1197 = vmatpush1.msra.mxu0 %v499
      %1198 = vmatprep.subr.mxu0 %v498
      %1199 = vmatpush1.msra.mxu0 %v497
      %1200 = vmatprep.subr.mxu0 %v496
      %1201 = vmatpush1.msra.mxu0 %v495
      %1202 = vmatprep.subr.mxu0 %v494
      %1203 = vmatpush1.msra.mxu0 %v493
      %1204 = vmatprep.subr.mxu0 %v492
      %1205 = vmatpush1.msra.mxu0 %v491
      %1206 = vmatprep.subr.mxu0 %v490
      %1207 = vmatpush1.msra.mxu0 %v489
      %1208 = vmatprep.subr.mxu0 %v488
      %1209 = vmatpush1.msra.mxu0 %v487
      %1210 = vmatprep.subr.mxu0 %v486
      %1211 = vmatpush1.msra.mxu0 %v485
      %1212 = vmatprep.subr.mxu0 %v484
      %1213 = vmatpush1.msra.mxu0 %v483
      %1214 = vmatprep.subr.mxu0 %v482
      %1215 = vmatpush1.msra.mxu0 %v481
      %1216 = vmatprep.subr.mxu0 %v480
      %1217 = vmatpush1.msra.mxu0 %v479
      %1218 = vmatprep.subr.mxu0 %v478
      %1219 = vmatpush1.msra.mxu0 %v477
      %1220 = vmatprep.subr.mxu0 %v476
      %1221 = vmatpush1.msra.mxu0 %v475
      %1222 = vmatprep.subr.mxu0 %v474
      %1223 = vmatpush1.msra.mxu0 %v473
      %1224 = vmatprep.subr.mxu0 %v472
      %1225 = vmatpush1.msra.mxu0 %v471
      %1226 = vmatprep.subr.mxu0 %v470
      %1227 = vmatpush1.msra.mxu0 %v469
      %1228 = vmatprep.subr.mxu0 %v532
      %1229 = vmatpush2.msra.mxu0 %v531
      %1230 = vmatprep.subr.mxu0 %v530
      %1231 = vmatpush2.msra.mxu0 %v529
      %1232 = vmatprep.subr.mxu0 %v528
      %1233 = vmatpush2.msra.mxu0 %v527
      %1234 = vmatprep.subr.mxu0 %v526
      %1235 = vmatpush2.msra.mxu0 %v525
      %1236 = vmatprep.subr.mxu0 %v524
      %1237 = vmatpush2.msra.mxu0 %v523
      %1238 = vmatprep.subr.mxu0 %v522
      %1239 = vmatpush2.msra.mxu0 %v521
      %1240 = vmatprep.subr.mxu0 %v520
      %1241 = vmatpush2.msra.mxu0 %v519
      %1242 = vmatprep.subr.mxu0 %v518
      %1243 = vmatpush2.msra.mxu0 %v517
      %1244 = vmatprep.subr.mxu0 %v516
      %1245 = vmatpush2.msra.mxu0 %v515
      %1246 = vmatprep.subr.mxu0 %v514
      %1247 = vmatpush2.msra.mxu0 %v513
      %1248 = vmatprep.subr.mxu0 %v512
      %1249 = vmatpush2.msra.mxu0 %v511
      %1250 = vmatprep.subr.mxu0 %v510
      %1251 = vmatpush2.msra.mxu0 %v509
      %1252 = vmatprep.subr.mxu0 %v508
      %1253 = vmatpush2.msra.mxu0 %v507
      %1254 = vmatprep.subr.mxu0 %v506
      %1255 = vmatpush2.msra.mxu0 %v505
      %1256 = vmatprep.subr.mxu0 %v504
      %1257 = vmatpush2.msra.mxu0 %v503
      %1258 = vmatprep.subr.mxu0 %v502
      %1259 = vmatpush2.msra.mxu0 %v501
      %1260 = vmatprep.mubr.f32.mxu0 %v180
      %1261 = vmatmul.mubr.f32.gmra.mxu0 %v179
      %v1262 = vpop.f32.mrf.mxu0
      %v1263 = vadd.f32 %v1186, %v1262
      %v1264 = vpop.f32.mrf.mxu0
      %v1265 = vadd.f32 %v1188, %v1264
      %1266 = vmatprep.mubr.f32.mxu0 %v201
      %1267 = vmatmul.mubr.f32.gmra.mxu0 %v200
      %v1268 = vpop.f32.mrf.mxu0
      %v1269 = vadd.f32 %v1192, %v1268
      %v1270 = vpop.f32.mrf.mxu0
      %v1271 = vadd.f32 %v1194, %v1270
      %1272 = vdwg.mxu0
      %1273 = vmatprep.subr.mxu0 %v564
      %1274 = vmatpush1.msra.mxu0 %v563
      %1275 = vmatprep.subr.mxu0 %v562
      %1276 = vmatpush1.msra.mxu0 %v561
      %1277 = vmatprep.subr.mxu0 %v560
      %1278 = vmatpush1.msra.mxu0 %v559
      %1279 = vmatprep.subr.mxu0 %v558
      %1280 = vmatpush1.msra.mxu0 %v557
      %1281 = vmatprep.subr.mxu0 %v556
      %1282 = vmatpush1.msra.mxu0 %v555
      %1283 = vmatprep.subr.mxu0 %v554
      %1284 = vmatpush1.msra.mxu0 %v553
      %1285 = vmatprep.subr.mxu0 %v552
      %1286 = vmatpush1.msra.mxu0 %v551
      %1287 = vmatprep.subr.mxu0 %v550
      %1288 = vmatpush1.msra.mxu0 %v549
      %1289 = vmatprep.subr.mxu0 %v548
      %1290 = vmatpush1.msra.mxu0 %v547
      %1291 = vmatprep.subr.mxu0 %v546
      %1292 = vmatpush1.msra.mxu0 %v545
      %1293 = vmatprep.subr.mxu0 %v544
      %1294 = vmatpush1.msra.mxu0 %v543
      %1295 = vmatprep.subr.mxu0 %v542
      %1296 = vmatpush1.msra.mxu0 %v541
      %1297 = vmatprep.subr.mxu0 %v540
      %1298 = vmatpush1.msra.mxu0 %v539
      %1299 = vmatprep.subr.mxu0 %v538
      %1300 = vmatpush1.msra.mxu0 %v537
      %1301 = vmatprep.subr.mxu0 %v536
      %1302 = vmatpush1.msra.mxu0 %v535
      %1303 = vmatprep.subr.mxu0 %v534
      %1304 = vmatpush1.msra.mxu0 %v533
      %1305 = vmatprep.subr.mxu0 %v596
      %1306 = vmatpush2.msra.mxu0 %v595
      %1307 = vmatprep.subr.mxu0 %v594
      %1308 = vmatpush2.msra.mxu0 %v593
      %1309 = vmatprep.subr.mxu0 %v592
      %1310 = vmatpush2.msra.mxu0 %v591
      %1311 = vmatprep.subr.mxu0 %v590
      %1312 = vmatpush2.msra.mxu0 %v589
      %1313 = vmatprep.subr.mxu0 %v588
      %1314 = vmatpush2.msra.mxu0 %v587
      %1315 = vmatprep.subr.mxu0 %v586
      %1316 = vmatpush2.msra.mxu0 %v585
      %1317 = vmatprep.subr.mxu0 %v584
      %1318 = vmatpush2.msra.mxu0 %v583
      %1319 = vmatprep.subr.mxu0 %v582
      %1320 = vmatpush2.msra.mxu0 %v581
      %1321 = vmatprep.subr.mxu0 %v580
      %1322 = vmatpush2.msra.mxu0 %v579
      %1323 = vmatprep.subr.mxu0 %v578
      %1324 = vmatpush2.msra.mxu0 %v577
      %1325 = vmatprep.subr.mxu0 %v576
      %1326 = vmatpush2.msra.mxu0 %v575
      %1327 = vmatprep.subr.mxu0 %v574
      %1328 = vmatpush2.msra.mxu0 %v573
      %1329 = vmatprep.subr.mxu0 %v572
      %1330 = vmatpush2.msra.mxu0 %v571
      %1331 = vmatprep.subr.mxu0 %v570
      %1332 = vmatpush2.msra.mxu0 %v569
      %1333 = vmatprep.subr.mxu0 %v568
      %1334 = vmatpush2.msra.mxu0 %v567
      %1335 = vmatprep.subr.mxu0 %v566
      %1336 = vmatpush2.msra.mxu0 %v565
      %1337 = vmatprep.mubr.f32.mxu0 %v182
      %1338 = vmatmul.mubr.f32.gmra.mxu0 %v181
      %v1339 = vpop.f32.mrf.mxu0
      %v1340 = vadd.f32 %v1263, %v1339
      %v1341 = vpop.f32.mrf.mxu0
      %v1342 = vadd.f32 %v1265, %v1341
      %1343 = vmatprep.mubr.f32.mxu0 %v203
      %1344 = vmatmul.mubr.f32.gmra.mxu0 %v202
      %v1345 = vpop.f32.mrf.mxu0
      %v1346 = vadd.f32 %v1269, %v1345
      %v1347 = vpop.f32.mrf.mxu0
      %v1348 = vadd.f32 %v1271, %v1347
      %1349 = vdwg.mxu0
      %1350 = vmatprep.subr.mxu0 %v628
      %1351 = vmatpush1.msra.mxu0 %v627
      %1352 = vmatprep.subr.mxu0 %v626
      %1353 = vmatpush1.msra.mxu0 %v625
      %1354 = vmatprep.subr.mxu0 %v624
      %1355 = vmatpush1.msra.mxu0 %v623
      %1356 = vmatprep.subr.mxu0 %v622
      %1357 = vmatpush1.msra.mxu0 %v621
      %1358 = vmatprep.subr.mxu0 %v620
      %1359 = vmatpush1.msra.mxu0 %v619
      %1360 = vmatprep.subr.mxu0 %v618
      %1361 = vmatpush1.msra.mxu0 %v617
      %1362 = vmatprep.subr.mxu0 %v616
      %1363 = vmatpush1.msra.mxu0 %v615
      %1364 = vmatprep.subr.mxu0 %v614
      %1365 = vmatpush1.msra.mxu0 %v613
      %1366 = vmatprep.subr.mxu0 %v612
      %1367 = vmatpush1.msra.mxu0 %v611
      %1368 = vmatprep.subr.mxu0 %v610
      %1369 = vmatpush1.msra.mxu0 %v609
      %1370 = vmatprep.subr.mxu0 %v608
      %1371 = vmatpush1.msra.mxu0 %v607
      %1372 = vmatprep.subr.mxu0 %v606
      %1373 = vmatpush1.msra.mxu0 %v605
      %1374 = vmatprep.subr.mxu0 %v604
      %1375 = vmatpush1.msra.mxu0 %v603
      %1376 = vmatprep.subr.mxu0 %v602
      %1377 = vmatpush1.msra.mxu0 %v601
      %1378 = vmatprep.subr.mxu0 %v600
      %1379 = vmatpush1.msra.mxu0 %v599
      %1380 = vmatprep.subr.mxu0 %v598
      %1381 = vmatpush1.msra.mxu0 %v597
      %1382 = vmatprep.subr.mxu0 %v660
      %1383 = vmatpush2.msra.mxu0 %v659
      %1384 = vmatprep.subr.mxu0 %v658
      %1385 = vmatpush2.msra.mxu0 %v657
      %1386 = vmatprep.subr.mxu0 %v656
      %1387 = vmatpush2.msra.mxu0 %v655
      %1388 = vmatprep.subr.mxu0 %v654
      %1389 = vmatpush2.msra.mxu0 %v653
      %1390 = vmatprep.subr.mxu0 %v652
      %1391 = vmatpush2.msra.mxu0 %v651
      %1392 = vmatprep.subr.mxu0 %v650
      %1393 = vmatpush2.msra.mxu0 %v649
      %1394 = vmatprep.subr.mxu0 %v648
      %1395 = vmatpush2.msra.mxu0 %v647
      %1396 = vmatprep.subr.mxu0 %v646
      %1397 = vmatpush2.msra.mxu0 %v645
      %1398 = vmatprep.subr.mxu0 %v644
      %1399 = vmatpush2.msra.mxu0 %v643
      %1400 = vmatprep.subr.mxu0 %v642
      %1401 = vmatpush2.msra.mxu0 %v641
      %1402 = vmatprep.subr.mxu0 %v640
      %1403 = vmatpush2.msra.mxu0 %v639
      %1404 = vmatprep.subr.mxu0 %v638
      %1405 = vmatpush2.msra.mxu0 %v637
      %1406 = vmatprep.subr.mxu0 %v636
      %1407 = vmatpush2.msra.mxu0 %v635
      %1408 = vmatprep.subr.mxu0 %v634
      %1409 = vmatpush2.msra.mxu0 %v633
      %1410 = vmatprep.subr.mxu0 %v632
      %1411 = vmatpush2.msra.mxu0 %v631
      %1412 = vmatprep.subr.mxu0 %v630
      %1413 = vmatpush2.msra.mxu0 %v629
      %1414 = vmatprep.mubr.f32.mxu0 %v184
      %1415 = vmatmul.mubr.f32.gmra.mxu0 %v183
      %v1416 = vpop.f32.mrf.mxu0
      %v1417 = vadd.f32 %v1340, %v1416
      %v1418 = vpop.f32.mrf.mxu0
      %v1419 = vadd.f32 %v1342, %v1418
      %1420 = vmatprep.mubr.f32.mxu0 %v205
      %1421 = vmatmul.mubr.f32.gmra.mxu0 %v204
      %v1422 = vpop.f32.mrf.mxu0
      %v1423 = vadd.f32 %v1346, %v1422
      %v1424 = vpop.f32.mrf.mxu0
      %v1425 = vadd.f32 %v1348, %v1424
      %1426 = vdwg.mxu0
      %1427 = vmatprep.subr.mxu0 %v692
      %1428 = vmatpush1.msra.mxu0 %v691
      %1429 = vmatprep.subr.mxu0 %v690
      %1430 = vmatpush1.msra.mxu0 %v689
      %1431 = vmatprep.subr.mxu0 %v688
      %1432 = vmatpush1.msra.mxu0 %v687
      %1433 = vmatprep.subr.mxu0 %v686
      %1434 = vmatpush1.msra.mxu0 %v685
      %1435 = vmatprep.subr.mxu0 %v684
      %1436 = vmatpush1.msra.mxu0 %v683
      %1437 = vmatprep.subr.mxu0 %v682
      %1438 = vmatpush1.msra.mxu0 %v681
      %1439 = vmatprep.subr.mxu0 %v680
      %1440 = vmatpush1.msra.mxu0 %v679
      %1441 = vmatprep.subr.mxu0 %v678
      %1442 = vmatpush1.msra.mxu0 %v677
      %1443 = vmatprep.subr.mxu0 %v676
      %1444 = vmatpush1.msra.mxu0 %v675
      %1445 = vmatprep.subr.mxu0 %v674
      %1446 = vmatpush1.msra.mxu0 %v673
      %1447 = vmatprep.subr.mxu0 %v672
      %1448 = vmatpush1.msra.mxu0 %v671
      %1449 = vmatprep.subr.mxu0 %v670
      %1450 = vmatpush1.msra.mxu0 %v669
      %1451 = vmatprep.subr.mxu0 %v668
      %1452 = vmatpush1.msra.mxu0 %v667
      %1453 = vmatprep.subr.mxu0 %v666
      %1454 = vmatpush1.msra.mxu0 %v665
      %1455 = vmatprep.subr.mxu0 %v664
      %1456 = vmatpush1.msra.mxu0 %v663
      %1457 = vmatprep.subr.mxu0 %v662
      %1458 = vmatpush1.msra.mxu0 %v661
      %1459 = vmatprep.subr.mxu0 %v724
      %1460 = vmatpush2.msra.mxu0 %v723
      %1461 = vmatprep.subr.mxu0 %v722
      %1462 = vmatpush2.msra.mxu0 %v721
      %1463 = vmatprep.subr.mxu0 %v720
      %1464 = vmatpush2.msra.mxu0 %v719
      %1465 = vmatprep.subr.mxu0 %v718
      %1466 = vmatpush2.msra.mxu0 %v717
      %1467 = vmatprep.subr.mxu0 %v716
      %1468 = vmatpush2.msra.mxu0 %v715
      %1469 = vmatprep.subr.mxu0 %v714
      %1470 = vmatpush2.msra.mxu0 %v713
      %1471 = vmatprep.subr.mxu0 %v712
      %1472 = vmatpush2.msra.mxu0 %v711
      %1473 = vmatprep.subr.mxu0 %v710
      %1474 = vmatpush2.msra.mxu0 %v709
      %1475 = vmatprep.subr.mxu0 %v708
      %1476 = vmatpush2.msra.mxu0 %v707
      %1477 = vmatprep.subr.mxu0 %v706
      %1478 = vmatpush2.msra.mxu0 %v705
      %1479 = vmatprep.subr.mxu0 %v704
      %1480 = vmatpush2.msra.mxu0 %v703
      %1481 = vmatprep.subr.mxu0 %v702
      %1482 = vmatpush2.msra.mxu0 %v701
      %1483 = vmatprep.subr.mxu0 %v700
      %1484 = vmatpush2.msra.mxu0 %v699
      %1485 = vmatprep.subr.mxu0 %v698
      %1486 = vmatpush2.msra.mxu0 %v697
      %1487 = vmatprep.subr.mxu0 %v696
      %1488 = vmatpush2.msra.mxu0 %v695
      %1489 = vmatprep.subr.mxu0 %v694
      %1490 = vmatpush2.msra.mxu0 %v693
      %1491 = vmatprep.mubr.f32.mxu0 %v186
      %1492 = vmatmul.mubr.f32.gmra.mxu0 %v185
      %v1493 = vpop.f32.mrf.mxu0
      %v1494 = vadd.f32 %v1417, %v1493
      %v1495 = vpop.f32.mrf.mxu0
      %v1496 = vadd.f32 %v1419, %v1495
      %1497 = vmatprep.mubr.f32.mxu0 %v207
      %1498 = vmatmul.mubr.f32.gmra.mxu0 %v206
      %v1499 = vpop.f32.mrf.mxu0
      %v1500 = vadd.f32 %v1423, %v1499
      %v1501 = vpop.f32.mrf.mxu0
      %v1502 = vadd.f32 %v1425, %v1501
      %1503 = vdwg.mxu0
      %1504 = vmatprep.subr.mxu0 %v756
      %1505 = vmatpush1.msra.mxu0 %v755
      %1506 = vmatprep.subr.mxu0 %v754
      %1507 = vmatpush1.msra.mxu0 %v753
      %1508 = vmatprep.subr.mxu0 %v752
      %1509 = vmatpush1.msra.mxu0 %v751
      %1510 = vmatprep.subr.mxu0 %v750
      %1511 = vmatpush1.msra.mxu0 %v749
      %1512 = vmatprep.subr.mxu0 %v748
      %1513 = vmatpush1.msra.mxu0 %v747
      %1514 = vmatprep.subr.mxu0 %v746
      %1515 = vmatpush1.msra.mxu0 %v745
      %1516 = vmatprep.subr.mxu0 %v744
      %1517 = vmatpush1.msra.mxu0 %v743
      %1518 = vmatprep.subr.mxu0 %v742
      %1519 = vmatpush1.msra.mxu0 %v741
      %1520 = vmatprep.subr.mxu0 %v740
      %1521 = vmatpush1.msra.mxu0 %v739
      %1522 = vmatprep.subr.mxu0 %v738
      %1523 = vmatpush1.msra.mxu0 %v737
      %1524 = vmatprep.subr.mxu0 %v736
      %1525 = vmatpush1.msra.mxu0 %v735
      %1526 = vmatprep.subr.mxu0 %v734
      %1527 = vmatpush1.msra.mxu0 %v733
      %1528 = vmatprep.subr.mxu0 %v732
      %1529 = vmatpush1.msra.mxu0 %v731
      %1530 = vmatprep.subr.mxu0 %v730
      %1531 = vmatpush1.msra.mxu0 %v729
      %1532 = vmatprep.subr.mxu0 %v728
      %1533 = vmatpush1.msra.mxu0 %v727
      %1534 = vmatprep.subr.mxu0 %v726
      %1535 = vmatpush1.msra.mxu0 %v725
      %1536 = vmatprep.subr.mxu0 %v788
      %1537 = vmatpush2.msra.mxu0 %v787
      %1538 = vmatprep.subr.mxu0 %v786
      %1539 = vmatpush2.msra.mxu0 %v785
      %1540 = vmatprep.subr.mxu0 %v784
      %1541 = vmatpush2.msra.mxu0 %v783
      %1542 = vmatprep.subr.mxu0 %v782
      %1543 = vmatpush2.msra.mxu0 %v781
      %1544 = vmatprep.subr.mxu0 %v780
      %1545 = vmatpush2.msra.mxu0 %v779
      %1546 = vmatprep.subr.mxu0 %v778
      %1547 = vmatpush2.msra.mxu0 %v777
      %1548 = vmatprep.subr.mxu0 %v776
      %1549 = vmatpush2.msra.mxu0 %v775
      %1550 = vmatprep.subr.mxu0 %v774
      %1551 = vmatpush2.msra.mxu0 %v773
      %1552 = vmatprep.subr.mxu0 %v772
      %1553 = vmatpush2.msra.mxu0 %v771
      %1554 = vmatprep.subr.mxu0 %v770
      %1555 = vmatpush2.msra.mxu0 %v769
      %1556 = vmatprep.subr.mxu0 %v768
      %1557 = vmatpush2.msra.mxu0 %v767
      %1558 = vmatprep.subr.mxu0 %v766
      %1559 = vmatpush2.msra.mxu0 %v765
      %1560 = vmatprep.subr.mxu0 %v764
      %1561 = vmatpush2.msra.mxu0 %v763
      %1562 = vmatprep.subr.mxu0 %v762
      %1563 = vmatpush2.msra.mxu0 %v761
      %1564 = vmatprep.subr.mxu0 %v760
      %1565 = vmatpush2.msra.mxu0 %v759
      %1566 = vmatprep.subr.mxu0 %v758
      %1567 = vmatpush2.msra.mxu0 %v757
      %1568 = vmatprep.mubr.f32.mxu0 %v188
      %1569 = vmatmul.mubr.f32.gmra.mxu0 %v187
      %v1570 = vpop.f32.mrf.mxu0
      %v1571 = vadd.f32 %v1494, %v1570
      %v1572 = vpop.f32.mrf.mxu0
      %v1573 = vadd.f32 %v1496, %v1572
      %1574 = vmatprep.mubr.f32.mxu0 %v209
      %1575 = vmatmul.mubr.f32.gmra.mxu0 %v208
      %v1576 = vpop.f32.mrf.mxu0
      %v1577 = vadd.f32 %v1500, %v1576
      %v1578 = vpop.f32.mrf.mxu0
      %v1579 = vadd.f32 %v1502, %v1578
      %1580 = vdwg.mxu0
      %1581 = vmatprep.subr.mxu0 %v820
      %1582 = vmatpush1.msra.mxu0 %v819
      %1583 = vmatprep.subr.mxu0 %v818
      %1584 = vmatpush1.msra.mxu0 %v817
      %1585 = vmatprep.subr.mxu0 %v816
      %1586 = vmatpush1.msra.mxu0 %v815
      %1587 = vmatprep.subr.mxu0 %v814
      %1588 = vmatpush1.msra.mxu0 %v813
      %1589 = vmatprep.subr.mxu0 %v812
      %1590 = vmatpush1.msra.mxu0 %v811
      %1591 = vmatprep.subr.mxu0 %v810
      %1592 = vmatpush1.msra.mxu0 %v809
      %1593 = vmatprep.subr.mxu0 %v808
      %1594 = vmatpush1.msra.mxu0 %v807
      %1595 = vmatprep.subr.mxu0 %v806
      %1596 = vmatpush1.msra.mxu0 %v805
      %1597 = vmatprep.subr.mxu0 %v804
      %1598 = vmatpush1.msra.mxu0 %v803
      %1599 = vmatprep.subr.mxu0 %v802
      %1600 = vmatpush1.msra.mxu0 %v801
      %1601 = vmatprep.subr.mxu0 %v800
      %1602 = vmatpush1.msra.mxu0 %v799
      %1603 = vmatprep.subr.mxu0 %v798
      %1604 = vmatpush1.msra.mxu0 %v797
      %1605 = vmatprep.subr.mxu0 %v796
      %1606 = vmatpush1.msra.mxu0 %v795
      %1607 = vmatprep.subr.mxu0 %v794
      %1608 = vmatpush1.msra.mxu0 %v793
      %1609 = vmatprep.subr.mxu0 %v792
      %1610 = vmatpush1.msra.mxu0 %v791
      %1611 = vmatprep.subr.mxu0 %v790
      %1612 = vmatpush1.msra.mxu0 %v789
      %1613 = vmatprep.subr.mxu0 %v852
      %1614 = vmatpush2.msra.mxu0 %v851
      %1615 = vmatprep.subr.mxu0 %v850
      %1616 = vmatpush2.msra.mxu0 %v849
      %1617 = vmatprep.subr.mxu0 %v848
      %1618 = vmatpush2.msra.mxu0 %v847
      %1619 = vmatprep.subr.mxu0 %v846
      %1620 = vmatpush2.msra.mxu0 %v845
      %1621 = vmatprep.subr.mxu0 %v844
      %1622 = vmatpush2.msra.mxu0 %v843
      %1623 = vmatprep.subr.mxu0 %v842
      %1624 = vmatpush2.msra.mxu0 %v841
      %1625 = vmatprep.subr.mxu0 %v840
      %1626 = vmatpush2.msra.mxu0 %v839
      %1627 = vmatprep.subr.mxu0 %v838
      %1628 = vmatpush2.msra.mxu0 %v837
      %1629 = vmatprep.subr.mxu0 %v836
      %1630 = vmatpush2.msra.mxu0 %v835
      %1631 = vmatprep.subr.mxu0 %v834
      %1632 = vmatpush2.msra.mxu0 %v833
      %1633 = vmatprep.subr.mxu0 %v832
      %1634 = vmatpush2.msra.mxu0 %v831
      %1635 = vmatprep.subr.mxu0 %v830
      %1636 = vmatpush2.msra.mxu0 %v829
      %1637 = vmatprep.subr.mxu0 %v828
      %1638 = vmatpush2.msra.mxu0 %v827
      %1639 = vmatprep.subr.mxu0 %v826
      %1640 = vmatpush2.msra.mxu0 %v825
      %1641 = vmatprep.subr.mxu0 %v824
      %1642 = vmatpush2.msra.mxu0 %v823
      %1643 = vmatprep.subr.mxu0 %v822
      %1644 = vmatpush2.msra.mxu0 %v821
      %1645 = vmatprep.mubr.f32.mxu0 %v190
      %1646 = vmatmul.mubr.f32.gmra.mxu0 %v189
      %v1647 = vpop.f32.mrf.mxu0
      %v1648 = vadd.f32 %v1571, %v1647
      %v1649 = vpop.f32.mrf.mxu0
      %v1650 = vadd.f32 %v1573, %v1649
      %1651 = vmatprep.mubr.f32.mxu0 %v211
      %1652 = vmatmul.mubr.f32.gmra.mxu0 %v210
      %v1653 = vpop.f32.mrf.mxu0
      %v1654 = vadd.f32 %v1577, %v1653
      %v1655 = vpop.f32.mrf.mxu0
      %v1656 = vadd.f32 %v1579, %v1655
      %1657 = vdwg.mxu0
      %1658 = vmatprep.subr.mxu0 0.0
      %1659 = vmatpush1.msra.mxu0 0.0
      %1660 = vmatprep.subr.mxu0 0.0
      %1661 = vmatpush1.msra.mxu0 0.0
      %1662 = vmatprep.subr.mxu0 0.0
      %1663 = vmatpush1.msra.mxu0 0.0
      %1664 = vmatprep.subr.mxu0 0.0
      %1665 = vmatpush1.msra.mxu0 0.0
      %1666 = vmatprep.subr.mxu0 0.0
      %1667 = vmatpush1.msra.mxu0 0.0
      %1668 = vmatprep.subr.mxu0 0.0
      %1669 = vmatpush1.msra.mxu0 0.0
      %1670 = vmatprep.subr.mxu0 0.0
      %1671 = vmatpush1.msra.mxu0 0.0
      %1672 = vmatprep.subr.mxu0 0.0
      %1673 = vmatpush1.msra.mxu0 0.0
      %1674 = vmatprep.subr.mxu0 %v868
      %1675 = vmatpush1.msra.mxu0 %v867
      %1676 = vmatprep.subr.mxu0 %v866
      %1677 = vmatpush1.msra.mxu0 %v865
      %1678 = vmatprep.subr.mxu0 %v864
      %1679 = vmatpush1.msra.mxu0 %v863
      %1680 = vmatprep.subr.mxu0 %v862
      %1681 = vmatpush1.msra.mxu0 %v861
      %1682 = vmatprep.subr.mxu0 %v860
      %1683 = vmatpush1.msra.mxu0 %v859
      %1684 = vmatprep.subr.mxu0 %v858
      %1685 = vmatpush1.msra.mxu0 %v857
      %1686 = vmatprep.subr.mxu0 %v856
      %1687 = vmatpush1.msra.mxu0 %v855
      %1688 = vmatprep.subr.mxu0 %v854
      %1689 = vmatpush1.msra.mxu0 %v853
      %1690 = vmatprep.subr.mxu0 0.0
      %1691 = vmatpush2.msra.mxu0 0.0
      %1692 = vmatprep.subr.mxu0 0.0
      %1693 = vmatpush2.msra.mxu0 0.0
      %1694 = vmatprep.subr.mxu0 0.0
      %1695 = vmatpush2.msra.mxu0 0.0
      %1696 = vmatprep.subr.mxu0 0.0
      %1697 = vmatpush2.msra.mxu0 0.0
      %1698 = vmatprep.subr.mxu0 0.0
      %1699 = vmatpush2.msra.mxu0 0.0
      %1700 = vmatprep.subr.mxu0 0.0
      %1701 = vmatpush2.msra.mxu0 0.0
      %1702 = vmatprep.subr.mxu0 0.0
      %1703 = vmatpush2.msra.mxu0 0.0
      %1704 = vmatprep.subr.mxu0 0.0
      %1705 = vmatpush2.msra.mxu0 0.0
      %1706 = vmatprep.subr.mxu0 0.0
      %1707 = vmatpush2.msra.mxu0 0.0
      %1708 = vmatprep.subr.mxu0 0.0
      %1709 = vmatpush2.msra.mxu0 0.0
      %1710 = vmatprep.subr.mxu0 0.0
      %1711 = vmatpush2.msra.mxu0 0.0
      %1712 = vmatprep.subr.mxu0 0.0
      %1713 = vmatpush2.msra.mxu0 0.0
      %1714 = vmatprep.subr.mxu0 0.0
      %1715 = vmatpush2.msra.mxu0 0.0
      %1716 = vmatprep.subr.mxu0 0.0
      %1717 = vmatpush2.msra.mxu0 0.0
      %1718 = vmatprep.subr.mxu0 0.0
      %1719 = vmatpush2.msra.mxu0 0.0
      %1720 = vmatprep.subr.mxu0 0.0
      %1721 = vmatpush2.msra.mxu0 0.0
      %1722 = vmatprep.mubr.f32.mxu0 0.0
      %1723 = vmatmul.mubr.f32.gmra.mxu0 %v883
      %v1724 = vpop.f32.mrf.mxu0
      %v1725 = vadd.f32 %v1648, %v1724
      %v1726 = vpop.f32.mrf.mxu0
      %v1727 = vadd.f32 %v1650, %v1726
      %1728 = vmatprep.mubr.f32.mxu0 0.0
      %1729 = vmatmul.mubr.f32.gmra.mxu0 %v886
      %v1730 = vpop.f32.mrf.mxu0
      %v1731 = vadd.f32 %v1654, %v1730
      %v1732 = vpop.f32.mrf.mxu0
      %v1733 = vadd.f32 %v1656, %v1732
      %1734 = vdwg.mxu0
      %vm1735 = vcmp.ge.f32.partialorder %v1725, 0.0
      %vm1736 = vcmp.ge.f32.partialorder %v1727, 0.0
      %vm1737 = vcmp.ge.f32.partialorder %v1731, 0.0
      %vm1738 = vcmp.ge.f32.partialorder %v1733, 0.0
      %v1739 = vmul.f32 %v1725, 0.1
      %v1740 = vmul.f32 %v1727, 0.1
      %v1741 = vmul.f32 %v1731, 0.1
      %v1742 = vmul.f32 %v1733, 0.1
      %v1743 = vsel %vm1735, %v1725, %v1739
      %v1744 = vsel %vm1736, %v1727, %v1740
      %v1745 = vsel %vm1737, %v1731, %v1741
      %v1746 = vsel %vm1738, %v1733, %v1742
      %1747 = vst [vmem:[%s170] sm:$0xff] %v1743
      %1748 = vst [vmem:[%s170 + $0x8] sm:$0xff] %v1744
      %1749 = vst [vmem:[%s170 + $0x10] sm:$0xff] %v1745
      %1750 = vst [vmem:[%s170 + $0x18] sm:$0xff] %v1746
      %p1751 = scmp.lt.s32.totalorder %s14, 1
      %s1752 = scalar_select %p1751, %s14, 1
      %s1753 = smul.addr %s1752, 4
      %s1754 = smul.addr %s1753, 8
      %s1755 = scalar_lea.vmem %s3, %s1754
      // Predicated region
      $region33: #{discriminator_s_forward.9} parent=31 // pred_check
        %p1756 = pneg %p100
      $region34: #{discriminator_s_forward.9} parent=31 // pred_check_branch
        %1758 = sbr.rel (%p1756) target = $region36
      $region35: #{discriminator_s_forward.9} parent=31 // pred_region
        _
      $region36: #{discriminator_s_forward.9} parent=31 // pred_fallthru
        _
    $region32: #{discriminator_s_forward.9} parent=5 // pred_fallthru
      _
    %p1759 = scmp.le.s32.totalorder 2, %s9
    // Predicated region
    $region37: #{discriminator_s_forward.9} parent=5 // pred_check
      %p1760 = pneg %p1759
    $region38: #{discriminator_s_forward.9} parent=5 // pred_check_branch
      %1762 = sbr.rel (%p1760) target = $region40
    $region39: #{discriminator_s_forward.9} parent=5 // pred_region
      %s1763 = ssub.s32 %s9, 2
      // Predicated region
      $region41: #{discriminator_s_forward.9} parent=39 // pred_check
        %p1764 = pneg %p106
      $region42: #{discriminator_s_forward.9} parent=39 // pred_check_branch
        %1766 = sbr.rel (%p1764) target = $region44
      $region43: #{discriminator_s_forward.9} parent=39 // pred_region
        %p1767 = scmp.lt.s32.totalorder %s15, 1
        %s1768 = scalar_select %p1767, %s15, 1
        %s1769 = smul.addr %s1768, 4
        %s1770 = smul.addr %s1769, 8
        %s1771 = scalar_lea.vmem %s3, %s1770
      $region44: #{discriminator_s_forward.9} parent=39 // pred_fallthru
        _
    $region40: #{discriminator_s_forward.9} parent=5 // pred_fallthru
      _
  $region6: #{discriminator_s_forward.9} parent=0 // loop_footer
    %s13 = sadd.s32 1, %s9
  $region7: #{discriminator_s_forward.9} parent=0 // loop_footer_branch
    %8 = sbr.rel target = $region3
  $region8: #{discriminator_s_forward.9} parent=0 // loop_exit
    _

// kernel: discriminator_s_forward.10
$region0: #{discriminator_s_forward.10}
  #allocation0 [shape = 'u32[]', space=smem, size = 0x4, offset = 0x4, fixed_abs, tag = 'smem constant byte address 0x4 - core index']
  #allocation1 [shape = 'u32[144,128]{1,0:T(1,128)}', space=vmem, size = 0x12000, scoped, tag = 'internal scratch']
  %s0 = inlined_call_operand.vmem [shape: f32[2,4,112,1024], index: 0, kind: input, shape index: {}]
  %s1 = inlined_call_operand.vmem [shape: f32[112,1024], index: 1, kind: input, shape index: {}]
  %s2 = inlined_call_operand.vmem [shape: f32[1,1024], index: 2, kind: input, shape index: {}]
  %s3 = inlined_call_operand.vmem [shape: f32[2,4,1024], index: 3, kind: output, shape index: {}]
  %s4 = sld [smem:[#allocation0]]
  $region45: #{discriminator_s_forward.10} parent=0
    _
  %s6 = ssub.s32 1, %s4
  %s7 = scalar_select 0, %s6, %s4
  loop: start=0, step=1, limit=4
  $region2: #{discriminator_s_forward.10} parent=0 // loop_pre_header
    _
  $region3: #{discriminator_s_forward.10} parent=0 // loop_header
    %s9 = sphi 0, %s13
    %p10 = scmp.ge.s32.totalorder %s9, 4
    %s19 = sphi 0, %s21
    %s22 = sphi 0, %s19
    %s23 = sphi 0, %s22
    %s39 = sphi 0, %s23
    %s43 = sphi 0, %s43
    %s45 = sphi 0, %s43
    %s46 = sphi 0, %s45
    %s60 = sphi 0, %s46
    %s64 = sphi 0, %s64
    %s66 = sphi 0, %s64
    %s67 = sphi 0, %s66
    %s81 = sphi 0, %s67
    %s87 = sphi 0, %s89
    %s90 = sphi 0, %s87
    %s91 = sphi 0, %s90
    %s107 = sphi 0, %s91
  $region4: #{discriminator_s_forward.10} parent=0 // loop_header_branch
    %12 = sbr.rel (%p10) target = $region8
  $region5: #{discriminator_s_forward.10} parent=0 // loop_body
    %s14 = ssub.s32 %s9, 1
    %s15 = ssub.s32 %s9, 2
    %s16 = sadd.s32 %s9, 1
    %s17 = ssub.s32 %s9, %s16
    %p18 = scmp.eq.s32.totalorder %s17, 0
    %s20 = sadd.s32 %s19, 1
    %s21 = scalar_select %p18, %s19, %s20
    %p24 = pneg %p18
    %p25 = scmp.eq.s32.totalorder %s9, 1
    %p26 = por %p24, %p25
    %p27 = scmp.ne.s32.totalorder %s19, %s22
    %p28 = scmp.eq.s32.totalorder %s9, 0
    %p29 = por %p27, %p28
    %p30 = scmp.ne.s32.totalorder %s19, %s22
    %p31 = scmp.eq.s32.totalorder %s14, 1
    %p32 = por %p30, %p31
    %p33 = scmp.ne.s32.totalorder %s22, %s23
    %p34 = scmp.eq.s32.totalorder %s14, 0
    %p35 = por %p33, %p34
    %p36 = scmp.ne.s32.totalorder %s22, %s23
    %p37 = scmp.eq.s32.totalorder %s15, 1
    %p38 = por %p36, %p37
    %p40 = scmp.ne.s32.totalorder %s23, %s39
    %p41 = scmp.eq.s32.totalorder %s15, 0
    %p42 = por %p40, %p41
    %s44 = sadd.s32 %s43, 1
    %p47 = scmp.eq.s32.totalorder %s9, 1
    %p48 = scmp.ne.s32.totalorder %s43, %s45
    %p49 = scmp.eq.s32.totalorder %s9, 0
    %p50 = por %p48, %p49
    %p51 = scmp.ne.s32.totalorder %s43, %s45
    %p52 = scmp.eq.s32.totalorder %s14, 1
    %p53 = por %p51, %p52
    %p54 = scmp.ne.s32.totalorder %s45, %s46
    %p55 = scmp.eq.s32.totalorder %s14, 0
    %p56 = por %p54, %p55
    %p57 = scmp.ne.s32.totalorder %s45, %s46
    %p58 = scmp.eq.s32.totalorder %s15, 1
    %p59 = por %p57, %p58
    %p61 = scmp.ne.s32.totalorder %s46, %s60
    %p62 = scmp.eq.s32.totalorder %s15, 0
    %p63 = por %p61, %p62
    %s65 = sadd.s32 %s64, 1
    %p68 = scmp.eq.s32.totalorder %s9, 1
    %p69 = scmp.ne.s32.totalorder %s64, %s66
    %p70 = scmp.eq.s32.totalorder %s9, 0
    %p71 = por %p69, %p70
    %p72 = scmp.ne.s32.totalorder %s64, %s66
    %p73 = scmp.eq.s32.totalorder %s14, 1
    %p74 = por %p72, %p73
    %p75 = scmp.ne.s32.totalorder %s66, %s67
    %p76 = scmp.eq.s32.totalorder %s14, 0
    %p77 = por %p75, %p76
    %p78 = scmp.ne.s32.totalorder %s66, %s67
    %p79 = scmp.eq.s32.totalorder %s15, 1
    %p80 = por %p78, %p79
    %p82 = scmp.ne.s32.totalorder %s67, %s81
    %p83 = scmp.eq.s32.totalorder %s15, 0
    %p84 = por %p82, %p83
    %s85 = ssub.s32 %s9, %s16
    %p86 = scmp.eq.s32.totalorder %s85, 0
    %s88 = sadd.s32 %s87, 1
    %s89 = scalar_select %p86, %s87, %s88
    %p92 = pneg %p86
    %p93 = scmp.eq.s32.totalorder %s9, 1
    %p94 = por %p92, %p93
    %p95 = scmp.ne.s32.totalorder %s87, %s90
    %p96 = scmp.eq.s32.totalorder %s9, 0
    %p97 = por %p95, %p96
    %p98 = scmp.ne.s32.totalorder %s87, %s90
    %p99 = scmp.eq.s32.totalorder %s14, 1
    %p100 = por %p98, %p99
    %p101 = scmp.ne.s32.totalorder %s90, %s91
    %p102 = scmp.eq.s32.totalorder %s14, 0
    %p103 = por %p101, %p102
    %p104 = scmp.ne.s32.totalorder %s90, %s91
    %p105 = scmp.eq.s32.totalorder %s15, 1
    %p106 = por %p104, %p105
    %p108 = scmp.ne.s32.totalorder %s91, %s107
    %p109 = scmp.eq.s32.totalorder %s15, 0
    %p110 = por %p108, %p109
    %p111 = scmp.le.s32.totalorder 1, %s9
    %p112 = scmp.lt.s32.totalorder %s9, 3
    %p113 = pnand %p111, %p112
    %p114 = pneg %p113
    // Predicated region
    $region9: #{discriminator_s_forward.10} parent=5 // pred_check
      _
    $region10: #{discriminator_s_forward.10} parent=5 // pred_check_branch
      %116 = sbr.rel (%p113) target = $region12
    $region11: #{discriminator_s_forward.10} parent=5 // pred_region
      %s117 = ssub.s32 %s9, 1
      // Predicated region
      $region13: #{discriminator_s_forward.10} parent=11 // pred_check
        %p118 = pneg %p56
      $region14: #{discriminator_s_forward.10} parent=11 // pred_check_branch
        %120 = sbr.rel (%p118) target = $region16
      $region15: #{discriminator_s_forward.10} parent=11 // pred_region
        _
      $region16: #{discriminator_s_forward.10} parent=11 // pred_fallthru
        _
      // Predicated region
      $region17: #{discriminator_s_forward.10} parent=11 // pred_check
        %p121 = pneg %p77
      $region18: #{discriminator_s_forward.10} parent=11 // pred_check_branch
        %123 = sbr.rel (%p121) target = $region20
      $region19: #{discriminator_s_forward.10} parent=11 // pred_region
        _
      $region20: #{discriminator_s_forward.10} parent=11 // pred_fallthru
        _
    $region12: #{discriminator_s_forward.10} parent=5 // pred_fallthru
      _
    %p124 = scmp.lt.s32.totalorder %s9, 2
    // Predicated region
    $region21: #{discriminator_s_forward.10} parent=5 // pred_check
      %p125 = pneg %p124
    $region22: #{discriminator_s_forward.10} parent=5 // pred_check_branch
      %127 = sbr.rel (%p125) target = $region24
    $region23: #{discriminator_s_forward.10} parent=5 // pred_region
      // Predicated region
      $region25: #{discriminator_s_forward.10} parent=23 // pred_check
        %p128 = pneg %p29
      $region26: #{discriminator_s_forward.10} parent=23 // pred_check_branch
        %130 = sbr.rel (%p128) target = $region28
      $region27: #{discriminator_s_forward.10} parent=23 // pred_region
        %p131 = scmp.lt.s32.totalorder %s9, 1
        %s132 = scalar_select %p131, %s9, 1
        %s133 = smul.addr %s132, 448
        %s134 = smul.addr %s133, 8
        %s135 = scalar_lea.vmem %s0, %s134
      $region28: #{discriminator_s_forward.10} parent=23 // pred_fallthru
        _
    $region24: #{discriminator_s_forward.10} parent=5 // pred_fallthru
      _
    %p136 = scmp.le.s32.totalorder 1, %s9
    %p137 = scmp.lt.s32.totalorder %s9, 3
    %p138 = pnand %p136, %p137
    %p139 = pneg %p138
    // Predicated region
    $region29: #{discriminator_s_forward.10} parent=5 // pred_check
      _
    $region30: #{discriminator_s_forward.10} parent=5 // pred_check_branch
      %141 = sbr.rel (%p138) target = $region32
    $region31: #{discriminator_s_forward.10} parent=5 // pred_region
      %s142 = ssub.s32 %s9, 1
      %p143 = scmp.lt.s32.totalorder %s14, 1
      %s144 = scalar_select %p143, %s14, 1
      %s145 = smul.addr %s144, 448
      %s146 = smul.addr %s145, 8
      %s147 = scalar_lea.vmem %s0, %s146
      %p148 = pneg %p35
      %p149 = pneg %p32
      %p150 = pneg %p56
      %p151 = pneg %p53
      %p152 = pneg %p77
      %p153 = pneg %p74
      %p154 = pneg %p103
      %p155 = pneg %p100
      %p156 = scmp.lt.s32.totalorder %s14, 1
      %s157 = scalar_select %p156, %s14, 1
      %s158 = smul.addr %s157, 8
      %s159 = smul.addr %s158, 4
      %s160 = scalar_lea.vmem %s3, %s159
      %p161 = scmp.lt.s32.totalorder %s14, 1
      %s162 = scalar_select %p161, %s14, 1
      %s163 = smul.addr %s162, 448
      %s164 = smul.addr %s163, 8
      %s165 = scalar_lea.vmem %s0, %s164
      %p166 = scmp.lt.s32.totalorder %s14, 1
      %s167 = scalar_select %p166, %s14, 1
      %s168 = smul.addr %s167, 8
      %s169 = smul.addr %s168, 4
      %s170 = scalar_lea.vmem %s3, %s169
      %v171 = vld [vmem:[%s1] sm:$0xff]
      %v172 = vld [vmem:[%s1 + $0x8] sm:$0xff]
      %v173 = vld [vmem:[%s1 + $0x10] sm:$0xff]
      %v174 = vld [vmem:[%s1 + $0x18] sm:$0xff]
      %v175 = vld [vmem:[%s1 + $0x20] sm:$0xff]
      %v176 = vld [vmem:[%s1 + $0x28] sm:$0xff]
      %v177 = vld [vmem:[%s1 + $0x30] sm:$0xff]
      %v178 = vld [vmem:[%s1 + $0x38] sm:$0xff]
      %v179 = vld [vmem:[%s1 + $0x40] sm:$0xff]
      %v180 = vld [vmem:[%s1 + $0x48] sm:$0xff]
      %v181 = vld [vmem:[%s1 + $0x50] sm:$0xff]
      %v182 = vld [vmem:[%s1 + $0x58] sm:$0xff]
      %v183 = vld [vmem:[%s1 + $0x60] sm:$0xff]
      %v184 = vld [vmem:[%s1 + $0x68] sm:$0xff]
      %v185 = vld [vmem:[%s1 + $0x70] sm:$0xff]
      %v186 = vld [vmem:[%s1 + $0x78] sm:$0xff]
      %v187 = vld [vmem:[%s1 + $0x80] sm:$0xff]
      %v188 = vld [vmem:[%s1 + $0x88] sm:$0xff]
      %v189 = vld [vmem:[%s1 + $0x90] sm:$0xff]
      %v190 = vld [vmem:[%s1 + $0x98] sm:$0xff]
      %v191 = vld [vmem:[%s1 + $0xa0] sm:$0xff]
      %v192 = vld [vmem:[%s1 + $0xa8] sm:$0xff]
      %v193 = vld [vmem:[%s1 + $0xb0] sm:$0xff]
      %v194 = vld [vmem:[%s1 + $0xb8] sm:$0xff]
      %v195 = vld [vmem:[%s1 + $0xc0] sm:$0xff]
      %v196 = vld [vmem:[%s1 + $0xc8] sm:$0xff]
      %v197 = vld [vmem:[%s1 + $0xd0] sm:$0xff]
      %v198 = vld [vmem:[%s1 + $0xd8] sm:$0xff]
      %v199 = vld [vmem:[%s1 + $0xe0] sm:$0xff]
      %v200 = vld [vmem:[%s1 + $0xe8] sm:$0xff]
      %v201 = vld [vmem:[%s1 + $0xf0] sm:$0xff]
      %v202 = vld [vmem:[%s1 + $0xf8] sm:$0xff]
      %v203 = vld [vmem:[%s1 + $0x100] sm:$0xff]
      %v204 = vld [vmem:[%s1 + $0x108] sm:$0xff]
      %v205 = vld [vmem:[%s1 + $0x110] sm:$0xff]
      %v206 = vld [vmem:[%s1 + $0x118] sm:$0xff]
      %v207 = vld [vmem:[%s1 + $0x120] sm:$0xff]
      %v208 = vld [vmem:[%s1 + $0x128] sm:$0xff]
      %v209 = vld [vmem:[%s1 + $0x130] sm:$0xff]
      %v210 = vld [vmem:[%s1 + $0x138] sm:$0xff]
      %v211 = vld [vmem:[%s1 + $0x140] sm:$0xff]
      %v212 = vld [vmem:[%s1 + $0x148] sm:$0xff]
      %v213 = vld [vmem:[%s1 + $0x150] sm:$0xff]
      %v214 = vld [vmem:[%s1 + $0x158] sm:$0xff]
      %v215 = vld [vmem:[%s1 + $0x160] sm:$0xff]
      %v216 = vld [vmem:[%s1 + $0x168] sm:$0xff]
      %v217 = vld [vmem:[%s1 + $0x170] sm:$0xff]
      %v218 = vld [vmem:[%s1 + $0x178] sm:$0xff]
      %v219 = vld [vmem:[%s1 + $0x180] sm:$0xff]
      %v220 = vld [vmem:[%s1 + $0x188] sm:$0xff]
      %v221 = vld [vmem:[%s1 + $0x190] sm:$0xff]
      %v222 = vld [vmem:[%s1 + $0x198] sm:$0xff]
      %v223 = vld [vmem:[%s1 + $0x1a0] sm:$0xff]
      %v224 = vld [vmem:[%s1 + $0x1a8] sm:$0xff]
      %v225 = vld [vmem:[%s1 + $0x1b0] sm:$0xff]
      %v226 = vld [vmem:[%s1 + $0x1b8] sm:$0xff]
      %v227 = vld [vmem:[%s1 + $0x1c0] sm:$0xff]
      %v228 = vld [vmem:[%s1 + $0x1c8] sm:$0xff]
      %v229 = vld [vmem:[%s1 + $0x1d0] sm:$0xff]
      %v230 = vld [vmem:[%s1 + $0x1d8] sm:$0xff]
      %v231 = vld [vmem:[%s1 + $0x1e0] sm:$0xff]
      %v232 = vld [vmem:[%s1 + $0x1e8] sm:$0xff]
      %v233 = vld [vmem:[%s1 + $0x1f0] sm:$0xff]
      %v234 = vld [vmem:[%s1 + $0x1f8] sm:$0xff]
      %v235 = vld [vmem:[%s1 + $0x200] sm:$0xff]
      %v236 = vld [vmem:[%s1 + $0x208] sm:$0xff]
      %v237 = vld [vmem:[%s1 + $0x210] sm:$0xff]
      %v238 = vld [vmem:[%s1 + $0x218] sm:$0xff]
      %v239 = vld [vmem:[%s1 + $0x220] sm:$0xff]
      %v240 = vld [vmem:[%s1 + $0x228] sm:$0xff]
      %v241 = vld [vmem:[%s1 + $0x230] sm:$0xff]
      %v242 = vld [vmem:[%s1 + $0x238] sm:$0xff]
      %v243 = vld [vmem:[%s1 + $0x240] sm:$0xff]
      %v244 = vld [vmem:[%s1 + $0x248] sm:$0xff]
      %v245 = vld [vmem:[%s1 + $0x250] sm:$0xff]
      %v246 = vld [vmem:[%s1 + $0x258] sm:$0xff]
      %v247 = vld [vmem:[%s1 + $0x260] sm:$0xff]
      %v248 = vld [vmem:[%s1 + $0x268] sm:$0xff]
      %v249 = vld [vmem:[%s1 + $0x270] sm:$0xff]
      %v250 = vld [vmem:[%s1 + $0x278] sm:$0xff]
      %v251 = vld [vmem:[%s1 + $0x280] sm:$0xff]
      %v252 = vld [vmem:[%s1 + $0x288] sm:$0xff]
      %v253 = vld [vmem:[%s1 + $0x290] sm:$0xff]
      %v254 = vld [vmem:[%s1 + $0x298] sm:$0xff]
      %v255 = vld [vmem:[%s1 + $0x2a0] sm:$0xff]
      %v256 = vld [vmem:[%s1 + $0x2a8] sm:$0xff]
      %v257 = vld [vmem:[%s1 + $0x2b0] sm:$0xff]
      %v258 = vld [vmem:[%s1 + $0x2b8] sm:$0xff]
      %v259 = vld [vmem:[%s1 + $0x2c0] sm:$0xff]
      %v260 = vld [vmem:[%s1 + $0x2c8] sm:$0xff]
      %v261 = vld [vmem:[%s1 + $0x2d0] sm:$0xff]
      %v262 = vld [vmem:[%s1 + $0x2d8] sm:$0xff]
      %v263 = vld [vmem:[%s1 + $0x2e0] sm:$0xff]
      %v264 = vld [vmem:[%s1 + $0x2e8] sm:$0xff]
      %v265 = vld [vmem:[%s1 + $0x2f0] sm:$0xff]
      %v266 = vld [vmem:[%s1 + $0x2f8] sm:$0xff]
      %v267 = vld [vmem:[%s1 + $0x300] sm:$0xff]
      %v268 = vld [vmem:[%s1 + $0x308] sm:$0xff]
      %v269 = vld [vmem:[%s1 + $0x310] sm:$0xff]
      %v270 = vld [vmem:[%s1 + $0x318] sm:$0xff]
      %v271 = vld [vmem:[%s1 + $0x320] sm:$0xff]
      %v272 = vld [vmem:[%s1 + $0x328] sm:$0xff]
      %v273 = vld [vmem:[%s1 + $0x330] sm:$0xff]
      %v274 = vld [vmem:[%s1 + $0x338] sm:$0xff]
      %v275 = vld [vmem:[%s1 + $0x340] sm:$0xff]
      %v276 = vld [vmem:[%s1 + $0x348] sm:$0xff]
      %v277 = vld [vmem:[%s1 + $0x350] sm:$0xff]
      %v278 = vld [vmem:[%s1 + $0x358] sm:$0xff]
      %v279 = vld [vmem:[%s1 + $0x360] sm:$0xff]
      %v280 = vld [vmem:[%s1 + $0x368] sm:$0xff]
      %v281 = vld [vmem:[%s1 + $0x370] sm:$0xff]
      %v282 = vld [vmem:[%s1 + $0x378] sm:$0xff]
      %v283 = vld [vmem:[%s165] sm:$0xff]
      %v284 = vld [vmem:[%s165 + $0x8] sm:$0xff]
      %v285 = vld [vmem:[%s165 + $0x10] sm:$0xff]
      %v286 = vld [vmem:[%s165 + $0x18] sm:$0xff]
      %v287 = vld [vmem:[%s165 + $0x20] sm:$0xff]
      %v288 = vld [vmem:[%s165 + $0x28] sm:$0xff]
      %v289 = vld [vmem:[%s165 + $0x30] sm:$0xff]
      %v290 = vld [vmem:[%s165 + $0x38] sm:$0xff]
      %v291 = vld [vmem:[%s165 + $0x40] sm:$0xff]
      %v292 = vld [vmem:[%s165 + $0x48] sm:$0xff]
      %v293 = vld [vmem:[%s165 + $0x50] sm:$0xff]
      %v294 = vld [vmem:[%s165 + $0x58] sm:$0xff]
      %v295 = vld [vmem:[%s165 + $0x60] sm:$0xff]
      %v296 = vld [vmem:[%s165 + $0x68] sm:$0xff]
      %v297 = vld [vmem:[%s165 + $0x70] sm:$0xff]
      %v298 = vld [vmem:[%s165 + $0x78] sm:$0xff]
      %v299 = vld [vmem:[%s165 + $0x80] sm:$0xff]
      %v300 = vld [vmem:[%s165 + $0x88] sm:$0xff]
      %v301 = vld [vmem:[%s165 + $0x90] sm:$0xff]
      %v302 = vld [vmem:[%s165 + $0x98] sm:$0xff]
      %v303 = vld [vmem:[%s165 + $0xa0] sm:$0xff]
      %v304 = vld [vmem:[%s165 + $0xa8] sm:$0xff]
      %v305 = vld [vmem:[%s165 + $0xb0] sm:$0xff]
      %v306 = vld [vmem:[%s165 + $0xb8] sm:$0xff]
      %v307 = vld [vmem:[%s165 + $0xc0] sm:$0xff]
      %v308 = vld [vmem:[%s165 + $0xc8] sm:$0xff]
      %v309 = vld [vmem:[%s165 + $0xd0] sm:$0xff]
      %v310 = vld [vmem:[%s165 + $0xd8] sm:$0xff]
      %v311 = vld [vmem:[%s165 + $0xe0] sm:$0xff]
      %v312 = vld [vmem:[%s165 + $0xe8] sm:$0xff]
      %v313 = vld [vmem:[%s165 + $0xf0] sm:$0xff]
      %v314 = vld [vmem:[%s165 + $0xf8] sm:$0xff]
      %v315 = vld [vmem:[%s165 + $0x100] sm:$0xff]
      %v316 = vld [vmem:[%s165 + $0x108] sm:$0xff]
      %v317 = vld [vmem:[%s165 + $0x110] sm:$0xff]
      %v318 = vld [vmem:[%s165 + $0x118] sm:$0xff]
      %v319 = vld [vmem:[%s165 + $0x120] sm:$0xff]
      %v320 = vld [vmem:[%s165 + $0x128] sm:$0xff]
      %v321 = vld [vmem:[%s165 + $0x130] sm:$0xff]
      %v322 = vld [vmem:[%s165 + $0x138] sm:$0xff]
      %v323 = vld [vmem:[%s165 + $0x140] sm:$0xff]
      %v324 = vld [vmem:[%s165 + $0x148] sm:$0xff]
      %v325 = vld [vmem:[%s165 + $0x150] sm:$0xff]
      %v326 = vld [vmem:[%s165 + $0x158] sm:$0xff]
      %v327 = vld [vmem:[%s165 + $0x160] sm:$0xff]
      %v328 = vld [vmem:[%s165 + $0x168] sm:$0xff]
      %v329 = vld [vmem:[%s165 + $0x170] sm:$0xff]
      %v330 = vld [vmem:[%s165 + $0x178] sm:$0xff]
      %v331 = vld [vmem:[%s165 + $0x180] sm:$0xff]
      %v332 = vld [vmem:[%s165 + $0x188] sm:$0xff]
      %v333 = vld [vmem:[%s165 + $0x190] sm:$0xff]
      %v334 = vld [vmem:[%s165 + $0x198] sm:$0xff]
      %v335 = vld [vmem:[%s165 + $0x1a0] sm:$0xff]
      %v336 = vld [vmem:[%s165 + $0x1a8] sm:$0xff]
      %v337 = vld [vmem:[%s165 + $0x1b0] sm:$0xff]
      %v338 = vld [vmem:[%s165 + $0x1b8] sm:$0xff]
      %v339 = vld [vmem:[%s165 + $0x1c0] sm:$0xff]
      %v340 = vld [vmem:[%s165 + $0x1c8] sm:$0xff]
      %v341 = vld [vmem:[%s165 + $0x1d0] sm:$0xff]
      %v342 = vld [vmem:[%s165 + $0x1d8] sm:$0xff]
      %v343 = vld [vmem:[%s165 + $0x1e0] sm:$0xff]
      %v344 = vld [vmem:[%s165 + $0x1e8] sm:$0xff]
      %v345 = vld [vmem:[%s165 + $0x1f0] sm:$0xff]
      %v346 = vld [vmem:[%s165 + $0x1f8] sm:$0xff]
      %v347 = vld [vmem:[%s165 + $0x200] sm:$0xff]
      %v348 = vld [vmem:[%s165 + $0x208] sm:$0xff]
      %v349 = vld [vmem:[%s165 + $0x210] sm:$0xff]
      %v350 = vld [vmem:[%s165 + $0x218] sm:$0xff]
      %v351 = vld [vmem:[%s165 + $0x220] sm:$0xff]
      %v352 = vld [vmem:[%s165 + $0x228] sm:$0xff]
      %v353 = vld [vmem:[%s165 + $0x230] sm:$0xff]
      %v354 = vld [vmem:[%s165 + $0x238] sm:$0xff]
      %v355 = vld [vmem:[%s165 + $0x240] sm:$0xff]
      %v356 = vld [vmem:[%s165 + $0x248] sm:$0xff]
      %v357 = vld [vmem:[%s165 + $0x250] sm:$0xff]
      %v358 = vld [vmem:[%s165 + $0x258] sm:$0xff]
      %v359 = vld [vmem:[%s165 + $0x260] sm:$0xff]
      %v360 = vld [vmem:[%s165 + $0x268] sm:$0xff]
      %v361 = vld [vmem:[%s165 + $0x270] sm:$0xff]
      %v362 = vld [vmem:[%s165 + $0x278] sm:$0xff]
      %v363 = vld [vmem:[%s165 + $0x280] sm:$0xff]
      %v364 = vld [vmem:[%s165 + $0x288] sm:$0xff]
      %v365 = vld [vmem:[%s165 + $0x290] sm:$0xff]
      %v366 = vld [vmem:[%s165 + $0x298] sm:$0xff]
      %v367 = vld [vmem:[%s165 + $0x2a0] sm:$0xff]
      %v368 = vld [vmem:[%s165 + $0x2a8] sm:$0xff]
      %v369 = vld [vmem:[%s165 + $0x2b0] sm:$0xff]
      %v370 = vld [vmem:[%s165 + $0x2b8] sm:$0xff]
      %v371 = vld [vmem:[%s165 + $0x2c0] sm:$0xff]
      %v372 = vld [vmem:[%s165 + $0x2c8] sm:$0xff]
      %v373 = vld [vmem:[%s165 + $0x2d0] sm:$0xff]
      %v374 = vld [vmem:[%s165 + $0x2d8] sm:$0xff]
      %v375 = vld [vmem:[%s165 + $0x2e0] sm:$0xff]
      %v376 = vld [vmem:[%s165 + $0x2e8] sm:$0xff]
      %v377 = vld [vmem:[%s165 + $0x2f0] sm:$0xff]
      %v378 = vld [vmem:[%s165 + $0x2f8] sm:$0xff]
      %v379 = vld [vmem:[%s165 + $0x300] sm:$0xff]
      %v380 = vld [vmem:[%s165 + $0x308] sm:$0xff]
      %v381 = vld [vmem:[%s165 + $0x310] sm:$0xff]
      %v382 = vld [vmem:[%s165 + $0x318] sm:$0xff]
      %v383 = vld [vmem:[%s165 + $0x320] sm:$0xff]
      %v384 = vld [vmem:[%s165 + $0x328] sm:$0xff]
      %v385 = vld [vmem:[%s165 + $0x330] sm:$0xff]
      %v386 = vld [vmem:[%s165 + $0x338] sm:$0xff]
      %v387 = vld [vmem:[%s165 + $0x340] sm:$0xff]
      %v388 = vld [vmem:[%s165 + $0x348] sm:$0xff]
      %v389 = vld [vmem:[%s165 + $0x350] sm:$0xff]
      %v390 = vld [vmem:[%s165 + $0x358] sm:$0xff]
      %v391 = vld [vmem:[%s165 + $0x360] sm:$0xff]
      %v392 = vld [vmem:[%s165 + $0x368] sm:$0xff]
      %v393 = vld [vmem:[%s165 + $0x370] sm:$0xff]
      %v394 = vld [vmem:[%s165 + $0x378] sm:$0xff]
      %v395 = vmul.f32 %v283, %v171
      %v396 = vmul.f32 %v284, %v172
      %v397 = vmul.f32 %v285, %v173
      %v398 = vmul.f32 %v286, %v174
      %v399 = vmul.f32 %v287, %v175
      %v400 = vmul.f32 %v288, %v176
      %v401 = vmul.f32 %v289, %v177
      %v402 = vmul.f32 %v290, %v178
      %v403 = vmul.f32 %v291, %v179
      %v404 = vmul.f32 %v292, %v180
      %v405 = vmul.f32 %v293, %v181
      %v406 = vmul.f32 %v294, %v182
      %v407 = vmul.f32 %v295, %v183
      %v408 = vmul.f32 %v296, %v184
      %v409 = vmul.f32 %v297, %v185
      %v410 = vmul.f32 %v298, %v186
      %v411 = vmul.f32 %v299, %v187
      %v412 = vmul.f32 %v300, %v188
      %v413 = vmul.f32 %v301, %v189
      %v414 = vmul.f32 %v302, %v190
      %v415 = vmul.f32 %v303, %v191
      %v416 = vmul.f32 %v304, %v192
      %v417 = vmul.f32 %v305, %v193
      %v418 = vmul.f32 %v306, %v194
      %v419 = vmul.f32 %v307, %v195
      %v420 = vmul.f32 %v308, %v196
      %v421 = vmul.f32 %v309, %v197
      %v422 = vmul.f32 %v310, %v198
      %v423 = vmul.f32 %v311, %v199
      %v424 = vmul.f32 %v312, %v200
      %v425 = vmul.f32 %v313, %v201
      %v426 = vmul.f32 %v314, %v202
      %v427 = vmul.f32 %v315, %v203
      %v428 = vmul.f32 %v316, %v204
      %v429 = vmul.f32 %v317, %v205
      %v430 = vmul.f32 %v318, %v206
      %v431 = vmul.f32 %v319, %v207
      %v432 = vmul.f32 %v320, %v208
      %v433 = vmul.f32 %v321, %v209
      %v434 = vmul.f32 %v322, %v210
      %v435 = vmul.f32 %v323, %v211
      %v436 = vmul.f32 %v324, %v212
      %v437 = vmul.f32 %v325, %v213
      %v438 = vmul.f32 %v326, %v214
      %v439 = vmul.f32 %v327, %v215
      %v440 = vmul.f32 %v328, %v216
      %v441 = vmul.f32 %v329, %v217
      %v442 = vmul.f32 %v330, %v218
      %v443 = vmul.f32 %v331, %v219
      %v444 = vmul.f32 %v332, %v220
      %v445 = vmul.f32 %v333, %v221
      %v446 = vmul.f32 %v334, %v222
      %v447 = vmul.f32 %v335, %v223
      %v448 = vmul.f32 %v336, %v224
      %v449 = vmul.f32 %v337, %v225
      %v450 = vmul.f32 %v338, %v226
      %v451 = vmul.f32 %v339, %v227
      %v452 = vmul.f32 %v340, %v228
      %v453 = vmul.f32 %v341, %v229
      %v454 = vmul.f32 %v342, %v230
      %v455 = vmul.f32 %v343, %v231
      %v456 = vmul.f32 %v344, %v232
      %v457 = vmul.f32 %v345, %v233
      %v458 = vmul.f32 %v346, %v234
      %v459 = vmul.f32 %v347, %v235
      %v460 = vmul.f32 %v348, %v236
      %v461 = vmul.f32 %v349, %v237
      %v462 = vmul.f32 %v350, %v238
      %v463 = vmul.f32 %v351, %v239
      %v464 = vmul.f32 %v352, %v240
      %v465 = vmul.f32 %v353, %v241
      %v466 = vmul.f32 %v354, %v242
      %v467 = vmul.f32 %v355, %v243
      %v468 = vmul.f32 %v356, %v244
      %v469 = vmul.f32 %v357, %v245
      %v470 = vmul.f32 %v358, %v246
      %v471 = vmul.f32 %v359, %v247
      %v472 = vmul.f32 %v360, %v248
      %v473 = vmul.f32 %v361, %v249
      %v474 = vmul.f32 %v362, %v250
      %v475 = vmul.f32 %v363, %v251
      %v476 = vmul.f32 %v364, %v252
      %v477 = vmul.f32 %v365, %v253
      %v478 = vmul.f32 %v366, %v254
      %v479 = vmul.f32 %v367, %v255
      %v480 = vmul.f32 %v368, %v256
      %v481 = vmul.f32 %v369, %v257
      %v482 = vmul.f32 %v370, %v258
      %v483 = vmul.f32 %v371, %v259
      %v484 = vmul.f32 %v372, %v260
      %v485 = vmul.f32 %v373, %v261
      %v486 = vmul.f32 %v374, %v262
      %v487 = vmul.f32 %v375, %v263
      %v488 = vmul.f32 %v376, %v264
      %v489 = vmul.f32 %v377, %v265
      %v490 = vmul.f32 %v378, %v266
      %v491 = vmul.f32 %v379, %v267
      %v492 = vmul.f32 %v380, %v268
      %v493 = vmul.f32 %v381, %v269
      %v494 = vmul.f32 %v382, %v270
      %v495 = vmul.f32 %v383, %v271
      %v496 = vmul.f32 %v384, %v272
      %v497 = vmul.f32 %v385, %v273
      %v498 = vmul.f32 %v386, %v274
      %v499 = vmul.f32 %v387, %v275
      %v500 = vmul.f32 %v388, %v276
      %v501 = vmul.f32 %v389, %v277
      %v502 = vmul.f32 %v390, %v278
      %v503 = vmul.f32 %v391, %v279
      %v504 = vmul.f32 %v392, %v280
      %v505 = vmul.f32 %v393, %v281
      %v506 = vmul.f32 %v394, %v282
      %v507 = vadd.f32 %v395, %v403
      %v508 = vadd.f32 %v507, %v411
      %v509 = vadd.f32 %v508, %v419
      %v510 = vadd.f32 %v509, %v427
      %v511 = vadd.f32 %v510, %v435
      %v512 = vadd.f32 %v511, %v443
      %v513 = vadd.f32 %v512, %v451
      %v514 = vadd.f32 %v513, %v459
      %v515 = vadd.f32 %v514, %v467
      %v516 = vadd.f32 %v515, %v475
      %v517 = vadd.f32 %v516, %v483
      %v518 = vadd.f32 %v517, %v491
      %v519 = vadd.f32 %v518, %v499
      %v520 = vrot.slane %v519, 4
      %v521 = vadd.f32 %v519, %v520
      %v522 = vrot.slane %v521, 2
      %v523 = vadd.f32 %v521, %v522
      %v524 = vrot.slane %v523, 1
      %v525 = vadd.f32 %v523, %v524
      %v526 = vadd.f32 %v396, %v404
      %v527 = vadd.f32 %v526, %v412
      %v528 = vadd.f32 %v527, %v420
      %v529 = vadd.f32 %v528, %v428
      %v530 = vadd.f32 %v529, %v436
      %v531 = vadd.f32 %v530, %v444
      %v532 = vadd.f32 %v531, %v452
      %v533 = vadd.f32 %v532, %v460
      %v534 = vadd.f32 %v533, %v468
      %v535 = vadd.f32 %v534, %v476
      %v536 = vadd.f32 %v535, %v484
      %v537 = vadd.f32 %v536, %v492
      %v538 = vadd.f32 %v537, %v500
      %v539 = vrot.slane %v538, 4
      %v540 = vadd.f32 %v538, %v539
      %v541 = vrot.slane %v540, 2
      %v542 = vadd.f32 %v540, %v541
      %v543 = vrot.slane %v542, 1
      %v544 = vadd.f32 %v542, %v543
      %v545 = vadd.f32 %v397, %v405
      %v546 = vadd.f32 %v545, %v413
      %v547 = vadd.f32 %v546, %v421
      %v548 = vadd.f32 %v547, %v429
      %v549 = vadd.f32 %v548, %v437
      %v550 = vadd.f32 %v549, %v445
      %v551 = vadd.f32 %v550, %v453
      %v552 = vadd.f32 %v551, %v461
      %v553 = vadd.f32 %v552, %v469
      %v554 = vadd.f32 %v553, %v477
      %v555 = vadd.f32 %v554, %v485
      %v556 = vadd.f32 %v555, %v493
      %v557 = vadd.f32 %v556, %v501
      %v558 = vrot.slane %v557, 4
      %v559 = vadd.f32 %v557, %v558
      %v560 = vrot.slane %v559, 2
      %v561 = vadd.f32 %v559, %v560
      %v562 = vrot.slane %v561, 1
      %v563 = vadd.f32 %v561, %v562
      %v564 = vadd.f32 %v398, %v406
      %v565 = vadd.f32 %v564, %v414
      %v566 = vadd.f32 %v565, %v422
      %v567 = vadd.f32 %v566, %v430
      %v568 = vadd.f32 %v567, %v438
      %v569 = vadd.f32 %v568, %v446
      %v570 = vadd.f32 %v569, %v454
      %v571 = vadd.f32 %v570, %v462
      %v572 = vadd.f32 %v571, %v470
      %v573 = vadd.f32 %v572, %v478
      %v574 = vadd.f32 %v573, %v486
      %v575 = vadd.f32 %v574, %v494
      %v576 = vadd.f32 %v575, %v502
      %v577 = vrot.slane %v576, 4
      %v578 = vadd.f32 %v576, %v577
      %v579 = vrot.slane %v578, 2
      %v580 = vadd.f32 %v578, %v579
      %v581 = vrot.slane %v580, 1
      %v582 = vadd.f32 %v580, %v581
      %v583 = vadd.f32 %v399, %v407
      %v584 = vadd.f32 %v583, %v415
      %v585 = vadd.f32 %v584, %v423
      %v586 = vadd.f32 %v585, %v431
      %v587 = vadd.f32 %v586, %v439
      %v588 = vadd.f32 %v587, %v447
      %v589 = vadd.f32 %v588, %v455
      %v590 = vadd.f32 %v589, %v463
      %v591 = vadd.f32 %v590, %v471
      %v592 = vadd.f32 %v591, %v479
      %v593 = vadd.f32 %v592, %v487
      %v594 = vadd.f32 %v593, %v495
      %v595 = vadd.f32 %v594, %v503
      %v596 = vrot.slane %v595, 4
      %v597 = vadd.f32 %v595, %v596
      %v598 = vrot.slane %v597, 2
      %v599 = vadd.f32 %v597, %v598
      %v600 = vrot.slane %v599, 1
      %v601 = vadd.f32 %v599, %v600
      %v602 = vadd.f32 %v400, %v408
      %v603 = vadd.f32 %v602, %v416
      %v604 = vadd.f32 %v603, %v424
      %v605 = vadd.f32 %v604, %v432
      %v606 = vadd.f32 %v605, %v440
      %v607 = vadd.f32 %v606, %v448
      %v608 = vadd.f32 %v607, %v456
      %v609 = vadd.f32 %v608, %v464
      %v610 = vadd.f32 %v609, %v472
      %v611 = vadd.f32 %v610, %v480
      %v612 = vadd.f32 %v611, %v488
      %v613 = vadd.f32 %v612, %v496
      %v614 = vadd.f32 %v613, %v504
      %v615 = vrot.slane %v614, 4
      %v616 = vadd.f32 %v614, %v615
      %v617 = vrot.slane %v616, 2
      %v618 = vadd.f32 %v616, %v617
      %v619 = vrot.slane %v618, 1
      %v620 = vadd.f32 %v618, %v619
      %v621 = vadd.f32 %v401, %v409
      %v622 = vadd.f32 %v621, %v417
      %v623 = vadd.f32 %v622, %v425
      %v624 = vadd.f32 %v623, %v433
      %v625 = vadd.f32 %v624, %v441
      %v626 = vadd.f32 %v625, %v449
      %v627 = vadd.f32 %v626, %v457
      %v628 = vadd.f32 %v627, %v465
      %v629 = vadd.f32 %v628, %v473
      %v630 = vadd.f32 %v629, %v481
      %v631 = vadd.f32 %v630, %v489
      %v632 = vadd.f32 %v631, %v497
      %v633 = vadd.f32 %v632, %v505
      %v634 = vrot.slane %v633, 4
      %v635 = vadd.f32 %v633, %v634
      %v636 = vrot.slane %v635, 2
      %v637 = vadd.f32 %v635, %v636
      %v638 = vrot.slane %v637, 1
      %v639 = vadd.f32 %v637, %v638
      %v640 = vadd.f32 %v402, %v410
      %v641 = vadd.f32 %v640, %v418
      %v642 = vadd.f32 %v641, %v426
      %v643 = vadd.f32 %v642, %v434
      %v644 = vadd.f32 %v643, %v442
      %v645 = vadd.f32 %v644, %v450
      %v646 = vadd.f32 %v645, %v458
      %v647 = vadd.f32 %v646, %v466
      %v648 = vadd.f32 %v647, %v474
      %v649 = vadd.f32 %v648, %v482
      %v650 = vadd.f32 %v649, %v490
      %v651 = vadd.f32 %v650, %v498
      %v652 = vadd.f32 %v651, %v506
      %v653 = vrot.slane %v652, 4
      %v654 = vadd.f32 %v652, %v653
      %v655 = vrot.slane %v654, 2
      %v656 = vadd.f32 %v654, %v655
      %v657 = vrot.slane %v656, 1
      %v658 = vadd.f32 %v656, %v657
      %s659 = scalar_lea.vmem %s165, 896
      %v660 = vld [vmem:[%s659] sm:$0xff]
      %v661 = vld [vmem:[%s659 + $0x8] sm:$0xff]
      %v662 = vld [vmem:[%s659 + $0x10] sm:$0xff]
      %v663 = vld [vmem:[%s659 + $0x18] sm:$0xff]
      %v664 = vld [vmem:[%s659 + $0x20] sm:$0xff]
      %v665 = vld [vmem:[%s659 + $0x28] sm:$0xff]
      %v666 = vld [vmem:[%s659 + $0x30] sm:$0xff]
      %v667 = vld [vmem:[%s659 + $0x38] sm:$0xff]
      %v668 = vld [vmem:[%s659 + $0x40] sm:$0xff]
      %v669 = vld [vmem:[%s659 + $0x48] sm:$0xff]
      %v670 = vld [vmem:[%s659 + $0x50] sm:$0xff]
      %v671 = vld [vmem:[%s659 + $0x58] sm:$0xff]
      %v672 = vld [vmem:[%s659 + $0x60] sm:$0xff]
      %v673 = vld [vmem:[%s659 + $0x68] sm:$0xff]
      %v674 = vld [vmem:[%s659 + $0x70] sm:$0xff]
      %v675 = vld [vmem:[%s659 + $0x78] sm:$0xff]
      %v676 = vld [vmem:[%s659 + $0x80] sm:$0xff]
      %v677 = vld [vmem:[%s659 + $0x88] sm:$0xff]
      %v678 = vld [vmem:[%s659 + $0x90] sm:$0xff]
      %v679 = vld [vmem:[%s659 + $0x98] sm:$0xff]
      %v680 = vld [vmem:[%s659 + $0xa0] sm:$0xff]
      %v681 = vld [vmem:[%s659 + $0xa8] sm:$0xff]
      %v682 = vld [vmem:[%s659 + $0xb0] sm:$0xff]
      %v683 = vld [vmem:[%s659 + $0xb8] sm:$0xff]
      %v684 = vld [vmem:[%s659 + $0xc0] sm:$0xff]
      %v685 = vld [vmem:[%s659 + $0xc8] sm:$0xff]
      %v686 = vld [vmem:[%s659 + $0xd0] sm:$0xff]
      %v687 = vld [vmem:[%s659 + $0xd8] sm:$0xff]
      %v688 = vld [vmem:[%s659 + $0xe0] sm:$0xff]
      %v689 = vld [vmem:[%s659 + $0xe8] sm:$0xff]
      %v690 = vld [vmem:[%s659 + $0xf0] sm:$0xff]
      %v691 = vld [vmem:[%s659 + $0xf8] sm:$0xff]
      %v692 = vld [vmem:[%s659 + $0x100] sm:$0xff]
      %v693 = vld [vmem:[%s659 + $0x108] sm:$0xff]
      %v694 = vld [vmem:[%s659 + $0x110] sm:$0xff]
      %v695 = vld [vmem:[%s659 + $0x118] sm:$0xff]
      %v696 = vld [vmem:[%s659 + $0x120] sm:$0xff]
      %v697 = vld [vmem:[%s659 + $0x128] sm:$0xff]
      %v698 = vld [vmem:[%s659 + $0x130] sm:$0xff]
      %v699 = vld [vmem:[%s659 + $0x138] sm:$0xff]
      %v700 = vld [vmem:[%s659 + $0x140] sm:$0xff]
      %v701 = vld [vmem:[%s659 + $0x148] sm:$0xff]
      %v702 = vld [vmem:[%s659 + $0x150] sm:$0xff]
      %v703 = vld [vmem:[%s659 + $0x158] sm:$0xff]
      %v704 = vld [vmem:[%s659 + $0x160] sm:$0xff]
      %v705 = vld [vmem:[%s659 + $0x168] sm:$0xff]
      %v706 = vld [vmem:[%s659 + $0x170] sm:$0xff]
      %v707 = vld [vmem:[%s659 + $0x178] sm:$0xff]
      %v708 = vld [vmem:[%s659 + $0x180] sm:$0xff]
      %v709 = vld [vmem:[%s659 + $0x188] sm:$0xff]
      %v710 = vld [vmem:[%s659 + $0x190] sm:$0xff]
      %v711 = vld [vmem:[%s659 + $0x198] sm:$0xff]
      %v712 = vld [vmem:[%s659 + $0x1a0] sm:$0xff]
      %v713 = vld [vmem:[%s659 + $0x1a8] sm:$0xff]
      %v714 = vld [vmem:[%s659 + $0x1b0] sm:$0xff]
      %v715 = vld [vmem:[%s659 + $0x1b8] sm:$0xff]
      %v716 = vld [vmem:[%s659 + $0x1c0] sm:$0xff]
      %v717 = vld [vmem:[%s659 + $0x1c8] sm:$0xff]
      %v718 = vld [vmem:[%s659 + $0x1d0] sm:$0xff]
      %v719 = vld [vmem:[%s659 + $0x1d8] sm:$0xff]
      %v720 = vld [vmem:[%s659 + $0x1e0] sm:$0xff]
      %v721 = vld [vmem:[%s659 + $0x1e8] sm:$0xff]
      %v722 = vld [vmem:[%s659 + $0x1f0] sm:$0xff]
      %v723 = vld [vmem:[%s659 + $0x1f8] sm:$0xff]
      %v724 = vld [vmem:[%s659 + $0x200] sm:$0xff]
      %v725 = vld [vmem:[%s659 + $0x208] sm:$0xff]
      %v726 = vld [vmem:[%s659 + $0x210] sm:$0xff]
      %v727 = vld [vmem:[%s659 + $0x218] sm:$0xff]
      %v728 = vld [vmem:[%s659 + $0x220] sm:$0xff]
      %v729 = vld [vmem:[%s659 + $0x228] sm:$0xff]
      %v730 = vld [vmem:[%s659 + $0x230] sm:$0xff]
      %v731 = vld [vmem:[%s659 + $0x238] sm:$0xff]
      %v732 = vld [vmem:[%s659 + $0x240] sm:$0xff]
      %v733 = vld [vmem:[%s659 + $0x248] sm:$0xff]
      %v734 = vld [vmem:[%s659 + $0x250] sm:$0xff]
      %v735 = vld [vmem:[%s659 + $0x258] sm:$0xff]
      %v736 = vld [vmem:[%s659 + $0x260] sm:$0xff]
      %v737 = vld [vmem:[%s659 + $0x268] sm:$0xff]
      %v738 = vld [vmem:[%s659 + $0x270] sm:$0xff]
      %v739 = vld [vmem:[%s659 + $0x278] sm:$0xff]
      %v740 = vld [vmem:[%s659 + $0x280] sm:$0xff]
      %v741 = vld [vmem:[%s659 + $0x288] sm:$0xff]
      %v742 = vld [vmem:[%s659 + $0x290] sm:$0xff]
      %v743 = vld [vmem:[%s659 + $0x298] sm:$0xff]
      %v744 = vld [vmem:[%s659 + $0x2a0] sm:$0xff]
      %v745 = vld [vmem:[%s659 + $0x2a8] sm:$0xff]
      %v746 = vld [vmem:[%s659 + $0x2b0] sm:$0xff]
      %v747 = vld [vmem:[%s659 + $0x2b8] sm:$0xff]
      %v748 = vld [vmem:[%s659 + $0x2c0] sm:$0xff]
      %v749 = vld [vmem:[%s659 + $0x2c8] sm:$0xff]
      %v750 = vld [vmem:[%s659 + $0x2d0] sm:$0xff]
      %v751 = vld [vmem:[%s659 + $0x2d8] sm:$0xff]
      %v752 = vld [vmem:[%s659 + $0x2e0] sm:$0xff]
      %v753 = vld [vmem:[%s659 + $0x2e8] sm:$0xff]
      %v754 = vld [vmem:[%s659 + $0x2f0] sm:$0xff]
      %v755 = vld [vmem:[%s659 + $0x2f8] sm:$0xff]
      %v756 = vld [vmem:[%s659 + $0x300] sm:$0xff]
      %v757 = vld [vmem:[%s659 + $0x308] sm:$0xff]
      %v758 = vld [vmem:[%s659 + $0x310] sm:$0xff]
      %v759 = vld [vmem:[%s659 + $0x318] sm:$0xff]
      %v760 = vld [vmem:[%s659 + $0x320] sm:$0xff]
      %v761 = vld [vmem:[%s659 + $0x328] sm:$0xff]
      %v762 = vld [vmem:[%s659 + $0x330] sm:$0xff]
      %v763 = vld [vmem:[%s659 + $0x338] sm:$0xff]
      %v764 = vld [vmem:[%s659 + $0x340] sm:$0xff]
      %v765 = vld [vmem:[%s659 + $0x348] sm:$0xff]
      %v766 = vld [vmem:[%s659 + $0x350] sm:$0xff]
      %v767 = vld [vmem:[%s659 + $0x358] sm:$0xff]
      %v768 = vld [vmem:[%s659 + $0x360] sm:$0xff]
      %v769 = vld [vmem:[%s659 + $0x368] sm:$0xff]
      %v770 = vld [vmem:[%s659 + $0x370] sm:$0xff]
      %v771 = vld [vmem:[%s659 + $0x378] sm:$0xff]
      %v772 = vmul.f32 %v660, %v171
      %v773 = vmul.f32 %v661, %v172
      %v774 = vmul.f32 %v662, %v173
      %v775 = vmul.f32 %v663, %v174
      %v776 = vmul.f32 %v664, %v175
      %v777 = vmul.f32 %v665, %v176
      %v778 = vmul.f32 %v666, %v177
      %v779 = vmul.f32 %v667, %v178
      %v780 = vmul.f32 %v668, %v179
      %v781 = vmul.f32 %v669, %v180
      %v782 = vmul.f32 %v670, %v181
      %v783 = vmul.f32 %v671, %v182
      %v784 = vmul.f32 %v672, %v183
      %v785 = vmul.f32 %v673, %v184
      %v786 = vmul.f32 %v674, %v185
      %v787 = vmul.f32 %v675, %v186
      %v788 = vmul.f32 %v676, %v187
      %v789 = vmul.f32 %v677, %v188
      %v790 = vmul.f32 %v678, %v189
      %v791 = vmul.f32 %v679, %v190
      %v792 = vmul.f32 %v680, %v191
      %v793 = vmul.f32 %v681, %v192
      %v794 = vmul.f32 %v682, %v193
      %v795 = vmul.f32 %v683, %v194
      %v796 = vmul.f32 %v684, %v195
      %v797 = vmul.f32 %v685, %v196
      %v798 = vmul.f32 %v686, %v197
      %v799 = vmul.f32 %v687, %v198
      %v800 = vmul.f32 %v688, %v199
      %v801 = vmul.f32 %v689, %v200
      %v802 = vmul.f32 %v690, %v201
      %v803 = vmul.f32 %v691, %v202
      %v804 = vmul.f32 %v692, %v203
      %v805 = vmul.f32 %v693, %v204
      %v806 = vmul.f32 %v694, %v205
      %v807 = vmul.f32 %v695, %v206
      %v808 = vmul.f32 %v696, %v207
      %v809 = vmul.f32 %v697, %v208
      %v810 = vmul.f32 %v698, %v209
      %v811 = vmul.f32 %v699, %v210
      %v812 = vmul.f32 %v700, %v211
      %v813 = vmul.f32 %v701, %v212
      %v814 = vmul.f32 %v702, %v213
      %v815 = vmul.f32 %v703, %v214
      %v816 = vmul.f32 %v704, %v215
      %v817 = vmul.f32 %v705, %v216
      %v818 = vmul.f32 %v706, %v217
      %v819 = vmul.f32 %v707, %v218
      %v820 = vmul.f32 %v708, %v219
      %v821 = vmul.f32 %v709, %v220
      %v822 = vmul.f32 %v710, %v221
      %v823 = vmul.f32 %v711, %v222
      %v824 = vmul.f32 %v712, %v223
      %v825 = vmul.f32 %v713, %v224
      %v826 = vmul.f32 %v714, %v225
      %v827 = vmul.f32 %v715, %v226
      %v828 = vmul.f32 %v716, %v227
      %v829 = vmul.f32 %v717, %v228
      %v830 = vmul.f32 %v718, %v229
      %v831 = vmul.f32 %v719, %v230
      %v832 = vmul.f32 %v720, %v231
      %v833 = vmul.f32 %v721, %v232
      %v834 = vmul.f32 %v722, %v233
      %v835 = vmul.f32 %v723, %v234
      %v836 = vmul.f32 %v724, %v235
      %v837 = vmul.f32 %v725, %v236
      %v838 = vmul.f32 %v726, %v237
      %v839 = vmul.f32 %v727, %v238
      %v840 = vmul.f32 %v728, %v239
      %v841 = vmul.f32 %v729, %v240
      %v842 = vmul.f32 %v730, %v241
      %v843 = vmul.f32 %v731, %v242
      %v844 = vmul.f32 %v732, %v243
      %v845 = vmul.f32 %v733, %v244
      %v846 = vmul.f32 %v734, %v245
      %v847 = vmul.f32 %v735, %v246
      %v848 = vmul.f32 %v736, %v247
      %v849 = vmul.f32 %v737, %v248
      %v850 = vmul.f32 %v738, %v249
      %v851 = vmul.f32 %v739, %v250
      %v852 = vmul.f32 %v740, %v251
      %v853 = vmul.f32 %v741, %v252
      %v854 = vmul.f32 %v742, %v253
      %v855 = vmul.f32 %v743, %v254
      %v856 = vmul.f32 %v744, %v255
      %v857 = vmul.f32 %v745, %v256
      %v858 = vmul.f32 %v746, %v257
      %v859 = vmul.f32 %v747, %v258
      %v860 = vmul.f32 %v748, %v259
      %v861 = vmul.f32 %v749, %v260
      %v862 = vmul.f32 %v750, %v261
      %v863 = vmul.f32 %v751, %v262
      %v864 = vmul.f32 %v752, %v263
      %v865 = vmul.f32 %v753, %v264
      %v866 = vmul.f32 %v754, %v265
      %v867 = vmul.f32 %v755, %v266
      %v868 = vmul.f32 %v756, %v267
      %v869 = vmul.f32 %v757, %v268
      %v870 = vmul.f32 %v758, %v269
      %v871 = vmul.f32 %v759, %v270
      %v872 = vmul.f32 %v760, %v271
      %v873 = vmul.f32 %v761, %v272
      %v874 = vmul.f32 %v762, %v273
      %v875 = vmul.f32 %v763, %v274
      %v876 = vmul.f32 %v764, %v275
      %v877 = vmul.f32 %v765, %v276
      %v878 = vmul.f32 %v766, %v277
      %v879 = vmul.f32 %v767, %v278
      %v880 = vmul.f32 %v768, %v279
      %v881 = vmul.f32 %v769, %v280
      %v882 = vmul.f32 %v770, %v281
      %v883 = vmul.f32 %v771, %v282
      %v884 = vadd.f32 %v772, %v780
      %v885 = vadd.f32 %v884, %v788
      %v886 = vadd.f32 %v885, %v796
      %v887 = vadd.f32 %v886, %v804
      %v888 = vadd.f32 %v887, %v812
      %v889 = vadd.f32 %v888, %v820
      %v890 = vadd.f32 %v889, %v828
      %v891 = vadd.f32 %v890, %v836
      %v892 = vadd.f32 %v891, %v844
      %v893 = vadd.f32 %v892, %v852
      %v894 = vadd.f32 %v893, %v860
      %v895 = vadd.f32 %v894, %v868
      %v896 = vadd.f32 %v895, %v876
      %v897 = vrot.slane %v896, 4
      %v898 = vadd.f32 %v896, %v897
      %v899 = vrot.slane %v898, 2
      %v900 = vadd.f32 %v898, %v899
      %v901 = vrot.slane %v900, 1
      %v902 = vadd.f32 %v900, %v901
      %v903 = vadd.f32 %v773, %v781
      %v904 = vadd.f32 %v903, %v789
      %v905 = vadd.f32 %v904, %v797
      %v906 = vadd.f32 %v905, %v805
      %v907 = vadd.f32 %v906, %v813
      %v908 = vadd.f32 %v907, %v821
      %v909 = vadd.f32 %v908, %v829
      %v910 = vadd.f32 %v909, %v837
      %v911 = vadd.f32 %v910, %v845
      %v912 = vadd.f32 %v911, %v853
      %v913 = vadd.f32 %v912, %v861
      %v914 = vadd.f32 %v913, %v869
      %v915 = vadd.f32 %v914, %v877
      %v916 = vrot.slane %v915, 4
      %v917 = vadd.f32 %v915, %v916
      %v918 = vrot.slane %v917, 2
      %v919 = vadd.f32 %v917, %v918
      %v920 = vrot.slane %v919, 1
      %v921 = vadd.f32 %v919, %v920
      %v922 = vadd.f32 %v774, %v782
      %v923 = vadd.f32 %v922, %v790
      %v924 = vadd.f32 %v923, %v798
      %v925 = vadd.f32 %v924, %v806
      %v926 = vadd.f32 %v925, %v814
      %v927 = vadd.f32 %v926, %v822
      %v928 = vadd.f32 %v927, %v830
      %v929 = vadd.f32 %v928, %v838
      %v930 = vadd.f32 %v929, %v846
      %v931 = vadd.f32 %v930, %v854
      %v932 = vadd.f32 %v931, %v862
      %v933 = vadd.f32 %v932, %v870
      %v934 = vadd.f32 %v933, %v878
      %v935 = vrot.slane %v934, 4
      %v936 = vadd.f32 %v934, %v935
      %v937 = vrot.slane %v936, 2
      %v938 = vadd.f32 %v936, %v937
      %v939 = vrot.slane %v938, 1
      %v940 = vadd.f32 %v938, %v939
      %v941 = vadd.f32 %v775, %v783
      %v942 = vadd.f32 %v941, %v791
      %v943 = vadd.f32 %v942, %v799
      %v944 = vadd.f32 %v943, %v807
      %v945 = vadd.f32 %v944, %v815
      %v946 = vadd.f32 %v945, %v823
      %v947 = vadd.f32 %v946, %v831
      %v948 = vadd.f32 %v947, %v839
      %v949 = vadd.f32 %v948, %v847
      %v950 = vadd.f32 %v949, %v855
      %v951 = vadd.f32 %v950, %v863
      %v952 = vadd.f32 %v951, %v871
      %v953 = vadd.f32 %v952, %v879
      %v954 = vrot.slane %v953, 4
      %v955 = vadd.f32 %v953, %v954
      %v956 = vrot.slane %v955, 2
      %v957 = vadd.f32 %v955, %v956
      %v958 = vrot.slane %v957, 1
      %v959 = vadd.f32 %v957, %v958
      %v960 = vadd.f32 %v776, %v784
      %v961 = vadd.f32 %v960, %v792
      %v962 = vadd.f32 %v961, %v800
      %v963 = vadd.f32 %v962, %v808
      %v964 = vadd.f32 %v963, %v816
      %v965 = vadd.f32 %v964, %v824
      %v966 = vadd.f32 %v965, %v832
      %v967 = vadd.f32 %v966, %v840
      %v968 = vadd.f32 %v967, %v848
      %v969 = vadd.f32 %v968, %v856
      %v970 = vadd.f32 %v969, %v864
      %v971 = vadd.f32 %v970, %v872
      %v972 = vadd.f32 %v971, %v880
      %v973 = vrot.slane %v972, 4
      %v974 = vadd.f32 %v972, %v973
      %v975 = vrot.slane %v974, 2
      %v976 = vadd.f32 %v974, %v975
      %v977 = vrot.slane %v976, 1
      %v978 = vadd.f32 %v976, %v977
      %v979 = vadd.f32 %v777, %v785
      %v980 = vadd.f32 %v979, %v793
      %v981 = vadd.f32 %v980, %v801
      %v982 = vadd.f32 %v981, %v809
      %v983 = vadd.f32 %v982, %v817
      %v984 = vadd.f32 %v983, %v825
      %v985 = vadd.f32 %v984, %v833
      %v986 = vadd.f32 %v985, %v841
      %v987 = vadd.f32 %v986, %v849
      %v988 = vadd.f32 %v987, %v857
      %v989 = vadd.f32 %v988, %v865
      %v990 = vadd.f32 %v989, %v873
      %v991 = vadd.f32 %v990, %v881
      %v992 = vrot.slane %v991, 4
      %v993 = vadd.f32 %v991, %v992
      %v994 = vrot.slane %v993, 2
      %v995 = vadd.f32 %v993, %v994
      %v996 = vrot.slane %v995, 1
      %v997 = vadd.f32 %v995, %v996
      %v998 = vadd.f32 %v778, %v786
      %v999 = vadd.f32 %v998, %v794
      %v1000 = vadd.f32 %v999, %v802
      %v1001 = vadd.f32 %v1000, %v810
      %v1002 = vadd.f32 %v1001, %v818
      %v1003 = vadd.f32 %v1002, %v826
      %v1004 = vadd.f32 %v1003, %v834
      %v1005 = vadd.f32 %v1004, %v842
      %v1006 = vadd.f32 %v1005, %v850
      %v1007 = vadd.f32 %v1006, %v858
      %v1008 = vadd.f32 %v1007, %v866
      %v1009 = vadd.f32 %v1008, %v874
      %v1010 = vadd.f32 %v1009, %v882
      %v1011 = vrot.slane %v1010, 4
      %v1012 = vadd.f32 %v1010, %v1011
      %v1013 = vrot.slane %v1012, 2
      %v1014 = vadd.f32 %v1012, %v1013
      %v1015 = vrot.slane %v1014, 1
      %v1016 = vadd.f32 %v1014, %v1015
      %v1017 = vadd.f32 %v779, %v787
      %v1018 = vadd.f32 %v1017, %v795
      %v1019 = vadd.f32 %v1018, %v803
      %v1020 = vadd.f32 %v1019, %v811
      %v1021 = vadd.f32 %v1020, %v819
      %v1022 = vadd.f32 %v1021, %v827
      %v1023 = vadd.f32 %v1022, %v835
      %v1024 = vadd.f32 %v1023, %v843
      %v1025 = vadd.f32 %v1024, %v851
      %v1026 = vadd.f32 %v1025, %v859
      %v1027 = vadd.f32 %v1026, %v867
      %v1028 = vadd.f32 %v1027, %v875
      %v1029 = vadd.f32 %v1028, %v883
      %v1030 = vrot.slane %v1029, 4
      %v1031 = vadd.f32 %v1029, %v1030
      %v1032 = vrot.slane %v1031, 2
      %v1033 = vadd.f32 %v1031, %v1032
      %v1034 = vrot.slane %v1033, 1
      %v1035 = vadd.f32 %v1033, %v1034
      %s1036 = scalar_lea.vmem %s165, 1792
      %v1037 = vld [vmem:[%s1036] sm:$0xff]
      %v1038 = vld [vmem:[%s1036 + $0x8] sm:$0xff]
      %v1039 = vld [vmem:[%s1036 + $0x10] sm:$0xff]
      %v1040 = vld [vmem:[%s1036 + $0x18] sm:$0xff]
      %v1041 = vld [vmem:[%s1036 + $0x20] sm:$0xff]
      %v1042 = vld [vmem:[%s1036 + $0x28] sm:$0xff]
      %v1043 = vld [vmem:[%s1036 + $0x30] sm:$0xff]
      %v1044 = vld [vmem:[%s1036 + $0x38] sm:$0xff]
      %v1045 = vld [vmem:[%s1036 + $0x40] sm:$0xff]
      %v1046 = vld [vmem:[%s1036 + $0x48] sm:$0xff]
      %v1047 = vld [vmem:[%s1036 + $0x50] sm:$0xff]
      %v1048 = vld [vmem:[%s1036 + $0x58] sm:$0xff]
      %v1049 = vld [vmem:[%s1036 + $0x60] sm:$0xff]
      %v1050 = vld [vmem:[%s1036 + $0x68] sm:$0xff]
      %v1051 = vld [vmem:[%s1036 + $0x70] sm:$0xff]
      %v1052 = vld [vmem:[%s1036 + $0x78] sm:$0xff]
      %v1053 = vld [vmem:[%s1036 + $0x80] sm:$0xff]
      %v1054 = vld [vmem:[%s1036 + $0x88] sm:$0xff]
      %v1055 = vld [vmem:[%s1036 + $0x90] sm:$0xff]
      %v1056 = vld [vmem:[%s1036 + $0x98] sm:$0xff]
      %v1057 = vld [vmem:[%s1036 + $0xa0] sm:$0xff]
      %v1058 = vld [vmem:[%s1036 + $0xa8] sm:$0xff]
      %v1059 = vld [vmem:[%s1036 + $0xb0] sm:$0xff]
      %v1060 = vld [vmem:[%s1036 + $0xb8] sm:$0xff]
      %v1061 = vld [vmem:[%s1036 + $0xc0] sm:$0xff]
      %v1062 = vld [vmem:[%s1036 + $0xc8] sm:$0xff]
      %v1063 = vld [vmem:[%s1036 + $0xd0] sm:$0xff]
      %v1064 = vld [vmem:[%s1036 + $0xd8] sm:$0xff]
      %v1065 = vld [vmem:[%s1036 + $0xe0] sm:$0xff]
      %v1066 = vld [vmem:[%s1036 + $0xe8] sm:$0xff]
      %v1067 = vld [vmem:[%s1036 + $0xf0] sm:$0xff]
      %v1068 = vld [vmem:[%s1036 + $0xf8] sm:$0xff]
      %v1069 = vld [vmem:[%s1036 + $0x100] sm:$0xff]
      %v1070 = vld [vmem:[%s1036 + $0x108] sm:$0xff]
      %v1071 = vld [vmem:[%s1036 + $0x110] sm:$0xff]
      %v1072 = vld [vmem:[%s1036 + $0x118] sm:$0xff]
      %v1073 = vld [vmem:[%s1036 + $0x120] sm:$0xff]
      %v1074 = vld [vmem:[%s1036 + $0x128] sm:$0xff]
      %v1075 = vld [vmem:[%s1036 + $0x130] sm:$0xff]
      %v1076 = vld [vmem:[%s1036 + $0x138] sm:$0xff]
      %v1077 = vld [vmem:[%s1036 + $0x140] sm:$0xff]
      %v1078 = vld [vmem:[%s1036 + $0x148] sm:$0xff]
      %v1079 = vld [vmem:[%s1036 + $0x150] sm:$0xff]
      %v1080 = vld [vmem:[%s1036 + $0x158] sm:$0xff]
      %v1081 = vld [vmem:[%s1036 + $0x160] sm:$0xff]
      %v1082 = vld [vmem:[%s1036 + $0x168] sm:$0xff]
      %v1083 = vld [vmem:[%s1036 + $0x170] sm:$0xff]
      %v1084 = vld [vmem:[%s1036 + $0x178] sm:$0xff]
      %v1085 = vld [vmem:[%s1036 + $0x180] sm:$0xff]
      %v1086 = vld [vmem:[%s1036 + $0x188] sm:$0xff]
      %v1087 = vld [vmem:[%s1036 + $0x190] sm:$0xff]
      %v1088 = vld [vmem:[%s1036 + $0x198] sm:$0xff]
      %v1089 = vld [vmem:[%s1036 + $0x1a0] sm:$0xff]
      %v1090 = vld [vmem:[%s1036 + $0x1a8] sm:$0xff]
      %v1091 = vld [vmem:[%s1036 + $0x1b0] sm:$0xff]
      %v1092 = vld [vmem:[%s1036 + $0x1b8] sm:$0xff]
      %v1093 = vld [vmem:[%s1036 + $0x1c0] sm:$0xff]
      %v1094 = vld [vmem:[%s1036 + $0x1c8] sm:$0xff]
      %v1095 = vld [vmem:[%s1036 + $0x1d0] sm:$0xff]
      %v1096 = vld [vmem:[%s1036 + $0x1d8] sm:$0xff]
      %v1097 = vld [vmem:[%s1036 + $0x1e0] sm:$0xff]
      %v1098 = vld [vmem:[%s1036 + $0x1e8] sm:$0xff]
      %v1099 = vld [vmem:[%s1036 + $0x1f0] sm:$0xff]
      %v1100 = vld [vmem:[%s1036 + $0x1f8] sm:$0xff]
      %v1101 = vld [vmem:[%s1036 + $0x200] sm:$0xff]
      %v1102 = vld [vmem:[%s1036 + $0x208] sm:$0xff]
      %v1103 = vld [vmem:[%s1036 + $0x210] sm:$0xff]
      %v1104 = vld [vmem:[%s1036 + $0x218] sm:$0xff]
      %v1105 = vld [vmem:[%s1036 + $0x220] sm:$0xff]
      %v1106 = vld [vmem:[%s1036 + $0x228] sm:$0xff]
      %v1107 = vld [vmem:[%s1036 + $0x230] sm:$0xff]
      %v1108 = vld [vmem:[%s1036 + $0x238] sm:$0xff]
      %v1109 = vld [vmem:[%s1036 + $0x240] sm:$0xff]
      %v1110 = vld [vmem:[%s1036 + $0x248] sm:$0xff]
      %v1111 = vld [vmem:[%s1036 + $0x250] sm:$0xff]
      %v1112 = vld [vmem:[%s1036 + $0x258] sm:$0xff]
      %v1113 = vld [vmem:[%s1036 + $0x260] sm:$0xff]
      %v1114 = vld [vmem:[%s1036 + $0x268] sm:$0xff]
      %v1115 = vld [vmem:[%s1036 + $0x270] sm:$0xff]
      %v1116 = vld [vmem:[%s1036 + $0x278] sm:$0xff]
      %v1117 = vld [vmem:[%s1036 + $0x280] sm:$0xff]
      %v1118 = vld [vmem:[%s1036 + $0x288] sm:$0xff]
      %v1119 = vld [vmem:[%s1036 + $0x290] sm:$0xff]
      %v1120 = vld [vmem:[%s1036 + $0x298] sm:$0xff]
      %v1121 = vld [vmem:[%s1036 + $0x2a0] sm:$0xff]
      %v1122 = vld [vmem:[%s1036 + $0x2a8] sm:$0xff]
      %v1123 = vld [vmem:[%s1036 + $0x2b0] sm:$0xff]
      %v1124 = vld [vmem:[%s1036 + $0x2b8] sm:$0xff]
      %v1125 = vld [vmem:[%s1036 + $0x2c0] sm:$0xff]
      %v1126 = vld [vmem:[%s1036 + $0x2c8] sm:$0xff]
      %v1127 = vld [vmem:[%s1036 + $0x2d0] sm:$0xff]
      %v1128 = vld [vmem:[%s1036 + $0x2d8] sm:$0xff]
      %v1129 = vld [vmem:[%s1036 + $0x2e0] sm:$0xff]
      %v1130 = vld [vmem:[%s1036 + $0x2e8] sm:$0xff]
      %v1131 = vld [vmem:[%s1036 + $0x2f0] sm:$0xff]
      %v1132 = vld [vmem:[%s1036 + $0x2f8] sm:$0xff]
      %v1133 = vld [vmem:[%s1036 + $0x300] sm:$0xff]
      %v1134 = vld [vmem:[%s1036 + $0x308] sm:$0xff]
      %v1135 = vld [vmem:[%s1036 + $0x310] sm:$0xff]
      %v1136 = vld [vmem:[%s1036 + $0x318] sm:$0xff]
      %v1137 = vld [vmem:[%s1036 + $0x320] sm:$0xff]
      %v1138 = vld [vmem:[%s1036 + $0x328] sm:$0xff]
      %v1139 = vld [vmem:[%s1036 + $0x330] sm:$0xff]
      %v1140 = vld [vmem:[%s1036 + $0x338] sm:$0xff]
      %v1141 = vld [vmem:[%s1036 + $0x340] sm:$0xff]
      %v1142 = vld [vmem:[%s1036 + $0x348] sm:$0xff]
      %v1143 = vld [vmem:[%s1036 + $0x350] sm:$0xff]
      %v1144 = vld [vmem:[%s1036 + $0x358] sm:$0xff]
      %v1145 = vld [vmem:[%s1036 + $0x360] sm:$0xff]
      %v1146 = vld [vmem:[%s1036 + $0x368] sm:$0xff]
      %v1147 = vld [vmem:[%s1036 + $0x370] sm:$0xff]
      %v1148 = vld [vmem:[%s1036 + $0x378] sm:$0xff]
      %v1149 = vmul.f32 %v1037, %v171
      %v1150 = vmul.f32 %v1038, %v172
      %v1151 = vmul.f32 %v1039, %v173
      %v1152 = vmul.f32 %v1040, %v174
      %v1153 = vmul.f32 %v1041, %v175
      %v1154 = vmul.f32 %v1042, %v176
      %v1155 = vmul.f32 %v1043, %v177
      %v1156 = vmul.f32 %v1044, %v178
      %v1157 = vmul.f32 %v1045, %v179
      %v1158 = vmul.f32 %v1046, %v180
      %v1159 = vmul.f32 %v1047, %v181
      %v1160 = vmul.f32 %v1048, %v182
      %v1161 = vmul.f32 %v1049, %v183
      %v1162 = vmul.f32 %v1050, %v184
      %v1163 = vmul.f32 %v1051, %v185
      %v1164 = vmul.f32 %v1052, %v186
      %v1165 = vmul.f32 %v1053, %v187
      %v1166 = vmul.f32 %v1054, %v188
      %v1167 = vmul.f32 %v1055, %v189
      %v1168 = vmul.f32 %v1056, %v190
      %v1169 = vmul.f32 %v1057, %v191
      %v1170 = vmul.f32 %v1058, %v192
      %v1171 = vmul.f32 %v1059, %v193
      %v1172 = vmul.f32 %v1060, %v194
      %v1173 = vmul.f32 %v1061, %v195
      %v1174 = vmul.f32 %v1062, %v196
      %v1175 = vmul.f32 %v1063, %v197
      %v1176 = vmul.f32 %v1064, %v198
      %v1177 = vmul.f32 %v1065, %v199
      %v1178 = vmul.f32 %v1066, %v200
      %v1179 = vmul.f32 %v1067, %v201
      %v1180 = vmul.f32 %v1068, %v202
      %v1181 = vmul.f32 %v1069, %v203
      %v1182 = vmul.f32 %v1070, %v204
      %v1183 = vmul.f32 %v1071, %v205
      %v1184 = vmul.f32 %v1072, %v206
      %v1185 = vmul.f32 %v1073, %v207
      %v1186 = vmul.f32 %v1074, %v208
      %v1187 = vmul.f32 %v1075, %v209
      %v1188 = vmul.f32 %v1076, %v210
      %v1189 = vmul.f32 %v1077, %v211
      %v1190 = vmul.f32 %v1078, %v212
      %v1191 = vmul.f32 %v1079, %v213
      %v1192 = vmul.f32 %v1080, %v214
      %v1193 = vmul.f32 %v1081, %v215
      %v1194 = vmul.f32 %v1082, %v216
      %v1195 = vmul.f32 %v1083, %v217
      %v1196 = vmul.f32 %v1084, %v218
      %v1197 = vmul.f32 %v1085, %v219
      %v1198 = vmul.f32 %v1086, %v220
      %v1199 = vmul.f32 %v1087, %v221
      %v1200 = vmul.f32 %v1088, %v222
      %v1201 = vmul.f32 %v1089, %v223
      %v1202 = vmul.f32 %v1090, %v224
      %v1203 = vmul.f32 %v1091, %v225
      %v1204 = vmul.f32 %v1092, %v226
      %v1205 = vmul.f32 %v1093, %v227
      %v1206 = vmul.f32 %v1094, %v228
      %v1207 = vmul.f32 %v1095, %v229
      %v1208 = vmul.f32 %v1096, %v230
      %v1209 = vmul.f32 %v1097, %v231
      %v1210 = vmul.f32 %v1098, %v232
      %v1211 = vmul.f32 %v1099, %v233
      %v1212 = vmul.f32 %v1100, %v234
      %v1213 = vmul.f32 %v1101, %v235
      %v1214 = vmul.f32 %v1102, %v236
      %v1215 = vmul.f32 %v1103, %v237
      %v1216 = vmul.f32 %v1104, %v238
      %v1217 = vmul.f32 %v1105, %v239
      %v1218 = vmul.f32 %v1106, %v240
      %v1219 = vmul.f32 %v1107, %v241
      %v1220 = vmul.f32 %v1108, %v242
      %v1221 = vmul.f32 %v1109, %v243
      %v1222 = vmul.f32 %v1110, %v244
      %v1223 = vmul.f32 %v1111, %v245
      %v1224 = vmul.f32 %v1112, %v246
      %v1225 = vmul.f32 %v1113, %v247
      %v1226 = vmul.f32 %v1114, %v248
      %v1227 = vmul.f32 %v1115, %v249
      %v1228 = vmul.f32 %v1116, %v250
      %v1229 = vmul.f32 %v1117, %v251
      %v1230 = vmul.f32 %v1118, %v252
      %v1231 = vmul.f32 %v1119, %v253
      %v1232 = vmul.f32 %v1120, %v254
      %v1233 = vmul.f32 %v1121, %v255
      %v1234 = vmul.f32 %v1122, %v256
      %v1235 = vmul.f32 %v1123, %v257
      %v1236 = vmul.f32 %v1124, %v258
      %v1237 = vmul.f32 %v1125, %v259
      %v1238 = vmul.f32 %v1126, %v260
      %v1239 = vmul.f32 %v1127, %v261
      %v1240 = vmul.f32 %v1128, %v262
      %v1241 = vmul.f32 %v1129, %v263
      %v1242 = vmul.f32 %v1130, %v264
      %v1243 = vmul.f32 %v1131, %v265
      %v1244 = vmul.f32 %v1132, %v266
      %v1245 = vmul.f32 %v1133, %v267
      %v1246 = vmul.f32 %v1134, %v268
      %v1247 = vmul.f32 %v1135, %v269
      %v1248 = vmul.f32 %v1136, %v270
      %v1249 = vmul.f32 %v1137, %v271
      %v1250 = vmul.f32 %v1138, %v272
      %v1251 = vmul.f32 %v1139, %v273
      %v1252 = vmul.f32 %v1140, %v274
      %v1253 = vmul.f32 %v1141, %v275
      %v1254 = vmul.f32 %v1142, %v276
      %v1255 = vmul.f32 %v1143, %v277
      %v1256 = vmul.f32 %v1144, %v278
      %v1257 = vmul.f32 %v1145, %v279
      %v1258 = vmul.f32 %v1146, %v280
      %v1259 = vmul.f32 %v1147, %v281
      %v1260 = vmul.f32 %v1148, %v282
      %v1261 = vadd.f32 %v1149, %v1157
      %v1262 = vadd.f32 %v1261, %v1165
      %v1263 = vadd.f32 %v1262, %v1173
      %v1264 = vadd.f32 %v1263, %v1181
      %v1265 = vadd.f32 %v1264, %v1189
      %v1266 = vadd.f32 %v1265, %v1197
      %v1267 = vadd.f32 %v1266, %v1205
      %v1268 = vadd.f32 %v1267, %v1213
      %v1269 = vadd.f32 %v1268, %v1221
      %v1270 = vadd.f32 %v1269, %v1229
      %v1271 = vadd.f32 %v1270, %v1237
      %v1272 = vadd.f32 %v1271, %v1245
      %v1273 = vadd.f32 %v1272, %v1253
      %v1274 = vrot.slane %v1273, 4
      %v1275 = vadd.f32 %v1273, %v1274
      %v1276 = vrot.slane %v1275, 2
      %v1277 = vadd.f32 %v1275, %v1276
      %v1278 = vrot.slane %v1277, 1
      %v1279 = vadd.f32 %v1277, %v1278
      %v1280 = vadd.f32 %v1150, %v1158
      %v1281 = vadd.f32 %v1280, %v1166
      %v1282 = vadd.f32 %v1281, %v1174
      %v1283 = vadd.f32 %v1282, %v1182
      %v1284 = vadd.f32 %v1283, %v1190
      %v1285 = vadd.f32 %v1284, %v1198
      %v1286 = vadd.f32 %v1285, %v1206
      %v1287 = vadd.f32 %v1286, %v1214
      %v1288 = vadd.f32 %v1287, %v1222
      %v1289 = vadd.f32 %v1288, %v1230
      %v1290 = vadd.f32 %v1289, %v1238
      %v1291 = vadd.f32 %v1290, %v1246
      %v1292 = vadd.f32 %v1291, %v1254
      %v1293 = vrot.slane %v1292, 4
      %v1294 = vadd.f32 %v1292, %v1293
      %v1295 = vrot.slane %v1294, 2
      %v1296 = vadd.f32 %v1294, %v1295
      %v1297 = vrot.slane %v1296, 1
      %v1298 = vadd.f32 %v1296, %v1297
      %v1299 = vadd.f32 %v1151, %v1159
      %v1300 = vadd.f32 %v1299, %v1167
      %v1301 = vadd.f32 %v1300, %v1175
      %v1302 = vadd.f32 %v1301, %v1183
      %v1303 = vadd.f32 %v1302, %v1191
      %v1304 = vadd.f32 %v1303, %v1199
      %v1305 = vadd.f32 %v1304, %v1207
      %v1306 = vadd.f32 %v1305, %v1215
      %v1307 = vadd.f32 %v1306, %v1223
      %v1308 = vadd.f32 %v1307, %v1231
      %v1309 = vadd.f32 %v1308, %v1239
      %v1310 = vadd.f32 %v1309, %v1247
      %v1311 = vadd.f32 %v1310, %v1255
      %v1312 = vrot.slane %v1311, 4
      %v1313 = vadd.f32 %v1311, %v1312
      %v1314 = vrot.slane %v1313, 2
      %v1315 = vadd.f32 %v1313, %v1314
      %v1316 = vrot.slane %v1315, 1
      %v1317 = vadd.f32 %v1315, %v1316
      %v1318 = vadd.f32 %v1152, %v1160
      %v1319 = vadd.f32 %v1318, %v1168
      %v1320 = vadd.f32 %v1319, %v1176
      %v1321 = vadd.f32 %v1320, %v1184
      %v1322 = vadd.f32 %v1321, %v1192
      %v1323 = vadd.f32 %v1322, %v1200
      %v1324 = vadd.f32 %v1323, %v1208
      %v1325 = vadd.f32 %v1324, %v1216
      %v1326 = vadd.f32 %v1325, %v1224
      %v1327 = vadd.f32 %v1326, %v1232
      %v1328 = vadd.f32 %v1327, %v1240
      %v1329 = vadd.f32 %v1328, %v1248
      %v1330 = vadd.f32 %v1329, %v1256
      %v1331 = vrot.slane %v1330, 4
      %v1332 = vadd.f32 %v1330, %v1331
      %v1333 = vrot.slane %v1332, 2
      %v1334 = vadd.f32 %v1332, %v1333
      %v1335 = vrot.slane %v1334, 1
      %v1336 = vadd.f32 %v1334, %v1335
      %v1337 = vadd.f32 %v1153, %v1161
      %v1338 = vadd.f32 %v1337, %v1169
      %v1339 = vadd.f32 %v1338, %v1177
      %v1340 = vadd.f32 %v1339, %v1185
      %v1341 = vadd.f32 %v1340, %v1193
      %v1342 = vadd.f32 %v1341, %v1201
      %v1343 = vadd.f32 %v1342, %v1209
      %v1344 = vadd.f32 %v1343, %v1217
      %v1345 = vadd.f32 %v1344, %v1225
      %v1346 = vadd.f32 %v1345, %v1233
      %v1347 = vadd.f32 %v1346, %v1241
      %v1348 = vadd.f32 %v1347, %v1249
      %v1349 = vadd.f32 %v1348, %v1257
      %v1350 = vrot.slane %v1349, 4
      %v1351 = vadd.f32 %v1349, %v1350
      %v1352 = vrot.slane %v1351, 2
      %v1353 = vadd.f32 %v1351, %v1352
      %v1354 = vrot.slane %v1353, 1
      %v1355 = vadd.f32 %v1353, %v1354
      %v1356 = vadd.f32 %v1154, %v1162
      %v1357 = vadd.f32 %v1356, %v1170
      %v1358 = vadd.f32 %v1357, %v1178
      %v1359 = vadd.f32 %v1358, %v1186
      %v1360 = vadd.f32 %v1359, %v1194
      %v1361 = vadd.f32 %v1360, %v1202
      %v1362 = vadd.f32 %v1361, %v1210
      %v1363 = vadd.f32 %v1362, %v1218
      %v1364 = vadd.f32 %v1363, %v1226
      %v1365 = vadd.f32 %v1364, %v1234
      %v1366 = vadd.f32 %v1365, %v1242
      %v1367 = vadd.f32 %v1366, %v1250
      %v1368 = vadd.f32 %v1367, %v1258
      %v1369 = vrot.slane %v1368, 4
      %v1370 = vadd.f32 %v1368, %v1369
      %v1371 = vrot.slane %v1370, 2
      %v1372 = vadd.f32 %v1370, %v1371
      %v1373 = vrot.slane %v1372, 1
      %v1374 = vadd.f32 %v1372, %v1373
      %v1375 = vadd.f32 %v1155, %v1163
      %v1376 = vadd.f32 %v1375, %v1171
      %v1377 = vadd.f32 %v1376, %v1179
      %v1378 = vadd.f32 %v1377, %v1187
      %v1379 = vadd.f32 %v1378, %v1195
      %v1380 = vadd.f32 %v1379, %v1203
      %v1381 = vadd.f32 %v1380, %v1211
      %v1382 = vadd.f32 %v1381, %v1219
      %v1383 = vadd.f32 %v1382, %v1227
      %v1384 = vadd.f32 %v1383, %v1235
      %v1385 = vadd.f32 %v1384, %v1243
      %v1386 = vadd.f32 %v1385, %v1251
      %v1387 = vadd.f32 %v1386, %v1259
      %v1388 = vrot.slane %v1387, 4
      %v1389 = vadd.f32 %v1387, %v1388
      %v1390 = vrot.slane %v1389, 2
      %v1391 = vadd.f32 %v1389, %v1390
      %v1392 = vrot.slane %v1391, 1
      %v1393 = vadd.f32 %v1391, %v1392
      %v1394 = vadd.f32 %v1156, %v1164
      %v1395 = vadd.f32 %v1394, %v1172
      %v1396 = vadd.f32 %v1395, %v1180
      %v1397 = vadd.f32 %v1396, %v1188
      %v1398 = vadd.f32 %v1397, %v1196
      %v1399 = vadd.f32 %v1398, %v1204
      %v1400 = vadd.f32 %v1399, %v1212
      %v1401 = vadd.f32 %v1400, %v1220
      %v1402 = vadd.f32 %v1401, %v1228
      %v1403 = vadd.f32 %v1402, %v1236
      %v1404 = vadd.f32 %v1403, %v1244
      %v1405 = vadd.f32 %v1404, %v1252
      %v1406 = vadd.f32 %v1405, %v1260
      %v1407 = vrot.slane %v1406, 4
      %v1408 = vadd.f32 %v1406, %v1407
      %v1409 = vrot.slane %v1408, 2
      %v1410 = vadd.f32 %v1408, %v1409
      %v1411 = vrot.slane %v1410, 1
      %v1412 = vadd.f32 %v1410, %v1411
      %s1413 = scalar_lea.vmem %s165, 2688
      %v1414 = vld [vmem:[%s1413] sm:$0xff]
      %v1415 = vld [vmem:[%s1413 + $0x8] sm:$0xff]
      %v1416 = vld [vmem:[%s1413 + $0x10] sm:$0xff]
      %v1417 = vld [vmem:[%s1413 + $0x18] sm:$0xff]
      %v1418 = vld [vmem:[%s1413 + $0x20] sm:$0xff]
      %v1419 = vld [vmem:[%s1413 + $0x28] sm:$0xff]
      %v1420 = vld [vmem:[%s1413 + $0x30] sm:$0xff]
      %v1421 = vld [vmem:[%s1413 + $0x38] sm:$0xff]
      %v1422 = vld [vmem:[%s1413 + $0x40] sm:$0xff]
      %v1423 = vld [vmem:[%s1413 + $0x48] sm:$0xff]
      %v1424 = vld [vmem:[%s1413 + $0x50] sm:$0xff]
      %v1425 = vld [vmem:[%s1413 + $0x58] sm:$0xff]
      %v1426 = vld [vmem:[%s1413 + $0x60] sm:$0xff]
      %v1427 = vld [vmem:[%s1413 + $0x68] sm:$0xff]
      %v1428 = vld [vmem:[%s1413 + $0x70] sm:$0xff]
      %v1429 = vld [vmem:[%s1413 + $0x78] sm:$0xff]
      %v1430 = vld [vmem:[%s1413 + $0x80] sm:$0xff]
      %v1431 = vld [vmem:[%s1413 + $0x88] sm:$0xff]
      %v1432 = vld [vmem:[%s1413 + $0x90] sm:$0xff]
      %v1433 = vld [vmem:[%s1413 + $0x98] sm:$0xff]
      %v1434 = vld [vmem:[%s1413 + $0xa0] sm:$0xff]
      %v1435 = vld [vmem:[%s1413 + $0xa8] sm:$0xff]
      %v1436 = vld [vmem:[%s1413 + $0xb0] sm:$0xff]
      %v1437 = vld [vmem:[%s1413 + $0xb8] sm:$0xff]
      %v1438 = vld [vmem:[%s1413 + $0xc0] sm:$0xff]
      %v1439 = vld [vmem:[%s1413 + $0xc8] sm:$0xff]
      %v1440 = vld [vmem:[%s1413 + $0xd0] sm:$0xff]
      %v1441 = vld [vmem:[%s1413 + $0xd8] sm:$0xff]
      %v1442 = vld [vmem:[%s1413 + $0xe0] sm:$0xff]
      %v1443 = vld [vmem:[%s1413 + $0xe8] sm:$0xff]
      %v1444 = vld [vmem:[%s1413 + $0xf0] sm:$0xff]
      %v1445 = vld [vmem:[%s1413 + $0xf8] sm:$0xff]
      %v1446 = vld [vmem:[%s1413 + $0x100] sm:$0xff]
      %v1447 = vld [vmem:[%s1413 + $0x108] sm:$0xff]
      %v1448 = vld [vmem:[%s1413 + $0x110] sm:$0xff]
      %v1449 = vld [vmem:[%s1413 + $0x118] sm:$0xff]
      %v1450 = vld [vmem:[%s1413 + $0x120] sm:$0xff]
      %v1451 = vld [vmem:[%s1413 + $0x128] sm:$0xff]
      %v1452 = vld [vmem:[%s1413 + $0x130] sm:$0xff]
      %v1453 = vld [vmem:[%s1413 + $0x138] sm:$0xff]
      %v1454 = vld [vmem:[%s1413 + $0x140] sm:$0xff]
      %v1455 = vld [vmem:[%s1413 + $0x148] sm:$0xff]
      %v1456 = vld [vmem:[%s1413 + $0x150] sm:$0xff]
      %v1457 = vld [vmem:[%s1413 + $0x158] sm:$0xff]
      %v1458 = vld [vmem:[%s1413 + $0x160] sm:$0xff]
      %v1459 = vld [vmem:[%s1413 + $0x168] sm:$0xff]
      %v1460 = vld [vmem:[%s1413 + $0x170] sm:$0xff]
      %v1461 = vld [vmem:[%s1413 + $0x178] sm:$0xff]
      %v1462 = vld [vmem:[%s1413 + $0x180] sm:$0xff]
      %v1463 = vld [vmem:[%s1413 + $0x188] sm:$0xff]
      %v1464 = vld [vmem:[%s1413 + $0x190] sm:$0xff]
      %v1465 = vld [vmem:[%s1413 + $0x198] sm:$0xff]
      %v1466 = vld [vmem:[%s1413 + $0x1a0] sm:$0xff]
      %v1467 = vld [vmem:[%s1413 + $0x1a8] sm:$0xff]
      %v1468 = vld [vmem:[%s1413 + $0x1b0] sm:$0xff]
      %v1469 = vld [vmem:[%s1413 + $0x1b8] sm:$0xff]
      %v1470 = vld [vmem:[%s1413 + $0x1c0] sm:$0xff]
      %v1471 = vld [vmem:[%s1413 + $0x1c8] sm:$0xff]
      %v1472 = vld [vmem:[%s1413 + $0x1d0] sm:$0xff]
      %v1473 = vld [vmem:[%s1413 + $0x1d8] sm:$0xff]
      %v1474 = vld [vmem:[%s1413 + $0x1e0] sm:$0xff]
      %v1475 = vld [vmem:[%s1413 + $0x1e8] sm:$0xff]
      %v1476 = vld [vmem:[%s1413 + $0x1f0] sm:$0xff]
      %v1477 = vld [vmem:[%s1413 + $0x1f8] sm:$0xff]
      %v1478 = vld [vmem:[%s1413 + $0x200] sm:$0xff]
      %v1479 = vld [vmem:[%s1413 + $0x208] sm:$0xff]
      %v1480 = vld [vmem:[%s1413 + $0x210] sm:$0xff]
      %v1481 = vld [vmem:[%s1413 + $0x218] sm:$0xff]
      %v1482 = vld [vmem:[%s1413 + $0x220] sm:$0xff]
      %v1483 = vld [vmem:[%s1413 + $0x228] sm:$0xff]
      %v1484 = vld [vmem:[%s1413 + $0x230] sm:$0xff]
      %v1485 = vld [vmem:[%s1413 + $0x238] sm:$0xff]
      %v1486 = vld [vmem:[%s1413 + $0x240] sm:$0xff]
      %v1487 = vld [vmem:[%s1413 + $0x248] sm:$0xff]
      %v1488 = vld [vmem:[%s1413 + $0x250] sm:$0xff]
      %v1489 = vld [vmem:[%s1413 + $0x258] sm:$0xff]
      %v1490 = vld [vmem:[%s1413 + $0x260] sm:$0xff]
      %v1491 = vld [vmem:[%s1413 + $0x268] sm:$0xff]
      %v1492 = vld [vmem:[%s1413 + $0x270] sm:$0xff]
      %v1493 = vld [vmem:[%s1413 + $0x278] sm:$0xff]
      %v1494 = vld [vmem:[%s1413 + $0x280] sm:$0xff]
      %v1495 = vld [vmem:[%s1413 + $0x288] sm:$0xff]
      %v1496 = vld [vmem:[%s1413 + $0x290] sm:$0xff]
      %v1497 = vld [vmem:[%s1413 + $0x298] sm:$0xff]
      %v1498 = vld [vmem:[%s1413 + $0x2a0] sm:$0xff]
      %v1499 = vld [vmem:[%s1413 + $0x2a8] sm:$0xff]
      %v1500 = vld [vmem:[%s1413 + $0x2b0] sm:$0xff]
      %v1501 = vld [vmem:[%s1413 + $0x2b8] sm:$0xff]
      %v1502 = vld [vmem:[%s1413 + $0x2c0] sm:$0xff]
      %v1503 = vld [vmem:[%s1413 + $0x2c8] sm:$0xff]
      %v1504 = vld [vmem:[%s1413 + $0x2d0] sm:$0xff]
      %v1505 = vld [vmem:[%s1413 + $0x2d8] sm:$0xff]
      %v1506 = vld [vmem:[%s1413 + $0x2e0] sm:$0xff]
      %v1507 = vld [vmem:[%s1413 + $0x2e8] sm:$0xff]
      %v1508 = vld [vmem:[%s1413 + $0x2f0] sm:$0xff]
      %v1509 = vld [vmem:[%s1413 + $0x2f8] sm:$0xff]
      %v1510 = vld [vmem:[%s1413 + $0x300] sm:$0xff]
      %v1511 = vld [vmem:[%s1413 + $0x308] sm:$0xff]
      %v1512 = vld [vmem:[%s1413 + $0x310] sm:$0xff]
      %v1513 = vld [vmem:[%s1413 + $0x318] sm:$0xff]
      %v1514 = vld [vmem:[%s1413 + $0x320] sm:$0xff]
      %v1515 = vld [vmem:[%s1413 + $0x328] sm:$0xff]
      %v1516 = vld [vmem:[%s1413 + $0x330] sm:$0xff]
      %v1517 = vld [vmem:[%s1413 + $0x338] sm:$0xff]
      %v1518 = vld [vmem:[%s1413 + $0x340] sm:$0xff]
      %v1519 = vld [vmem:[%s1413 + $0x348] sm:$0xff]
      %v1520 = vld [vmem:[%s1413 + $0x350] sm:$0xff]
      %v1521 = vld [vmem:[%s1413 + $0x358] sm:$0xff]
      %v1522 = vld [vmem:[%s1413 + $0x360] sm:$0xff]
      %v1523 = vld [vmem:[%s1413 + $0x368] sm:$0xff]
      %v1524 = vld [vmem:[%s1413 + $0x370] sm:$0xff]
      %v1525 = vld [vmem:[%s1413 + $0x378] sm:$0xff]
      %v1526 = vmul.f32 %v1414, %v171
      %v1527 = vmul.f32 %v1415, %v172
      %v1528 = vmul.f32 %v1416, %v173
      %v1529 = vmul.f32 %v1417, %v174
      %v1530 = vmul.f32 %v1418, %v175
      %v1531 = vmul.f32 %v1419, %v176
      %v1532 = vmul.f32 %v1420, %v177
      %v1533 = vmul.f32 %v1421, %v178
      %v1534 = vmul.f32 %v1422, %v179
      %v1535 = vmul.f32 %v1423, %v180
      %v1536 = vmul.f32 %v1424, %v181
      %v1537 = vmul.f32 %v1425, %v182
      %v1538 = vmul.f32 %v1426, %v183
      %v1539 = vmul.f32 %v1427, %v184
      %v1540 = vmul.f32 %v1428, %v185
      %v1541 = vmul.f32 %v1429, %v186
      %v1542 = vmul.f32 %v1430, %v187
      %v1543 = vmul.f32 %v1431, %v188
      %v1544 = vmul.f32 %v1432, %v189
      %v1545 = vmul.f32 %v1433, %v190
      %v1546 = vmul.f32 %v1434, %v191
      %v1547 = vmul.f32 %v1435, %v192
      %v1548 = vmul.f32 %v1436, %v193
      %v1549 = vmul.f32 %v1437, %v194
      %v1550 = vmul.f32 %v1438, %v195
      %v1551 = vmul.f32 %v1439, %v196
      %v1552 = vmul.f32 %v1440, %v197
      %v1553 = vmul.f32 %v1441, %v198
      %v1554 = vmul.f32 %v1442, %v199
      %v1555 = vmul.f32 %v1443, %v200
      %v1556 = vmul.f32 %v1444, %v201
      %v1557 = vmul.f32 %v1445, %v202
      %v1558 = vmul.f32 %v1446, %v203
      %v1559 = vmul.f32 %v1447, %v204
      %v1560 = vmul.f32 %v1448, %v205
      %v1561 = vmul.f32 %v1449, %v206
      %v1562 = vmul.f32 %v1450, %v207
      %v1563 = vmul.f32 %v1451, %v208
      %v1564 = vmul.f32 %v1452, %v209
      %v1565 = vmul.f32 %v1453, %v210
      %v1566 = vmul.f32 %v1454, %v211
      %v1567 = vmul.f32 %v1455, %v212
      %v1568 = vmul.f32 %v1456, %v213
      %v1569 = vmul.f32 %v1457, %v214
      %v1570 = vmul.f32 %v1458, %v215
      %v1571 = vmul.f32 %v1459, %v216
      %v1572 = vmul.f32 %v1460, %v217
      %v1573 = vmul.f32 %v1461, %v218
      %v1574 = vmul.f32 %v1462, %v219
      %v1575 = vmul.f32 %v1463, %v220
      %v1576 = vmul.f32 %v1464, %v221
      %v1577 = vmul.f32 %v1465, %v222
      %v1578 = vmul.f32 %v1466, %v223
      %v1579 = vmul.f32 %v1467, %v224
      %v1580 = vmul.f32 %v1468, %v225
      %v1581 = vmul.f32 %v1469, %v226
      %v1582 = vmul.f32 %v1470, %v227
      %v1583 = vmul.f32 %v1471, %v228
      %v1584 = vmul.f32 %v1472, %v229
      %v1585 = vmul.f32 %v1473, %v230
      %v1586 = vmul.f32 %v1474, %v231
      %v1587 = vmul.f32 %v1475, %v232
      %v1588 = vmul.f32 %v1476, %v233
      %v1589 = vmul.f32 %v1477, %v234
      %v1590 = vmul.f32 %v1478, %v235
      %v1591 = vmul.f32 %v1479, %v236
      %v1592 = vmul.f32 %v1480, %v237
      %v1593 = vmul.f32 %v1481, %v238
      %v1594 = vmul.f32 %v1482, %v239
      %v1595 = vmul.f32 %v1483, %v240
      %v1596 = vmul.f32 %v1484, %v241
      %v1597 = vmul.f32 %v1485, %v242
      %v1598 = vmul.f32 %v1486, %v243
      %v1599 = vmul.f32 %v1487, %v244
      %v1600 = vmul.f32 %v1488, %v245
      %v1601 = vmul.f32 %v1489, %v246
      %v1602 = vmul.f32 %v1490, %v247
      %v1603 = vmul.f32 %v1491, %v248
      %v1604 = vmul.f32 %v1492, %v249
      %v1605 = vmul.f32 %v1493, %v250
      %v1606 = vmul.f32 %v1494, %v251
      %v1607 = vmul.f32 %v1495, %v252
      %v1608 = vmul.f32 %v1496, %v253
      %v1609 = vmul.f32 %v1497, %v254
      %v1610 = vmul.f32 %v1498, %v255
      %v1611 = vmul.f32 %v1499, %v256
      %v1612 = vmul.f32 %v1500, %v257
      %v1613 = vmul.f32 %v1501, %v258
      %v1614 = vmul.f32 %v1502, %v259
      %v1615 = vmul.f32 %v1503, %v260
      %v1616 = vmul.f32 %v1504, %v261
      %v1617 = vmul.f32 %v1505, %v262
      %v1618 = vmul.f32 %v1506, %v263
      %v1619 = vmul.f32 %v1507, %v264
      %v1620 = vmul.f32 %v1508, %v265
      %v1621 = vmul.f32 %v1509, %v266
      %v1622 = vmul.f32 %v1510, %v267
      %v1623 = vmul.f32 %v1511, %v268
      %v1624 = vmul.f32 %v1512, %v269
      %v1625 = vmul.f32 %v1513, %v270
      %v1626 = vmul.f32 %v1514, %v271
      %v1627 = vmul.f32 %v1515, %v272
      %v1628 = vmul.f32 %v1516, %v273
      %v1629 = vmul.f32 %v1517, %v274
      %v1630 = vmul.f32 %v1518, %v275
      %v1631 = vmul.f32 %v1519, %v276
      %v1632 = vmul.f32 %v1520, %v277
      %v1633 = vmul.f32 %v1521, %v278
      %v1634 = vmul.f32 %v1522, %v279
      %v1635 = vmul.f32 %v1523, %v280
      %v1636 = vmul.f32 %v1524, %v281
      %v1637 = vmul.f32 %v1525, %v282
      %v1638 = vadd.f32 %v1526, %v1534
      %v1639 = vadd.f32 %v1638, %v1542
      %v1640 = vadd.f32 %v1639, %v1550
      %v1641 = vadd.f32 %v1640, %v1558
      %v1642 = vadd.f32 %v1641, %v1566
      %v1643 = vadd.f32 %v1642, %v1574
      %v1644 = vadd.f32 %v1643, %v1582
      %v1645 = vadd.f32 %v1644, %v1590
      %v1646 = vadd.f32 %v1645, %v1598
      %v1647 = vadd.f32 %v1646, %v1606
      %v1648 = vadd.f32 %v1647, %v1614
      %v1649 = vadd.f32 %v1648, %v1622
      %v1650 = vadd.f32 %v1649, %v1630
      %v1651 = vrot.slane %v1650, 4
      %v1652 = vadd.f32 %v1650, %v1651
      %v1653 = vrot.slane %v1652, 2
      %v1654 = vadd.f32 %v1652, %v1653
      %v1655 = vrot.slane %v1654, 1
      %v1656 = vadd.f32 %v1654, %v1655
      %v1657 = vadd.f32 %v1527, %v1535
      %v1658 = vadd.f32 %v1657, %v1543
      %v1659 = vadd.f32 %v1658, %v1551
      %v1660 = vadd.f32 %v1659, %v1559
      %v1661 = vadd.f32 %v1660, %v1567
      %v1662 = vadd.f32 %v1661, %v1575
      %v1663 = vadd.f32 %v1662, %v1583
      %v1664 = vadd.f32 %v1663, %v1591
      %v1665 = vadd.f32 %v1664, %v1599
      %v1666 = vadd.f32 %v1665, %v1607
      %v1667 = vadd.f32 %v1666, %v1615
      %v1668 = vadd.f32 %v1667, %v1623
      %v1669 = vadd.f32 %v1668, %v1631
      %v1670 = vrot.slane %v1669, 4
      %v1671 = vadd.f32 %v1669, %v1670
      %v1672 = vrot.slane %v1671, 2
      %v1673 = vadd.f32 %v1671, %v1672
      %v1674 = vrot.slane %v1673, 1
      %v1675 = vadd.f32 %v1673, %v1674
      %v1676 = vadd.f32 %v1528, %v1536
      %v1677 = vadd.f32 %v1676, %v1544
      %v1678 = vadd.f32 %v1677, %v1552
      %v1679 = vadd.f32 %v1678, %v1560
      %v1680 = vadd.f32 %v1679, %v1568
      %v1681 = vadd.f32 %v1680, %v1576
      %v1682 = vadd.f32 %v1681, %v1584
      %v1683 = vadd.f32 %v1682, %v1592
      %v1684 = vadd.f32 %v1683, %v1600
      %v1685 = vadd.f32 %v1684, %v1608
      %v1686 = vadd.f32 %v1685, %v1616
      %v1687 = vadd.f32 %v1686, %v1624
      %v1688 = vadd.f32 %v1687, %v1632
      %v1689 = vrot.slane %v1688, 4
      %v1690 = vadd.f32 %v1688, %v1689
      %v1691 = vrot.slane %v1690, 2
      %v1692 = vadd.f32 %v1690, %v1691
      %v1693 = vrot.slane %v1692, 1
      %v1694 = vadd.f32 %v1692, %v1693
      %v1695 = vadd.f32 %v1529, %v1537
      %v1696 = vadd.f32 %v1695, %v1545
      %v1697 = vadd.f32 %v1696, %v1553
      %v1698 = vadd.f32 %v1697, %v1561
      %v1699 = vadd.f32 %v1698, %v1569
      %v1700 = vadd.f32 %v1699, %v1577
      %v1701 = vadd.f32 %v1700, %v1585
      %v1702 = vadd.f32 %v1701, %v1593
      %v1703 = vadd.f32 %v1702, %v1601
      %v1704 = vadd.f32 %v1703, %v1609
      %v1705 = vadd.f32 %v1704, %v1617
      %v1706 = vadd.f32 %v1705, %v1625
      %v1707 = vadd.f32 %v1706, %v1633
      %v1708 = vrot.slane %v1707, 4
      %v1709 = vadd.f32 %v1707, %v1708
      %v1710 = vrot.slane %v1709, 2
      %v1711 = vadd.f32 %v1709, %v1710
      %v1712 = vrot.slane %v1711, 1
      %v1713 = vadd.f32 %v1711, %v1712
      %v1714 = vadd.f32 %v1530, %v1538
      %v1715 = vadd.f32 %v1714, %v1546
      %v1716 = vadd.f32 %v1715, %v1554
      %v1717 = vadd.f32 %v1716, %v1562
      %v1718 = vadd.f32 %v1717, %v1570
      %v1719 = vadd.f32 %v1718, %v1578
      %v1720 = vadd.f32 %v1719, %v1586
      %v1721 = vadd.f32 %v1720, %v1594
      %v1722 = vadd.f32 %v1721, %v1602
      %v1723 = vadd.f32 %v1722, %v1610
      %v1724 = vadd.f32 %v1723, %v1618
      %v1725 = vadd.f32 %v1724, %v1626
      %v1726 = vadd.f32 %v1725, %v1634
      %v1727 = vrot.slane %v1726, 4
      %v1728 = vadd.f32 %v1726, %v1727
      %v1729 = vrot.slane %v1728, 2
      %v1730 = vadd.f32 %v1728, %v1729
      %v1731 = vrot.slane %v1730, 1
      %v1732 = vadd.f32 %v1730, %v1731
      %v1733 = vadd.f32 %v1531, %v1539
      %v1734 = vadd.f32 %v1733, %v1547
      %v1735 = vadd.f32 %v1734, %v1555
      %v1736 = vadd.f32 %v1735, %v1563
      %v1737 = vadd.f32 %v1736, %v1571
      %v1738 = vadd.f32 %v1737, %v1579
      %v1739 = vadd.f32 %v1738, %v1587
      %v1740 = vadd.f32 %v1739, %v1595
      %v1741 = vadd.f32 %v1740, %v1603
      %v1742 = vadd.f32 %v1741, %v1611
      %v1743 = vadd.f32 %v1742, %v1619
      %v1744 = vadd.f32 %v1743, %v1627
      %v1745 = vadd.f32 %v1744, %v1635
      %v1746 = vrot.slane %v1745, 4
      %v1747 = vadd.f32 %v1745, %v1746
      %v1748 = vrot.slane %v1747, 2
      %v1749 = vadd.f32 %v1747, %v1748
      %v1750 = vrot.slane %v1749, 1
      %v1751 = vadd.f32 %v1749, %v1750
      %v1752 = vadd.f32 %v1532, %v1540
      %v1753 = vadd.f32 %v1752, %v1548
      %v1754 = vadd.f32 %v1753, %v1556
      %v1755 = vadd.f32 %v1754, %v1564
      %v1756 = vadd.f32 %v1755, %v1572
      %v1757 = vadd.f32 %v1756, %v1580
      %v1758 = vadd.f32 %v1757, %v1588
      %v1759 = vadd.f32 %v1758, %v1596
      %v1760 = vadd.f32 %v1759, %v1604
      %v1761 = vadd.f32 %v1760, %v1612
      %v1762 = vadd.f32 %v1761, %v1620
      %v1763 = vadd.f32 %v1762, %v1628
      %v1764 = vadd.f32 %v1763, %v1636
      %v1765 = vrot.slane %v1764, 4
      %v1766 = vadd.f32 %v1764, %v1765
      %v1767 = vrot.slane %v1766, 2
      %v1768 = vadd.f32 %v1766, %v1767
      %v1769 = vrot.slane %v1768, 1
      %v1770 = vadd.f32 %v1768, %v1769
      %v1771 = vadd.f32 %v1533, %v1541
      %v1772 = vadd.f32 %v1771, %v1549
      %v1773 = vadd.f32 %v1772, %v1557
      %v1774 = vadd.f32 %v1773, %v1565
      %v1775 = vadd.f32 %v1774, %v1573
      %v1776 = vadd.f32 %v1775, %v1581
      %v1777 = vadd.f32 %v1776, %v1589
      %v1778 = vadd.f32 %v1777, %v1597
      %v1779 = vadd.f32 %v1778, %v1605
      %v1780 = vadd.f32 %v1779, %v1613
      %v1781 = vadd.f32 %v1780, %v1621
      %v1782 = vadd.f32 %v1781, %v1629
      %v1783 = vadd.f32 %v1782, %v1637
      %v1784 = vrot.slane %v1783, 4
      %v1785 = vadd.f32 %v1783, %v1784
      %v1786 = vrot.slane %v1785, 2
      %v1787 = vadd.f32 %v1785, %v1786
      %v1788 = vrot.slane %v1787, 1
      %v1789 = vadd.f32 %v1787, %v1788
      %vm1790 = vcmask 1040384
      %v1791 = vsel %vm1790, %v525, %v902
      %v1792 = vsel %vm1790, %v544, %v921
      %v1793 = vsel %vm1790, %v563, %v940
      %v1794 = vsel %vm1790, %v582, %v959
      %v1795 = vsel %vm1790, %v601, %v978
      %v1796 = vsel %vm1790, %v620, %v997
      %v1797 = vsel %vm1790, %v639, %v1016
      %v1798 = vsel %vm1790, %v658, %v1035
      %vm1799 = vcmask 1041408
      %v1800 = vsel %vm1799, %v1791, %v1279
      %v1801 = vsel %vm1799, %v1792, %v1298
      %v1802 = vsel %vm1799, %v1793, %v1317
      %v1803 = vsel %vm1799, %v1794, %v1336
      %v1804 = vsel %vm1799, %v1795, %v1355
      %v1805 = vsel %vm1799, %v1796, %v1374
      %v1806 = vsel %vm1799, %v1797, %v1393
      %v1807 = vsel %vm1799, %v1798, %v1412
      %vm1808 = vcmask 1042432
      %v1809 = vsel %vm1808, %v1800, %v1656
      %v1810 = vsel %vm1808, %v1801, %v1675
      %v1811 = vsel %vm1808, %v1802, %v1694
      %v1812 = vsel %vm1808, %v1803, %v1713
      %v1813 = vsel %vm1808, %v1804, %v1732
      %v1814 = vsel %vm1808, %v1805, %v1751
      %v1815 = vsel %vm1808, %v1806, %v1770
      %v1816 = vsel %vm1808, %v1807, %v1789
      %v1817 = vld [vmem:[%s2] sm:$0xff]
      %v1819 = vlaneseq
      %v1820 = vshrl.u32 %v1819, 7
      %v1821 = vsub.s32 0, %v1820
      %v1822 = vrot.slane %v1817, %v1821
      %v1823 = vlaneseq
      %v1824 = vshrl.u32 %v1823, 7
      %v1825 = vsub.s32 1, %v1824
      %v1826 = vrot.slane %v1817, %v1825
      %v1827 = vlaneseq
      %v1828 = vshrl.u32 %v1827, 7
      %v1829 = vsub.s32 2, %v1828
      %v1830 = vrot.slane %v1817, %v1829
      %v1831 = vlaneseq
      %v1832 = vshrl.u32 %v1831, 7
      %v1833 = vsub.s32 3, %v1832
      %v1834 = vrot.slane %v1817, %v1833
      %v1835 = vlaneseq
      %v1836 = vshrl.u32 %v1835, 7
      %v1837 = vsub.s32 4, %v1836
      %v1838 = vrot.slane %v1817, %v1837
      %v1839 = vlaneseq
      %v1840 = vshrl.u32 %v1839, 7
      %v1841 = vsub.s32 5, %v1840
      %v1842 = vrot.slane %v1817, %v1841
      %v1843 = vlaneseq
      %v1844 = vshrl.u32 %v1843, 7
      %v1845 = vsub.s32 6, %v1844
      %v1846 = vrot.slane %v1817, %v1845
      %v1847 = vlaneseq
      %v1848 = vshrl.u32 %v1847, 7
      %v1849 = vsub.s32 7, %v1848
      %v1850 = vrot.slane %v1817, %v1849
      %v1859 = vadd.f32 %v1809, %v1822
      %v1860 = vadd.f32 %v1810, %v1826
      %v1861 = vadd.f32 %v1811, %v1830
      %v1862 = vadd.f32 %v1812, %v1834
      %v1863 = vadd.f32 %v1813, %v1838
      %v1864 = vadd.f32 %v1814, %v1842
      %v1865 = vadd.f32 %v1815, %v1846
      %v1866 = vadd.f32 %v1816, %v1850
      %vm1867 = vcmp.ge.f32.partialorder %v1859, 0.0
      %vm1868 = vcmp.ge.f32.partialorder %v1860, 0.0
      %vm1869 = vcmp.ge.f32.partialorder %v1861, 0.0
      %vm1870 = vcmp.ge.f32.partialorder %v1862, 0.0
      %vm1871 = vcmp.ge.f32.partialorder %v1863, 0.0
      %vm1872 = vcmp.ge.f32.partialorder %v1864, 0.0
      %vm1873 = vcmp.ge.f32.partialorder %v1865, 0.0
      %vm1874 = vcmp.ge.f32.partialorder %v1866, 0.0
      %v1875 = vmul.f32 %v1859, 0.1
      %v1876 = vmul.f32 %v1860, 0.1
      %v1877 = vmul.f32 %v1861, 0.1
      %v1878 = vmul.f32 %v1862, 0.1
      %v1879 = vmul.f32 %v1863, 0.1
      %v1880 = vmul.f32 %v1864, 0.1
      %v1881 = vmul.f32 %v1865, 0.1
      %v1882 = vmul.f32 %v1866, 0.1
      %v1883 = vsel %vm1867, %v1859, %v1875
      %v1884 = vsel %vm1868, %v1860, %v1876
      %v1885 = vsel %vm1869, %v1861, %v1877
      %v1886 = vsel %vm1870, %v1862, %v1878
      %v1887 = vsel %vm1871, %v1863, %v1879
      %v1888 = vsel %vm1872, %v1864, %v1880
      %v1889 = vsel %vm1873, %v1865, %v1881
      %v1890 = vsel %vm1874, %v1866, %v1882
      %v1899 = vcombine.low %v1883, %v1884
      %v1900 = vcombine.low %v1885, %v1886
      %v1901 = vcombine.low %v1887, %v1888
      %v1902 = vcombine.low %v1889, %v1890
      %1907 = vst [vmem:[%s170] sm:$0xff] %v1899
      %1908 = vst [vmem:[%s170 + $0x8] sm:$0xff] %v1900
      %1909 = vst [vmem:[%s170 + $0x10] sm:$0xff] %v1901
      %1910 = vst [vmem:[%s170 + $0x18] sm:$0xff] %v1902
      %p1911 = scmp.lt.s32.totalorder %s14, 1
      %s1912 = scalar_select %p1911, %s14, 1
      %s1913 = smul.addr %s1912, 8
      %s1914 = smul.addr %s1913, 4
      %s1915 = scalar_lea.vmem %s3, %s1914
      // Predicated region
      $region33: #{discriminator_s_forward.10} parent=31 // pred_check
        %p1916 = pneg %p100
      $region34: #{discriminator_s_forward.10} parent=31 // pred_check_branch
        %1918 = sbr.rel (%p1916) target = $region36
      $region35: #{discriminator_s_forward.10} parent=31 // pred_region
        _
      $region36: #{discriminator_s_forward.10} parent=31 // pred_fallthru
        _
    $region32: #{discriminator_s_forward.10} parent=5 // pred_fallthru
      _
    %p1919 = scmp.le.s32.totalorder 2, %s9
    // Predicated region
    $region37: #{discriminator_s_forward.10} parent=5 // pred_check
      %p1920 = pneg %p1919
    $region38: #{discriminator_s_forward.10} parent=5 // pred_check_branch
      %1922 = sbr.rel (%p1920) target = $region40
    $region39: #{discriminator_s_forward.10} parent=5 // pred_region
      %s1923 = ssub.s32 %s9, 2
      // Predicated region
      $region41: #{discriminator_s_forward.10} parent=39 // pred_check
        %p1924 = pneg %p106
      $region42: #{discriminator_s_forward.10} parent=39 // pred_check_branch
        %1926 = sbr.rel (%p1924) target = $region44
      $region43: #{discriminator_s_forward.10} parent=39 // pred_region
        %p1927 = scmp.lt.s32.totalorder %s15, 1
        %s1928 = scalar_select %p1927, %s15, 1
        %s1929 = smul.addr %s1928, 8
        %s1930 = smul.addr %s1929, 4
        %s1931 = scalar_lea.vmem %s3, %s1930
      $region44: #{discriminator_s_forward.10} parent=39 // pred_fallthru
        _
    $region40: #{discriminator_s_forward.10} parent=5 // pred_fallthru
      _
  $region6: #{discriminator_s_forward.10} parent=0 // loop_footer
    %s13 = sadd.s32 1, %s9
  $region7: #{discriminator_s_forward.10} parent=0 // loop_footer_branch
    %8 = sbr.rel target = $region3
  $region8: #{discriminator_s_forward.10} parent=0 // loop_exit
    _

// kernel: discriminator_s_forward.11
$region0: #{discriminator_s_forward.11}
  #allocation0 [shape = 'u32[]', space=smem, size = 0x4, offset = 0x4, fixed_abs, tag = 'smem constant byte address 0x4 - core index']
  #allocation1 [shape = 'u32[144,128]{1,0:T(1,128)}', space=vmem, size = 0x12000, scoped, tag = 'internal scratch']
  %s0 = inlined_call_operand.vmem [shape: f32[2,1,16,1024], index: 0, kind: input, shape index: {}]
  %s1 = inlined_call_operand.vmem [shape: f32[16,1024], index: 1, kind: input, shape index: {}]
  %s2 = inlined_call_operand.vmem [shape: f32[1,1024], index: 2, kind: input, shape index: {}]
  %s3 = inlined_call_operand.vmem [shape: f32[2,1,1024], index: 3, kind: output, shape index: {}]
  %s4 = sld [smem:[#allocation0]]
  $region45: #{discriminator_s_forward.11} parent=0
    _
  %s6 = ssub.s32 1, %s4
  %s7 = scalar_select 0, %s6, %s4
  loop: start=0, step=1, limit=4
  $region2: #{discriminator_s_forward.11} parent=0 // loop_pre_header
    _
  $region3: #{discriminator_s_forward.11} parent=0 // loop_header
    %s9 = sphi 0, %s13
    %p10 = scmp.ge.s32.totalorder %s9, 4
    %s19 = sphi 0, %s21
    %s22 = sphi 0, %s19
    %s23 = sphi 0, %s22
    %s39 = sphi 0, %s23
    %s43 = sphi 0, %s43
    %s45 = sphi 0, %s43
    %s46 = sphi 0, %s45
    %s60 = sphi 0, %s46
    %s64 = sphi 0, %s64
    %s66 = sphi 0, %s64
    %s67 = sphi 0, %s66
    %s81 = sphi 0, %s67
    %s87 = sphi 0, %s89
    %s90 = sphi 0, %s87
    %s91 = sphi 0, %s90
    %s107 = sphi 0, %s91
  $region4: #{discriminator_s_forward.11} parent=0 // loop_header_branch
    %12 = sbr.rel (%p10) target = $region8
  $region5: #{discriminator_s_forward.11} parent=0 // loop_body
    %s14 = ssub.s32 %s9, 1
    %s15 = ssub.s32 %s9, 2
    %s16 = sadd.s32 %s9, 1
    %s17 = ssub.s32 %s9, %s16
    %p18 = scmp.eq.s32.totalorder %s17, 0
    %s20 = sadd.s32 %s19, 1
    %s21 = scalar_select %p18, %s19, %s20
    %p24 = pneg %p18
    %p25 = scmp.eq.s32.totalorder %s9, 1
    %p26 = por %p24, %p25
    %p27 = scmp.ne.s32.totalorder %s19, %s22
    %p28 = scmp.eq.s32.totalorder %s9, 0
    %p29 = por %p27, %p28
    %p30 = scmp.ne.s32.totalorder %s19, %s22
    %p31 = scmp.eq.s32.totalorder %s14, 1
    %p32 = por %p30, %p31
    %p33 = scmp.ne.s32.totalorder %s22, %s23
    %p34 = scmp.eq.s32.totalorder %s14, 0
    %p35 = por %p33, %p34
    %p36 = scmp.ne.s32.totalorder %s22, %s23
    %p37 = scmp.eq.s32.totalorder %s15, 1
    %p38 = por %p36, %p37
    %p40 = scmp.ne.s32.totalorder %s23, %s39
    %p41 = scmp.eq.s32.totalorder %s15, 0
    %p42 = por %p40, %p41
    %s44 = sadd.s32 %s43, 1
    %p47 = scmp.eq.s32.totalorder %s9, 1
    %p48 = scmp.ne.s32.totalorder %s43, %s45
    %p49 = scmp.eq.s32.totalorder %s9, 0
    %p50 = por %p48, %p49
    %p51 = scmp.ne.s32.totalorder %s43, %s45
    %p52 = scmp.eq.s32.totalorder %s14, 1
    %p53 = por %p51, %p52
    %p54 = scmp.ne.s32.totalorder %s45, %s46
    %p55 = scmp.eq.s32.totalorder %s14, 0
    %p56 = por %p54, %p55
    %p57 = scmp.ne.s32.totalorder %s45, %s46
    %p58 = scmp.eq.s32.totalorder %s15, 1
    %p59 = por %p57, %p58
    %p61 = scmp.ne.s32.totalorder %s46, %s60
    %p62 = scmp.eq.s32.totalorder %s15, 0
    %p63 = por %p61, %p62
    %s65 = sadd.s32 %s64, 1
    %p68 = scmp.eq.s32.totalorder %s9, 1
    %p69 = scmp.ne.s32.totalorder %s64, %s66
    %p70 = scmp.eq.s32.totalorder %s9, 0
    %p71 = por %p69, %p70
    %p72 = scmp.ne.s32.totalorder %s64, %s66
    %p73 = scmp.eq.s32.totalorder %s14, 1
    %p74 = por %p72, %p73
    %p75 = scmp.ne.s32.totalorder %s66, %s67
    %p76 = scmp.eq.s32.totalorder %s14, 0
    %p77 = por %p75, %p76
    %p78 = scmp.ne.s32.totalorder %s66, %s67
    %p79 = scmp.eq.s32.totalorder %s15, 1
    %p80 = por %p78, %p79
    %p82 = scmp.ne.s32.totalorder %s67, %s81
    %p83 = scmp.eq.s32.totalorder %s15, 0
    %p84 = por %p82, %p83
    %s85 = ssub.s32 %s9, %s16
    %p86 = scmp.eq.s32.totalorder %s85, 0
    %s88 = sadd.s32 %s87, 1
    %s89 = scalar_select %p86, %s87, %s88
    %p92 = pneg %p86
    %p93 = scmp.eq.s32.totalorder %s9, 1
    %p94 = por %p92, %p93
    %p95 = scmp.ne.s32.totalorder %s87, %s90
    %p96 = scmp.eq.s32.totalorder %s9, 0
    %p97 = por %p95, %p96
    %p98 = scmp.ne.s32.totalorder %s87, %s90
    %p99 = scmp.eq.s32.totalorder %s14, 1
    %p100 = por %p98, %p99
    %p101 = scmp.ne.s32.totalorder %s90, %s91
    %p102 = scmp.eq.s32.totalorder %s14, 0
    %p103 = por %p101, %p102
    %p104 = scmp.ne.s32.totalorder %s90, %s91
    %p105 = scmp.eq.s32.totalorder %s15, 1
    %p106 = por %p104, %p105
    %p108 = scmp.ne.s32.totalorder %s91, %s107
    %p109 = scmp.eq.s32.totalorder %s15, 0
    %p110 = por %p108, %p109
    %p111 = scmp.le.s32.totalorder 1, %s9
    %p112 = scmp.lt.s32.totalorder %s9, 3
    %p113 = pnand %p111, %p112
    %p114 = pneg %p113
    // Predicated region
    $region9: #{discriminator_s_forward.11} parent=5 // pred_check
      _
    $region10: #{discriminator_s_forward.11} parent=5 // pred_check_branch
      %116 = sbr.rel (%p113) target = $region12
    $region11: #{discriminator_s_forward.11} parent=5 // pred_region
      %s117 = ssub.s32 %s9, 1
      // Predicated region
      $region13: #{discriminator_s_forward.11} parent=11 // pred_check
        %p118 = pneg %p56
      $region14: #{discriminator_s_forward.11} parent=11 // pred_check_branch
        %120 = sbr.rel (%p118) target = $region16
      $region15: #{discriminator_s_forward.11} parent=11 // pred_region
        _
      $region16: #{discriminator_s_forward.11} parent=11 // pred_fallthru
        _
      // Predicated region
      $region17: #{discriminator_s_forward.11} parent=11 // pred_check
        %p121 = pneg %p77
      $region18: #{discriminator_s_forward.11} parent=11 // pred_check_branch
        %123 = sbr.rel (%p121) target = $region20
      $region19: #{discriminator_s_forward.11} parent=11 // pred_region
        _
      $region20: #{discriminator_s_forward.11} parent=11 // pred_fallthru
        _
    $region12: #{discriminator_s_forward.11} parent=5 // pred_fallthru
      _
    %p124 = scmp.lt.s32.totalorder %s9, 2
    // Predicated region
    $region21: #{discriminator_s_forward.11} parent=5 // pred_check
      %p125 = pneg %p124
    $region22: #{discriminator_s_forward.11} parent=5 // pred_check_branch
      %127 = sbr.rel (%p125) target = $region24
    $region23: #{discriminator_s_forward.11} parent=5 // pred_region
      // Predicated region
      $region25: #{discriminator_s_forward.11} parent=23 // pred_check
        %p128 = pneg %p29
      $region26: #{discriminator_s_forward.11} parent=23 // pred_check_branch
        %130 = sbr.rel (%p128) target = $region28
      $region27: #{discriminator_s_forward.11} parent=23 // pred_region
        %p131 = scmp.lt.s32.totalorder %s9, 1
        %s132 = scalar_select %p131, %s9, 1
        %s133 = smul.addr %s132, 16
        %s134 = smul.addr %s133, 8
        %s135 = scalar_lea.vmem %s0, %s134
      $region28: #{discriminator_s_forward.11} parent=23 // pred_fallthru
        _
    $region24: #{discriminator_s_forward.11} parent=5 // pred_fallthru
      _
    %p136 = scmp.le.s32.totalorder 1, %s9
    %p137 = scmp.lt.s32.totalorder %s9, 3
    %p138 = pnand %p136, %p137
    %p139 = pneg %p138
    // Predicated region
    $region29: #{discriminator_s_forward.11} parent=5 // pred_check
      _
    $region30: #{discriminator_s_forward.11} parent=5 // pred_check_branch
      %141 = sbr.rel (%p138) target = $region32
    $region31: #{discriminator_s_forward.11} parent=5 // pred_region
      %s142 = ssub.s32 %s9, 1
      %p143 = scmp.lt.s32.totalorder %s14, 1
      %s144 = scalar_select %p143, %s14, 1
      %s145 = smul.addr %s144, 16
      %s146 = smul.addr %s145, 8
      %s147 = scalar_lea.vmem %s0, %s146
      %p148 = pneg %p35
      %p149 = pneg %p32
      %p150 = pneg %p56
      %p151 = pneg %p53
      %p152 = pneg %p77
      %p153 = pneg %p74
      %p154 = pneg %p103
      %p155 = pneg %p100
      %p156 = scmp.lt.s32.totalorder %s14, 1
      %s157 = scalar_select %p156, %s14, 1
      %s158 = smul.addr %s157, 8
      %s159 = scalar_lea.vmem %s3, %s158
      %p160 = scmp.lt.s32.totalorder %s14, 1
      %s161 = scalar_select %p160, %s14, 1
      %s162 = smul.addr %s161, 16
      %s163 = smul.addr %s162, 8
      %s164 = scalar_lea.vmem %s0, %s163
      %p165 = scmp.lt.s32.totalorder %s14, 1
      %s166 = scalar_select %p165, %s14, 1
      %s167 = smul.addr %s166, 8
      %s168 = scalar_lea.vmem %s3, %s167
      %v169 = vld [vmem:[%s1] sm:$0xff]
      %v170 = vld [vmem:[%s1 + $0x8] sm:$0xff]
      %v171 = vld [vmem:[%s1 + $0x10] sm:$0xff]
      %v172 = vld [vmem:[%s1 + $0x18] sm:$0xff]
      %v173 = vld [vmem:[%s1 + $0x20] sm:$0xff]
      %v174 = vld [vmem:[%s1 + $0x28] sm:$0xff]
      %v175 = vld [vmem:[%s1 + $0x30] sm:$0xff]
      %v176 = vld [vmem:[%s1 + $0x38] sm:$0xff]
      %v177 = vld [vmem:[%s1 + $0x40] sm:$0xff]
      %v178 = vld [vmem:[%s1 + $0x48] sm:$0xff]
      %v179 = vld [vmem:[%s1 + $0x50] sm:$0xff]
      %v180 = vld [vmem:[%s1 + $0x58] sm:$0xff]
      %v181 = vld [vmem:[%s1 + $0x60] sm:$0xff]
      %v182 = vld [vmem:[%s1 + $0x68] sm:$0xff]
      %v183 = vld [vmem:[%s1 + $0x70] sm:$0xff]
      %v184 = vld [vmem:[%s1 + $0x78] sm:$0xff]
      %v185 = vld [vmem:[%s164] sm:$0xff]
      %v186 = vld [vmem:[%s164 + $0x8] sm:$0xff]
      %v187 = vld [vmem:[%s164 + $0x10] sm:$0xff]
      %v188 = vld [vmem:[%s164 + $0x18] sm:$0xff]
      %v189 = vld [vmem:[%s164 + $0x20] sm:$0xff]
      %v190 = vld [vmem:[%s164 + $0x28] sm:$0xff]
      %v191 = vld [vmem:[%s164 + $0x30] sm:$0xff]
      %v192 = vld [vmem:[%s164 + $0x38] sm:$0xff]
      %v193 = vld [vmem:[%s164 + $0x40] sm:$0xff]
      %v194 = vld [vmem:[%s164 + $0x48] sm:$0xff]
      %v195 = vld [vmem:[%s164 + $0x50] sm:$0xff]
      %v196 = vld [vmem:[%s164 + $0x58] sm:$0xff]
      %v197 = vld [vmem:[%s164 + $0x60] sm:$0xff]
      %v198 = vld [vmem:[%s164 + $0x68] sm:$0xff]
      %v199 = vld [vmem:[%s164 + $0x70] sm:$0xff]
      %v200 = vld [vmem:[%s164 + $0x78] sm:$0xff]
      %v201 = vmul.f32 %v185, %v169
      %v202 = vmul.f32 %v186, %v170
      %v203 = vmul.f32 %v187, %v171
      %v204 = vmul.f32 %v188, %v172
      %v205 = vmul.f32 %v189, %v173
      %v206 = vmul.f32 %v190, %v174
      %v207 = vmul.f32 %v191, %v175
      %v208 = vmul.f32 %v192, %v176
      %v209 = vmul.f32 %v193, %v177
      %v210 = vmul.f32 %v194, %v178
      %v211 = vmul.f32 %v195, %v179
      %v212 = vmul.f32 %v196, %v180
      %v213 = vmul.f32 %v197, %v181
      %v214 = vmul.f32 %v198, %v182
      %v215 = vmul.f32 %v199, %v183
      %v216 = vmul.f32 %v200, %v184
      %v217 = vadd.f32 %v201, %v209
      %v218 = vrot.slane %v217, 4
      %v219 = vadd.f32 %v217, %v218
      %v220 = vrot.slane %v219, 2
      %v221 = vadd.f32 %v219, %v220
      %v222 = vrot.slane %v221, 1
      %v223 = vadd.f32 %v221, %v222
      %v224 = vadd.f32 %v202, %v210
      %v225 = vrot.slane %v224, 4
      %v226 = vadd.f32 %v224, %v225
      %v227 = vrot.slane %v226, 2
      %v228 = vadd.f32 %v226, %v227
      %v229 = vrot.slane %v228, 1
      %v230 = vadd.f32 %v228, %v229
      %v231 = vadd.f32 %v203, %v211
      %v232 = vrot.slane %v231, 4
      %v233 = vadd.f32 %v231, %v232
      %v234 = vrot.slane %v233, 2
      %v235 = vadd.f32 %v233, %v234
      %v236 = vrot.slane %v235, 1
      %v237 = vadd.f32 %v235, %v236
      %v238 = vadd.f32 %v204, %v212
      %v239 = vrot.slane %v238, 4
      %v240 = vadd.f32 %v238, %v239
      %v241 = vrot.slane %v240, 2
      %v242 = vadd.f32 %v240, %v241
      %v243 = vrot.slane %v242, 1
      %v244 = vadd.f32 %v242, %v243
      %v245 = vadd.f32 %v205, %v213
      %v246 = vrot.slane %v245, 4
      %v247 = vadd.f32 %v245, %v246
      %v248 = vrot.slane %v247, 2
      %v249 = vadd.f32 %v247, %v248
      %v250 = vrot.slane %v249, 1
      %v251 = vadd.f32 %v249, %v250
      %v252 = vadd.f32 %v206, %v214
      %v253 = vrot.slane %v252, 4
      %v254 = vadd.f32 %v252, %v253
      %v255 = vrot.slane %v254, 2
      %v256 = vadd.f32 %v254, %v255
      %v257 = vrot.slane %v256, 1
      %v258 = vadd.f32 %v256, %v257
      %v259 = vadd.f32 %v207, %v215
      %v260 = vrot.slane %v259, 4
      %v261 = vadd.f32 %v259, %v260
      %v262 = vrot.slane %v261, 2
      %v263 = vadd.f32 %v261, %v262
      %v264 = vrot.slane %v263, 1
      %v265 = vadd.f32 %v263, %v264
      %v266 = vadd.f32 %v208, %v216
      %v267 = vrot.slane %v266, 4
      %v268 = vadd.f32 %v266, %v267
      %v269 = vrot.slane %v268, 2
      %v270 = vadd.f32 %v268, %v269
      %v271 = vrot.slane %v270, 1
      %v272 = vadd.f32 %v270, %v271
      %v273 = vld [vmem:[%s2] sm:$0xff]
      %v275 = vlaneseq
      %v276 = vshrl.u32 %v275, 7
      %v277 = vsub.s32 0, %v276
      %v278 = vrot.slane %v273, %v277
      %v279 = vlaneseq
      %v280 = vshrl.u32 %v279, 7
      %v281 = vsub.s32 1, %v280
      %v282 = vrot.slane %v273, %v281
      %v283 = vlaneseq
      %v284 = vshrl.u32 %v283, 7
      %v285 = vsub.s32 2, %v284
      %v286 = vrot.slane %v273, %v285
      %v287 = vlaneseq
      %v288 = vshrl.u32 %v287, 7
      %v289 = vsub.s32 3, %v288
      %v290 = vrot.slane %v273, %v289
      %v291 = vlaneseq
      %v292 = vshrl.u32 %v291, 7
      %v293 = vsub.s32 4, %v292
      %v294 = vrot.slane %v273, %v293
      %v295 = vlaneseq
      %v296 = vshrl.u32 %v295, 7
      %v297 = vsub.s32 5, %v296
      %v298 = vrot.slane %v273, %v297
      %v299 = vlaneseq
      %v300 = vshrl.u32 %v299, 7
      %v301 = vsub.s32 6, %v300
      %v302 = vrot.slane %v273, %v301
      %v303 = vlaneseq
      %v304 = vshrl.u32 %v303, 7
      %v305 = vsub.s32 7, %v304
      %v306 = vrot.slane %v273, %v305
      %v315 = vadd.f32 %v223, %v278
      %v316 = vadd.f32 %v230, %v282
      %v317 = vadd.f32 %v237, %v286
      %v318 = vadd.f32 %v244, %v290
      %v319 = vadd.f32 %v251, %v294
      %v320 = vadd.f32 %v258, %v298
      %v321 = vadd.f32 %v265, %v302
      %v322 = vadd.f32 %v272, %v306
      %vm323 = vcmp.ge.f32.partialorder %v315, 0.0
      %vm324 = vcmp.ge.f32.partialorder %v316, 0.0
      %vm325 = vcmp.ge.f32.partialorder %v317, 0.0
      %vm326 = vcmp.ge.f32.partialorder %v318, 0.0
      %vm327 = vcmp.ge.f32.partialorder %v319, 0.0
      %vm328 = vcmp.ge.f32.partialorder %v320, 0.0
      %vm329 = vcmp.ge.f32.partialorder %v321, 0.0
      %vm330 = vcmp.ge.f32.partialorder %v322, 0.0
      %v331 = vmul.f32 %v315, 0.1
      %v332 = vmul.f32 %v316, 0.1
      %v333 = vmul.f32 %v317, 0.1
      %v334 = vmul.f32 %v318, 0.1
      %v335 = vmul.f32 %v319, 0.1
      %v336 = vmul.f32 %v320, 0.1
      %v337 = vmul.f32 %v321, 0.1
      %v338 = vmul.f32 %v322, 0.1
      %v339 = vsel %vm323, %v315, %v331
      %v340 = vsel %vm324, %v316, %v332
      %v341 = vsel %vm325, %v317, %v333
      %v342 = vsel %vm326, %v318, %v334
      %v343 = vsel %vm327, %v319, %v335
      %v344 = vsel %vm328, %v320, %v336
      %v345 = vsel %vm329, %v321, %v337
      %v346 = vsel %vm330, %v322, %v338
      %v355 = vcombine.low %v339, %v340
      %v356 = vcombine.low %v341, %v342
      %v357 = vcombine.low %v343, %v344
      %v358 = vcombine.low %v345, %v346
      %v360 = vunpack.c.l.s4 1966171168
      %v361 = vunpack.c.0.s8 %v360
      %v362 = vlaneseq
      %v363 = vshrl.u32 %v362, 7
      %v364 = vsub.s32 %v361, %v363
      %v365 = vrot.slane %v355, %v364
      %v367 = vunpack.c.l.s4 1966171168
      %v368 = vunpack.c.0.s8 %v367
      %v369 = vlaneseq
      %v370 = vshrl.u32 %v369, 7
      %v371 = vsub.s32 %v368, %v370
      %v372 = vrot.slane %v356, %v371
      %v374 = vunpack.c.l.s4 1966171168
      %v375 = vunpack.c.0.s8 %v374
      %v376 = vlaneseq
      %v377 = vshrl.u32 %v376, 7
      %v378 = vsub.s32 %v375, %v377
      %v379 = vrot.slane %v357, %v378
      %v381 = vunpack.c.l.s4 1966171168
      %v382 = vunpack.c.0.s8 %v381
      %v383 = vlaneseq
      %v384 = vshrl.u32 %v383, 7
      %v385 = vsub.s32 %v382, %v384
      %v386 = vrot.slane %v358, %v385
      %v387 = vcombine.low %v365, %v372
      %v388 = vcombine.low %v379, %v386
      %v390 = vunpack.c.l.s4 1966171168
      %v391 = vunpack.c.0.s8 %v390
      %v392 = vlaneseq
      %v393 = vshrl.u32 %v392, 7
      %v394 = vsub.s32 %v391, %v393
      %v395 = vrot.slane %v387, %v394
      %v397 = vunpack.c.l.s4 1966171168
      %v398 = vunpack.c.0.s8 %v397
      %v399 = vlaneseq
      %v400 = vshrl.u32 %v399, 7
      %v401 = vsub.s32 %v398, %v400
      %v402 = vrot.slane %v388, %v401
      %v403 = vcombine.low %v395, %v402
      %405 = vst [vmem:[%s168] sm:$0xff] %v403
      %p406 = scmp.lt.s32.totalorder %s14, 1
      %s407 = scalar_select %p406, %s14, 1
      %s408 = smul.addr %s407, 8
      %s409 = scalar_lea.vmem %s3, %s408
      // Predicated region
      $region33: #{discriminator_s_forward.11} parent=31 // pred_check
        %p410 = pneg %p100
      $region34: #{discriminator_s_forward.11} parent=31 // pred_check_branch
        %412 = sbr.rel (%p410) target = $region36
      $region35: #{discriminator_s_forward.11} parent=31 // pred_region
        _
      $region36: #{discriminator_s_forward.11} parent=31 // pred_fallthru
        _
    $region32: #{discriminator_s_forward.11} parent=5 // pred_fallthru
      _
    %p413 = scmp.le.s32.totalorder 2, %s9
    // Predicated region
    $region37: #{discriminator_s_forward.11} parent=5 // pred_check
      %p414 = pneg %p413
    $region38: #{discriminator_s_forward.11} parent=5 // pred_check_branch
      %416 = sbr.rel (%p414) target = $region40
    $region39: #{discriminator_s_forward.11} parent=5 // pred_region
      %s417 = ssub.s32 %s9, 2
      // Predicated region
      $region41: #{discriminator_s_forward.11} parent=39 // pred_check
        %p418 = pneg %p106
      $region42: #{discriminator_s_forward.11} parent=39 // pred_check_branch
        %420 = sbr.rel (%p418) target = $region44
      $region43: #{discriminator_s_forward.11} parent=39 // pred_region
        %p421 = scmp.lt.s32.totalorder %s15, 1
        %s422 = scalar_select %p421, %s15, 1
        %s423 = smul.addr %s422, 8
        %s424 = scalar_lea.vmem %s3, %s423
      $region44: #{discriminator_s_forward.11} parent=39 // pred_fallthru
        _
    $region40: #{discriminator_s_forward.11} parent=5 // pred_fallthru
      _
  $region6: #{discriminator_s_forward.11} parent=0 // loop_footer
    %s13 = sadd.s32 1, %s9
  $region7: #{discriminator_s_forward.11} parent=0 // loop_footer_branch
    %8 = sbr.rel target = $region3
  $region8: #{discriminator_s_forward.11} parent=0 // loop_exit
    _

// kernel: discriminator_s_forward.13
$region0: #{discriminator_s_forward.13}
  #allocation0 [shape = 'u32[]', space=smem, size = 0x4, offset = 0x4, fixed_abs, tag = 'smem constant byte address 0x4 - core index']
  #allocation1 [shape = 'u32[144,128]{1,0:T(1,128)}', space=vmem, size = 0x12000, scoped, tag = 'internal scratch']
  #allocation2 [shape = 'f32[1,1]{1,0:T(1,128)S(1)}', space=vmem, size = 0x200, scoped, tag = 'scoped memory for discriminator_s_forward.13']
  %s0 = inlined_call_operand.vmem [shape: f32[2,1,1024], index: 0, kind: input, shape index: {}]
  %s1 = inlined_call_operand.vmem [shape: f32[1024,1], index: 1, kind: input, shape index: {}]
  %s2 = inlined_call_operand.<no memory space> [shape: f32[1,1], index: 2, kind: input, shape index: {}]
  %s3 = inlined_call_operand.vmem [shape: f32[2,1,1], index: 3, kind: output, shape index: {}]
  %s4 = sld [smem:[#allocation0]]
  $region45: #{discriminator_s_forward.13} parent=0
    _
  %s6 = ssub.s32 1, %s4
  %s7 = scalar_select 0, %s6, %s4
  %v8 = vstv %s2
  %9 = vst [vmem:[#allocation2] sm:$0x1] %v8
  loop: start=0, step=1, limit=4
  $region2: #{discriminator_s_forward.13} parent=0 // loop_pre_header
    _
  $region3: #{discriminator_s_forward.13} parent=0 // loop_header
    %s11 = sphi 0, %s15
    %p12 = scmp.ge.s32.totalorder %s11, 4
    %s21 = sphi 0, %s23
    %s24 = sphi 0, %s21
    %s25 = sphi 0, %s24
    %s41 = sphi 0, %s25
    %s45 = sphi 0, %s45
    %s47 = sphi 0, %s45
    %s48 = sphi 0, %s47
    %s62 = sphi 0, %s48
    %s66 = sphi 0, %s66
    %s68 = sphi 0, %s66
    %s69 = sphi 0, %s68
    %s83 = sphi 0, %s69
    %s89 = sphi 0, %s91
    %s92 = sphi 0, %s89
    %s93 = sphi 0, %s92
    %s109 = sphi 0, %s93
  $region4: #{discriminator_s_forward.13} parent=0 // loop_header_branch
    %14 = sbr.rel (%p12) target = $region8
  $region5: #{discriminator_s_forward.13} parent=0 // loop_body
    %s16 = ssub.s32 %s11, 1
    %s17 = ssub.s32 %s11, 2
    %s18 = sadd.s32 %s11, 1
    %s19 = ssub.s32 %s11, %s18
    %p20 = scmp.eq.s32.totalorder %s19, 0
    %s22 = sadd.s32 %s21, 1
    %s23 = scalar_select %p20, %s21, %s22
    %p26 = pneg %p20
    %p27 = scmp.eq.s32.totalorder %s11, 1
    %p28 = por %p26, %p27
    %p29 = scmp.ne.s32.totalorder %s21, %s24
    %p30 = scmp.eq.s32.totalorder %s11, 0
    %p31 = por %p29, %p30
    %p32 = scmp.ne.s32.totalorder %s21, %s24
    %p33 = scmp.eq.s32.totalorder %s16, 1
    %p34 = por %p32, %p33
    %p35 = scmp.ne.s32.totalorder %s24, %s25
    %p36 = scmp.eq.s32.totalorder %s16, 0
    %p37 = por %p35, %p36
    %p38 = scmp.ne.s32.totalorder %s24, %s25
    %p39 = scmp.eq.s32.totalorder %s17, 1
    %p40 = por %p38, %p39
    %p42 = scmp.ne.s32.totalorder %s25, %s41
    %p43 = scmp.eq.s32.totalorder %s17, 0
    %p44 = por %p42, %p43
    %s46 = sadd.s32 %s45, 1
    %p49 = scmp.eq.s32.totalorder %s11, 1
    %p50 = scmp.ne.s32.totalorder %s45, %s47
    %p51 = scmp.eq.s32.totalorder %s11, 0
    %p52 = por %p50, %p51
    %p53 = scmp.ne.s32.totalorder %s45, %s47
    %p54 = scmp.eq.s32.totalorder %s16, 1
    %p55 = por %p53, %p54
    %p56 = scmp.ne.s32.totalorder %s47, %s48
    %p57 = scmp.eq.s32.totalorder %s16, 0
    %p58 = por %p56, %p57
    %p59 = scmp.ne.s32.totalorder %s47, %s48
    %p60 = scmp.eq.s32.totalorder %s17, 1
    %p61 = por %p59, %p60
    %p63 = scmp.ne.s32.totalorder %s48, %s62
    %p64 = scmp.eq.s32.totalorder %s17, 0
    %p65 = por %p63, %p64
    %s67 = sadd.s32 %s66, 1
    %p70 = scmp.eq.s32.totalorder %s11, 1
    %p71 = scmp.ne.s32.totalorder %s66, %s68
    %p72 = scmp.eq.s32.totalorder %s11, 0
    %p73 = por %p71, %p72
    %p74 = scmp.ne.s32.totalorder %s66, %s68
    %p75 = scmp.eq.s32.totalorder %s16, 1
    %p76 = por %p74, %p75
    %p77 = scmp.ne.s32.totalorder %s68, %s69
    %p78 = scmp.eq.s32.totalorder %s16, 0
    %p79 = por %p77, %p78
    %p80 = scmp.ne.s32.totalorder %s68, %s69
    %p81 = scmp.eq.s32.totalorder %s17, 1
    %p82 = por %p80, %p81
    %p84 = scmp.ne.s32.totalorder %s69, %s83
    %p85 = scmp.eq.s32.totalorder %s17, 0
    %p86 = por %p84, %p85
    %s87 = ssub.s32 %s11, %s18
    %p88 = scmp.eq.s32.totalorder %s87, 0
    %s90 = sadd.s32 %s89, 1
    %s91 = scalar_select %p88, %s89, %s90
    %p94 = pneg %p88
    %p95 = scmp.eq.s32.totalorder %s11, 1
    %p96 = por %p94, %p95
    %p97 = scmp.ne.s32.totalorder %s89, %s92
    %p98 = scmp.eq.s32.totalorder %s11, 0
    %p99 = por %p97, %p98
    %p100 = scmp.ne.s32.totalorder %s89, %s92
    %p101 = scmp.eq.s32.totalorder %s16, 1
    %p102 = por %p100, %p101
    %p103 = scmp.ne.s32.totalorder %s92, %s93
    %p104 = scmp.eq.s32.totalorder %s16, 0
    %p105 = por %p103, %p104
    %p106 = scmp.ne.s32.totalorder %s92, %s93
    %p107 = scmp.eq.s32.totalorder %s17, 1
    %p108 = por %p106, %p107
    %p110 = scmp.ne.s32.totalorder %s93, %s109
    %p111 = scmp.eq.s32.totalorder %s17, 0
    %p112 = por %p110, %p111
    %p113 = scmp.le.s32.totalorder 1, %s11
    %p114 = scmp.lt.s32.totalorder %s11, 3
    %p115 = pnand %p113, %p114
    %p116 = pneg %p115
    // Predicated region
    $region9: #{discriminator_s_forward.13} parent=5 // pred_check
      _
    $region10: #{discriminator_s_forward.13} parent=5 // pred_check_branch
      %118 = sbr.rel (%p115) target = $region12
    $region11: #{discriminator_s_forward.13} parent=5 // pred_region
      %s119 = ssub.s32 %s11, 1
      // Predicated region
      $region13: #{discriminator_s_forward.13} parent=11 // pred_check
        %p120 = pneg %p58
      $region14: #{discriminator_s_forward.13} parent=11 // pred_check_branch
        %122 = sbr.rel (%p120) target = $region16
      $region15: #{discriminator_s_forward.13} parent=11 // pred_region
        _
      $region16: #{discriminator_s_forward.13} parent=11 // pred_fallthru
        _
      // Predicated region
      $region17: #{discriminator_s_forward.13} parent=11 // pred_check
        %p123 = pneg %p79
      $region18: #{discriminator_s_forward.13} parent=11 // pred_check_branch
        %125 = sbr.rel (%p123) target = $region20
      $region19: #{discriminator_s_forward.13} parent=11 // pred_region
        _
      $region20: #{discriminator_s_forward.13} parent=11 // pred_fallthru
        _
    $region12: #{discriminator_s_forward.13} parent=5 // pred_fallthru
      _
    %p126 = scmp.lt.s32.totalorder %s11, 2
    // Predicated region
    $region21: #{discriminator_s_forward.13} parent=5 // pred_check
      %p127 = pneg %p126
    $region22: #{discriminator_s_forward.13} parent=5 // pred_check_branch
      %129 = sbr.rel (%p127) target = $region24
    $region23: #{discriminator_s_forward.13} parent=5 // pred_region
      // Predicated region
      $region25: #{discriminator_s_forward.13} parent=23 // pred_check
        %p130 = pneg %p31
      $region26: #{discriminator_s_forward.13} parent=23 // pred_check_branch
        %132 = sbr.rel (%p130) target = $region28
      $region27: #{discriminator_s_forward.13} parent=23 // pred_region
        %p133 = scmp.lt.s32.totalorder %s11, 1
        %s134 = scalar_select %p133, %s11, 1
        %s135 = smul.addr %s134, 8
        %s136 = scalar_lea.vmem %s0, %s135
      $region28: #{discriminator_s_forward.13} parent=23 // pred_fallthru
        _
    $region24: #{discriminator_s_forward.13} parent=5 // pred_fallthru
      _
    %p137 = scmp.le.s32.totalorder 1, %s11
    %p138 = scmp.lt.s32.totalorder %s11, 3
    %p139 = pnand %p137, %p138
    %p140 = pneg %p139
    // Predicated region
    $region29: #{discriminator_s_forward.13} parent=5 // pred_check
      _
    $region30: #{discriminator_s_forward.13} parent=5 // pred_check_branch
      %142 = sbr.rel (%p139) target = $region32
    $region31: #{discriminator_s_forward.13} parent=5 // pred_region
      %s143 = ssub.s32 %s11, 1
      %p144 = scmp.lt.s32.totalorder %s16, 1
      %s145 = scalar_select %p144, %s16, 1
      %s146 = smul.addr %s145, 8
      %s147 = scalar_lea.vmem %s0, %s146
      %p148 = pneg %p37
      %p149 = pneg %p34
      %p150 = pneg %p58
      %p151 = pneg %p55
      %p152 = pneg %p79
      %p153 = pneg %p76
      %p154 = pneg %p105
      %p155 = pneg %p102
      %p156 = scmp.lt.s32.totalorder %s16, 1
      %s157 = scalar_select %p156, %s16, 1
      %s158 = scalar_lea.vmem %s3, %s157
      %p159 = scmp.lt.s32.totalorder %s16, 1
      %s160 = scalar_select %p159, %s16, 1
      %s161 = smul.addr %s160, 8
      %s162 = scalar_lea.vmem %s0, %s161
      %p163 = scmp.lt.s32.totalorder %s16, 1
      %s164 = scalar_select %p163, %s16, 1
      %s165 = scalar_lea.vmem %s3, %s164
      %v166 = vld [vmem:[%s162] sm:$0xff]
      %v167 = vld [vmem:[%s1] sm:$0xff]
      %v168 = vld [vmem:[%s1 + $0x8] sm:$0xff]
      %v169 = vld [vmem:[%s1 + $0x10] sm:$0xff]
      %v170 = vld [vmem:[%s1 + $0x18] sm:$0xff]
      %v171 = vld [vmem:[%s1 + $0x20] sm:$0xff]
      %v172 = vld [vmem:[%s1 + $0x28] sm:$0xff]
      %v173 = vld [vmem:[%s1 + $0x30] sm:$0xff]
      %v174 = vld [vmem:[%s1 + $0x38] sm:$0xff]
      %v175 = vld [vmem:[%s1 + $0x40] sm:$0xff]
      %v176 = vld [vmem:[%s1 + $0x48] sm:$0xff]
      %v177 = vld [vmem:[%s1 + $0x50] sm:$0xff]
      %v178 = vld [vmem:[%s1 + $0x58] sm:$0xff]
      %v179 = vld [vmem:[%s1 + $0x60] sm:$0xff]
      %v180 = vld [vmem:[%s1 + $0x68] sm:$0xff]
      %v181 = vld [vmem:[%s1 + $0x70] sm:$0xff]
      %v182 = vld [vmem:[%s1 + $0x78] sm:$0xff]
      %v183 = vld [vmem:[%s1 + $0x80] sm:$0xff]
      %v184 = vld [vmem:[%s1 + $0x88] sm:$0xff]
      %v185 = vld [vmem:[%s1 + $0x90] sm:$0xff]
      %v186 = vld [vmem:[%s1 + $0x98] sm:$0xff]
      %v187 = vld [vmem:[%s1 + $0xa0] sm:$0xff]
      %v188 = vld [vmem:[%s1 + $0xa8] sm:$0xff]
      %v189 = vld [vmem:[%s1 + $0xb0] sm:$0xff]
      %v190 = vld [vmem:[%s1 + $0xb8] sm:$0xff]
      %v191 = vld [vmem:[%s1 + $0xc0] sm:$0xff]
      %v192 = vld [vmem:[%s1 + $0xc8] sm:$0xff]
      %v193 = vld [vmem:[%s1 + $0xd0] sm:$0xff]
      %v194 = vld [vmem:[%s1 + $0xd8] sm:$0xff]
      %v195 = vld [vmem:[%s1 + $0xe0] sm:$0xff]
      %v196 = vld [vmem:[%s1 + $0xe8] sm:$0xff]
      %v197 = vld [vmem:[%s1 + $0xf0] sm:$0xff]
      %v198 = vld [vmem:[%s1 + $0xf8] sm:$0xff]
      %v199 = vld [vmem:[%s1 + $0x100] sm:$0xff]
      %v200 = vld [vmem:[%s1 + $0x108] sm:$0xff]
      %v201 = vld [vmem:[%s1 + $0x110] sm:$0xff]
      %v202 = vld [vmem:[%s1 + $0x118] sm:$0xff]
      %v203 = vld [vmem:[%s1 + $0x120] sm:$0xff]
      %v204 = vld [vmem:[%s1 + $0x128] sm:$0xff]
      %v205 = vld [vmem:[%s1 + $0x130] sm:$0xff]
      %v206 = vld [vmem:[%s1 + $0x138] sm:$0xff]
      %v207 = vld [vmem:[%s1 + $0x140] sm:$0xff]
      %v208 = vld [vmem:[%s1 + $0x148] sm:$0xff]
      %v209 = vld [vmem:[%s1 + $0x150] sm:$0xff]
      %v210 = vld [vmem:[%s1 + $0x158] sm:$0xff]
      %v211 = vld [vmem:[%s1 + $0x160] sm:$0xff]
      %v212 = vld [vmem:[%s1 + $0x168] sm:$0xff]
      %v213 = vld [vmem:[%s1 + $0x170] sm:$0xff]
      %v214 = vld [vmem:[%s1 + $0x178] sm:$0xff]
      %v215 = vld [vmem:[%s1 + $0x180] sm:$0xff]
      %v216 = vld [vmem:[%s1 + $0x188] sm:$0xff]
      %v217 = vld [vmem:[%s1 + $0x190] sm:$0xff]
      %v218 = vld [vmem:[%s1 + $0x198] sm:$0xff]
      %v219 = vld [vmem:[%s1 + $0x1a0] sm:$0xff]
      %v220 = vld [vmem:[%s1 + $0x1a8] sm:$0xff]
      %v221 = vld [vmem:[%s1 + $0x1b0] sm:$0xff]
      %v222 = vld [vmem:[%s1 + $0x1b8] sm:$0xff]
      %v223 = vld [vmem:[%s1 + $0x1c0] sm:$0xff]
      %v224 = vld [vmem:[%s1 + $0x1c8] sm:$0xff]
      %v225 = vld [vmem:[%s1 + $0x1d0] sm:$0xff]
      %v226 = vld [vmem:[%s1 + $0x1d8] sm:$0xff]
      %v227 = vld [vmem:[%s1 + $0x1e0] sm:$0xff]
      %v228 = vld [vmem:[%s1 + $0x1e8] sm:$0xff]
      %v229 = vld [vmem:[%s1 + $0x1f0] sm:$0xff]
      %v230 = vld [vmem:[%s1 + $0x1f8] sm:$0xff]
      %v231 = vld [vmem:[%s1 + $0x200] sm:$0xff]
      %v232 = vld [vmem:[%s1 + $0x208] sm:$0xff]
      %v233 = vld [vmem:[%s1 + $0x210] sm:$0xff]
      %v234 = vld [vmem:[%s1 + $0x218] sm:$0xff]
      %v235 = vld [vmem:[%s1 + $0x220] sm:$0xff]
      %v236 = vld [vmem:[%s1 + $0x228] sm:$0xff]
      %v237 = vld [vmem:[%s1 + $0x230] sm:$0xff]
      %v238 = vld [vmem:[%s1 + $0x238] sm:$0xff]
      %v239 = vld [vmem:[%s1 + $0x240] sm:$0xff]
      %v240 = vld [vmem:[%s1 + $0x248] sm:$0xff]
      %v241 = vld [vmem:[%s1 + $0x250] sm:$0xff]
      %v242 = vld [vmem:[%s1 + $0x258] sm:$0xff]
      %v243 = vld [vmem:[%s1 + $0x260] sm:$0xff]
      %v244 = vld [vmem:[%s1 + $0x268] sm:$0xff]
      %v245 = vld [vmem:[%s1 + $0x270] sm:$0xff]
      %v246 = vld [vmem:[%s1 + $0x278] sm:$0xff]
      %v247 = vld [vmem:[%s1 + $0x280] sm:$0xff]
      %v248 = vld [vmem:[%s1 + $0x288] sm:$0xff]
      %v249 = vld [vmem:[%s1 + $0x290] sm:$0xff]
      %v250 = vld [vmem:[%s1 + $0x298] sm:$0xff]
      %v251 = vld [vmem:[%s1 + $0x2a0] sm:$0xff]
      %v252 = vld [vmem:[%s1 + $0x2a8] sm:$0xff]
      %v253 = vld [vmem:[%s1 + $0x2b0] sm:$0xff]
      %v254 = vld [vmem:[%s1 + $0x2b8] sm:$0xff]
      %v255 = vld [vmem:[%s1 + $0x2c0] sm:$0xff]
      %v256 = vld [vmem:[%s1 + $0x2c8] sm:$0xff]
      %v257 = vld [vmem:[%s1 + $0x2d0] sm:$0xff]
      %v258 = vld [vmem:[%s1 + $0x2d8] sm:$0xff]
      %v259 = vld [vmem:[%s1 + $0x2e0] sm:$0xff]
      %v260 = vld [vmem:[%s1 + $0x2e8] sm:$0xff]
      %v261 = vld [vmem:[%s1 + $0x2f0] sm:$0xff]
      %v262 = vld [vmem:[%s1 + $0x2f8] sm:$0xff]
      %v263 = vld [vmem:[%s1 + $0x300] sm:$0xff]
      %v264 = vld [vmem:[%s1 + $0x308] sm:$0xff]
      %v265 = vld [vmem:[%s1 + $0x310] sm:$0xff]
      %v266 = vld [vmem:[%s1 + $0x318] sm:$0xff]
      %v267 = vld [vmem:[%s1 + $0x320] sm:$0xff]
      %v268 = vld [vmem:[%s1 + $0x328] sm:$0xff]
      %v269 = vld [vmem:[%s1 + $0x330] sm:$0xff]
      %v270 = vld [vmem:[%s1 + $0x338] sm:$0xff]
      %v271 = vld [vmem:[%s1 + $0x340] sm:$0xff]
      %v272 = vld [vmem:[%s1 + $0x348] sm:$0xff]
      %v273 = vld [vmem:[%s1 + $0x350] sm:$0xff]
      %v274 = vld [vmem:[%s1 + $0x358] sm:$0xff]
      %v275 = vld [vmem:[%s1 + $0x360] sm:$0xff]
      %v276 = vld [vmem:[%s1 + $0x368] sm:$0xff]
      %v277 = vld [vmem:[%s1 + $0x370] sm:$0xff]
      %v278 = vld [vmem:[%s1 + $0x378] sm:$0xff]
      %v279 = vld [vmem:[%s1 + $0x380] sm:$0xff]
      %v280 = vld [vmem:[%s1 + $0x388] sm:$0xff]
      %v281 = vld [vmem:[%s1 + $0x390] sm:$0xff]
      %v282 = vld [vmem:[%s1 + $0x398] sm:$0xff]
      %v283 = vld [vmem:[%s1 + $0x3a0] sm:$0xff]
      %v284 = vld [vmem:[%s1 + $0x3a8] sm:$0xff]
      %v285 = vld [vmem:[%s1 + $0x3b0] sm:$0xff]
      %v286 = vld [vmem:[%s1 + $0x3b8] sm:$0xff]
      %v287 = vld [vmem:[%s1 + $0x3c0] sm:$0xff]
      %v288 = vld [vmem:[%s1 + $0x3c8] sm:$0xff]
      %v289 = vld [vmem:[%s1 + $0x3d0] sm:$0xff]
      %v290 = vld [vmem:[%s1 + $0x3d8] sm:$0xff]
      %v291 = vld [vmem:[%s1 + $0x3e0] sm:$0xff]
      %v292 = vld [vmem:[%s1 + $0x3e8] sm:$0xff]
      %v293 = vld [vmem:[%s1 + $0x3f0] sm:$0xff]
      %v294 = vld [vmem:[%s1 + $0x3f8] sm:$0xff]
      %v295 = vld [vmem:[#allocation2] sm:$0x1]
      %v297 = vlaneseq
      %v298 = vshrl.u32 %v297, 7
      %v299 = vsub.s32 0, %v298
      %v300 = vrot.slane %v166, %v299
      %v301 = vlaneseq
      %v302 = vshrl.u32 %v301, 7
      %v303 = vsub.s32 1, %v302
      %v304 = vrot.slane %v166, %v303
      %v305 = vlaneseq
      %v306 = vshrl.u32 %v305, 7
      %v307 = vsub.s32 2, %v306
      %v308 = vrot.slane %v166, %v307
      %v309 = vlaneseq
      %v310 = vshrl.u32 %v309, 7
      %v311 = vsub.s32 3, %v310
      %v312 = vrot.slane %v166, %v311
      %v313 = vlaneseq
      %v314 = vshrl.u32 %v313, 7
      %v315 = vsub.s32 4, %v314
      %v316 = vrot.slane %v166, %v315
      %v317 = vlaneseq
      %v318 = vshrl.u32 %v317, 7
      %v319 = vsub.s32 5, %v318
      %v320 = vrot.slane %v166, %v319
      %v321 = vlaneseq
      %v322 = vshrl.u32 %v321, 7
      %v323 = vsub.s32 6, %v322
      %v324 = vrot.slane %v166, %v323
      %v325 = vlaneseq
      %v326 = vshrl.u32 %v325, 7
      %v327 = vsub.s32 7, %v326
      %v328 = vrot.slane %v166, %v327
      %337 = vmatprep.subr.mxu0 0.0
      %338 = vmatpush1.msra.mxu0 %v182
      %339 = vmatprep.subr.mxu0 0.0
      %340 = vmatpush1.msra.mxu0 %v181
      %341 = vmatprep.subr.mxu0 0.0
      %342 = vmatpush1.msra.mxu0 %v180
      %343 = vmatprep.subr.mxu0 0.0
      %344 = vmatpush1.msra.mxu0 %v179
      %345 = vmatprep.subr.mxu0 0.0
      %346 = vmatpush1.msra.mxu0 %v178
      %347 = vmatprep.subr.mxu0 0.0
      %348 = vmatpush1.msra.mxu0 %v177
      %349 = vmatprep.subr.mxu0 0.0
      %350 = vmatpush1.msra.mxu0 %v176
      %351 = vmatprep.subr.mxu0 0.0
      %352 = vmatpush1.msra.mxu0 %v175
      %353 = vmatprep.subr.mxu0 0.0
      %354 = vmatpush1.msra.mxu0 %v174
      %355 = vmatprep.subr.mxu0 0.0
      %356 = vmatpush1.msra.mxu0 %v173
      %357 = vmatprep.subr.mxu0 0.0
      %358 = vmatpush1.msra.mxu0 %v172
      %359 = vmatprep.subr.mxu0 0.0
      %360 = vmatpush1.msra.mxu0 %v171
      %361 = vmatprep.subr.mxu0 0.0
      %362 = vmatpush1.msra.mxu0 %v170
      %363 = vmatprep.subr.mxu0 0.0
      %364 = vmatpush1.msra.mxu0 %v169
      %365 = vmatprep.subr.mxu0 0.0
      %366 = vmatpush1.msra.mxu0 %v168
      %367 = vmatprep.subr.mxu0 0.0
      %368 = vmatpush1.msra.mxu0 %v167
      %369 = vmatprep.subr.mxu0 0.0
      %370 = vmatpush2.msra.mxu0 %v198
      %371 = vmatprep.subr.mxu0 0.0
      %372 = vmatpush2.msra.mxu0 %v197
      %373 = vmatprep.subr.mxu0 0.0
      %374 = vmatpush2.msra.mxu0 %v196
      %375 = vmatprep.subr.mxu0 0.0
      %376 = vmatpush2.msra.mxu0 %v195
      %377 = vmatprep.subr.mxu0 0.0
      %378 = vmatpush2.msra.mxu0 %v194
      %379 = vmatprep.subr.mxu0 0.0
      %380 = vmatpush2.msra.mxu0 %v193
      %381 = vmatprep.subr.mxu0 0.0
      %382 = vmatpush2.msra.mxu0 %v192
      %383 = vmatprep.subr.mxu0 0.0
      %384 = vmatpush2.msra.mxu0 %v191
      %385 = vmatprep.subr.mxu0 0.0
      %386 = vmatpush2.msra.mxu0 %v190
      %387 = vmatprep.subr.mxu0 0.0
      %388 = vmatpush2.msra.mxu0 %v189
      %389 = vmatprep.subr.mxu0 0.0
      %390 = vmatpush2.msra.mxu0 %v188
      %391 = vmatprep.subr.mxu0 0.0
      %392 = vmatpush2.msra.mxu0 %v187
      %393 = vmatprep.subr.mxu0 0.0
      %394 = vmatpush2.msra.mxu0 %v186
      %395 = vmatprep.subr.mxu0 0.0
      %396 = vmatpush2.msra.mxu0 %v185
      %397 = vmatprep.subr.mxu0 0.0
      %398 = vmatpush2.msra.mxu0 %v184
      %399 = vmatprep.subr.mxu0 0.0
      %400 = vmatpush2.msra.mxu0 %v183
      %401 = vmatprep.mubr.f32.mxu0 %v304
      %402 = vmatmul.mubr.f32.gmra.mxu0 %v300
      %v403 = vpop.f32.mrf.mxu0
      %v404 = vadd.f32 %v295, %v403
      %v405 = vpop.f32.mrf.mxu0
      %406 = vdwg.mxu0
      %407 = vmatprep.subr.mxu0 0.0
      %408 = vmatpush1.msra.mxu0 %v214
      %409 = vmatprep.subr.mxu0 0.0
      %410 = vmatpush1.msra.mxu0 %v213
      %411 = vmatprep.subr.mxu0 0.0
      %412 = vmatpush1.msra.mxu0 %v212
      %413 = vmatprep.subr.mxu0 0.0
      %414 = vmatpush1.msra.mxu0 %v211
      %415 = vmatprep.subr.mxu0 0.0
      %416 = vmatpush1.msra.mxu0 %v210
      %417 = vmatprep.subr.mxu0 0.0
      %418 = vmatpush1.msra.mxu0 %v209
      %419 = vmatprep.subr.mxu0 0.0
      %420 = vmatpush1.msra.mxu0 %v208
      %421 = vmatprep.subr.mxu0 0.0
      %422 = vmatpush1.msra.mxu0 %v207
      %423 = vmatprep.subr.mxu0 0.0
      %424 = vmatpush1.msra.mxu0 %v206
      %425 = vmatprep.subr.mxu0 0.0
      %426 = vmatpush1.msra.mxu0 %v205
      %427 = vmatprep.subr.mxu0 0.0
      %428 = vmatpush1.msra.mxu0 %v204
      %429 = vmatprep.subr.mxu0 0.0
      %430 = vmatpush1.msra.mxu0 %v203
      %431 = vmatprep.subr.mxu0 0.0
      %432 = vmatpush1.msra.mxu0 %v202
      %433 = vmatprep.subr.mxu0 0.0
      %434 = vmatpush1.msra.mxu0 %v201
      %435 = vmatprep.subr.mxu0 0.0
      %436 = vmatpush1.msra.mxu0 %v200
      %437 = vmatprep.subr.mxu0 0.0
      %438 = vmatpush1.msra.mxu0 %v199
      %439 = vmatprep.subr.mxu0 0.0
      %440 = vmatpush2.msra.mxu0 %v230
      %441 = vmatprep.subr.mxu0 0.0
      %442 = vmatpush2.msra.mxu0 %v229
      %443 = vmatprep.subr.mxu0 0.0
      %444 = vmatpush2.msra.mxu0 %v228
      %445 = vmatprep.subr.mxu0 0.0
      %446 = vmatpush2.msra.mxu0 %v227
      %447 = vmatprep.subr.mxu0 0.0
      %448 = vmatpush2.msra.mxu0 %v226
      %449 = vmatprep.subr.mxu0 0.0
      %450 = vmatpush2.msra.mxu0 %v225
      %451 = vmatprep.subr.mxu0 0.0
      %452 = vmatpush2.msra.mxu0 %v224
      %453 = vmatprep.subr.mxu0 0.0
      %454 = vmatpush2.msra.mxu0 %v223
      %455 = vmatprep.subr.mxu0 0.0
      %456 = vmatpush2.msra.mxu0 %v222
      %457 = vmatprep.subr.mxu0 0.0
      %458 = vmatpush2.msra.mxu0 %v221
      %459 = vmatprep.subr.mxu0 0.0
      %460 = vmatpush2.msra.mxu0 %v220
      %461 = vmatprep.subr.mxu0 0.0
      %462 = vmatpush2.msra.mxu0 %v219
      %463 = vmatprep.subr.mxu0 0.0
      %464 = vmatpush2.msra.mxu0 %v218
      %465 = vmatprep.subr.mxu0 0.0
      %466 = vmatpush2.msra.mxu0 %v217
      %467 = vmatprep.subr.mxu0 0.0
      %468 = vmatpush2.msra.mxu0 %v216
      %469 = vmatprep.subr.mxu0 0.0
      %470 = vmatpush2.msra.mxu0 %v215
      %471 = vmatprep.mubr.f32.mxu0 %v312
      %472 = vmatmul.mubr.f32.gmra.mxu0 %v308
      %v473 = vpop.f32.mrf.mxu0
      %v474 = vadd.f32 %v404, %v473
      %v475 = vpop.f32.mrf.mxu0
      %476 = vdwg.mxu0
      %477 = vmatprep.subr.mxu0 0.0
      %478 = vmatpush1.msra.mxu0 %v246
      %479 = vmatprep.subr.mxu0 0.0
      %480 = vmatpush1.msra.mxu0 %v245
      %481 = vmatprep.subr.mxu0 0.0
      %482 = vmatpush1.msra.mxu0 %v244
      %483 = vmatprep.subr.mxu0 0.0
      %484 = vmatpush1.msra.mxu0 %v243
      %485 = vmatprep.subr.mxu0 0.0
      %486 = vmatpush1.msra.mxu0 %v242
      %487 = vmatprep.subr.mxu0 0.0
      %488 = vmatpush1.msra.mxu0 %v241
      %489 = vmatprep.subr.mxu0 0.0
      %490 = vmatpush1.msra.mxu0 %v240
      %491 = vmatprep.subr.mxu0 0.0
      %492 = vmatpush1.msra.mxu0 %v239
      %493 = vmatprep.subr.mxu0 0.0
      %494 = vmatpush1.msra.mxu0 %v238
      %495 = vmatprep.subr.mxu0 0.0
      %496 = vmatpush1.msra.mxu0 %v237
      %497 = vmatprep.subr.mxu0 0.0
      %498 = vmatpush1.msra.mxu0 %v236
      %499 = vmatprep.subr.mxu0 0.0
      %500 = vmatpush1.msra.mxu0 %v235
      %501 = vmatprep.subr.mxu0 0.0
      %502 = vmatpush1.msra.mxu0 %v234
      %503 = vmatprep.subr.mxu0 0.0
      %504 = vmatpush1.msra.mxu0 %v233
      %505 = vmatprep.subr.mxu0 0.0
      %506 = vmatpush1.msra.mxu0 %v232
      %507 = vmatprep.subr.mxu0 0.0
      %508 = vmatpush1.msra.mxu0 %v231
      %509 = vmatprep.subr.mxu0 0.0
      %510 = vmatpush2.msra.mxu0 %v262
      %511 = vmatprep.subr.mxu0 0.0
      %512 = vmatpush2.msra.mxu0 %v261
      %513 = vmatprep.subr.mxu0 0.0
      %514 = vmatpush2.msra.mxu0 %v260
      %515 = vmatprep.subr.mxu0 0.0
      %516 = vmatpush2.msra.mxu0 %v259
      %517 = vmatprep.subr.mxu0 0.0
      %518 = vmatpush2.msra.mxu0 %v258
      %519 = vmatprep.subr.mxu0 0.0
      %520 = vmatpush2.msra.mxu0 %v257
      %521 = vmatprep.subr.mxu0 0.0
      %522 = vmatpush2.msra.mxu0 %v256
      %523 = vmatprep.subr.mxu0 0.0
      %524 = vmatpush2.msra.mxu0 %v255
      %525 = vmatprep.subr.mxu0 0.0
      %526 = vmatpush2.msra.mxu0 %v254
      %527 = vmatprep.subr.mxu0 0.0
      %528 = vmatpush2.msra.mxu0 %v253
      %529 = vmatprep.subr.mxu0 0.0
      %530 = vmatpush2.msra.mxu0 %v252
      %531 = vmatprep.subr.mxu0 0.0
      %532 = vmatpush2.msra.mxu0 %v251
      %533 = vmatprep.subr.mxu0 0.0
      %534 = vmatpush2.msra.mxu0 %v250
      %535 = vmatprep.subr.mxu0 0.0
      %536 = vmatpush2.msra.mxu0 %v249
      %537 = vmatprep.subr.mxu0 0.0
      %538 = vmatpush2.msra.mxu0 %v248
      %539 = vmatprep.subr.mxu0 0.0
      %540 = vmatpush2.msra.mxu0 %v247
      %541 = vmatprep.mubr.f32.mxu0 %v320
      %542 = vmatmul.mubr.f32.gmra.mxu0 %v316
      %v543 = vpop.f32.mrf.mxu0
      %v544 = vadd.f32 %v474, %v543
      %v545 = vpop.f32.mrf.mxu0
      %546 = vdwg.mxu0
      %547 = vmatprep.subr.mxu0 0.0
      %548 = vmatpush1.msra.mxu0 %v278
      %549 = vmatprep.subr.mxu0 0.0
      %550 = vmatpush1.msra.mxu0 %v277
      %551 = vmatprep.subr.mxu0 0.0
      %552 = vmatpush1.msra.mxu0 %v276
      %553 = vmatprep.subr.mxu0 0.0
      %554 = vmatpush1.msra.mxu0 %v275
      %555 = vmatprep.subr.mxu0 0.0
      %556 = vmatpush1.msra.mxu0 %v274
      %557 = vmatprep.subr.mxu0 0.0
      %558 = vmatpush1.msra.mxu0 %v273
      %559 = vmatprep.subr.mxu0 0.0
      %560 = vmatpush1.msra.mxu0 %v272
      %561 = vmatprep.subr.mxu0 0.0
      %562 = vmatpush1.msra.mxu0 %v271
      %563 = vmatprep.subr.mxu0 0.0
      %564 = vmatpush1.msra.mxu0 %v270
      %565 = vmatprep.subr.mxu0 0.0
      %566 = vmatpush1.msra.mxu0 %v269
      %567 = vmatprep.subr.mxu0 0.0
      %568 = vmatpush1.msra.mxu0 %v268
      %569 = vmatprep.subr.mxu0 0.0
      %570 = vmatpush1.msra.mxu0 %v267
      %571 = vmatprep.subr.mxu0 0.0
      %572 = vmatpush1.msra.mxu0 %v266
      %573 = vmatprep.subr.mxu0 0.0
      %574 = vmatpush1.msra.mxu0 %v265
      %575 = vmatprep.subr.mxu0 0.0
      %576 = vmatpush1.msra.mxu0 %v264
      %577 = vmatprep.subr.mxu0 0.0
      %578 = vmatpush1.msra.mxu0 %v263
      %579 = vmatprep.subr.mxu0 0.0
      %580 = vmatpush2.msra.mxu0 %v294
      %581 = vmatprep.subr.mxu0 0.0
      %582 = vmatpush2.msra.mxu0 %v293
      %583 = vmatprep.subr.mxu0 0.0
      %584 = vmatpush2.msra.mxu0 %v292
      %585 = vmatprep.subr.mxu0 0.0
      %586 = vmatpush2.msra.mxu0 %v291
      %587 = vmatprep.subr.mxu0 0.0
      %588 = vmatpush2.msra.mxu0 %v290
      %589 = vmatprep.subr.mxu0 0.0
      %590 = vmatpush2.msra.mxu0 %v289
      %591 = vmatprep.subr.mxu0 0.0
      %592 = vmatpush2.msra.mxu0 %v288
      %593 = vmatprep.subr.mxu0 0.0
      %594 = vmatpush2.msra.mxu0 %v287
      %595 = vmatprep.subr.mxu0 0.0
      %596 = vmatpush2.msra.mxu0 %v286
      %597 = vmatprep.subr.mxu0 0.0
      %598 = vmatpush2.msra.mxu0 %v285
      %599 = vmatprep.subr.mxu0 0.0
      %600 = vmatpush2.msra.mxu0 %v284
      %601 = vmatprep.subr.mxu0 0.0
      %602 = vmatpush2.msra.mxu0 %v283
      %603 = vmatprep.subr.mxu0 0.0
      %604 = vmatpush2.msra.mxu0 %v282
      %605 = vmatprep.subr.mxu0 0.0
      %606 = vmatpush2.msra.mxu0 %v281
      %607 = vmatprep.subr.mxu0 0.0
      %608 = vmatpush2.msra.mxu0 %v280
      %609 = vmatprep.subr.mxu0 0.0
      %610 = vmatpush2.msra.mxu0 %v279
      %611 = vmatprep.mubr.f32.mxu0 %v328
      %612 = vmatmul.mubr.f32.gmra.mxu0 %v324
      %v613 = vpop.f32.mrf.mxu0
      %v614 = vadd.f32 %v544, %v613
      %v615 = vpop.f32.mrf.mxu0
      %616 = vdwg.mxu0
      %vm617 = vcmask 0
      %618 = vst.msk [vmem:[%s165] sm:$0x1] %vm617, %v614
      %p619 = scmp.lt.s32.totalorder %s16, 1
      %s620 = scalar_select %p619, %s16, 1
      %s621 = scalar_lea.vmem %s3, %s620
      // Predicated region
      $region33: #{discriminator_s_forward.13} parent=31 // pred_check
        %p622 = pneg %p102
      $region34: #{discriminator_s_forward.13} parent=31 // pred_check_branch
        %624 = sbr.rel (%p622) target = $region36
      $region35: #{discriminator_s_forward.13} parent=31 // pred_region
        _
      $region36: #{discriminator_s_forward.13} parent=31 // pred_fallthru
        _
    $region32: #{discriminator_s_forward.13} parent=5 // pred_fallthru
      _
    %p625 = scmp.le.s32.totalorder 2, %s11
    // Predicated region
    $region37: #{discriminator_s_forward.13} parent=5 // pred_check
      %p626 = pneg %p625
    $region38: #{discriminator_s_forward.13} parent=5 // pred_check_branch
      %628 = sbr.rel (%p626) target = $region40
    $region39: #{discriminator_s_forward.13} parent=5 // pred_region
      %s629 = ssub.s32 %s11, 2
      // Predicated region
      $region41: #{discriminator_s_forward.13} parent=39 // pred_check
        %p630 = pneg %p108
      $region42: #{discriminator_s_forward.13} parent=39 // pred_check_branch
        %632 = sbr.rel (%p630) target = $region44
      $region43: #{discriminator_s_forward.13} parent=39 // pred_region
        %p633 = scmp.lt.s32.totalorder %s17, 1
        %s634 = scalar_select %p633, %s17, 1
        %s635 = scalar_lea.vmem %s3, %s634
      $region44: #{discriminator_s_forward.13} parent=39 // pred_fallthru
        _
    $region40: #{discriminator_s_forward.13} parent=5 // pred_fallthru
      _
  $region6: #{discriminator_s_forward.13} parent=0 // loop_footer
    %s15 = sadd.s32 1, %s11
  $region7: #{discriminator_s_forward.13} parent=0 // loop_footer_branch
    %10 = sbr.rel target = $region3
  $region8: #{discriminator_s_forward.13} parent=0 // loop_exit
    _

// kernel: discriminator_s_forward.12
$region0: #{discriminator_s_forward.12}
  #allocation0 [shape = 'u32[]', space=smem, size = 0x4, offset = 0x4, fixed_abs, tag = 'smem constant byte address 0x4 - core index']
  #allocation1 [shape = 'u32[144,128]{1,0:T(1,128)}', space=vmem, size = 0x12000, scoped, tag = 'internal scratch']
  %s0 = inlined_call_operand.vmem [shape: f32[2,1,1024], index: 0, kind: input, shape index: {}]
  %s1 = inlined_call_operand.vmem [shape: f32[1024,1024], index: 1, kind: input, shape index: {}]
  %s2 = inlined_call_operand.vmem [shape: f32[1,1024], index: 2, kind: input, shape index: {}]
  %s3 = inlined_call_operand.vmem [shape: f32[2,1,1024], index: 3, kind: output, shape index: {}]
  %s4 = sld [smem:[#allocation0]]
  $region45: #{discriminator_s_forward.12} parent=0
    _
  %s6 = ssub.s32 1, %s4
  %s7 = scalar_select 0, %s6, %s4
  loop: start=0, step=1, limit=4
  $region2: #{discriminator_s_forward.12} parent=0 // loop_pre_header
    _
  $region3: #{discriminator_s_forward.12} parent=0 // loop_header
    %s9 = sphi 0, %s13
    %p10 = scmp.ge.s32.totalorder %s9, 4
    %s19 = sphi 0, %s21
    %s22 = sphi 0, %s19
    %s23 = sphi 0, %s22
    %s39 = sphi 0, %s23
    %s43 = sphi 0, %s43
    %s45 = sphi 0, %s43
    %s46 = sphi 0, %s45
    %s60 = sphi 0, %s46
    %s64 = sphi 0, %s64
    %s66 = sphi 0, %s64
    %s67 = sphi 0, %s66
    %s81 = sphi 0, %s67
    %s87 = sphi 0, %s89
    %s90 = sphi 0, %s87
    %s91 = sphi 0, %s90
    %s107 = sphi 0, %s91
  $region4: #{discriminator_s_forward.12} parent=0 // loop_header_branch
    %12 = sbr.rel (%p10) target = $region8
  $region5: #{discriminator_s_forward.12} parent=0 // loop_body
    %s14 = ssub.s32 %s9, 1
    %s15 = ssub.s32 %s9, 2
    %s16 = sadd.s32 %s9, 1
    %s17 = ssub.s32 %s9, %s16
    %p18 = scmp.eq.s32.totalorder %s17, 0
    %s20 = sadd.s32 %s19, 1
    %s21 = scalar_select %p18, %s19, %s20
    %p24 = pneg %p18
    %p25 = scmp.eq.s32.totalorder %s9, 1
    %p26 = por %p24, %p25
    %p27 = scmp.ne.s32.totalorder %s19, %s22
    %p28 = scmp.eq.s32.totalorder %s9, 0
    %p29 = por %p27, %p28
    %p30 = scmp.ne.s32.totalorder %s19, %s22
    %p31 = scmp.eq.s32.totalorder %s14, 1
    %p32 = por %p30, %p31
    %p33 = scmp.ne.s32.totalorder %s22, %s23
    %p34 = scmp.eq.s32.totalorder %s14, 0
    %p35 = por %p33, %p34
    %p36 = scmp.ne.s32.totalorder %s22, %s23
    %p37 = scmp.eq.s32.totalorder %s15, 1
    %p38 = por %p36, %p37
    %p40 = scmp.ne.s32.totalorder %s23, %s39
    %p41 = scmp.eq.s32.totalorder %s15, 0
    %p42 = por %p40, %p41
    %s44 = sadd.s32 %s43, 1
    %p47 = scmp.eq.s32.totalorder %s9, 1
    %p48 = scmp.ne.s32.totalorder %s43, %s45
    %p49 = scmp.eq.s32.totalorder %s9, 0
    %p50 = por %p48, %p49
    %p51 = scmp.ne.s32.totalorder %s43, %s45
    %p52 = scmp.eq.s32.totalorder %s14, 1
    %p53 = por %p51, %p52
    %p54 = scmp.ne.s32.totalorder %s45, %s46
    %p55 = scmp.eq.s32.totalorder %s14, 0
    %p56 = por %p54, %p55
    %p57 = scmp.ne.s32.totalorder %s45, %s46
    %p58 = scmp.eq.s32.totalorder %s15, 1
    %p59 = por %p57, %p58
    %p61 = scmp.ne.s32.totalorder %s46, %s60
    %p62 = scmp.eq.s32.totalorder %s15, 0
    %p63 = por %p61, %p62
    %s65 = sadd.s32 %s64, 1
    %p68 = scmp.eq.s32.totalorder %s9, 1
    %p69 = scmp.ne.s32.totalorder %s64, %s66
    %p70 = scmp.eq.s32.totalorder %s9, 0
    %p71 = por %p69, %p70
    %p72 = scmp.ne.s32.totalorder %s64, %s66
    %p73 = scmp.eq.s32.totalorder %s14, 1
    %p74 = por %p72, %p73
    %p75 = scmp.ne.s32.totalorder %s66, %s67
    %p76 = scmp.eq.s32.totalorder %s14, 0
    %p77 = por %p75, %p76
    %p78 = scmp.ne.s32.totalorder %s66, %s67
    %p79 = scmp.eq.s32.totalorder %s15, 1
    %p80 = por %p78, %p79
    %p82 = scmp.ne.s32.totalorder %s67, %s81
    %p83 = scmp.eq.s32.totalorder %s15, 0
    %p84 = por %p82, %p83
    %s85 = ssub.s32 %s9, %s16
    %p86 = scmp.eq.s32.totalorder %s85, 0
    %s88 = sadd.s32 %s87, 1
    %s89 = scalar_select %p86, %s87, %s88
    %p92 = pneg %p86
    %p93 = scmp.eq.s32.totalorder %s9, 1
    %p94 = por %p92, %p93
    %p95 = scmp.ne.s32.totalorder %s87, %s90
    %p96 = scmp.eq.s32.totalorder %s9, 0
    %p97 = por %p95, %p96
    %p98 = scmp.ne.s32.totalorder %s87, %s90
    %p99 = scmp.eq.s32.totalorder %s14, 1
    %p100 = por %p98, %p99
    %p101 = scmp.ne.s32.totalorder %s90, %s91
    %p102 = scmp.eq.s32.totalorder %s14, 0
    %p103 = por %p101, %p102
    %p104 = scmp.ne.s32.totalorder %s90, %s91
    %p105 = scmp.eq.s32.totalorder %s15, 1
    %p106 = por %p104, %p105
    %p108 = scmp.ne.s32.totalorder %s91, %s107
    %p109 = scmp.eq.s32.totalorder %s15, 0
    %p110 = por %p108, %p109
    %p111 = scmp.le.s32.totalorder 1, %s9
    %p112 = scmp.lt.s32.totalorder %s9, 3
    %p113 = pnand %p111, %p112
    %p114 = pneg %p113
    // Predicated region
    $region9: #{discriminator_s_forward.12} parent=5 // pred_check
      _
    $region10: #{discriminator_s_forward.12} parent=5 // pred_check_branch
      %116 = sbr.rel (%p113) target = $region12
    $region11: #{discriminator_s_forward.12} parent=5 // pred_region
      %s117 = ssub.s32 %s9, 1
      // Predicated region
      $region13: #{discriminator_s_forward.12} parent=11 // pred_check
        %p118 = pneg %p56
      $region14: #{discriminator_s_forward.12} parent=11 // pred_check_branch
        %120 = sbr.rel (%p118) target = $region16
      $region15: #{discriminator_s_forward.12} parent=11 // pred_region
        _
      $region16: #{discriminator_s_forward.12} parent=11 // pred_fallthru
        _
      // Predicated region
      $region17: #{discriminator_s_forward.12} parent=11 // pred_check
        %p121 = pneg %p77
      $region18: #{discriminator_s_forward.12} parent=11 // pred_check_branch
        %123 = sbr.rel (%p121) target = $region20
      $region19: #{discriminator_s_forward.12} parent=11 // pred_region
        _
      $region20: #{discriminator_s_forward.12} parent=11 // pred_fallthru
        _
    $region12: #{discriminator_s_forward.12} parent=5 // pred_fallthru
      _
    %p124 = scmp.lt.s32.totalorder %s9, 2
    // Predicated region
    $region21: #{discriminator_s_forward.12} parent=5 // pred_check
      %p125 = pneg %p124
    $region22: #{discriminator_s_forward.12} parent=5 // pred_check_branch
      %127 = sbr.rel (%p125) target = $region24
    $region23: #{discriminator_s_forward.12} parent=5 // pred_region
      // Predicated region
      $region25: #{discriminator_s_forward.12} parent=23 // pred_check
        %p128 = pneg %p29
      $region26: #{discriminator_s_forward.12} parent=23 // pred_check_branch
        %130 = sbr.rel (%p128) target = $region28
      $region27: #{discriminator_s_forward.12} parent=23 // pred_region
        %p131 = scmp.lt.s32.totalorder %s9, 1
        %s132 = scalar_select %p131, %s9, 1
        %s133 = smul.addr %s132, 8
        %s134 = scalar_lea.vmem %s0, %s133
      $region28: #{discriminator_s_forward.12} parent=23 // pred_fallthru
        _
    $region24: #{discriminator_s_forward.12} parent=5 // pred_fallthru
      _
    %p135 = scmp.le.s32.totalorder 1, %s9
    %p136 = scmp.lt.s32.totalorder %s9, 3
    %p137 = pnand %p135, %p136
    %p138 = pneg %p137
    // Predicated region
    $region29: #{discriminator_s_forward.12} parent=5 // pred_check
      _
    $region30: #{discriminator_s_forward.12} parent=5 // pred_check_branch
      %140 = sbr.rel (%p137) target = $region32
    $region31: #{discriminator_s_forward.12} parent=5 // pred_region
      %s141 = ssub.s32 %s9, 1
      %p142 = scmp.lt.s32.totalorder %s14, 1
      %s143 = scalar_select %p142, %s14, 1
      %s144 = smul.addr %s143, 8
      %s145 = scalar_lea.vmem %s0, %s144
      %p146 = pneg %p35
      %p147 = pneg %p32
      %p148 = pneg %p56
      %p149 = pneg %p53
      %p150 = pneg %p77
      %p151 = pneg %p74
      %p152 = pneg %p103
      %p153 = pneg %p100
      %p154 = scmp.lt.s32.totalorder %s14, 1
      %s155 = scalar_select %p154, %s14, 1
      %s156 = smul.addr %s155, 8
      %s157 = scalar_lea.vmem %s3, %s156
      %p158 = scmp.lt.s32.totalorder %s14, 1
      %s159 = scalar_select %p158, %s14, 1
      %s160 = smul.addr %s159, 8
      %s161 = scalar_lea.vmem %s0, %s160
      %p162 = scmp.lt.s32.totalorder %s14, 1
      %s163 = scalar_select %p162, %s14, 1
      %s164 = smul.addr %s163, 8
      %s165 = scalar_lea.vmem %s3, %s164
      %v166 = vld [vmem:[%s161] sm:$0xff]
      %v167 = vld [vmem:[%s1] sm:$0xff]
      %v168 = vld [vmem:[%s1 + $0x8] sm:$0xff]
      %v169 = vld [vmem:[%s1 + $0x10] sm:$0xff]
      %v170 = vld [vmem:[%s1 + $0x18] sm:$0xff]
      %v171 = vld [vmem:[%s1 + $0x20] sm:$0xff]
      %v172 = vld [vmem:[%s1 + $0x28] sm:$0xff]
      %v173 = vld [vmem:[%s1 + $0x30] sm:$0xff]
      %v174 = vld [vmem:[%s1 + $0x38] sm:$0xff]
      %v175 = vld [vmem:[%s1 + $0x40] sm:$0xff]
      %v176 = vld [vmem:[%s1 + $0x48] sm:$0xff]
      %v177 = vld [vmem:[%s1 + $0x50] sm:$0xff]
      %v178 = vld [vmem:[%s1 + $0x58] sm:$0xff]
      %v179 = vld [vmem:[%s1 + $0x60] sm:$0xff]
      %v180 = vld [vmem:[%s1 + $0x68] sm:$0xff]
      %v181 = vld [vmem:[%s1 + $0x70] sm:$0xff]
      %v182 = vld [vmem:[%s1 + $0x78] sm:$0xff]
      %v183 = vld [vmem:[%s1 + $0x80] sm:$0xff]
      %v184 = vld [vmem:[%s1 + $0x88] sm:$0xff]
      %v185 = vld [vmem:[%s1 + $0x90] sm:$0xff]
      %v186 = vld [vmem:[%s1 + $0x98] sm:$0xff]
      %v187 = vld [vmem:[%s1 + $0xa0] sm:$0xff]
      %v188 = vld [vmem:[%s1 + $0xa8] sm:$0xff]
      %v189 = vld [vmem:[%s1 + $0xb0] sm:$0xff]
      %v190 = vld [vmem:[%s1 + $0xb8] sm:$0xff]
      %v191 = vld [vmem:[%s1 + $0xc0] sm:$0xff]
      %v192 = vld [vmem:[%s1 + $0xc8] sm:$0xff]
      %v193 = vld [vmem:[%s1 + $0xd0] sm:$0xff]
      %v194 = vld [vmem:[%s1 + $0xd8] sm:$0xff]
      %v195 = vld [vmem:[%s1 + $0xe0] sm:$0xff]
      %v196 = vld [vmem:[%s1 + $0xe8] sm:$0xff]
      %v197 = vld [vmem:[%s1 + $0xf0] sm:$0xff]
      %v198 = vld [vmem:[%s1 + $0xf8] sm:$0xff]
      %v199 = vld [vmem:[%s1 + $0x100] sm:$0xff]
      %v200 = vld [vmem:[%s1 + $0x108] sm:$0xff]
      %v201 = vld [vmem:[%s1 + $0x110] sm:$0xff]
      %v202 = vld [vmem:[%s1 + $0x118] sm:$0xff]
      %v203 = vld [vmem:[%s1 + $0x120] sm:$0xff]
      %v204 = vld [vmem:[%s1 + $0x128] sm:$0xff]
      %v205 = vld [vmem:[%s1 + $0x130] sm:$0xff]
      %v206 = vld [vmem:[%s1 + $0x138] sm:$0xff]
      %v207 = vld [vmem:[%s1 + $0x140] sm:$0xff]
      %v208 = vld [vmem:[%s1 + $0x148] sm:$0xff]
      %v209 = vld [vmem:[%s1 + $0x150] sm:$0xff]
      %v210 = vld [vmem:[%s1 + $0x158] sm:$0xff]
      %v211 = vld [vmem:[%s1 + $0x160] sm:$0xff]
      %v212 = vld [vmem:[%s1 + $0x168] sm:$0xff]
      %v213 = vld [vmem:[%s1 + $0x170] sm:$0xff]
      %v214 = vld [vmem:[%s1 + $0x178] sm:$0xff]
      %v215 = vld [vmem:[%s1 + $0x180] sm:$0xff]
      %v216 = vld [vmem:[%s1 + $0x188] sm:$0xff]
      %v217 = vld [vmem:[%s1 + $0x190] sm:$0xff]
      %v218 = vld [vmem:[%s1 + $0x198] sm:$0xff]
      %v219 = vld [vmem:[%s1 + $0x1a0] sm:$0xff]
      %v220 = vld [vmem:[%s1 + $0x1a8] sm:$0xff]
      %v221 = vld [vmem:[%s1 + $0x1b0] sm:$0xff]
      %v222 = vld [vmem:[%s1 + $0x1b8] sm:$0xff]
      %v223 = vld [vmem:[%s1 + $0x1c0] sm:$0xff]
      %v224 = vld [vmem:[%s1 + $0x1c8] sm:$0xff]
      %v225 = vld [vmem:[%s1 + $0x1d0] sm:$0xff]
      %v226 = vld [vmem:[%s1 + $0x1d8] sm:$0xff]
      %v227 = vld [vmem:[%s1 + $0x1e0] sm:$0xff]
      %v228 = vld [vmem:[%s1 + $0x1e8] sm:$0xff]
      %v229 = vld [vmem:[%s1 + $0x1f0] sm:$0xff]
      %v230 = vld [vmem:[%s1 + $0x1f8] sm:$0xff]
      %v231 = vld [vmem:[%s1 + $0x200] sm:$0xff]
      %v232 = vld [vmem:[%s1 + $0x208] sm:$0xff]
      %v233 = vld [vmem:[%s1 + $0x210] sm:$0xff]
      %v234 = vld [vmem:[%s1 + $0x218] sm:$0xff]
      %v235 = vld [vmem:[%s1 + $0x220] sm:$0xff]
      %v236 = vld [vmem:[%s1 + $0x228] sm:$0xff]
      %v237 = vld [vmem:[%s1 + $0x230] sm:$0xff]
      %v238 = vld [vmem:[%s1 + $0x238] sm:$0xff]
      %v239 = vld [vmem:[%s1 + $0x240] sm:$0xff]
      %v240 = vld [vmem:[%s1 + $0x248] sm:$0xff]
      %v241 = vld [vmem:[%s1 + $0x250] sm:$0xff]
      %v242 = vld [vmem:[%s1 + $0x258] sm:$0xff]
      %v243 = vld [vmem:[%s1 + $0x260] sm:$0xff]
      %v244 = vld [vmem:[%s1 + $0x268] sm:$0xff]
      %v245 = vld [vmem:[%s1 + $0x270] sm:$0xff]
      %v246 = vld [vmem:[%s1 + $0x278] sm:$0xff]
      %v247 = vld [vmem:[%s1 + $0x280] sm:$0xff]
      %v248 = vld [vmem:[%s1 + $0x288] sm:$0xff]
      %v249 = vld [vmem:[%s1 + $0x290] sm:$0xff]
      %v250 = vld [vmem:[%s1 + $0x298] sm:$0xff]
      %v251 = vld [vmem:[%s1 + $0x2a0] sm:$0xff]
      %v252 = vld [vmem:[%s1 + $0x2a8] sm:$0xff]
      %v253 = vld [vmem:[%s1 + $0x2b0] sm:$0xff]
      %v254 = vld [vmem:[%s1 + $0x2b8] sm:$0xff]
      %v255 = vld [vmem:[%s1 + $0x2c0] sm:$0xff]
      %v256 = vld [vmem:[%s1 + $0x2c8] sm:$0xff]
      %v257 = vld [vmem:[%s1 + $0x2d0] sm:$0xff]
      %v258 = vld [vmem:[%s1 + $0x2d8] sm:$0xff]
      %v259 = vld [vmem:[%s1 + $0x2e0] sm:$0xff]
      %v260 = vld [vmem:[%s1 + $0x2e8] sm:$0xff]
      %v261 = vld [vmem:[%s1 + $0x2f0] sm:$0xff]
      %v262 = vld [vmem:[%s1 + $0x2f8] sm:$0xff]
      %v263 = vld [vmem:[%s1 + $0x300] sm:$0xff]
      %v264 = vld [vmem:[%s1 + $0x308] sm:$0xff]
      %v265 = vld [vmem:[%s1 + $0x310] sm:$0xff]
      %v266 = vld [vmem:[%s1 + $0x318] sm:$0xff]
      %v267 = vld [vmem:[%s1 + $0x320] sm:$0xff]
      %v268 = vld [vmem:[%s1 + $0x328] sm:$0xff]
      %v269 = vld [vmem:[%s1 + $0x330] sm:$0xff]
      %v270 = vld [vmem:[%s1 + $0x338] sm:$0xff]
      %v271 = vld [vmem:[%s1 + $0x340] sm:$0xff]
      %v272 = vld [vmem:[%s1 + $0x348] sm:$0xff]
      %v273 = vld [vmem:[%s1 + $0x350] sm:$0xff]
      %v274 = vld [vmem:[%s1 + $0x358] sm:$0xff]
      %v275 = vld [vmem:[%s1 + $0x360] sm:$0xff]
      %v276 = vld [vmem:[%s1 + $0x368] sm:$0xff]
      %v277 = vld [vmem:[%s1 + $0x370] sm:$0xff]
      %v278 = vld [vmem:[%s1 + $0x378] sm:$0xff]
      %v279 = vld [vmem:[%s1 + $0x380] sm:$0xff]
      %v280 = vld [vmem:[%s1 + $0x388] sm:$0xff]
      %v281 = vld [vmem:[%s1 + $0x390] sm:$0xff]
      %v282 = vld [vmem:[%s1 + $0x398] sm:$0xff]
      %v283 = vld [vmem:[%s1 + $0x3a0] sm:$0xff]
      %v284 = vld [vmem:[%s1 + $0x3a8] sm:$0xff]
      %v285 = vld [vmem:[%s1 + $0x3b0] sm:$0xff]
      %v286 = vld [vmem:[%s1 + $0x3b8] sm:$0xff]
      %v287 = vld [vmem:[%s1 + $0x3c0] sm:$0xff]
      %v288 = vld [vmem:[%s1 + $0x3c8] sm:$0xff]
      %v289 = vld [vmem:[%s1 + $0x3d0] sm:$0xff]
      %v290 = vld [vmem:[%s1 + $0x3d8] sm:$0xff]
      %v291 = vld [vmem:[%s1 + $0x3e0] sm:$0xff]
      %v292 = vld [vmem:[%s1 + $0x3e8] sm:$0xff]
      %v293 = vld [vmem:[%s1 + $0x3f0] sm:$0xff]
      %v294 = vld [vmem:[%s1 + $0x3f8] sm:$0xff]
      %v295 = vld [vmem:[%s1 + $0x400] sm:$0xff]
      %v296 = vld [vmem:[%s1 + $0x408] sm:$0xff]
      %v297 = vld [vmem:[%s1 + $0x410] sm:$0xff]
      %v298 = vld [vmem:[%s1 + $0x418] sm:$0xff]
      %v299 = vld [vmem:[%s1 + $0x420] sm:$0xff]
      %v300 = vld [vmem:[%s1 + $0x428] sm:$0xff]
      %v301 = vld [vmem:[%s1 + $0x430] sm:$0xff]
      %v302 = vld [vmem:[%s1 + $0x438] sm:$0xff]
      %v303 = vld [vmem:[%s1 + $0x440] sm:$0xff]
      %v304 = vld [vmem:[%s1 + $0x448] sm:$0xff]
      %v305 = vld [vmem:[%s1 + $0x450] sm:$0xff]
      %v306 = vld [vmem:[%s1 + $0x458] sm:$0xff]
      %v307 = vld [vmem:[%s1 + $0x460] sm:$0xff]
      %v308 = vld [vmem:[%s1 + $0x468] sm:$0xff]
      %v309 = vld [vmem:[%s1 + $0x470] sm:$0xff]
      %v310 = vld [vmem:[%s1 + $0x478] sm:$0xff]
      %v311 = vld [vmem:[%s1 + $0x480] sm:$0xff]
      %v312 = vld [vmem:[%s1 + $0x488] sm:$0xff]
      %v313 = vld [vmem:[%s1 + $0x490] sm:$0xff]
      %v314 = vld [vmem:[%s1 + $0x498] sm:$0xff]
      %v315 = vld [vmem:[%s1 + $0x4a0] sm:$0xff]
      %v316 = vld [vmem:[%s1 + $0x4a8] sm:$0xff]
      %v317 = vld [vmem:[%s1 + $0x4b0] sm:$0xff]
      %v318 = vld [vmem:[%s1 + $0x4b8] sm:$0xff]
      %v319 = vld [vmem:[%s1 + $0x4c0] sm:$0xff]
      %v320 = vld [vmem:[%s1 + $0x4c8] sm:$0xff]
      %v321 = vld [vmem:[%s1 + $0x4d0] sm:$0xff]
      %v322 = vld [vmem:[%s1 + $0x4d8] sm:$0xff]
      %v323 = vld [vmem:[%s1 + $0x4e0] sm:$0xff]
      %v324 = vld [vmem:[%s1 + $0x4e8] sm:$0xff]
      %v325 = vld [vmem:[%s1 + $0x4f0] sm:$0xff]
      %v326 = vld [vmem:[%s1 + $0x4f8] sm:$0xff]
      %v327 = vld [vmem:[%s1 + $0x500] sm:$0xff]
      %v328 = vld [vmem:[%s1 + $0x508] sm:$0xff]
      %v329 = vld [vmem:[%s1 + $0x510] sm:$0xff]
      %v330 = vld [vmem:[%s1 + $0x518] sm:$0xff]
      %v331 = vld [vmem:[%s1 + $0x520] sm:$0xff]
      %v332 = vld [vmem:[%s1 + $0x528] sm:$0xff]
      %v333 = vld [vmem:[%s1 + $0x530] sm:$0xff]
      %v334 = vld [vmem:[%s1 + $0x538] sm:$0xff]
      %v335 = vld [vmem:[%s1 + $0x540] sm:$0xff]
      %v336 = vld [vmem:[%s1 + $0x548] sm:$0xff]
      %v337 = vld [vmem:[%s1 + $0x550] sm:$0xff]
      %v338 = vld [vmem:[%s1 + $0x558] sm:$0xff]
      %v339 = vld [vmem:[%s1 + $0x560] sm:$0xff]
      %v340 = vld [vmem:[%s1 + $0x568] sm:$0xff]
      %v341 = vld [vmem:[%s1 + $0x570] sm:$0xff]
      %v342 = vld [vmem:[%s1 + $0x578] sm:$0xff]
      %v343 = vld [vmem:[%s1 + $0x580] sm:$0xff]
      %v344 = vld [vmem:[%s1 + $0x588] sm:$0xff]
      %v345 = vld [vmem:[%s1 + $0x590] sm:$0xff]
      %v346 = vld [vmem:[%s1 + $0x598] sm:$0xff]
      %v347 = vld [vmem:[%s1 + $0x5a0] sm:$0xff]
      %v348 = vld [vmem:[%s1 + $0x5a8] sm:$0xff]
      %v349 = vld [vmem:[%s1 + $0x5b0] sm:$0xff]
      %v350 = vld [vmem:[%s1 + $0x5b8] sm:$0xff]
      %v351 = vld [vmem:[%s1 + $0x5c0] sm:$0xff]
      %v352 = vld [vmem:[%s1 + $0x5c8] sm:$0xff]
      %v353 = vld [vmem:[%s1 + $0x5d0] sm:$0xff]
      %v354 = vld [vmem:[%s1 + $0x5d8] sm:$0xff]
      %v355 = vld [vmem:[%s1 + $0x5e0] sm:$0xff]
      %v356 = vld [vmem:[%s1 + $0x5e8] sm:$0xff]
      %v357 = vld [vmem:[%s1 + $0x5f0] sm:$0xff]
      %v358 = vld [vmem:[%s1 + $0x5f8] sm:$0xff]
      %v359 = vld [vmem:[%s1 + $0x600] sm:$0xff]
      %v360 = vld [vmem:[%s1 + $0x608] sm:$0xff]
      %v361 = vld [vmem:[%s1 + $0x610] sm:$0xff]
      %v362 = vld [vmem:[%s1 + $0x618] sm:$0xff]
      %v363 = vld [vmem:[%s1 + $0x620] sm:$0xff]
      %v364 = vld [vmem:[%s1 + $0x628] sm:$0xff]
      %v365 = vld [vmem:[%s1 + $0x630] sm:$0xff]
      %v366 = vld [vmem:[%s1 + $0x638] sm:$0xff]
      %v367 = vld [vmem:[%s1 + $0x640] sm:$0xff]
      %v368 = vld [vmem:[%s1 + $0x648] sm:$0xff]
      %v369 = vld [vmem:[%s1 + $0x650] sm:$0xff]
      %v370 = vld [vmem:[%s1 + $0x658] sm:$0xff]
      %v371 = vld [vmem:[%s1 + $0x660] sm:$0xff]
      %v372 = vld [vmem:[%s1 + $0x668] sm:$0xff]
      %v373 = vld [vmem:[%s1 + $0x670] sm:$0xff]
      %v374 = vld [vmem:[%s1 + $0x678] sm:$0xff]
      %v375 = vld [vmem:[%s1 + $0x680] sm:$0xff]
      %v376 = vld [vmem:[%s1 + $0x688] sm:$0xff]
      %v377 = vld [vmem:[%s1 + $0x690] sm:$0xff]
      %v378 = vld [vmem:[%s1 + $0x698] sm:$0xff]
      %v379 = vld [vmem:[%s1 + $0x6a0] sm:$0xff]
      %v380 = vld [vmem:[%s1 + $0x6a8] sm:$0xff]
      %v381 = vld [vmem:[%s1 + $0x6b0] sm:$0xff]
      %v382 = vld [vmem:[%s1 + $0x6b8] sm:$0xff]
      %v383 = vld [vmem:[%s1 + $0x6c0] sm:$0xff]
      %v384 = vld [vmem:[%s1 + $0x6c8] sm:$0xff]
      %v385 = vld [vmem:[%s1 + $0x6d0] sm:$0xff]
      %v386 = vld [vmem:[%s1 + $0x6d8] sm:$0xff]
      %v387 = vld [vmem:[%s1 + $0x6e0] sm:$0xff]
      %v388 = vld [vmem:[%s1 + $0x6e8] sm:$0xff]
      %v389 = vld [vmem:[%s1 + $0x6f0] sm:$0xff]
      %v390 = vld [vmem:[%s1 + $0x6f8] sm:$0xff]
      %v391 = vld [vmem:[%s1 + $0x700] sm:$0xff]
      %v392 = vld [vmem:[%s1 + $0x708] sm:$0xff]
      %v393 = vld [vmem:[%s1 + $0x710] sm:$0xff]
      %v394 = vld [vmem:[%s1 + $0x718] sm:$0xff]
      %v395 = vld [vmem:[%s1 + $0x720] sm:$0xff]
      %v396 = vld [vmem:[%s1 + $0x728] sm:$0xff]
      %v397 = vld [vmem:[%s1 + $0x730] sm:$0xff]
      %v398 = vld [vmem:[%s1 + $0x738] sm:$0xff]
      %v399 = vld [vmem:[%s1 + $0x740] sm:$0xff]
      %v400 = vld [vmem:[%s1 + $0x748] sm:$0xff]
      %v401 = vld [vmem:[%s1 + $0x750] sm:$0xff]
      %v402 = vld [vmem:[%s1 + $0x758] sm:$0xff]
      %v403 = vld [vmem:[%s1 + $0x760] sm:$0xff]
      %v404 = vld [vmem:[%s1 + $0x768] sm:$0xff]
      %v405 = vld [vmem:[%s1 + $0x770] sm:$0xff]
      %v406 = vld [vmem:[%s1 + $0x778] sm:$0xff]
      %v407 = vld [vmem:[%s1 + $0x780] sm:$0xff]
      %v408 = vld [vmem:[%s1 + $0x788] sm:$0xff]
      %v409 = vld [vmem:[%s1 + $0x790] sm:$0xff]
      %v410 = vld [vmem:[%s1 + $0x798] sm:$0xff]
      %v411 = vld [vmem:[%s1 + $0x7a0] sm:$0xff]
      %v412 = vld [vmem:[%s1 + $0x7a8] sm:$0xff]
      %v413 = vld [vmem:[%s1 + $0x7b0] sm:$0xff]
      %v414 = vld [vmem:[%s1 + $0x7b8] sm:$0xff]
      %v415 = vld [vmem:[%s1 + $0x7c0] sm:$0xff]
      %v416 = vld [vmem:[%s1 + $0x7c8] sm:$0xff]
      %v417 = vld [vmem:[%s1 + $0x7d0] sm:$0xff]
      %v418 = vld [vmem:[%s1 + $0x7d8] sm:$0xff]
      %v419 = vld [vmem:[%s1 + $0x7e0] sm:$0xff]
      %v420 = vld [vmem:[%s1 + $0x7e8] sm:$0xff]
      %v421 = vld [vmem:[%s1 + $0x7f0] sm:$0xff]
      %v422 = vld [vmem:[%s1 + $0x7f8] sm:$0xff]
      %v423 = vld [vmem:[%s1 + $0x800] sm:$0xff]
      %v424 = vld [vmem:[%s1 + $0x808] sm:$0xff]
      %v425 = vld [vmem:[%s1 + $0x810] sm:$0xff]
      %v426 = vld [vmem:[%s1 + $0x818] sm:$0xff]
      %v427 = vld [vmem:[%s1 + $0x820] sm:$0xff]
      %v428 = vld [vmem:[%s1 + $0x828] sm:$0xff]
      %v429 = vld [vmem:[%s1 + $0x830] sm:$0xff]
      %v430 = vld [vmem:[%s1 + $0x838] sm:$0xff]
      %v431 = vld [vmem:[%s1 + $0x840] sm:$0xff]
      %v432 = vld [vmem:[%s1 + $0x848] sm:$0xff]
      %v433 = vld [vmem:[%s1 + $0x850] sm:$0xff]
      %v434 = vld [vmem:[%s1 + $0x858] sm:$0xff]
      %v435 = vld [vmem:[%s1 + $0x860] sm:$0xff]
      %v436 = vld [vmem:[%s1 + $0x868] sm:$0xff]
      %v437 = vld [vmem:[%s1 + $0x870] sm:$0xff]
      %v438 = vld [vmem:[%s1 + $0x878] sm:$0xff]
      %v439 = vld [vmem:[%s1 + $0x880] sm:$0xff]
      %v440 = vld [vmem:[%s1 + $0x888] sm:$0xff]
      %v441 = vld [vmem:[%s1 + $0x890] sm:$0xff]
      %v442 = vld [vmem:[%s1 + $0x898] sm:$0xff]
      %v443 = vld [vmem:[%s1 + $0x8a0] sm:$0xff]
      %v444 = vld [vmem:[%s1 + $0x8a8] sm:$0xff]
      %v445 = vld [vmem:[%s1 + $0x8b0] sm:$0xff]
      %v446 = vld [vmem:[%s1 + $0x8b8] sm:$0xff]
      %v447 = vld [vmem:[%s1 + $0x8c0] sm:$0xff]
      %v448 = vld [vmem:[%s1 + $0x8c8] sm:$0xff]
      %v449 = vld [vmem:[%s1 + $0x8d0] sm:$0xff]
      %v450 = vld [vmem:[%s1 + $0x8d8] sm:$0xff]
      %v451 = vld [vmem:[%s1 + $0x8e0] sm:$0xff]
      %v452 = vld [vmem:[%s1 + $0x8e8] sm:$0xff]
      %v453 = vld [vmem:[%s1 + $0x8f0] sm:$0xff]
      %v454 = vld [vmem:[%s1 + $0x8f8] sm:$0xff]
      %v455 = vld [vmem:[%s1 + $0x900] sm:$0xff]
      %v456 = vld [vmem:[%s1 + $0x908] sm:$0xff]
      %v457 = vld [vmem:[%s1 + $0x910] sm:$0xff]
      %v458 = vld [vmem:[%s1 + $0x918] sm:$0xff]
      %v459 = vld [vmem:[%s1 + $0x920] sm:$0xff]
      %v460 = vld [vmem:[%s1 + $0x928] sm:$0xff]
      %v461 = vld [vmem:[%s1 + $0x930] sm:$0xff]
      %v462 = vld [vmem:[%s1 + $0x938] sm:$0xff]
      %v463 = vld [vmem:[%s1 + $0x940] sm:$0xff]
      %v464 = vld [vmem:[%s1 + $0x948] sm:$0xff]
      %v465 = vld [vmem:[%s1 + $0x950] sm:$0xff]
      %v466 = vld [vmem:[%s1 + $0x958] sm:$0xff]
      %v467 = vld [vmem:[%s1 + $0x960] sm:$0xff]
      %v468 = vld [vmem:[%s1 + $0x968] sm:$0xff]
      %v469 = vld [vmem:[%s1 + $0x970] sm:$0xff]
      %v470 = vld [vmem:[%s1 + $0x978] sm:$0xff]
      %v471 = vld [vmem:[%s1 + $0x980] sm:$0xff]
      %v472 = vld [vmem:[%s1 + $0x988] sm:$0xff]
      %v473 = vld [vmem:[%s1 + $0x990] sm:$0xff]
      %v474 = vld [vmem:[%s1 + $0x998] sm:$0xff]
      %v475 = vld [vmem:[%s1 + $0x9a0] sm:$0xff]
      %v476 = vld [vmem:[%s1 + $0x9a8] sm:$0xff]
      %v477 = vld [vmem:[%s1 + $0x9b0] sm:$0xff]
      %v478 = vld [vmem:[%s1 + $0x9b8] sm:$0xff]
      %v479 = vld [vmem:[%s1 + $0x9c0] sm:$0xff]
      %v480 = vld [vmem:[%s1 + $0x9c8] sm:$0xff]
      %v481 = vld [vmem:[%s1 + $0x9d0] sm:$0xff]
      %v482 = vld [vmem:[%s1 + $0x9d8] sm:$0xff]
      %v483 = vld [vmem:[%s1 + $0x9e0] sm:$0xff]
      %v484 = vld [vmem:[%s1 + $0x9e8] sm:$0xff]
      %v485 = vld [vmem:[%s1 + $0x9f0] sm:$0xff]
      %v486 = vld [vmem:[%s1 + $0x9f8] sm:$0xff]
      %v487 = vld [vmem:[%s1 + $0xa00] sm:$0xff]
      %v488 = vld [vmem:[%s1 + $0xa08] sm:$0xff]
      %v489 = vld [vmem:[%s1 + $0xa10] sm:$0xff]
      %v490 = vld [vmem:[%s1 + $0xa18] sm:$0xff]
      %v491 = vld [vmem:[%s1 + $0xa20] sm:$0xff]
      %v492 = vld [vmem:[%s1 + $0xa28] sm:$0xff]
      %v493 = vld [vmem:[%s1 + $0xa30] sm:$0xff]
      %v494 = vld [vmem:[%s1 + $0xa38] sm:$0xff]
      %v495 = vld [vmem:[%s1 + $0xa40] sm:$0xff]
      %v496 = vld [vmem:[%s1 + $0xa48] sm:$0xff]
      %v497 = vld [vmem:[%s1 + $0xa50] sm:$0xff]
      %v498 = vld [vmem:[%s1 + $0xa58] sm:$0xff]
      %v499 = vld [vmem:[%s1 + $0xa60] sm:$0xff]
      %v500 = vld [vmem:[%s1 + $0xa68] sm:$0xff]
      %v501 = vld [vmem:[%s1 + $0xa70] sm:$0xff]
      %v502 = vld [vmem:[%s1 + $0xa78] sm:$0xff]
      %v503 = vld [vmem:[%s1 + $0xa80] sm:$0xff]
      %v504 = vld [vmem:[%s1 + $0xa88] sm:$0xff]
      %v505 = vld [vmem:[%s1 + $0xa90] sm:$0xff]
      %v506 = vld [vmem:[%s1 + $0xa98] sm:$0xff]
      %v507 = vld [vmem:[%s1 + $0xaa0] sm:$0xff]
      %v508 = vld [vmem:[%s1 + $0xaa8] sm:$0xff]
      %v509 = vld [vmem:[%s1 + $0xab0] sm:$0xff]
      %v510 = vld [vmem:[%s1 + $0xab8] sm:$0xff]
      %v511 = vld [vmem:[%s1 + $0xac0] sm:$0xff]
      %v512 = vld [vmem:[%s1 + $0xac8] sm:$0xff]
      %v513 = vld [vmem:[%s1 + $0xad0] sm:$0xff]
      %v514 = vld [vmem:[%s1 + $0xad8] sm:$0xff]
      %v515 = vld [vmem:[%s1 + $0xae0] sm:$0xff]
      %v516 = vld [vmem:[%s1 + $0xae8] sm:$0xff]
      %v517 = vld [vmem:[%s1 + $0xaf0] sm:$0xff]
      %v518 = vld [vmem:[%s1 + $0xaf8] sm:$0xff]
      %v519 = vld [vmem:[%s1 + $0xb00] sm:$0xff]
      %v520 = vld [vmem:[%s1 + $0xb08] sm:$0xff]
      %v521 = vld [vmem:[%s1 + $0xb10] sm:$0xff]
      %v522 = vld [vmem:[%s1 + $0xb18] sm:$0xff]
      %v523 = vld [vmem:[%s1 + $0xb20] sm:$0xff]
      %v524 = vld [vmem:[%s1 + $0xb28] sm:$0xff]
      %v525 = vld [vmem:[%s1 + $0xb30] sm:$0xff]
      %v526 = vld [vmem:[%s1 + $0xb38] sm:$0xff]
      %v527 = vld [vmem:[%s1 + $0xb40] sm:$0xff]
      %v528 = vld [vmem:[%s1 + $0xb48] sm:$0xff]
      %v529 = vld [vmem:[%s1 + $0xb50] sm:$0xff]
      %v530 = vld [vmem:[%s1 + $0xb58] sm:$0xff]
      %v531 = vld [vmem:[%s1 + $0xb60] sm:$0xff]
      %v532 = vld [vmem:[%s1 + $0xb68] sm:$0xff]
      %v533 = vld [vmem:[%s1 + $0xb70] sm:$0xff]
      %v534 = vld [vmem:[%s1 + $0xb78] sm:$0xff]
      %v535 = vld [vmem:[%s1 + $0xb80] sm:$0xff]
      %v536 = vld [vmem:[%s1 + $0xb88] sm:$0xff]
      %v537 = vld [vmem:[%s1 + $0xb90] sm:$0xff]
      %v538 = vld [vmem:[%s1 + $0xb98] sm:$0xff]
      %v539 = vld [vmem:[%s1 + $0xba0] sm:$0xff]
      %v540 = vld [vmem:[%s1 + $0xba8] sm:$0xff]
      %v541 = vld [vmem:[%s1 + $0xbb0] sm:$0xff]
      %v542 = vld [vmem:[%s1 + $0xbb8] sm:$0xff]
      %v543 = vld [vmem:[%s1 + $0xbc0] sm:$0xff]
      %v544 = vld [vmem:[%s1 + $0xbc8] sm:$0xff]
      %v545 = vld [vmem:[%s1 + $0xbd0] sm:$0xff]
      %v546 = vld [vmem:[%s1 + $0xbd8] sm:$0xff]
      %v547 = vld [vmem:[%s1 + $0xbe0] sm:$0xff]
      %v548 = vld [vmem:[%s1 + $0xbe8] sm:$0xff]
      %v549 = vld [vmem:[%s1 + $0xbf0] sm:$0xff]
      %v550 = vld [vmem:[%s1 + $0xbf8] sm:$0xff]
      %v551 = vld [vmem:[%s1 + $0xc00] sm:$0xff]
      %v552 = vld [vmem:[%s1 + $0xc08] sm:$0xff]
      %v553 = vld [vmem:[%s1 + $0xc10] sm:$0xff]
      %v554 = vld [vmem:[%s1 + $0xc18] sm:$0xff]
      %v555 = vld [vmem:[%s1 + $0xc20] sm:$0xff]
      %v556 = vld [vmem:[%s1 + $0xc28] sm:$0xff]
      %v557 = vld [vmem:[%s1 + $0xc30] sm:$0xff]
      %v558 = vld [vmem:[%s1 + $0xc38] sm:$0xff]
      %v559 = vld [vmem:[%s1 + $0xc40] sm:$0xff]
      %v560 = vld [vmem:[%s1 + $0xc48] sm:$0xff]
      %v561 = vld [vmem:[%s1 + $0xc50] sm:$0xff]
      %v562 = vld [vmem:[%s1 + $0xc58] sm:$0xff]
      %v563 = vld [vmem:[%s1 + $0xc60] sm:$0xff]
      %v564 = vld [vmem:[%s1 + $0xc68] sm:$0xff]
      %v565 = vld [vmem:[%s1 + $0xc70] sm:$0xff]
      %v566 = vld [vmem:[%s1 + $0xc78] sm:$0xff]
      %v567 = vld [vmem:[%s1 + $0xc80] sm:$0xff]
      %v568 = vld [vmem:[%s1 + $0xc88] sm:$0xff]
      %v569 = vld [vmem:[%s1 + $0xc90] sm:$0xff]
      %v570 = vld [vmem:[%s1 + $0xc98] sm:$0xff]
      %v571 = vld [vmem:[%s1 + $0xca0] sm:$0xff]
      %v572 = vld [vmem:[%s1 + $0xca8] sm:$0xff]
      %v573 = vld [vmem:[%s1 + $0xcb0] sm:$0xff]
      %v574 = vld [vmem:[%s1 + $0xcb8] sm:$0xff]
      %v575 = vld [vmem:[%s1 + $0xcc0] sm:$0xff]
      %v576 = vld [vmem:[%s1 + $0xcc8] sm:$0xff]
      %v577 = vld [vmem:[%s1 + $0xcd0] sm:$0xff]
      %v578 = vld [vmem:[%s1 + $0xcd8] sm:$0xff]
      %v579 = vld [vmem:[%s1 + $0xce0] sm:$0xff]
      %v580 = vld [vmem:[%s1 + $0xce8] sm:$0xff]
      %v581 = vld [vmem:[%s1 + $0xcf0] sm:$0xff]
      %v582 = vld [vmem:[%s1 + $0xcf8] sm:$0xff]
      %v583 = vld [vmem:[%s1 + $0xd00] sm:$0xff]
      %v584 = vld [vmem:[%s1 + $0xd08] sm:$0xff]
      %v585 = vld [vmem:[%s1 + $0xd10] sm:$0xff]
      %v586 = vld [vmem:[%s1 + $0xd18] sm:$0xff]
      %v587 = vld [vmem:[%s1 + $0xd20] sm:$0xff]
      %v588 = vld [vmem:[%s1 + $0xd28] sm:$0xff]
      %v589 = vld [vmem:[%s1 + $0xd30] sm:$0xff]
      %v590 = vld [vmem:[%s1 + $0xd38] sm:$0xff]
      %v591 = vld [vmem:[%s1 + $0xd40] sm:$0xff]
      %v592 = vld [vmem:[%s1 + $0xd48] sm:$0xff]
      %v593 = vld [vmem:[%s1 + $0xd50] sm:$0xff]
      %v594 = vld [vmem:[%s1 + $0xd58] sm:$0xff]
      %v595 = vld [vmem:[%s1 + $0xd60] sm:$0xff]
      %v596 = vld [vmem:[%s1 + $0xd68] sm:$0xff]
      %v597 = vld [vmem:[%s1 + $0xd70] sm:$0xff]
      %v598 = vld [vmem:[%s1 + $0xd78] sm:$0xff]
      %v599 = vld [vmem:[%s1 + $0xd80] sm:$0xff]
      %v600 = vld [vmem:[%s1 + $0xd88] sm:$0xff]
      %v601 = vld [vmem:[%s1 + $0xd90] sm:$0xff]
      %v602 = vld [vmem:[%s1 + $0xd98] sm:$0xff]
      %v603 = vld [vmem:[%s1 + $0xda0] sm:$0xff]
      %v604 = vld [vmem:[%s1 + $0xda8] sm:$0xff]
      %v605 = vld [vmem:[%s1 + $0xdb0] sm:$0xff]
      %v606 = vld [vmem:[%s1 + $0xdb8] sm:$0xff]
      %v607 = vld [vmem:[%s1 + $0xdc0] sm:$0xff]
      %v608 = vld [vmem:[%s1 + $0xdc8] sm:$0xff]
      %v609 = vld [vmem:[%s1 + $0xdd0] sm:$0xff]
      %v610 = vld [vmem:[%s1 + $0xdd8] sm:$0xff]
      %v611 = vld [vmem:[%s1 + $0xde0] sm:$0xff]
      %v612 = vld [vmem:[%s1 + $0xde8] sm:$0xff]
      %v613 = vld [vmem:[%s1 + $0xdf0] sm:$0xff]
      %v614 = vld [vmem:[%s1 + $0xdf8] sm:$0xff]
      %v615 = vld [vmem:[%s1 + $0xe00] sm:$0xff]
      %v616 = vld [vmem:[%s1 + $0xe08] sm:$0xff]
      %v617 = vld [vmem:[%s1 + $0xe10] sm:$0xff]
      %v618 = vld [vmem:[%s1 + $0xe18] sm:$0xff]
      %v619 = vld [vmem:[%s1 + $0xe20] sm:$0xff]
      %v620 = vld [vmem:[%s1 + $0xe28] sm:$0xff]
      %v621 = vld [vmem:[%s1 + $0xe30] sm:$0xff]
      %v622 = vld [vmem:[%s1 + $0xe38] sm:$0xff]
      %v623 = vld [vmem:[%s1 + $0xe40] sm:$0xff]
      %v624 = vld [vmem:[%s1 + $0xe48] sm:$0xff]
      %v625 = vld [vmem:[%s1 + $0xe50] sm:$0xff]
      %v626 = vld [vmem:[%s1 + $0xe58] sm:$0xff]
      %v627 = vld [vmem:[%s1 + $0xe60] sm:$0xff]
      %v628 = vld [vmem:[%s1 + $0xe68] sm:$0xff]
      %v629 = vld [vmem:[%s1 + $0xe70] sm:$0xff]
      %v630 = vld [vmem:[%s1 + $0xe78] sm:$0xff]
      %v631 = vld [vmem:[%s1 + $0xe80] sm:$0xff]
      %v632 = vld [vmem:[%s1 + $0xe88] sm:$0xff]
      %v633 = vld [vmem:[%s1 + $0xe90] sm:$0xff]
      %v634 = vld [vmem:[%s1 + $0xe98] sm:$0xff]
      %v635 = vld [vmem:[%s1 + $0xea0] sm:$0xff]
      %v636 = vld [vmem:[%s1 + $0xea8] sm:$0xff]
      %v637 = vld [vmem:[%s1 + $0xeb0] sm:$0xff]
      %v638 = vld [vmem:[%s1 + $0xeb8] sm:$0xff]
      %v639 = vld [vmem:[%s1 + $0xec0] sm:$0xff]
      %v640 = vld [vmem:[%s1 + $0xec8] sm:$0xff]
      %v641 = vld [vmem:[%s1 + $0xed0] sm:$0xff]
      %v642 = vld [vmem:[%s1 + $0xed8] sm:$0xff]
      %v643 = vld [vmem:[%s1 + $0xee0] sm:$0xff]
      %v644 = vld [vmem:[%s1 + $0xee8] sm:$0xff]
      %v645 = vld [vmem:[%s1 + $0xef0] sm:$0xff]
      %v646 = vld [vmem:[%s1 + $0xef8] sm:$0xff]
      %v647 = vld [vmem:[%s1 + $0xf00] sm:$0xff]
      %v648 = vld [vmem:[%s1 + $0xf08] sm:$0xff]
      %v649 = vld [vmem:[%s1 + $0xf10] sm:$0xff]
      %v650 = vld [vmem:[%s1 + $0xf18] sm:$0xff]
      %v651 = vld [vmem:[%s1 + $0xf20] sm:$0xff]
      %v652 = vld [vmem:[%s1 + $0xf28] sm:$0xff]
      %v653 = vld [vmem:[%s1 + $0xf30] sm:$0xff]
      %v654 = vld [vmem:[%s1 + $0xf38] sm:$0xff]
      %v655 = vld [vmem:[%s1 + $0xf40] sm:$0xff]
      %v656 = vld [vmem:[%s1 + $0xf48] sm:$0xff]
      %v657 = vld [vmem:[%s1 + $0xf50] sm:$0xff]
      %v658 = vld [vmem:[%s1 + $0xf58] sm:$0xff]
      %v659 = vld [vmem:[%s1 + $0xf60] sm:$0xff]
      %v660 = vld [vmem:[%s1 + $0xf68] sm:$0xff]
      %v661 = vld [vmem:[%s1 + $0xf70] sm:$0xff]
      %v662 = vld [vmem:[%s1 + $0xf78] sm:$0xff]
      %v663 = vld [vmem:[%s1 + $0xf80] sm:$0xff]
      %v664 = vld [vmem:[%s1 + $0xf88] sm:$0xff]
      %v665 = vld [vmem:[%s1 + $0xf90] sm:$0xff]
      %v666 = vld [vmem:[%s1 + $0xf98] sm:$0xff]
      %v667 = vld [vmem:[%s1 + $0xfa0] sm:$0xff]
      %v668 = vld [vmem:[%s1 + $0xfa8] sm:$0xff]
      %v669 = vld [vmem:[%s1 + $0xfb0] sm:$0xff]
      %v670 = vld [vmem:[%s1 + $0xfb8] sm:$0xff]
      %v671 = vld [vmem:[%s1 + $0xfc0] sm:$0xff]
      %v672 = vld [vmem:[%s1 + $0xfc8] sm:$0xff]
      %v673 = vld [vmem:[%s1 + $0xfd0] sm:$0xff]
      %v674 = vld [vmem:[%s1 + $0xfd8] sm:$0xff]
      %v675 = vld [vmem:[%s1 + $0xfe0] sm:$0xff]
      %v676 = vld [vmem:[%s1 + $0xfe8] sm:$0xff]
      %v677 = vld [vmem:[%s1 + $0xff0] sm:$0xff]
      %v678 = vld [vmem:[%s1 + $0xff8] sm:$0xff]
      %v679 = vld [vmem:[%s1 + $0x1000] sm:$0xff]
      %v680 = vld [vmem:[%s1 + $0x1008] sm:$0xff]
      %v681 = vld [vmem:[%s1 + $0x1010] sm:$0xff]
      %v682 = vld [vmem:[%s1 + $0x1018] sm:$0xff]
      %v683 = vld [vmem:[%s1 + $0x1020] sm:$0xff]
      %v684 = vld [vmem:[%s1 + $0x1028] sm:$0xff]
      %v685 = vld [vmem:[%s1 + $0x1030] sm:$0xff]
      %v686 = vld [vmem:[%s1 + $0x1038] sm:$0xff]
      %v687 = vld [vmem:[%s1 + $0x1040] sm:$0xff]
      %v688 = vld [vmem:[%s1 + $0x1048] sm:$0xff]
      %v689 = vld [vmem:[%s1 + $0x1050] sm:$0xff]
      %v690 = vld [vmem:[%s1 + $0x1058] sm:$0xff]
      %v691 = vld [vmem:[%s1 + $0x1060] sm:$0xff]
      %v692 = vld [vmem:[%s1 + $0x1068] sm:$0xff]
      %v693 = vld [vmem:[%s1 + $0x1070] sm:$0xff]
      %v694 = vld [vmem:[%s1 + $0x1078] sm:$0xff]
      %v695 = vld [vmem:[%s1 + $0x1080] sm:$0xff]
      %v696 = vld [vmem:[%s1 + $0x1088] sm:$0xff]
      %v697 = vld [vmem:[%s1 + $0x1090] sm:$0xff]
      %v698 = vld [vmem:[%s1 + $0x1098] sm:$0xff]
      %v699 = vld [vmem:[%s1 + $0x10a0] sm:$0xff]
      %v700 = vld [vmem:[%s1 + $0x10a8] sm:$0xff]
      %v701 = vld [vmem:[%s1 + $0x10b0] sm:$0xff]
      %v702 = vld [vmem:[%s1 + $0x10b8] sm:$0xff]
      %v703 = vld [vmem:[%s1 + $0x10c0] sm:$0xff]
      %v704 = vld [vmem:[%s1 + $0x10c8] sm:$0xff]
      %v705 = vld [vmem:[%s1 + $0x10d0] sm:$0xff]
      %v706 = vld [vmem:[%s1 + $0x10d8] sm:$0xff]
      %v707 = vld [vmem:[%s1 + $0x10e0] sm:$0xff]
      %v708 = vld [vmem:[%s1 + $0x10e8] sm:$0xff]
      %v709 = vld [vmem:[%s1 + $0x10f0] sm:$0xff]
      %v710 = vld [vmem:[%s1 + $0x10f8] sm:$0xff]
      %v711 = vld [vmem:[%s1 + $0x1100] sm:$0xff]
      %v712 = vld [vmem:[%s1 + $0x1108] sm:$0xff]
      %v713 = vld [vmem:[%s1 + $0x1110] sm:$0xff]
      %v714 = vld [vmem:[%s1 + $0x1118] sm:$0xff]
      %v715 = vld [vmem:[%s1 + $0x1120] sm:$0xff]
      %v716 = vld [vmem:[%s1 + $0x1128] sm:$0xff]
      %v717 = vld [vmem:[%s1 + $0x1130] sm:$0xff]
      %v718 = vld [vmem:[%s1 + $0x1138] sm:$0xff]
      %v719 = vld [vmem:[%s1 + $0x1140] sm:$0xff]
      %v720 = vld [vmem:[%s1 + $0x1148] sm:$0xff]
      %v721 = vld [vmem:[%s1 + $0x1150] sm:$0xff]
      %v722 = vld [vmem:[%s1 + $0x1158] sm:$0xff]
      %v723 = vld [vmem:[%s1 + $0x1160] sm:$0xff]
      %v724 = vld [vmem:[%s1 + $0x1168] sm:$0xff]
      %v725 = vld [vmem:[%s1 + $0x1170] sm:$0xff]
      %v726 = vld [vmem:[%s1 + $0x1178] sm:$0xff]
      %v727 = vld [vmem:[%s1 + $0x1180] sm:$0xff]
      %v728 = vld [vmem:[%s1 + $0x1188] sm:$0xff]
      %v729 = vld [vmem:[%s1 + $0x1190] sm:$0xff]
      %v730 = vld [vmem:[%s1 + $0x1198] sm:$0xff]
      %v731 = vld [vmem:[%s1 + $0x11a0] sm:$0xff]
      %v732 = vld [vmem:[%s1 + $0x11a8] sm:$0xff]
      %v733 = vld [vmem:[%s1 + $0x11b0] sm:$0xff]
      %v734 = vld [vmem:[%s1 + $0x11b8] sm:$0xff]
      %v735 = vld [vmem:[%s1 + $0x11c0] sm:$0xff]
      %v736 = vld [vmem:[%s1 + $0x11c8] sm:$0xff]
      %v737 = vld [vmem:[%s1 + $0x11d0] sm:$0xff]
      %v738 = vld [vmem:[%s1 + $0x11d8] sm:$0xff]
      %v739 = vld [vmem:[%s1 + $0x11e0] sm:$0xff]
      %v740 = vld [vmem:[%s1 + $0x11e8] sm:$0xff]
      %v741 = vld [vmem:[%s1 + $0x11f0] sm:$0xff]
      %v742 = vld [vmem:[%s1 + $0x11f8] sm:$0xff]
      %v743 = vld [vmem:[%s1 + $0x1200] sm:$0xff]
      %v744 = vld [vmem:[%s1 + $0x1208] sm:$0xff]
      %v745 = vld [vmem:[%s1 + $0x1210] sm:$0xff]
      %v746 = vld [vmem:[%s1 + $0x1218] sm:$0xff]
      %v747 = vld [vmem:[%s1 + $0x1220] sm:$0xff]
      %v748 = vld [vmem:[%s1 + $0x1228] sm:$0xff]
      %v749 = vld [vmem:[%s1 + $0x1230] sm:$0xff]
      %v750 = vld [vmem:[%s1 + $0x1238] sm:$0xff]
      %v751 = vld [vmem:[%s1 + $0x1240] sm:$0xff]
      %v752 = vld [vmem:[%s1 + $0x1248] sm:$0xff]
      %v753 = vld [vmem:[%s1 + $0x1250] sm:$0xff]
      %v754 = vld [vmem:[%s1 + $0x1258] sm:$0xff]
      %v755 = vld [vmem:[%s1 + $0x1260] sm:$0xff]
      %v756 = vld [vmem:[%s1 + $0x1268] sm:$0xff]
      %v757 = vld [vmem:[%s1 + $0x1270] sm:$0xff]
      %v758 = vld [vmem:[%s1 + $0x1278] sm:$0xff]
      %v759 = vld [vmem:[%s1 + $0x1280] sm:$0xff]
      %v760 = vld [vmem:[%s1 + $0x1288] sm:$0xff]
      %v761 = vld [vmem:[%s1 + $0x1290] sm:$0xff]
      %v762 = vld [vmem:[%s1 + $0x1298] sm:$0xff]
      %v763 = vld [vmem:[%s1 + $0x12a0] sm:$0xff]
      %v764 = vld [vmem:[%s1 + $0x12a8] sm:$0xff]
      %v765 = vld [vmem:[%s1 + $0x12b0] sm:$0xff]
      %v766 = vld [vmem:[%s1 + $0x12b8] sm:$0xff]
      %v767 = vld [vmem:[%s1 + $0x12c0] sm:$0xff]
      %v768 = vld [vmem:[%s1 + $0x12c8] sm:$0xff]
      %v769 = vld [vmem:[%s1 + $0x12d0] sm:$0xff]
      %v770 = vld [vmem:[%s1 + $0x12d8] sm:$0xff]
      %v771 = vld [vmem:[%s1 + $0x12e0] sm:$0xff]
      %v772 = vld [vmem:[%s1 + $0x12e8] sm:$0xff]
      %v773 = vld [vmem:[%s1 + $0x12f0] sm:$0xff]
      %v774 = vld [vmem:[%s1 + $0x12f8] sm:$0xff]
      %v775 = vld [vmem:[%s1 + $0x1300] sm:$0xff]
      %v776 = vld [vmem:[%s1 + $0x1308] sm:$0xff]
      %v777 = vld [vmem:[%s1 + $0x1310] sm:$0xff]
      %v778 = vld [vmem:[%s1 + $0x1318] sm:$0xff]
      %v779 = vld [vmem:[%s1 + $0x1320] sm:$0xff]
      %v780 = vld [vmem:[%s1 + $0x1328] sm:$0xff]
      %v781 = vld [vmem:[%s1 + $0x1330] sm:$0xff]
      %v782 = vld [vmem:[%s1 + $0x1338] sm:$0xff]
      %v783 = vld [vmem:[%s1 + $0x1340] sm:$0xff]
      %v784 = vld [vmem:[%s1 + $0x1348] sm:$0xff]
      %v785 = vld [vmem:[%s1 + $0x1350] sm:$0xff]
      %v786 = vld [vmem:[%s1 + $0x1358] sm:$0xff]
      %v787 = vld [vmem:[%s1 + $0x1360] sm:$0xff]
      %v788 = vld [vmem:[%s1 + $0x1368] sm:$0xff]
      %v789 = vld [vmem:[%s1 + $0x1370] sm:$0xff]
      %v790 = vld [vmem:[%s1 + $0x1378] sm:$0xff]
      %v791 = vld [vmem:[%s1 + $0x1380] sm:$0xff]
      %v792 = vld [vmem:[%s1 + $0x1388] sm:$0xff]
      %v793 = vld [vmem:[%s1 + $0x1390] sm:$0xff]
      %v794 = vld [vmem:[%s1 + $0x1398] sm:$0xff]
      %v795 = vld [vmem:[%s1 + $0x13a0] sm:$0xff]
      %v796 = vld [vmem:[%s1 + $0x13a8] sm:$0xff]
      %v797 = vld [vmem:[%s1 + $0x13b0] sm:$0xff]
      %v798 = vld [vmem:[%s1 + $0x13b8] sm:$0xff]
      %v799 = vld [vmem:[%s1 + $0x13c0] sm:$0xff]
      %v800 = vld [vmem:[%s1 + $0x13c8] sm:$0xff]
      %v801 = vld [vmem:[%s1 + $0x13d0] sm:$0xff]
      %v802 = vld [vmem:[%s1 + $0x13d8] sm:$0xff]
      %v803 = vld [vmem:[%s1 + $0x13e0] sm:$0xff]
      %v804 = vld [vmem:[%s1 + $0x13e8] sm:$0xff]
      %v805 = vld [vmem:[%s1 + $0x13f0] sm:$0xff]
      %v806 = vld [vmem:[%s1 + $0x13f8] sm:$0xff]
      %v807 = vld [vmem:[%s1 + $0x1400] sm:$0xff]
      %v808 = vld [vmem:[%s1 + $0x1408] sm:$0xff]
      %v809 = vld [vmem:[%s1 + $0x1410] sm:$0xff]
      %v810 = vld [vmem:[%s1 + $0x1418] sm:$0xff]
      %v811 = vld [vmem:[%s1 + $0x1420] sm:$0xff]
      %v812 = vld [vmem:[%s1 + $0x1428] sm:$0xff]
      %v813 = vld [vmem:[%s1 + $0x1430] sm:$0xff]
      %v814 = vld [vmem:[%s1 + $0x1438] sm:$0xff]
      %v815 = vld [vmem:[%s1 + $0x1440] sm:$0xff]
      %v816 = vld [vmem:[%s1 + $0x1448] sm:$0xff]
      %v817 = vld [vmem:[%s1 + $0x1450] sm:$0xff]
      %v818 = vld [vmem:[%s1 + $0x1458] sm:$0xff]
      %v819 = vld [vmem:[%s1 + $0x1460] sm:$0xff]
      %v820 = vld [vmem:[%s1 + $0x1468] sm:$0xff]
      %v821 = vld [vmem:[%s1 + $0x1470] sm:$0xff]
      %v822 = vld [vmem:[%s1 + $0x1478] sm:$0xff]
      %v823 = vld [vmem:[%s1 + $0x1480] sm:$0xff]
      %v824 = vld [vmem:[%s1 + $0x1488] sm:$0xff]
      %v825 = vld [vmem:[%s1 + $0x1490] sm:$0xff]
      %v826 = vld [vmem:[%s1 + $0x1498] sm:$0xff]
      %v827 = vld [vmem:[%s1 + $0x14a0] sm:$0xff]
      %v828 = vld [vmem:[%s1 + $0x14a8] sm:$0xff]
      %v829 = vld [vmem:[%s1 + $0x14b0] sm:$0xff]
      %v830 = vld [vmem:[%s1 + $0x14b8] sm:$0xff]
      %v831 = vld [vmem:[%s1 + $0x14c0] sm:$0xff]
      %v832 = vld [vmem:[%s1 + $0x14c8] sm:$0xff]
      %v833 = vld [vmem:[%s1 + $0x14d0] sm:$0xff]
      %v834 = vld [vmem:[%s1 + $0x14d8] sm:$0xff]
      %v835 = vld [vmem:[%s1 + $0x14e0] sm:$0xff]
      %v836 = vld [vmem:[%s1 + $0x14e8] sm:$0xff]
      %v837 = vld [vmem:[%s1 + $0x14f0] sm:$0xff]
      %v838 = vld [vmem:[%s1 + $0x14f8] sm:$0xff]
      %v839 = vld [vmem:[%s1 + $0x1500] sm:$0xff]
      %v840 = vld [vmem:[%s1 + $0x1508] sm:$0xff]
      %v841 = vld [vmem:[%s1 + $0x1510] sm:$0xff]
      %v842 = vld [vmem:[%s1 + $0x1518] sm:$0xff]
      %v843 = vld [vmem:[%s1 + $0x1520] sm:$0xff]
      %v844 = vld [vmem:[%s1 + $0x1528] sm:$0xff]
      %v845 = vld [vmem:[%s1 + $0x1530] sm:$0xff]
      %v846 = vld [vmem:[%s1 + $0x1538] sm:$0xff]
      %v847 = vld [vmem:[%s1 + $0x1540] sm:$0xff]
      %v848 = vld [vmem:[%s1 + $0x1548] sm:$0xff]
      %v849 = vld [vmem:[%s1 + $0x1550] sm:$0xff]
      %v850 = vld [vmem:[%s1 + $0x1558] sm:$0xff]
      %v851 = vld [vmem:[%s1 + $0x1560] sm:$0xff]
      %v852 = vld [vmem:[%s1 + $0x1568] sm:$0xff]
      %v853 = vld [vmem:[%s1 + $0x1570] sm:$0xff]
      %v854 = vld [vmem:[%s1 + $0x1578] sm:$0xff]
      %v855 = vld [vmem:[%s1 + $0x1580] sm:$0xff]
      %v856 = vld [vmem:[%s1 + $0x1588] sm:$0xff]
      %v857 = vld [vmem:[%s1 + $0x1590] sm:$0xff]
      %v858 = vld [vmem:[%s1 + $0x1598] sm:$0xff]
      %v859 = vld [vmem:[%s1 + $0x15a0] sm:$0xff]
      %v860 = vld [vmem:[%s1 + $0x15a8] sm:$0xff]
      %v861 = vld [vmem:[%s1 + $0x15b0] sm:$0xff]
      %v862 = vld [vmem:[%s1 + $0x15b8] sm:$0xff]
      %v863 = vld [vmem:[%s1 + $0x15c0] sm:$0xff]
      %v864 = vld [vmem:[%s1 + $0x15c8] sm:$0xff]
      %v865 = vld [vmem:[%s1 + $0x15d0] sm:$0xff]
      %v866 = vld [vmem:[%s1 + $0x15d8] sm:$0xff]
      %v867 = vld [vmem:[%s1 + $0x15e0] sm:$0xff]
      %v868 = vld [vmem:[%s1 + $0x15e8] sm:$0xff]
      %v869 = vld [vmem:[%s1 + $0x15f0] sm:$0xff]
      %v870 = vld [vmem:[%s1 + $0x15f8] sm:$0xff]
      %v871 = vld [vmem:[%s1 + $0x1600] sm:$0xff]
      %v872 = vld [vmem:[%s1 + $0x1608] sm:$0xff]
      %v873 = vld [vmem:[%s1 + $0x1610] sm:$0xff]
      %v874 = vld [vmem:[%s1 + $0x1618] sm:$0xff]
      %v875 = vld [vmem:[%s1 + $0x1620] sm:$0xff]
      %v876 = vld [vmem:[%s1 + $0x1628] sm:$0xff]
      %v877 = vld [vmem:[%s1 + $0x1630] sm:$0xff]
      %v878 = vld [vmem:[%s1 + $0x1638] sm:$0xff]
      %v879 = vld [vmem:[%s1 + $0x1640] sm:$0xff]
      %v880 = vld [vmem:[%s1 + $0x1648] sm:$0xff]
      %v881 = vld [vmem:[%s1 + $0x1650] sm:$0xff]
      %v882 = vld [vmem:[%s1 + $0x1658] sm:$0xff]
      %v883 = vld [vmem:[%s1 + $0x1660] sm:$0xff]
      %v884 = vld [vmem:[%s1 + $0x1668] sm:$0xff]
      %v885 = vld [vmem:[%s1 + $0x1670] sm:$0xff]
      %v886 = vld [vmem:[%s1 + $0x1678] sm:$0xff]
      %v887 = vld [vmem:[%s1 + $0x1680] sm:$0xff]
      %v888 = vld [vmem:[%s1 + $0x1688] sm:$0xff]
      %v889 = vld [vmem:[%s1 + $0x1690] sm:$0xff]
      %v890 = vld [vmem:[%s1 + $0x1698] sm:$0xff]
      %v891 = vld [vmem:[%s1 + $0x16a0] sm:$0xff]
      %v892 = vld [vmem:[%s1 + $0x16a8] sm:$0xff]
      %v893 = vld [vmem:[%s1 + $0x16b0] sm:$0xff]
      %v894 = vld [vmem:[%s1 + $0x16b8] sm:$0xff]
      %v895 = vld [vmem:[%s1 + $0x16c0] sm:$0xff]
      %v896 = vld [vmem:[%s1 + $0x16c8] sm:$0xff]
      %v897 = vld [vmem:[%s1 + $0x16d0] sm:$0xff]
      %v898 = vld [vmem:[%s1 + $0x16d8] sm:$0xff]
      %v899 = vld [vmem:[%s1 + $0x16e0] sm:$0xff]
      %v900 = vld [vmem:[%s1 + $0x16e8] sm:$0xff]
      %v901 = vld [vmem:[%s1 + $0x16f0] sm:$0xff]
      %v902 = vld [vmem:[%s1 + $0x16f8] sm:$0xff]
      %v903 = vld [vmem:[%s1 + $0x1700] sm:$0xff]
      %v904 = vld [vmem:[%s1 + $0x1708] sm:$0xff]
      %v905 = vld [vmem:[%s1 + $0x1710] sm:$0xff]
      %v906 = vld [vmem:[%s1 + $0x1718] sm:$0xff]
      %v907 = vld [vmem:[%s1 + $0x1720] sm:$0xff]
      %v908 = vld [vmem:[%s1 + $0x1728] sm:$0xff]
      %v909 = vld [vmem:[%s1 + $0x1730] sm:$0xff]
      %v910 = vld [vmem:[%s1 + $0x1738] sm:$0xff]
      %v911 = vld [vmem:[%s1 + $0x1740] sm:$0xff]
      %v912 = vld [vmem:[%s1 + $0x1748] sm:$0xff]
      %v913 = vld [vmem:[%s1 + $0x1750] sm:$0xff]
      %v914 = vld [vmem:[%s1 + $0x1758] sm:$0xff]
      %v915 = vld [vmem:[%s1 + $0x1760] sm:$0xff]
      %v916 = vld [vmem:[%s1 + $0x1768] sm:$0xff]
      %v917 = vld [vmem:[%s1 + $0x1770] sm:$0xff]
      %v918 = vld [vmem:[%s1 + $0x1778] sm:$0xff]
      %v919 = vld [vmem:[%s1 + $0x1780] sm:$0xff]
      %v920 = vld [vmem:[%s1 + $0x1788] sm:$0xff]
      %v921 = vld [vmem:[%s1 + $0x1790] sm:$0xff]
      %v922 = vld [vmem:[%s1 + $0x1798] sm:$0xff]
      %v923 = vld [vmem:[%s1 + $0x17a0] sm:$0xff]
      %v924 = vld [vmem:[%s1 + $0x17a8] sm:$0xff]
      %v925 = vld [vmem:[%s1 + $0x17b0] sm:$0xff]
      %v926 = vld [vmem:[%s1 + $0x17b8] sm:$0xff]
      %v927 = vld [vmem:[%s1 + $0x17c0] sm:$0xff]
      %v928 = vld [vmem:[%s1 + $0x17c8] sm:$0xff]
      %v929 = vld [vmem:[%s1 + $0x17d0] sm:$0xff]
      %v930 = vld [vmem:[%s1 + $0x17d8] sm:$0xff]
      %v931 = vld [vmem:[%s1 + $0x17e0] sm:$0xff]
      %v932 = vld [vmem:[%s1 + $0x17e8] sm:$0xff]
      %v933 = vld [vmem:[%s1 + $0x17f0] sm:$0xff]
      %v934 = vld [vmem:[%s1 + $0x17f8] sm:$0xff]
      %v935 = vld [vmem:[%s1 + $0x1800] sm:$0xff]
      %v936 = vld [vmem:[%s1 + $0x1808] sm:$0xff]
      %v937 = vld [vmem:[%s1 + $0x1810] sm:$0xff]
      %v938 = vld [vmem:[%s1 + $0x1818] sm:$0xff]
      %v939 = vld [vmem:[%s1 + $0x1820] sm:$0xff]
      %v940 = vld [vmem:[%s1 + $0x1828] sm:$0xff]
      %v941 = vld [vmem:[%s1 + $0x1830] sm:$0xff]
      %v942 = vld [vmem:[%s1 + $0x1838] sm:$0xff]
      %v943 = vld [vmem:[%s1 + $0x1840] sm:$0xff]
      %v944 = vld [vmem:[%s1 + $0x1848] sm:$0xff]
      %v945 = vld [vmem:[%s1 + $0x1850] sm:$0xff]
      %v946 = vld [vmem:[%s1 + $0x1858] sm:$0xff]
      %v947 = vld [vmem:[%s1 + $0x1860] sm:$0xff]
      %v948 = vld [vmem:[%s1 + $0x1868] sm:$0xff]
      %v949 = vld [vmem:[%s1 + $0x1870] sm:$0xff]
      %v950 = vld [vmem:[%s1 + $0x1878] sm:$0xff]
      %v951 = vld [vmem:[%s1 + $0x1880] sm:$0xff]
      %v952 = vld [vmem:[%s1 + $0x1888] sm:$0xff]
      %v953 = vld [vmem:[%s1 + $0x1890] sm:$0xff]
      %v954 = vld [vmem:[%s1 + $0x1898] sm:$0xff]
      %v955 = vld [vmem:[%s1 + $0x18a0] sm:$0xff]
      %v956 = vld [vmem:[%s1 + $0x18a8] sm:$0xff]
      %v957 = vld [vmem:[%s1 + $0x18b0] sm:$0xff]
      %v958 = vld [vmem:[%s1 + $0x18b8] sm:$0xff]
      %v959 = vld [vmem:[%s1 + $0x18c0] sm:$0xff]
      %v960 = vld [vmem:[%s1 + $0x18c8] sm:$0xff]
      %v961 = vld [vmem:[%s1 + $0x18d0] sm:$0xff]
      %v962 = vld [vmem:[%s1 + $0x18d8] sm:$0xff]
      %v963 = vld [vmem:[%s1 + $0x18e0] sm:$0xff]
      %v964 = vld [vmem:[%s1 + $0x18e8] sm:$0xff]
      %v965 = vld [vmem:[%s1 + $0x18f0] sm:$0xff]
      %v966 = vld [vmem:[%s1 + $0x18f8] sm:$0xff]
      %v967 = vld [vmem:[%s1 + $0x1900] sm:$0xff]
      %v968 = vld [vmem:[%s1 + $0x1908] sm:$0xff]
      %v969 = vld [vmem:[%s1 + $0x1910] sm:$0xff]
      %v970 = vld [vmem:[%s1 + $0x1918] sm:$0xff]
      %v971 = vld [vmem:[%s1 + $0x1920] sm:$0xff]
      %v972 = vld [vmem:[%s1 + $0x1928] sm:$0xff]
      %v973 = vld [vmem:[%s1 + $0x1930] sm:$0xff]
      %v974 = vld [vmem:[%s1 + $0x1938] sm:$0xff]
      %v975 = vld [vmem:[%s1 + $0x1940] sm:$0xff]
      %v976 = vld [vmem:[%s1 + $0x1948] sm:$0xff]
      %v977 = vld [vmem:[%s1 + $0x1950] sm:$0xff]
      %v978 = vld [vmem:[%s1 + $0x1958] sm:$0xff]
      %v979 = vld [vmem:[%s1 + $0x1960] sm:$0xff]
      %v980 = vld [vmem:[%s1 + $0x1968] sm:$0xff]
      %v981 = vld [vmem:[%s1 + $0x1970] sm:$0xff]
      %v982 = vld [vmem:[%s1 + $0x1978] sm:$0xff]
      %v983 = vld [vmem:[%s1 + $0x1980] sm:$0xff]
      %v984 = vld [vmem:[%s1 + $0x1988] sm:$0xff]
      %v985 = vld [vmem:[%s1 + $0x1990] sm:$0xff]
      %v986 = vld [vmem:[%s1 + $0x1998] sm:$0xff]
      %v987 = vld [vmem:[%s1 + $0x19a0] sm:$0xff]
      %v988 = vld [vmem:[%s1 + $0x19a8] sm:$0xff]
      %v989 = vld [vmem:[%s1 + $0x19b0] sm:$0xff]
      %v990 = vld [vmem:[%s1 + $0x19b8] sm:$0xff]
      %v991 = vld [vmem:[%s1 + $0x19c0] sm:$0xff]
      %v992 = vld [vmem:[%s1 + $0x19c8] sm:$0xff]
      %v993 = vld [vmem:[%s1 + $0x19d0] sm:$0xff]
      %v994 = vld [vmem:[%s1 + $0x19d8] sm:$0xff]
      %v995 = vld [vmem:[%s1 + $0x19e0] sm:$0xff]
      %v996 = vld [vmem:[%s1 + $0x19e8] sm:$0xff]
      %v997 = vld [vmem:[%s1 + $0x19f0] sm:$0xff]
      %v998 = vld [vmem:[%s1 + $0x19f8] sm:$0xff]
      %v999 = vld [vmem:[%s1 + $0x1a00] sm:$0xff]
      %v1000 = vld [vmem:[%s1 + $0x1a08] sm:$0xff]
      %v1001 = vld [vmem:[%s1 + $0x1a10] sm:$0xff]
      %v1002 = vld [vmem:[%s1 + $0x1a18] sm:$0xff]
      %v1003 = vld [vmem:[%s1 + $0x1a20] sm:$0xff]
      %v1004 = vld [vmem:[%s1 + $0x1a28] sm:$0xff]
      %v1005 = vld [vmem:[%s1 + $0x1a30] sm:$0xff]
      %v1006 = vld [vmem:[%s1 + $0x1a38] sm:$0xff]
      %v1007 = vld [vmem:[%s1 + $0x1a40] sm:$0xff]
      %v1008 = vld [vmem:[%s1 + $0x1a48] sm:$0xff]
      %v1009 = vld [vmem:[%s1 + $0x1a50] sm:$0xff]
      %v1010 = vld [vmem:[%s1 + $0x1a58] sm:$0xff]
      %v1011 = vld [vmem:[%s1 + $0x1a60] sm:$0xff]
      %v1012 = vld [vmem:[%s1 + $0x1a68] sm:$0xff]
      %v1013 = vld [vmem:[%s1 + $0x1a70] sm:$0xff]
      %v1014 = vld [vmem:[%s1 + $0x1a78] sm:$0xff]
      %v1015 = vld [vmem:[%s1 + $0x1a80] sm:$0xff]
      %v1016 = vld [vmem:[%s1 + $0x1a88] sm:$0xff]
      %v1017 = vld [vmem:[%s1 + $0x1a90] sm:$0xff]
      %v1018 = vld [vmem:[%s1 + $0x1a98] sm:$0xff]
      %v1019 = vld [vmem:[%s1 + $0x1aa0] sm:$0xff]
      %v1020 = vld [vmem:[%s1 + $0x1aa8] sm:$0xff]
      %v1021 = vld [vmem:[%s1 + $0x1ab0] sm:$0xff]
      %v1022 = vld [vmem:[%s1 + $0x1ab8] sm:$0xff]
      %v1023 = vld [vmem:[%s1 + $0x1ac0] sm:$0xff]
      %v1024 = vld [vmem:[%s1 + $0x1ac8] sm:$0xff]
      %v1025 = vld [vmem:[%s1 + $0x1ad0] sm:$0xff]
      %v1026 = vld [vmem:[%s1 + $0x1ad8] sm:$0xff]
      %v1027 = vld [vmem:[%s1 + $0x1ae0] sm:$0xff]
      %v1028 = vld [vmem:[%s1 + $0x1ae8] sm:$0xff]
      %v1029 = vld [vmem:[%s1 + $0x1af0] sm:$0xff]
      %v1030 = vld [vmem:[%s1 + $0x1af8] sm:$0xff]
      %v1031 = vld [vmem:[%s1 + $0x1b00] sm:$0xff]
      %v1032 = vld [vmem:[%s1 + $0x1b08] sm:$0xff]
      %v1033 = vld [vmem:[%s1 + $0x1b10] sm:$0xff]
      %v1034 = vld [vmem:[%s1 + $0x1b18] sm:$0xff]
      %v1035 = vld [vmem:[%s1 + $0x1b20] sm:$0xff]
      %v1036 = vld [vmem:[%s1 + $0x1b28] sm:$0xff]
      %v1037 = vld [vmem:[%s1 + $0x1b30] sm:$0xff]
      %v1038 = vld [vmem:[%s1 + $0x1b38] sm:$0xff]
      %v1039 = vld [vmem:[%s1 + $0x1b40] sm:$0xff]
      %v1040 = vld [vmem:[%s1 + $0x1b48] sm:$0xff]
      %v1041 = vld [vmem:[%s1 + $0x1b50] sm:$0xff]
      %v1042 = vld [vmem:[%s1 + $0x1b58] sm:$0xff]
      %v1043 = vld [vmem:[%s1 + $0x1b60] sm:$0xff]
      %v1044 = vld [vmem:[%s1 + $0x1b68] sm:$0xff]
      %v1045 = vld [vmem:[%s1 + $0x1b70] sm:$0xff]
      %v1046 = vld [vmem:[%s1 + $0x1b78] sm:$0xff]
      %v1047 = vld [vmem:[%s1 + $0x1b80] sm:$0xff]
      %v1048 = vld [vmem:[%s1 + $0x1b88] sm:$0xff]
      %v1049 = vld [vmem:[%s1 + $0x1b90] sm:$0xff]
      %v1050 = vld [vmem:[%s1 + $0x1b98] sm:$0xff]
      %v1051 = vld [vmem:[%s1 + $0x1ba0] sm:$0xff]
      %v1052 = vld [vmem:[%s1 + $0x1ba8] sm:$0xff]
      %v1053 = vld [vmem:[%s1 + $0x1bb0] sm:$0xff]
      %v1054 = vld [vmem:[%s1 + $0x1bb8] sm:$0xff]
      %v1055 = vld [vmem:[%s1 + $0x1bc0] sm:$0xff]
      %v1056 = vld [vmem:[%s1 + $0x1bc8] sm:$0xff]
      %v1057 = vld [vmem:[%s1 + $0x1bd0] sm:$0xff]
      %v1058 = vld [vmem:[%s1 + $0x1bd8] sm:$0xff]
      %v1059 = vld [vmem:[%s1 + $0x1be0] sm:$0xff]
      %v1060 = vld [vmem:[%s1 + $0x1be8] sm:$0xff]
      %v1061 = vld [vmem:[%s1 + $0x1bf0] sm:$0xff]
      %v1062 = vld [vmem:[%s1 + $0x1bf8] sm:$0xff]
      %v1063 = vld [vmem:[%s1 + $0x1c00] sm:$0xff]
      %v1064 = vld [vmem:[%s1 + $0x1c08] sm:$0xff]
      %v1065 = vld [vmem:[%s1 + $0x1c10] sm:$0xff]
      %v1066 = vld [vmem:[%s1 + $0x1c18] sm:$0xff]
      %v1067 = vld [vmem:[%s1 + $0x1c20] sm:$0xff]
      %v1068 = vld [vmem:[%s1 + $0x1c28] sm:$0xff]
      %v1069 = vld [vmem:[%s1 + $0x1c30] sm:$0xff]
      %v1070 = vld [vmem:[%s1 + $0x1c38] sm:$0xff]
      %v1071 = vld [vmem:[%s1 + $0x1c40] sm:$0xff]
      %v1072 = vld [vmem:[%s1 + $0x1c48] sm:$0xff]
      %v1073 = vld [vmem:[%s1 + $0x1c50] sm:$0xff]
      %v1074 = vld [vmem:[%s1 + $0x1c58] sm:$0xff]
      %v1075 = vld [vmem:[%s1 + $0x1c60] sm:$0xff]
      %v1076 = vld [vmem:[%s1 + $0x1c68] sm:$0xff]
      %v1077 = vld [vmem:[%s1 + $0x1c70] sm:$0xff]
      %v1078 = vld [vmem:[%s1 + $0x1c78] sm:$0xff]
      %v1079 = vld [vmem:[%s1 + $0x1c80] sm:$0xff]
      %v1080 = vld [vmem:[%s1 + $0x1c88] sm:$0xff]
      %v1081 = vld [vmem:[%s1 + $0x1c90] sm:$0xff]
      %v1082 = vld [vmem:[%s1 + $0x1c98] sm:$0xff]
      %v1083 = vld [vmem:[%s1 + $0x1ca0] sm:$0xff]
      %v1084 = vld [vmem:[%s1 + $0x1ca8] sm:$0xff]
      %v1085 = vld [vmem:[%s1 + $0x1cb0] sm:$0xff]
      %v1086 = vld [vmem:[%s1 + $0x1cb8] sm:$0xff]
      %v1087 = vld [vmem:[%s1 + $0x1cc0] sm:$0xff]
      %v1088 = vld [vmem:[%s1 + $0x1cc8] sm:$0xff]
      %v1089 = vld [vmem:[%s1 + $0x1cd0] sm:$0xff]
      %v1090 = vld [vmem:[%s1 + $0x1cd8] sm:$0xff]
      %v1091 = vld [vmem:[%s1 + $0x1ce0] sm:$0xff]
      %v1092 = vld [vmem:[%s1 + $0x1ce8] sm:$0xff]
      %v1093 = vld [vmem:[%s1 + $0x1cf0] sm:$0xff]
      %v1094 = vld [vmem:[%s1 + $0x1cf8] sm:$0xff]
      %v1095 = vld [vmem:[%s1 + $0x1d00] sm:$0xff]
      %v1096 = vld [vmem:[%s1 + $0x1d08] sm:$0xff]
      %v1097 = vld [vmem:[%s1 + $0x1d10] sm:$0xff]
      %v1098 = vld [vmem:[%s1 + $0x1d18] sm:$0xff]
      %v1099 = vld [vmem:[%s1 + $0x1d20] sm:$0xff]
      %v1100 = vld [vmem:[%s1 + $0x1d28] sm:$0xff]
      %v1101 = vld [vmem:[%s1 + $0x1d30] sm:$0xff]
      %v1102 = vld [vmem:[%s1 + $0x1d38] sm:$0xff]
      %v1103 = vld [vmem:[%s1 + $0x1d40] sm:$0xff]
      %v1104 = vld [vmem:[%s1 + $0x1d48] sm:$0xff]
      %v1105 = vld [vmem:[%s1 + $0x1d50] sm:$0xff]
      %v1106 = vld [vmem:[%s1 + $0x1d58] sm:$0xff]
      %v1107 = vld [vmem:[%s1 + $0x1d60] sm:$0xff]
      %v1108 = vld [vmem:[%s1 + $0x1d68] sm:$0xff]
      %v1109 = vld [vmem:[%s1 + $0x1d70] sm:$0xff]
      %v1110 = vld [vmem:[%s1 + $0x1d78] sm:$0xff]
      %v1111 = vld [vmem:[%s1 + $0x1d80] sm:$0xff]
      %v1112 = vld [vmem:[%s1 + $0x1d88] sm:$0xff]
      %v1113 = vld [vmem:[%s1 + $0x1d90] sm:$0xff]
      %v1114 = vld [vmem:[%s1 + $0x1d98] sm:$0xff]
      %v1115 = vld [vmem:[%s1 + $0x1da0] sm:$0xff]
      %v1116 = vld [vmem:[%s1 + $0x1da8] sm:$0xff]
      %v1117 = vld [vmem:[%s1 + $0x1db0] sm:$0xff]
      %v1118 = vld [vmem:[%s1 + $0x1db8] sm:$0xff]
      %v1119 = vld [vmem:[%s1 + $0x1dc0] sm:$0xff]
      %v1120 = vld [vmem:[%s1 + $0x1dc8] sm:$0xff]
      %v1121 = vld [vmem:[%s1 + $0x1dd0] sm:$0xff]
      %v1122 = vld [vmem:[%s1 + $0x1dd8] sm:$0xff]
      %v1123 = vld [vmem:[%s1 + $0x1de0] sm:$0xff]
      %v1124 = vld [vmem:[%s1 + $0x1de8] sm:$0xff]
      %v1125 = vld [vmem:[%s1 + $0x1df0] sm:$0xff]
      %v1126 = vld [vmem:[%s1 + $0x1df8] sm:$0xff]
      %v1127 = vld [vmem:[%s1 + $0x1e00] sm:$0xff]
      %v1128 = vld [vmem:[%s1 + $0x1e08] sm:$0xff]
      %v1129 = vld [vmem:[%s1 + $0x1e10] sm:$0xff]
      %v1130 = vld [vmem:[%s1 + $0x1e18] sm:$0xff]
      %v1131 = vld [vmem:[%s1 + $0x1e20] sm:$0xff]
      %v1132 = vld [vmem:[%s1 + $0x1e28] sm:$0xff]
      %v1133 = vld [vmem:[%s1 + $0x1e30] sm:$0xff]
      %v1134 = vld [vmem:[%s1 + $0x1e38] sm:$0xff]
      %v1135 = vld [vmem:[%s1 + $0x1e40] sm:$0xff]
      %v1136 = vld [vmem:[%s1 + $0x1e48] sm:$0xff]
      %v1137 = vld [vmem:[%s1 + $0x1e50] sm:$0xff]
      %v1138 = vld [vmem:[%s1 + $0x1e58] sm:$0xff]
      %v1139 = vld [vmem:[%s1 + $0x1e60] sm:$0xff]
      %v1140 = vld [vmem:[%s1 + $0x1e68] sm:$0xff]
      %v1141 = vld [vmem:[%s1 + $0x1e70] sm:$0xff]
      %v1142 = vld [vmem:[%s1 + $0x1e78] sm:$0xff]
      %v1143 = vld [vmem:[%s1 + $0x1e80] sm:$0xff]
      %v1144 = vld [vmem:[%s1 + $0x1e88] sm:$0xff]
      %v1145 = vld [vmem:[%s1 + $0x1e90] sm:$0xff]
      %v1146 = vld [vmem:[%s1 + $0x1e98] sm:$0xff]
      %v1147 = vld [vmem:[%s1 + $0x1ea0] sm:$0xff]
      %v1148 = vld [vmem:[%s1 + $0x1ea8] sm:$0xff]
      %v1149 = vld [vmem:[%s1 + $0x1eb0] sm:$0xff]
      %v1150 = vld [vmem:[%s1 + $0x1eb8] sm:$0xff]
      %v1151 = vld [vmem:[%s1 + $0x1ec0] sm:$0xff]
      %v1152 = vld [vmem:[%s1 + $0x1ec8] sm:$0xff]
      %v1153 = vld [vmem:[%s1 + $0x1ed0] sm:$0xff]
      %v1154 = vld [vmem:[%s1 + $0x1ed8] sm:$0xff]
      %v1155 = vld [vmem:[%s1 + $0x1ee0] sm:$0xff]
      %v1156 = vld [vmem:[%s1 + $0x1ee8] sm:$0xff]
      %v1157 = vld [vmem:[%s1 + $0x1ef0] sm:$0xff]
      %v1158 = vld [vmem:[%s1 + $0x1ef8] sm:$0xff]
      %v1159 = vld [vmem:[%s1 + $0x1f00] sm:$0xff]
      %v1160 = vld [vmem:[%s1 + $0x1f08] sm:$0xff]
      %v1161 = vld [vmem:[%s1 + $0x1f10] sm:$0xff]
      %v1162 = vld [vmem:[%s1 + $0x1f18] sm:$0xff]
      %v1163 = vld [vmem:[%s1 + $0x1f20] sm:$0xff]
      %v1164 = vld [vmem:[%s1 + $0x1f28] sm:$0xff]
      %v1165 = vld [vmem:[%s1 + $0x1f30] sm:$0xff]
      %v1166 = vld [vmem:[%s1 + $0x1f38] sm:$0xff]
      %v1167 = vld [vmem:[%s1 + $0x1f40] sm:$0xff]
      %v1168 = vld [vmem:[%s1 + $0x1f48] sm:$0xff]
      %v1169 = vld [vmem:[%s1 + $0x1f50] sm:$0xff]
      %v1170 = vld [vmem:[%s1 + $0x1f58] sm:$0xff]
      %v1171 = vld [vmem:[%s1 + $0x1f60] sm:$0xff]
      %v1172 = vld [vmem:[%s1 + $0x1f68] sm:$0xff]
      %v1173 = vld [vmem:[%s1 + $0x1f70] sm:$0xff]
      %v1174 = vld [vmem:[%s1 + $0x1f78] sm:$0xff]
      %v1175 = vld [vmem:[%s1 + $0x1f80] sm:$0xff]
      %v1176 = vld [vmem:[%s1 + $0x1f88] sm:$0xff]
      %v1177 = vld [vmem:[%s1 + $0x1f90] sm:$0xff]
      %v1178 = vld [vmem:[%s1 + $0x1f98] sm:$0xff]
      %v1179 = vld [vmem:[%s1 + $0x1fa0] sm:$0xff]
      %v1180 = vld [vmem:[%s1 + $0x1fa8] sm:$0xff]
      %v1181 = vld [vmem:[%s1 + $0x1fb0] sm:$0xff]
      %v1182 = vld [vmem:[%s1 + $0x1fb8] sm:$0xff]
      %v1183 = vld [vmem:[%s1 + $0x1fc0] sm:$0xff]
      %v1184 = vld [vmem:[%s1 + $0x1fc8] sm:$0xff]
      %v1185 = vld [vmem:[%s1 + $0x1fd0] sm:$0xff]
      %v1186 = vld [vmem:[%s1 + $0x1fd8] sm:$0xff]
      %v1187 = vld [vmem:[%s1 + $0x1fe0] sm:$0xff]
      %v1188 = vld [vmem:[%s1 + $0x1fe8] sm:$0xff]
      %v1189 = vld [vmem:[%s1 + $0x1ff0] sm:$0xff]
      %v1190 = vld [vmem:[%s1 + $0x1ff8] sm:$0xff]
      %v1191 = vld [vmem:[%s2] sm:$0xff]
      %v1193 = vlaneseq
      %v1194 = vshrl.u32 %v1193, 7
      %v1195 = vsub.s32 0, %v1194
      %v1196 = vrot.slane %v166, %v1195
      %v1197 = vlaneseq
      %v1198 = vshrl.u32 %v1197, 7
      %v1199 = vsub.s32 1, %v1198
      %v1200 = vrot.slane %v166, %v1199
      %v1201 = vlaneseq
      %v1202 = vshrl.u32 %v1201, 7
      %v1203 = vsub.s32 2, %v1202
      %v1204 = vrot.slane %v166, %v1203
      %v1205 = vlaneseq
      %v1206 = vshrl.u32 %v1205, 7
      %v1207 = vsub.s32 3, %v1206
      %v1208 = vrot.slane %v166, %v1207
      %v1209 = vlaneseq
      %v1210 = vshrl.u32 %v1209, 7
      %v1211 = vsub.s32 4, %v1210
      %v1212 = vrot.slane %v166, %v1211
      %v1213 = vlaneseq
      %v1214 = vshrl.u32 %v1213, 7
      %v1215 = vsub.s32 5, %v1214
      %v1216 = vrot.slane %v166, %v1215
      %v1217 = vlaneseq
      %v1218 = vshrl.u32 %v1217, 7
      %v1219 = vsub.s32 6, %v1218
      %v1220 = vrot.slane %v166, %v1219
      %v1221 = vlaneseq
      %v1222 = vshrl.u32 %v1221, 7
      %v1223 = vsub.s32 7, %v1222
      %v1224 = vrot.slane %v166, %v1223
      %v1234 = vlaneseq
      %v1235 = vshrl.u32 %v1234, 7
      %v1236 = vsub.s32 0, %v1235
      %v1237 = vrot.slane %v1191, %v1236
      %v1238 = vlaneseq
      %v1239 = vshrl.u32 %v1238, 7
      %v1240 = vsub.s32 1, %v1239
      %v1241 = vrot.slane %v1191, %v1240
      %v1242 = vlaneseq
      %v1243 = vshrl.u32 %v1242, 7
      %v1244 = vsub.s32 2, %v1243
      %v1245 = vrot.slane %v1191, %v1244
      %v1246 = vlaneseq
      %v1247 = vshrl.u32 %v1246, 7
      %v1248 = vsub.s32 3, %v1247
      %v1249 = vrot.slane %v1191, %v1248
      %v1250 = vlaneseq
      %v1251 = vshrl.u32 %v1250, 7
      %v1252 = vsub.s32 4, %v1251
      %v1253 = vrot.slane %v1191, %v1252
      %v1254 = vlaneseq
      %v1255 = vshrl.u32 %v1254, 7
      %v1256 = vsub.s32 5, %v1255
      %v1257 = vrot.slane %v1191, %v1256
      %v1258 = vlaneseq
      %v1259 = vshrl.u32 %v1258, 7
      %v1260 = vsub.s32 6, %v1259
      %v1261 = vrot.slane %v1191, %v1260
      %v1262 = vlaneseq
      %v1263 = vshrl.u32 %v1262, 7
      %v1264 = vsub.s32 7, %v1263
      %v1265 = vrot.slane %v1191, %v1264
      %1274 = vmatprep.subr.mxu0 %v288
      %1275 = vmatpush1.msra.mxu0 %v287
      %1276 = vmatprep.subr.mxu0 %v280
      %1277 = vmatpush1.msra.mxu0 %v279
      %1278 = vmatprep.subr.mxu0 %v272
      %1279 = vmatpush1.msra.mxu0 %v271
      %1280 = vmatprep.subr.mxu0 %v264
      %1281 = vmatpush1.msra.mxu0 %v263
      %1282 = vmatprep.subr.mxu0 %v256
      %1283 = vmatpush1.msra.mxu0 %v255
      %1284 = vmatprep.subr.mxu0 %v248
      %1285 = vmatpush1.msra.mxu0 %v247
      %1286 = vmatprep.subr.mxu0 %v240
      %1287 = vmatpush1.msra.mxu0 %v239
      %1288 = vmatprep.subr.mxu0 %v232
      %1289 = vmatpush1.msra.mxu0 %v231
      %1290 = vmatprep.subr.mxu0 %v224
      %1291 = vmatpush1.msra.mxu0 %v223
      %1292 = vmatprep.subr.mxu0 %v216
      %1293 = vmatpush1.msra.mxu0 %v215
      %1294 = vmatprep.subr.mxu0 %v208
      %1295 = vmatpush1.msra.mxu0 %v207
      %1296 = vmatprep.subr.mxu0 %v200
      %1297 = vmatpush1.msra.mxu0 %v199
      %1298 = vmatprep.subr.mxu0 %v192
      %1299 = vmatpush1.msra.mxu0 %v191
      %1300 = vmatprep.subr.mxu0 %v184
      %1301 = vmatpush1.msra.mxu0 %v183
      %1302 = vmatprep.subr.mxu0 %v176
      %1303 = vmatpush1.msra.mxu0 %v175
      %1304 = vmatprep.subr.mxu0 %v168
      %1305 = vmatpush1.msra.mxu0 %v167
      %1306 = vmatprep.subr.mxu0 %v416
      %1307 = vmatpush2.msra.mxu0 %v415
      %1308 = vmatprep.subr.mxu0 %v408
      %1309 = vmatpush2.msra.mxu0 %v407
      %1310 = vmatprep.subr.mxu0 %v400
      %1311 = vmatpush2.msra.mxu0 %v399
      %1312 = vmatprep.subr.mxu0 %v392
      %1313 = vmatpush2.msra.mxu0 %v391
      %1314 = vmatprep.subr.mxu0 %v384
      %1315 = vmatpush2.msra.mxu0 %v383
      %1316 = vmatprep.subr.mxu0 %v376
      %1317 = vmatpush2.msra.mxu0 %v375
      %1318 = vmatprep.subr.mxu0 %v368
      %1319 = vmatpush2.msra.mxu0 %v367
      %1320 = vmatprep.subr.mxu0 %v360
      %1321 = vmatpush2.msra.mxu0 %v359
      %1322 = vmatprep.subr.mxu0 %v352
      %1323 = vmatpush2.msra.mxu0 %v351
      %1324 = vmatprep.subr.mxu0 %v344
      %1325 = vmatpush2.msra.mxu0 %v343
      %1326 = vmatprep.subr.mxu0 %v336
      %1327 = vmatpush2.msra.mxu0 %v335
      %1328 = vmatprep.subr.mxu0 %v328
      %1329 = vmatpush2.msra.mxu0 %v327
      %1330 = vmatprep.subr.mxu0 %v320
      %1331 = vmatpush2.msra.mxu0 %v319
      %1332 = vmatprep.subr.mxu0 %v312
      %1333 = vmatpush2.msra.mxu0 %v311
      %1334 = vmatprep.subr.mxu0 %v304
      %1335 = vmatpush2.msra.mxu0 %v303
      %1336 = vmatprep.subr.mxu0 %v296
      %1337 = vmatpush2.msra.mxu0 %v295
      %1338 = vmatprep.mubr.f32.mxu0 %v1200
      %1339 = vmatmul.mubr.f32.gmra.mxu0 %v1196
      %v1340 = vpop.f32.mrf.mxu0
      %v1341 = vadd.f32 %v1237, %v1340
      %v1342 = vpop.f32.mrf.mxu0
      %v1343 = vadd.f32 %v1241, %v1342
      %1344 = vdwg.mxu0
      %1345 = vmatprep.subr.mxu0 %v544
      %1346 = vmatpush1.msra.mxu0 %v543
      %1347 = vmatprep.subr.mxu0 %v536
      %1348 = vmatpush1.msra.mxu0 %v535
      %1349 = vmatprep.subr.mxu0 %v528
      %1350 = vmatpush1.msra.mxu0 %v527
      %1351 = vmatprep.subr.mxu0 %v520
      %1352 = vmatpush1.msra.mxu0 %v519
      %1353 = vmatprep.subr.mxu0 %v512
      %1354 = vmatpush1.msra.mxu0 %v511
      %1355 = vmatprep.subr.mxu0 %v504
      %1356 = vmatpush1.msra.mxu0 %v503
      %1357 = vmatprep.subr.mxu0 %v496
      %1358 = vmatpush1.msra.mxu0 %v495
      %1359 = vmatprep.subr.mxu0 %v488
      %1360 = vmatpush1.msra.mxu0 %v487
      %1361 = vmatprep.subr.mxu0 %v480
      %1362 = vmatpush1.msra.mxu0 %v479
      %1363 = vmatprep.subr.mxu0 %v472
      %1364 = vmatpush1.msra.mxu0 %v471
      %1365 = vmatprep.subr.mxu0 %v464
      %1366 = vmatpush1.msra.mxu0 %v463
      %1367 = vmatprep.subr.mxu0 %v456
      %1368 = vmatpush1.msra.mxu0 %v455
      %1369 = vmatprep.subr.mxu0 %v448
      %1370 = vmatpush1.msra.mxu0 %v447
      %1371 = vmatprep.subr.mxu0 %v440
      %1372 = vmatpush1.msra.mxu0 %v439
      %1373 = vmatprep.subr.mxu0 %v432
      %1374 = vmatpush1.msra.mxu0 %v431
      %1375 = vmatprep.subr.mxu0 %v424
      %1376 = vmatpush1.msra.mxu0 %v423
      %1377 = vmatprep.subr.mxu0 %v672
      %1378 = vmatpush2.msra.mxu0 %v671
      %1379 = vmatprep.subr.mxu0 %v664
      %1380 = vmatpush2.msra.mxu0 %v663
      %1381 = vmatprep.subr.mxu0 %v656
      %1382 = vmatpush2.msra.mxu0 %v655
      %1383 = vmatprep.subr.mxu0 %v648
      %1384 = vmatpush2.msra.mxu0 %v647
      %1385 = vmatprep.subr.mxu0 %v640
      %1386 = vmatpush2.msra.mxu0 %v639
      %1387 = vmatprep.subr.mxu0 %v632
      %1388 = vmatpush2.msra.mxu0 %v631
      %1389 = vmatprep.subr.mxu0 %v624
      %1390 = vmatpush2.msra.mxu0 %v623
      %1391 = vmatprep.subr.mxu0 %v616
      %1392 = vmatpush2.msra.mxu0 %v615
      %1393 = vmatprep.subr.mxu0 %v608
      %1394 = vmatpush2.msra.mxu0 %v607
      %1395 = vmatprep.subr.mxu0 %v600
      %1396 = vmatpush2.msra.mxu0 %v599
      %1397 = vmatprep.subr.mxu0 %v592
      %1398 = vmatpush2.msra.mxu0 %v591
      %1399 = vmatprep.subr.mxu0 %v584
      %1400 = vmatpush2.msra.mxu0 %v583
      %1401 = vmatprep.subr.mxu0 %v576
      %1402 = vmatpush2.msra.mxu0 %v575
      %1403 = vmatprep.subr.mxu0 %v568
      %1404 = vmatpush2.msra.mxu0 %v567
      %1405 = vmatprep.subr.mxu0 %v560
      %1406 = vmatpush2.msra.mxu0 %v559
      %1407 = vmatprep.subr.mxu0 %v552
      %1408 = vmatpush2.msra.mxu0 %v551
      %1409 = vmatprep.mubr.f32.mxu0 %v1208
      %1410 = vmatmul.mubr.f32.gmra.mxu0 %v1204
      %v1411 = vpop.f32.mrf.mxu0
      %v1412 = vadd.f32 %v1341, %v1411
      %v1413 = vpop.f32.mrf.mxu0
      %v1414 = vadd.f32 %v1343, %v1413
      %1415 = vdwg.mxu0
      %1416 = vmatprep.subr.mxu0 %v800
      %1417 = vmatpush1.msra.mxu0 %v799
      %1418 = vmatprep.subr.mxu0 %v792
      %1419 = vmatpush1.msra.mxu0 %v791
      %1420 = vmatprep.subr.mxu0 %v784
      %1421 = vmatpush1.msra.mxu0 %v783
      %1422 = vmatprep.subr.mxu0 %v776
      %1423 = vmatpush1.msra.mxu0 %v775
      %1424 = vmatprep.subr.mxu0 %v768
      %1425 = vmatpush1.msra.mxu0 %v767
      %1426 = vmatprep.subr.mxu0 %v760
      %1427 = vmatpush1.msra.mxu0 %v759
      %1428 = vmatprep.subr.mxu0 %v752
      %1429 = vmatpush1.msra.mxu0 %v751
      %1430 = vmatprep.subr.mxu0 %v744
      %1431 = vmatpush1.msra.mxu0 %v743
      %1432 = vmatprep.subr.mxu0 %v736
      %1433 = vmatpush1.msra.mxu0 %v735
      %1434 = vmatprep.subr.mxu0 %v728
      %1435 = vmatpush1.msra.mxu0 %v727
      %1436 = vmatprep.subr.mxu0 %v720
      %1437 = vmatpush1.msra.mxu0 %v719
      %1438 = vmatprep.subr.mxu0 %v712
      %1439 = vmatpush1.msra.mxu0 %v711
      %1440 = vmatprep.subr.mxu0 %v704
      %1441 = vmatpush1.msra.mxu0 %v703
      %1442 = vmatprep.subr.mxu0 %v696
      %1443 = vmatpush1.msra.mxu0 %v695
      %1444 = vmatprep.subr.mxu0 %v688
      %1445 = vmatpush1.msra.mxu0 %v687
      %1446 = vmatprep.subr.mxu0 %v680
      %1447 = vmatpush1.msra.mxu0 %v679
      %1448 = vmatprep.subr.mxu0 %v928
      %1449 = vmatpush2.msra.mxu0 %v927
      %1450 = vmatprep.subr.mxu0 %v920
      %1451 = vmatpush2.msra.mxu0 %v919
      %1452 = vmatprep.subr.mxu0 %v912
      %1453 = vmatpush2.msra.mxu0 %v911
      %1454 = vmatprep.subr.mxu0 %v904
      %1455 = vmatpush2.msra.mxu0 %v903
      %1456 = vmatprep.subr.mxu0 %v896
      %1457 = vmatpush2.msra.mxu0 %v895
      %1458 = vmatprep.subr.mxu0 %v888
      %1459 = vmatpush2.msra.mxu0 %v887
      %1460 = vmatprep.subr.mxu0 %v880
      %1461 = vmatpush2.msra.mxu0 %v879
      %1462 = vmatprep.subr.mxu0 %v872
      %1463 = vmatpush2.msra.mxu0 %v871
      %1464 = vmatprep.subr.mxu0 %v864
      %1465 = vmatpush2.msra.mxu0 %v863
      %1466 = vmatprep.subr.mxu0 %v856
      %1467 = vmatpush2.msra.mxu0 %v855
      %1468 = vmatprep.subr.mxu0 %v848
      %1469 = vmatpush2.msra.mxu0 %v847
      %1470 = vmatprep.subr.mxu0 %v840
      %1471 = vmatpush2.msra.mxu0 %v839
      %1472 = vmatprep.subr.mxu0 %v832
      %1473 = vmatpush2.msra.mxu0 %v831
      %1474 = vmatprep.subr.mxu0 %v824
      %1475 = vmatpush2.msra.mxu0 %v823
      %1476 = vmatprep.subr.mxu0 %v816
      %1477 = vmatpush2.msra.mxu0 %v815
      %1478 = vmatprep.subr.mxu0 %v808
      %1479 = vmatpush2.msra.mxu0 %v807
      %1480 = vmatprep.mubr.f32.mxu0 %v1216
      %1481 = vmatmul.mubr.f32.gmra.mxu0 %v1212
      %v1482 = vpop.f32.mrf.mxu0
      %v1483 = vadd.f32 %v1412, %v1482
      %v1484 = vpop.f32.mrf.mxu0
      %v1485 = vadd.f32 %v1414, %v1484
      %1486 = vdwg.mxu0
      %1487 = vmatprep.subr.mxu0 %v1056
      %1488 = vmatpush1.msra.mxu0 %v1055
      %1489 = vmatprep.subr.mxu0 %v1048
      %1490 = vmatpush1.msra.mxu0 %v1047
      %1491 = vmatprep.subr.mxu0 %v1040
      %1492 = vmatpush1.msra.mxu0 %v1039
      %1493 = vmatprep.subr.mxu0 %v1032
      %1494 = vmatpush1.msra.mxu0 %v1031
      %1495 = vmatprep.subr.mxu0 %v1024
      %1496 = vmatpush1.msra.mxu0 %v1023
      %1497 = vmatprep.subr.mxu0 %v1016
      %1498 = vmatpush1.msra.mxu0 %v1015
      %1499 = vmatprep.subr.mxu0 %v1008
      %1500 = vmatpush1.msra.mxu0 %v1007
      %1501 = vmatprep.subr.mxu0 %v1000
      %1502 = vmatpush1.msra.mxu0 %v999
      %1503 = vmatprep.subr.mxu0 %v992
      %1504 = vmatpush1.msra.mxu0 %v991
      %1505 = vmatprep.subr.mxu0 %v984
      %1506 = vmatpush1.msra.mxu0 %v983
      %1507 = vmatprep.subr.mxu0 %v976
      %1508 = vmatpush1.msra.mxu0 %v975
      %1509 = vmatprep.subr.mxu0 %v968
      %1510 = vmatpush1.msra.mxu0 %v967
      %1511 = vmatprep.subr.mxu0 %v960
      %1512 = vmatpush1.msra.mxu0 %v959
      %1513 = vmatprep.subr.mxu0 %v952
      %1514 = vmatpush1.msra.mxu0 %v951
      %1515 = vmatprep.subr.mxu0 %v944
      %1516 = vmatpush1.msra.mxu0 %v943
      %1517 = vmatprep.subr.mxu0 %v936
      %1518 = vmatpush1.msra.mxu0 %v935
      %1519 = vmatprep.subr.mxu0 %v1184
      %1520 = vmatpush2.msra.mxu0 %v1183
      %1521 = vmatprep.subr.mxu0 %v1176
      %1522 = vmatpush2.msra.mxu0 %v1175
      %1523 = vmatprep.subr.mxu0 %v1168
      %1524 = vmatpush2.msra.mxu0 %v1167
      %1525 = vmatprep.subr.mxu0 %v1160
      %1526 = vmatpush2.msra.mxu0 %v1159
      %1527 = vmatprep.subr.mxu0 %v1152
      %1528 = vmatpush2.msra.mxu0 %v1151
      %1529 = vmatprep.subr.mxu0 %v1144
      %1530 = vmatpush2.msra.mxu0 %v1143
      %1531 = vmatprep.subr.mxu0 %v1136
      %1532 = vmatpush2.msra.mxu0 %v1135
      %1533 = vmatprep.subr.mxu0 %v1128
      %1534 = vmatpush2.msra.mxu0 %v1127
      %1535 = vmatprep.subr.mxu0 %v1120
      %1536 = vmatpush2.msra.mxu0 %v1119
      %1537 = vmatprep.subr.mxu0 %v1112
      %1538 = vmatpush2.msra.mxu0 %v1111
      %1539 = vmatprep.subr.mxu0 %v1104
      %1540 = vmatpush2.msra.mxu0 %v1103
      %1541 = vmatprep.subr.mxu0 %v1096
      %1542 = vmatpush2.msra.mxu0 %v1095
      %1543 = vmatprep.subr.mxu0 %v1088
      %1544 = vmatpush2.msra.mxu0 %v1087
      %1545 = vmatprep.subr.mxu0 %v1080
      %1546 = vmatpush2.msra.mxu0 %v1079
      %1547 = vmatprep.subr.mxu0 %v1072
      %1548 = vmatpush2.msra.mxu0 %v1071
      %1549 = vmatprep.subr.mxu0 %v1064
      %1550 = vmatpush2.msra.mxu0 %v1063
      %1551 = vmatprep.mubr.f32.mxu0 %v1224
      %1552 = vmatmul.mubr.f32.gmra.mxu0 %v1220
      %v1553 = vpop.f32.mrf.mxu0
      %v1554 = vadd.f32 %v1483, %v1553
      %v1555 = vpop.f32.mrf.mxu0
      %v1556 = vadd.f32 %v1485, %v1555
      %1557 = vdwg.mxu0
      %1558 = vmatprep.subr.mxu0 %v290
      %1559 = vmatpush1.msra.mxu0 %v289
      %1560 = vmatprep.subr.mxu0 %v282
      %1561 = vmatpush1.msra.mxu0 %v281
      %1562 = vmatprep.subr.mxu0 %v274
      %1563 = vmatpush1.msra.mxu0 %v273
      %1564 = vmatprep.subr.mxu0 %v266
      %1565 = vmatpush1.msra.mxu0 %v265
      %1566 = vmatprep.subr.mxu0 %v258
      %1567 = vmatpush1.msra.mxu0 %v257
      %1568 = vmatprep.subr.mxu0 %v250
      %1569 = vmatpush1.msra.mxu0 %v249
      %1570 = vmatprep.subr.mxu0 %v242
      %1571 = vmatpush1.msra.mxu0 %v241
      %1572 = vmatprep.subr.mxu0 %v234
      %1573 = vmatpush1.msra.mxu0 %v233
      %1574 = vmatprep.subr.mxu0 %v226
      %1575 = vmatpush1.msra.mxu0 %v225
      %1576 = vmatprep.subr.mxu0 %v218
      %1577 = vmatpush1.msra.mxu0 %v217
      %1578 = vmatprep.subr.mxu0 %v210
      %1579 = vmatpush1.msra.mxu0 %v209
      %1580 = vmatprep.subr.mxu0 %v202
      %1581 = vmatpush1.msra.mxu0 %v201
      %1582 = vmatprep.subr.mxu0 %v194
      %1583 = vmatpush1.msra.mxu0 %v193
      %1584 = vmatprep.subr.mxu0 %v186
      %1585 = vmatpush1.msra.mxu0 %v185
      %1586 = vmatprep.subr.mxu0 %v178
      %1587 = vmatpush1.msra.mxu0 %v177
      %1588 = vmatprep.subr.mxu0 %v170
      %1589 = vmatpush1.msra.mxu0 %v169
      %1590 = vmatprep.subr.mxu0 %v418
      %1591 = vmatpush2.msra.mxu0 %v417
      %1592 = vmatprep.subr.mxu0 %v410
      %1593 = vmatpush2.msra.mxu0 %v409
      %1594 = vmatprep.subr.mxu0 %v402
      %1595 = vmatpush2.msra.mxu0 %v401
      %1596 = vmatprep.subr.mxu0 %v394
      %1597 = vmatpush2.msra.mxu0 %v393
      %1598 = vmatprep.subr.mxu0 %v386
      %1599 = vmatpush2.msra.mxu0 %v385
      %1600 = vmatprep.subr.mxu0 %v378
      %1601 = vmatpush2.msra.mxu0 %v377
      %1602 = vmatprep.subr.mxu0 %v370
      %1603 = vmatpush2.msra.mxu0 %v369
      %1604 = vmatprep.subr.mxu0 %v362
      %1605 = vmatpush2.msra.mxu0 %v361
      %1606 = vmatprep.subr.mxu0 %v354
      %1607 = vmatpush2.msra.mxu0 %v353
      %1608 = vmatprep.subr.mxu0 %v346
      %1609 = vmatpush2.msra.mxu0 %v345
      %1610 = vmatprep.subr.mxu0 %v338
      %1611 = vmatpush2.msra.mxu0 %v337
      %1612 = vmatprep.subr.mxu0 %v330
      %1613 = vmatpush2.msra.mxu0 %v329
      %1614 = vmatprep.subr.mxu0 %v322
      %1615 = vmatpush2.msra.mxu0 %v321
      %1616 = vmatprep.subr.mxu0 %v314
      %1617 = vmatpush2.msra.mxu0 %v313
      %1618 = vmatprep.subr.mxu0 %v306
      %1619 = vmatpush2.msra.mxu0 %v305
      %1620 = vmatprep.subr.mxu0 %v298
      %1621 = vmatpush2.msra.mxu0 %v297
      %1622 = vmatprep.mubr.f32.mxu0 %v1200
      %1623 = vmatmul.mubr.f32.gmra.mxu0 %v1196
      %v1624 = vpop.f32.mrf.mxu0
      %v1625 = vadd.f32 %v1245, %v1624
      %v1626 = vpop.f32.mrf.mxu0
      %v1627 = vadd.f32 %v1249, %v1626
      %1628 = vdwg.mxu0
      %1629 = vmatprep.subr.mxu0 %v546
      %1630 = vmatpush1.msra.mxu0 %v545
      %1631 = vmatprep.subr.mxu0 %v538
      %1632 = vmatpush1.msra.mxu0 %v537
      %1633 = vmatprep.subr.mxu0 %v530
      %1634 = vmatpush1.msra.mxu0 %v529
      %1635 = vmatprep.subr.mxu0 %v522
      %1636 = vmatpush1.msra.mxu0 %v521
      %1637 = vmatprep.subr.mxu0 %v514
      %1638 = vmatpush1.msra.mxu0 %v513
      %1639 = vmatprep.subr.mxu0 %v506
      %1640 = vmatpush1.msra.mxu0 %v505
      %1641 = vmatprep.subr.mxu0 %v498
      %1642 = vmatpush1.msra.mxu0 %v497
      %1643 = vmatprep.subr.mxu0 %v490
      %1644 = vmatpush1.msra.mxu0 %v489
      %1645 = vmatprep.subr.mxu0 %v482
      %1646 = vmatpush1.msra.mxu0 %v481
      %1647 = vmatprep.subr.mxu0 %v474
      %1648 = vmatpush1.msra.mxu0 %v473
      %1649 = vmatprep.subr.mxu0 %v466
      %1650 = vmatpush1.msra.mxu0 %v465
      %1651 = vmatprep.subr.mxu0 %v458
      %1652 = vmatpush1.msra.mxu0 %v457
      %1653 = vmatprep.subr.mxu0 %v450
      %1654 = vmatpush1.msra.mxu0 %v449
      %1655 = vmatprep.subr.mxu0 %v442
      %1656 = vmatpush1.msra.mxu0 %v441
      %1657 = vmatprep.subr.mxu0 %v434
      %1658 = vmatpush1.msra.mxu0 %v433
      %1659 = vmatprep.subr.mxu0 %v426
      %1660 = vmatpush1.msra.mxu0 %v425
      %1661 = vmatprep.subr.mxu0 %v674
      %1662 = vmatpush2.msra.mxu0 %v673
      %1663 = vmatprep.subr.mxu0 %v666
      %1664 = vmatpush2.msra.mxu0 %v665
      %1665 = vmatprep.subr.mxu0 %v658
      %1666 = vmatpush2.msra.mxu0 %v657
      %1667 = vmatprep.subr.mxu0 %v650
      %1668 = vmatpush2.msra.mxu0 %v649
      %1669 = vmatprep.subr.mxu0 %v642
      %1670 = vmatpush2.msra.mxu0 %v641
      %1671 = vmatprep.subr.mxu0 %v634
      %1672 = vmatpush2.msra.mxu0 %v633
      %1673 = vmatprep.subr.mxu0 %v626
      %1674 = vmatpush2.msra.mxu0 %v625
      %1675 = vmatprep.subr.mxu0 %v618
      %1676 = vmatpush2.msra.mxu0 %v617
      %1677 = vmatprep.subr.mxu0 %v610
      %1678 = vmatpush2.msra.mxu0 %v609
      %1679 = vmatprep.subr.mxu0 %v602
      %1680 = vmatpush2.msra.mxu0 %v601
      %1681 = vmatprep.subr.mxu0 %v594
      %1682 = vmatpush2.msra.mxu0 %v593
      %1683 = vmatprep.subr.mxu0 %v586
      %1684 = vmatpush2.msra.mxu0 %v585
      %1685 = vmatprep.subr.mxu0 %v578
      %1686 = vmatpush2.msra.mxu0 %v577
      %1687 = vmatprep.subr.mxu0 %v570
      %1688 = vmatpush2.msra.mxu0 %v569
      %1689 = vmatprep.subr.mxu0 %v562
      %1690 = vmatpush2.msra.mxu0 %v561
      %1691 = vmatprep.subr.mxu0 %v554
      %1692 = vmatpush2.msra.mxu0 %v553
      %1693 = vmatprep.mubr.f32.mxu0 %v1208
      %1694 = vmatmul.mubr.f32.gmra.mxu0 %v1204
      %v1695 = vpop.f32.mrf.mxu0
      %v1696 = vadd.f32 %v1625, %v1695
      %v1697 = vpop.f32.mrf.mxu0
      %v1698 = vadd.f32 %v1627, %v1697
      %1699 = vdwg.mxu0
      %1700 = vmatprep.subr.mxu0 %v802
      %1701 = vmatpush1.msra.mxu0 %v801
      %1702 = vmatprep.subr.mxu0 %v794
      %1703 = vmatpush1.msra.mxu0 %v793
      %1704 = vmatprep.subr.mxu0 %v786
      %1705 = vmatpush1.msra.mxu0 %v785
      %1706 = vmatprep.subr.mxu0 %v778
      %1707 = vmatpush1.msra.mxu0 %v777
      %1708 = vmatprep.subr.mxu0 %v770
      %1709 = vmatpush1.msra.mxu0 %v769
      %1710 = vmatprep.subr.mxu0 %v762
      %1711 = vmatpush1.msra.mxu0 %v761
      %1712 = vmatprep.subr.mxu0 %v754
      %1713 = vmatpush1.msra.mxu0 %v753
      %1714 = vmatprep.subr.mxu0 %v746
      %1715 = vmatpush1.msra.mxu0 %v745
      %1716 = vmatprep.subr.mxu0 %v738
      %1717 = vmatpush1.msra.mxu0 %v737
      %1718 = vmatprep.subr.mxu0 %v730
      %1719 = vmatpush1.msra.mxu0 %v729
      %1720 = vmatprep.subr.mxu0 %v722
      %1721 = vmatpush1.msra.mxu0 %v721
      %1722 = vmatprep.subr.mxu0 %v714
      %1723 = vmatpush1.msra.mxu0 %v713
      %1724 = vmatprep.subr.mxu0 %v706
      %1725 = vmatpush1.msra.mxu0 %v705
      %1726 = vmatprep.subr.mxu0 %v698
      %1727 = vmatpush1.msra.mxu0 %v697
      %1728 = vmatprep.subr.mxu0 %v690
      %1729 = vmatpush1.msra.mxu0 %v689
      %1730 = vmatprep.subr.mxu0 %v682
      %1731 = vmatpush1.msra.mxu0 %v681
      %1732 = vmatprep.subr.mxu0 %v930
      %1733 = vmatpush2.msra.mxu0 %v929
      %1734 = vmatprep.subr.mxu0 %v922
      %1735 = vmatpush2.msra.mxu0 %v921
      %1736 = vmatprep.subr.mxu0 %v914
      %1737 = vmatpush2.msra.mxu0 %v913
      %1738 = vmatprep.subr.mxu0 %v906
      %1739 = vmatpush2.msra.mxu0 %v905
      %1740 = vmatprep.subr.mxu0 %v898
      %1741 = vmatpush2.msra.mxu0 %v897
      %1742 = vmatprep.subr.mxu0 %v890
      %1743 = vmatpush2.msra.mxu0 %v889
      %1744 = vmatprep.subr.mxu0 %v882
      %1745 = vmatpush2.msra.mxu0 %v881
      %1746 = vmatprep.subr.mxu0 %v874
      %1747 = vmatpush2.msra.mxu0 %v873
      %1748 = vmatprep.subr.mxu0 %v866
      %1749 = vmatpush2.msra.mxu0 %v865
      %1750 = vmatprep.subr.mxu0 %v858
      %1751 = vmatpush2.msra.mxu0 %v857
      %1752 = vmatprep.subr.mxu0 %v850
      %1753 = vmatpush2.msra.mxu0 %v849
      %1754 = vmatprep.subr.mxu0 %v842
      %1755 = vmatpush2.msra.mxu0 %v841
      %1756 = vmatprep.subr.mxu0 %v834
      %1757 = vmatpush2.msra.mxu0 %v833
      %1758 = vmatprep.subr.mxu0 %v826
      %1759 = vmatpush2.msra.mxu0 %v825
      %1760 = vmatprep.subr.mxu0 %v818
      %1761 = vmatpush2.msra.mxu0 %v817
      %1762 = vmatprep.subr.mxu0 %v810
      %1763 = vmatpush2.msra.mxu0 %v809
      %1764 = vmatprep.mubr.f32.mxu0 %v1216
      %1765 = vmatmul.mubr.f32.gmra.mxu0 %v1212
      %v1766 = vpop.f32.mrf.mxu0
      %v1767 = vadd.f32 %v1696, %v1766
      %v1768 = vpop.f32.mrf.mxu0
      %v1769 = vadd.f32 %v1698, %v1768
      %1770 = vdwg.mxu0
      %1771 = vmatprep.subr.mxu0 %v1058
      %1772 = vmatpush1.msra.mxu0 %v1057
      %1773 = vmatprep.subr.mxu0 %v1050
      %1774 = vmatpush1.msra.mxu0 %v1049
      %1775 = vmatprep.subr.mxu0 %v1042
      %1776 = vmatpush1.msra.mxu0 %v1041
      %1777 = vmatprep.subr.mxu0 %v1034
      %1778 = vmatpush1.msra.mxu0 %v1033
      %1779 = vmatprep.subr.mxu0 %v1026
      %1780 = vmatpush1.msra.mxu0 %v1025
      %1781 = vmatprep.subr.mxu0 %v1018
      %1782 = vmatpush1.msra.mxu0 %v1017
      %1783 = vmatprep.subr.mxu0 %v1010
      %1784 = vmatpush1.msra.mxu0 %v1009
      %1785 = vmatprep.subr.mxu0 %v1002
      %1786 = vmatpush1.msra.mxu0 %v1001
      %1787 = vmatprep.subr.mxu0 %v994
      %1788 = vmatpush1.msra.mxu0 %v993
      %1789 = vmatprep.subr.mxu0 %v986
      %1790 = vmatpush1.msra.mxu0 %v985
      %1791 = vmatprep.subr.mxu0 %v978
      %1792 = vmatpush1.msra.mxu0 %v977
      %1793 = vmatprep.subr.mxu0 %v970
      %1794 = vmatpush1.msra.mxu0 %v969
      %1795 = vmatprep.subr.mxu0 %v962
      %1796 = vmatpush1.msra.mxu0 %v961
      %1797 = vmatprep.subr.mxu0 %v954
      %1798 = vmatpush1.msra.mxu0 %v953
      %1799 = vmatprep.subr.mxu0 %v946
      %1800 = vmatpush1.msra.mxu0 %v945
      %1801 = vmatprep.subr.mxu0 %v938
      %1802 = vmatpush1.msra.mxu0 %v937
      %1803 = vmatprep.subr.mxu0 %v1186
      %1804 = vmatpush2.msra.mxu0 %v1185
      %1805 = vmatprep.subr.mxu0 %v1178
      %1806 = vmatpush2.msra.mxu0 %v1177
      %1807 = vmatprep.subr.mxu0 %v1170
      %1808 = vmatpush2.msra.mxu0 %v1169
      %1809 = vmatprep.subr.mxu0 %v1162
      %1810 = vmatpush2.msra.mxu0 %v1161
      %1811 = vmatprep.subr.mxu0 %v1154
      %1812 = vmatpush2.msra.mxu0 %v1153
      %1813 = vmatprep.subr.mxu0 %v1146
      %1814 = vmatpush2.msra.mxu0 %v1145
      %1815 = vmatprep.subr.mxu0 %v1138
      %1816 = vmatpush2.msra.mxu0 %v1137
      %1817 = vmatprep.subr.mxu0 %v1130
      %1818 = vmatpush2.msra.mxu0 %v1129
      %1819 = vmatprep.subr.mxu0 %v1122
      %1820 = vmatpush2.msra.mxu0 %v1121
      %1821 = vmatprep.subr.mxu0 %v1114
      %1822 = vmatpush2.msra.mxu0 %v1113
      %1823 = vmatprep.subr.mxu0 %v1106
      %1824 = vmatpush2.msra.mxu0 %v1105
      %1825 = vmatprep.subr.mxu0 %v1098
      %1826 = vmatpush2.msra.mxu0 %v1097
      %1827 = vmatprep.subr.mxu0 %v1090
      %1828 = vmatpush2.msra.mxu0 %v1089
      %1829 = vmatprep.subr.mxu0 %v1082
      %1830 = vmatpush2.msra.mxu0 %v1081
      %1831 = vmatprep.subr.mxu0 %v1074
      %1832 = vmatpush2.msra.mxu0 %v1073
      %1833 = vmatprep.subr.mxu0 %v1066
      %1834 = vmatpush2.msra.mxu0 %v1065
      %1835 = vmatprep.mubr.f32.mxu0 %v1224
      %1836 = vmatmul.mubr.f32.gmra.mxu0 %v1220
      %v1837 = vpop.f32.mrf.mxu0
      %v1838 = vadd.f32 %v1767, %v1837
      %v1839 = vpop.f32.mrf.mxu0
      %v1840 = vadd.f32 %v1769, %v1839
      %1841 = vdwg.mxu0
      %1842 = vmatprep.subr.mxu0 %v292
      %1843 = vmatpush1.msra.mxu0 %v291
      %1844 = vmatprep.subr.mxu0 %v284
      %1845 = vmatpush1.msra.mxu0 %v283
      %1846 = vmatprep.subr.mxu0 %v276
      %1847 = vmatpush1.msra.mxu0 %v275
      %1848 = vmatprep.subr.mxu0 %v268
      %1849 = vmatpush1.msra.mxu0 %v267
      %1850 = vmatprep.subr.mxu0 %v260
      %1851 = vmatpush1.msra.mxu0 %v259
      %1852 = vmatprep.subr.mxu0 %v252
      %1853 = vmatpush1.msra.mxu0 %v251
      %1854 = vmatprep.subr.mxu0 %v244
      %1855 = vmatpush1.msra.mxu0 %v243
      %1856 = vmatprep.subr.mxu0 %v236
      %1857 = vmatpush1.msra.mxu0 %v235
      %1858 = vmatprep.subr.mxu0 %v228
      %1859 = vmatpush1.msra.mxu0 %v227
      %1860 = vmatprep.subr.mxu0 %v220
      %1861 = vmatpush1.msra.mxu0 %v219
      %1862 = vmatprep.subr.mxu0 %v212
      %1863 = vmatpush1.msra.mxu0 %v211
      %1864 = vmatprep.subr.mxu0 %v204
      %1865 = vmatpush1.msra.mxu0 %v203
      %1866 = vmatprep.subr.mxu0 %v196
      %1867 = vmatpush1.msra.mxu0 %v195
      %1868 = vmatprep.subr.mxu0 %v188
      %1869 = vmatpush1.msra.mxu0 %v187
      %1870 = vmatprep.subr.mxu0 %v180
      %1871 = vmatpush1.msra.mxu0 %v179
      %1872 = vmatprep.subr.mxu0 %v172
      %1873 = vmatpush1.msra.mxu0 %v171
      %1874 = vmatprep.subr.mxu0 %v420
      %1875 = vmatpush2.msra.mxu0 %v419
      %1876 = vmatprep.subr.mxu0 %v412
      %1877 = vmatpush2.msra.mxu0 %v411
      %1878 = vmatprep.subr.mxu0 %v404
      %1879 = vmatpush2.msra.mxu0 %v403
      %1880 = vmatprep.subr.mxu0 %v396
      %1881 = vmatpush2.msra.mxu0 %v395
      %1882 = vmatprep.subr.mxu0 %v388
      %1883 = vmatpush2.msra.mxu0 %v387
      %1884 = vmatprep.subr.mxu0 %v380
      %1885 = vmatpush2.msra.mxu0 %v379
      %1886 = vmatprep.subr.mxu0 %v372
      %1887 = vmatpush2.msra.mxu0 %v371
      %1888 = vmatprep.subr.mxu0 %v364
      %1889 = vmatpush2.msra.mxu0 %v363
      %1890 = vmatprep.subr.mxu0 %v356
      %1891 = vmatpush2.msra.mxu0 %v355
      %1892 = vmatprep.subr.mxu0 %v348
      %1893 = vmatpush2.msra.mxu0 %v347
      %1894 = vmatprep.subr.mxu0 %v340
      %1895 = vmatpush2.msra.mxu0 %v339
      %1896 = vmatprep.subr.mxu0 %v332
      %1897 = vmatpush2.msra.mxu0 %v331
      %1898 = vmatprep.subr.mxu0 %v324
      %1899 = vmatpush2.msra.mxu0 %v323
      %1900 = vmatprep.subr.mxu0 %v316
      %1901 = vmatpush2.msra.mxu0 %v315
      %1902 = vmatprep.subr.mxu0 %v308
      %1903 = vmatpush2.msra.mxu0 %v307
      %1904 = vmatprep.subr.mxu0 %v300
      %1905 = vmatpush2.msra.mxu0 %v299
      %1906 = vmatprep.mubr.f32.mxu0 %v1200
      %1907 = vmatmul.mubr.f32.gmra.mxu0 %v1196
      %v1908 = vpop.f32.mrf.mxu0
      %v1909 = vadd.f32 %v1253, %v1908
      %v1910 = vpop.f32.mrf.mxu0
      %v1911 = vadd.f32 %v1257, %v1910
      %1912 = vdwg.mxu0
      %1913 = vmatprep.subr.mxu0 %v548
      %1914 = vmatpush1.msra.mxu0 %v547
      %1915 = vmatprep.subr.mxu0 %v540
      %1916 = vmatpush1.msra.mxu0 %v539
      %1917 = vmatprep.subr.mxu0 %v532
      %1918 = vmatpush1.msra.mxu0 %v531
      %1919 = vmatprep.subr.mxu0 %v524
      %1920 = vmatpush1.msra.mxu0 %v523
      %1921 = vmatprep.subr.mxu0 %v516
      %1922 = vmatpush1.msra.mxu0 %v515
      %1923 = vmatprep.subr.mxu0 %v508
      %1924 = vmatpush1.msra.mxu0 %v507
      %1925 = vmatprep.subr.mxu0 %v500
      %1926 = vmatpush1.msra.mxu0 %v499
      %1927 = vmatprep.subr.mxu0 %v492
      %1928 = vmatpush1.msra.mxu0 %v491
      %1929 = vmatprep.subr.mxu0 %v484
      %1930 = vmatpush1.msra.mxu0 %v483
      %1931 = vmatprep.subr.mxu0 %v476
      %1932 = vmatpush1.msra.mxu0 %v475
      %1933 = vmatprep.subr.mxu0 %v468
      %1934 = vmatpush1.msra.mxu0 %v467
      %1935 = vmatprep.subr.mxu0 %v460
      %1936 = vmatpush1.msra.mxu0 %v459
      %1937 = vmatprep.subr.mxu0 %v452
      %1938 = vmatpush1.msra.mxu0 %v451
      %1939 = vmatprep.subr.mxu0 %v444
      %1940 = vmatpush1.msra.mxu0 %v443
      %1941 = vmatprep.subr.mxu0 %v436
      %1942 = vmatpush1.msra.mxu0 %v435
      %1943 = vmatprep.subr.mxu0 %v428
      %1944 = vmatpush1.msra.mxu0 %v427
      %1945 = vmatprep.subr.mxu0 %v676
      %1946 = vmatpush2.msra.mxu0 %v675
      %1947 = vmatprep.subr.mxu0 %v668
      %1948 = vmatpush2.msra.mxu0 %v667
      %1949 = vmatprep.subr.mxu0 %v660
      %1950 = vmatpush2.msra.mxu0 %v659
      %1951 = vmatprep.subr.mxu0 %v652
      %1952 = vmatpush2.msra.mxu0 %v651
      %1953 = vmatprep.subr.mxu0 %v644
      %1954 = vmatpush2.msra.mxu0 %v643
      %1955 = vmatprep.subr.mxu0 %v636
      %1956 = vmatpush2.msra.mxu0 %v635
      %1957 = vmatprep.subr.mxu0 %v628
      %1958 = vmatpush2.msra.mxu0 %v627
      %1959 = vmatprep.subr.mxu0 %v620
      %1960 = vmatpush2.msra.mxu0 %v619
      %1961 = vmatprep.subr.mxu0 %v612
      %1962 = vmatpush2.msra.mxu0 %v611
      %1963 = vmatprep.subr.mxu0 %v604
      %1964 = vmatpush2.msra.mxu0 %v603
      %1965 = vmatprep.subr.mxu0 %v596
      %1966 = vmatpush2.msra.mxu0 %v595
      %1967 = vmatprep.subr.mxu0 %v588
      %1968 = vmatpush2.msra.mxu0 %v587
      %1969 = vmatprep.subr.mxu0 %v580
      %1970 = vmatpush2.msra.mxu0 %v579
      %1971 = vmatprep.subr.mxu0 %v572
      %1972 = vmatpush2.msra.mxu0 %v571
      %1973 = vmatprep.subr.mxu0 %v564
      %1974 = vmatpush2.msra.mxu0 %v563
      %1975 = vmatprep.subr.mxu0 %v556
      %1976 = vmatpush2.msra.mxu0 %v555
      %1977 = vmatprep.mubr.f32.mxu0 %v1208
      %1978 = vmatmul.mubr.f32.gmra.mxu0 %v1204
      %v1979 = vpop.f32.mrf.mxu0
      %v1980 = vadd.f32 %v1909, %v1979
      %v1981 = vpop.f32.mrf.mxu0
      %v1982 = vadd.f32 %v1911, %v1981
      %1983 = vdwg.mxu0
      %1984 = vmatprep.subr.mxu0 %v804
      %1985 = vmatpush1.msra.mxu0 %v803
      %1986 = vmatprep.subr.mxu0 %v796
      %1987 = vmatpush1.msra.mxu0 %v795
      %1988 = vmatprep.subr.mxu0 %v788
      %1989 = vmatpush1.msra.mxu0 %v787
      %1990 = vmatprep.subr.mxu0 %v780
      %1991 = vmatpush1.msra.mxu0 %v779
      %1992 = vmatprep.subr.mxu0 %v772
      %1993 = vmatpush1.msra.mxu0 %v771
      %1994 = vmatprep.subr.mxu0 %v764
      %1995 = vmatpush1.msra.mxu0 %v763
      %1996 = vmatprep.subr.mxu0 %v756
      %1997 = vmatpush1.msra.mxu0 %v755
      %1998 = vmatprep.subr.mxu0 %v748
      %1999 = vmatpush1.msra.mxu0 %v747
      %2000 = vmatprep.subr.mxu0 %v740
      %2001 = vmatpush1.msra.mxu0 %v739
      %2002 = vmatprep.subr.mxu0 %v732
      %2003 = vmatpush1.msra.mxu0 %v731
      %2004 = vmatprep.subr.mxu0 %v724
      %2005 = vmatpush1.msra.mxu0 %v723
      %2006 = vmatprep.subr.mxu0 %v716
      %2007 = vmatpush1.msra.mxu0 %v715
      %2008 = vmatprep.subr.mxu0 %v708
      %2009 = vmatpush1.msra.mxu0 %v707
      %2010 = vmatprep.subr.mxu0 %v700
      %2011 = vmatpush1.msra.mxu0 %v699
      %2012 = vmatprep.subr.mxu0 %v692
      %2013 = vmatpush1.msra.mxu0 %v691
      %2014 = vmatprep.subr.mxu0 %v684
      %2015 = vmatpush1.msra.mxu0 %v683
      %2016 = vmatprep.subr.mxu0 %v932
      %2017 = vmatpush2.msra.mxu0 %v931
      %2018 = vmatprep.subr.mxu0 %v924
      %2019 = vmatpush2.msra.mxu0 %v923
      %2020 = vmatprep.subr.mxu0 %v916
      %2021 = vmatpush2.msra.mxu0 %v915
      %2022 = vmatprep.subr.mxu0 %v908
      %2023 = vmatpush2.msra.mxu0 %v907
      %2024 = vmatprep.subr.mxu0 %v900
      %2025 = vmatpush2.msra.mxu0 %v899
      %2026 = vmatprep.subr.mxu0 %v892
      %2027 = vmatpush2.msra.mxu0 %v891
      %2028 = vmatprep.subr.mxu0 %v884
      %2029 = vmatpush2.msra.mxu0 %v883
      %2030 = vmatprep.subr.mxu0 %v876
      %2031 = vmatpush2.msra.mxu0 %v875
      %2032 = vmatprep.subr.mxu0 %v868
      %2033 = vmatpush2.msra.mxu0 %v867
      %2034 = vmatprep.subr.mxu0 %v860
      %2035 = vmatpush2.msra.mxu0 %v859
      %2036 = vmatprep.subr.mxu0 %v852
      %2037 = vmatpush2.msra.mxu0 %v851
      %2038 = vmatprep.subr.mxu0 %v844
      %2039 = vmatpush2.msra.mxu0 %v843
      %2040 = vmatprep.subr.mxu0 %v836
      %2041 = vmatpush2.msra.mxu0 %v835
      %2042 = vmatprep.subr.mxu0 %v828
      %2043 = vmatpush2.msra.mxu0 %v827
      %2044 = vmatprep.subr.mxu0 %v820
      %2045 = vmatpush2.msra.mxu0 %v819
      %2046 = vmatprep.subr.mxu0 %v812
      %2047 = vmatpush2.msra.mxu0 %v811
      %2048 = vmatprep.mubr.f32.mxu0 %v1216
      %2049 = vmatmul.mubr.f32.gmra.mxu0 %v1212
      %v2050 = vpop.f32.mrf.mxu0
      %v2051 = vadd.f32 %v1980, %v2050
      %v2052 = vpop.f32.mrf.mxu0
      %v2053 = vadd.f32 %v1982, %v2052
      %2054 = vdwg.mxu0
      %2055 = vmatprep.subr.mxu0 %v1060
      %2056 = vmatpush1.msra.mxu0 %v1059
      %2057 = vmatprep.subr.mxu0 %v1052
      %2058 = vmatpush1.msra.mxu0 %v1051
      %2059 = vmatprep.subr.mxu0 %v1044
      %2060 = vmatpush1.msra.mxu0 %v1043
      %2061 = vmatprep.subr.mxu0 %v1036
      %2062 = vmatpush1.msra.mxu0 %v1035
      %2063 = vmatprep.subr.mxu0 %v1028
      %2064 = vmatpush1.msra.mxu0 %v1027
      %2065 = vmatprep.subr.mxu0 %v1020
      %2066 = vmatpush1.msra.mxu0 %v1019
      %2067 = vmatprep.subr.mxu0 %v1012
      %2068 = vmatpush1.msra.mxu0 %v1011
      %2069 = vmatprep.subr.mxu0 %v1004
      %2070 = vmatpush1.msra.mxu0 %v1003
      %2071 = vmatprep.subr.mxu0 %v996
      %2072 = vmatpush1.msra.mxu0 %v995
      %2073 = vmatprep.subr.mxu0 %v988
      %2074 = vmatpush1.msra.mxu0 %v987
      %2075 = vmatprep.subr.mxu0 %v980
      %2076 = vmatpush1.msra.mxu0 %v979
      %2077 = vmatprep.subr.mxu0 %v972
      %2078 = vmatpush1.msra.mxu0 %v971
      %2079 = vmatprep.subr.mxu0 %v964
      %2080 = vmatpush1.msra.mxu0 %v963
      %2081 = vmatprep.subr.mxu0 %v956
      %2082 = vmatpush1.msra.mxu0 %v955
      %2083 = vmatprep.subr.mxu0 %v948
      %2084 = vmatpush1.msra.mxu0 %v947
      %2085 = vmatprep.subr.mxu0 %v940
      %2086 = vmatpush1.msra.mxu0 %v939
      %2087 = vmatprep.subr.mxu0 %v1188
      %2088 = vmatpush2.msra.mxu0 %v1187
      %2089 = vmatprep.subr.mxu0 %v1180
      %2090 = vmatpush2.msra.mxu0 %v1179
      %2091 = vmatprep.subr.mxu0 %v1172
      %2092 = vmatpush2.msra.mxu0 %v1171
      %2093 = vmatprep.subr.mxu0 %v1164
      %2094 = vmatpush2.msra.mxu0 %v1163
      %2095 = vmatprep.subr.mxu0 %v1156
      %2096 = vmatpush2.msra.mxu0 %v1155
      %2097 = vmatprep.subr.mxu0 %v1148
      %2098 = vmatpush2.msra.mxu0 %v1147
      %2099 = vmatprep.subr.mxu0 %v1140
      %2100 = vmatpush2.msra.mxu0 %v1139
      %2101 = vmatprep.subr.mxu0 %v1132
      %2102 = vmatpush2.msra.mxu0 %v1131
      %2103 = vmatprep.subr.mxu0 %v1124
      %2104 = vmatpush2.msra.mxu0 %v1123
      %2105 = vmatprep.subr.mxu0 %v1116
      %2106 = vmatpush2.msra.mxu0 %v1115
      %2107 = vmatprep.subr.mxu0 %v1108
      %2108 = vmatpush2.msra.mxu0 %v1107
      %2109 = vmatprep.subr.mxu0 %v1100
      %2110 = vmatpush2.msra.mxu0 %v1099
      %2111 = vmatprep.subr.mxu0 %v1092
      %2112 = vmatpush2.msra.mxu0 %v1091
      %2113 = vmatprep.subr.mxu0 %v1084
      %2114 = vmatpush2.msra.mxu0 %v1083
      %2115 = vmatprep.subr.mxu0 %v1076
      %2116 = vmatpush2.msra.mxu0 %v1075
      %2117 = vmatprep.subr.mxu0 %v1068
      %2118 = vmatpush2.msra.mxu0 %v1067
      %2119 = vmatprep.mubr.f32.mxu0 %v1224
      %2120 = vmatmul.mubr.f32.gmra.mxu0 %v1220
      %v2121 = vpop.f32.mrf.mxu0
      %v2122 = vadd.f32 %v2051, %v2121
      %v2123 = vpop.f32.mrf.mxu0
      %v2124 = vadd.f32 %v2053, %v2123
      %2125 = vdwg.mxu0
      %2126 = vmatprep.subr.mxu0 %v294
      %2127 = vmatpush1.msra.mxu0 %v293
      %2128 = vmatprep.subr.mxu0 %v286
      %2129 = vmatpush1.msra.mxu0 %v285
      %2130 = vmatprep.subr.mxu0 %v278
      %2131 = vmatpush1.msra.mxu0 %v277
      %2132 = vmatprep.subr.mxu0 %v270
      %2133 = vmatpush1.msra.mxu0 %v269
      %2134 = vmatprep.subr.mxu0 %v262
      %2135 = vmatpush1.msra.mxu0 %v261
      %2136 = vmatprep.subr.mxu0 %v254
      %2137 = vmatpush1.msra.mxu0 %v253
      %2138 = vmatprep.subr.mxu0 %v246
      %2139 = vmatpush1.msra.mxu0 %v245
      %2140 = vmatprep.subr.mxu0 %v238
      %2141 = vmatpush1.msra.mxu0 %v237
      %2142 = vmatprep.subr.mxu0 %v230
      %2143 = vmatpush1.msra.mxu0 %v229
      %2144 = vmatprep.subr.mxu0 %v222
      %2145 = vmatpush1.msra.mxu0 %v221
      %2146 = vmatprep.subr.mxu0 %v214
      %2147 = vmatpush1.msra.mxu0 %v213
      %2148 = vmatprep.subr.mxu0 %v206
      %2149 = vmatpush1.msra.mxu0 %v205
      %2150 = vmatprep.subr.mxu0 %v198
      %2151 = vmatpush1.msra.mxu0 %v197
      %2152 = vmatprep.subr.mxu0 %v190
      %2153 = vmatpush1.msra.mxu0 %v189
      %2154 = vmatprep.subr.mxu0 %v182
      %2155 = vmatpush1.msra.mxu0 %v181
      %2156 = vmatprep.subr.mxu0 %v174
      %2157 = vmatpush1.msra.mxu0 %v173
      %2158 = vmatprep.subr.mxu0 %v422
      %2159 = vmatpush2.msra.mxu0 %v421
      %2160 = vmatprep.subr.mxu0 %v414
      %2161 = vmatpush2.msra.mxu0 %v413
      %2162 = vmatprep.subr.mxu0 %v406
      %2163 = vmatpush2.msra.mxu0 %v405
      %2164 = vmatprep.subr.mxu0 %v398
      %2165 = vmatpush2.msra.mxu0 %v397
      %2166 = vmatprep.subr.mxu0 %v390
      %2167 = vmatpush2.msra.mxu0 %v389
      %2168 = vmatprep.subr.mxu0 %v382
      %2169 = vmatpush2.msra.mxu0 %v381
      %2170 = vmatprep.subr.mxu0 %v374
      %2171 = vmatpush2.msra.mxu0 %v373
      %2172 = vmatprep.subr.mxu0 %v366
      %2173 = vmatpush2.msra.mxu0 %v365
      %2174 = vmatprep.subr.mxu0 %v358
      %2175 = vmatpush2.msra.mxu0 %v357
      %2176 = vmatprep.subr.mxu0 %v350
      %2177 = vmatpush2.msra.mxu0 %v349
      %2178 = vmatprep.subr.mxu0 %v342
      %2179 = vmatpush2.msra.mxu0 %v341
      %2180 = vmatprep.subr.mxu0 %v334
      %2181 = vmatpush2.msra.mxu0 %v333
      %2182 = vmatprep.subr.mxu0 %v326
      %2183 = vmatpush2.msra.mxu0 %v325
      %2184 = vmatprep.subr.mxu0 %v318
      %2185 = vmatpush2.msra.mxu0 %v317
      %2186 = vmatprep.subr.mxu0 %v310
      %2187 = vmatpush2.msra.mxu0 %v309
      %2188 = vmatprep.subr.mxu0 %v302
      %2189 = vmatpush2.msra.mxu0 %v301
      %2190 = vmatprep.mubr.f32.mxu0 %v1200
      %2191 = vmatmul.mubr.f32.gmra.mxu0 %v1196
      %v2192 = vpop.f32.mrf.mxu0
      %v2193 = vadd.f32 %v1261, %v2192
      %v2194 = vpop.f32.mrf.mxu0
      %v2195 = vadd.f32 %v1265, %v2194
      %2196 = vdwg.mxu0
      %2197 = vmatprep.subr.mxu0 %v550
      %2198 = vmatpush1.msra.mxu0 %v549
      %2199 = vmatprep.subr.mxu0 %v542
      %2200 = vmatpush1.msra.mxu0 %v541
      %2201 = vmatprep.subr.mxu0 %v534
      %2202 = vmatpush1.msra.mxu0 %v533
      %2203 = vmatprep.subr.mxu0 %v526
      %2204 = vmatpush1.msra.mxu0 %v525
      %2205 = vmatprep.subr.mxu0 %v518
      %2206 = vmatpush1.msra.mxu0 %v517
      %2207 = vmatprep.subr.mxu0 %v510
      %2208 = vmatpush1.msra.mxu0 %v509
      %2209 = vmatprep.subr.mxu0 %v502
      %2210 = vmatpush1.msra.mxu0 %v501
      %2211 = vmatprep.subr.mxu0 %v494
      %2212 = vmatpush1.msra.mxu0 %v493
      %2213 = vmatprep.subr.mxu0 %v486
      %2214 = vmatpush1.msra.mxu0 %v485
      %2215 = vmatprep.subr.mxu0 %v478
      %2216 = vmatpush1.msra.mxu0 %v477
      %2217 = vmatprep.subr.mxu0 %v470
      %2218 = vmatpush1.msra.mxu0 %v469
      %2219 = vmatprep.subr.mxu0 %v462
      %2220 = vmatpush1.msra.mxu0 %v461
      %2221 = vmatprep.subr.mxu0 %v454
      %2222 = vmatpush1.msra.mxu0 %v453
      %2223 = vmatprep.subr.mxu0 %v446
      %2224 = vmatpush1.msra.mxu0 %v445
      %2225 = vmatprep.subr.mxu0 %v438
      %2226 = vmatpush1.msra.mxu0 %v437
      %2227 = vmatprep.subr.mxu0 %v430
      %2228 = vmatpush1.msra.mxu0 %v429
      %2229 = vmatprep.subr.mxu0 %v678
      %2230 = vmatpush2.msra.mxu0 %v677
      %2231 = vmatprep.subr.mxu0 %v670
      %2232 = vmatpush2.msra.mxu0 %v669
      %2233 = vmatprep.subr.mxu0 %v662
      %2234 = vmatpush2.msra.mxu0 %v661
      %2235 = vmatprep.subr.mxu0 %v654
      %2236 = vmatpush2.msra.mxu0 %v653
      %2237 = vmatprep.subr.mxu0 %v646
      %2238 = vmatpush2.msra.mxu0 %v645
      %2239 = vmatprep.subr.mxu0 %v638
      %2240 = vmatpush2.msra.mxu0 %v637
      %2241 = vmatprep.subr.mxu0 %v630
      %2242 = vmatpush2.msra.mxu0 %v629
      %2243 = vmatprep.subr.mxu0 %v622
      %2244 = vmatpush2.msra.mxu0 %v621
      %2245 = vmatprep.subr.mxu0 %v614
      %2246 = vmatpush2.msra.mxu0 %v613
      %2247 = vmatprep.subr.mxu0 %v606
      %2248 = vmatpush2.msra.mxu0 %v605
      %2249 = vmatprep.subr.mxu0 %v598
      %2250 = vmatpush2.msra.mxu0 %v597
      %2251 = vmatprep.subr.mxu0 %v590
      %2252 = vmatpush2.msra.mxu0 %v589
      %2253 = vmatprep.subr.mxu0 %v582
      %2254 = vmatpush2.msra.mxu0 %v581
      %2255 = vmatprep.subr.mxu0 %v574
      %2256 = vmatpush2.msra.mxu0 %v573
      %2257 = vmatprep.subr.mxu0 %v566
      %2258 = vmatpush2.msra.mxu0 %v565
      %2259 = vmatprep.subr.mxu0 %v558
      %2260 = vmatpush2.msra.mxu0 %v557
      %2261 = vmatprep.mubr.f32.mxu0 %v1208
      %2262 = vmatmul.mubr.f32.gmra.mxu0 %v1204
      %v2263 = vpop.f32.mrf.mxu0
      %v2264 = vadd.f32 %v2193, %v2263
      %v2265 = vpop.f32.mrf.mxu0
      %v2266 = vadd.f32 %v2195, %v2265
      %2267 = vdwg.mxu0
      %2268 = vmatprep.subr.mxu0 %v806
      %2269 = vmatpush1.msra.mxu0 %v805
      %2270 = vmatprep.subr.mxu0 %v798
      %2271 = vmatpush1.msra.mxu0 %v797
      %2272 = vmatprep.subr.mxu0 %v790
      %2273 = vmatpush1.msra.mxu0 %v789
      %2274 = vmatprep.subr.mxu0 %v782
      %2275 = vmatpush1.msra.mxu0 %v781
      %2276 = vmatprep.subr.mxu0 %v774
      %2277 = vmatpush1.msra.mxu0 %v773
      %2278 = vmatprep.subr.mxu0 %v766
      %2279 = vmatpush1.msra.mxu0 %v765
      %2280 = vmatprep.subr.mxu0 %v758
      %2281 = vmatpush1.msra.mxu0 %v757
      %2282 = vmatprep.subr.mxu0 %v750
      %2283 = vmatpush1.msra.mxu0 %v749
      %2284 = vmatprep.subr.mxu0 %v742
      %2285 = vmatpush1.msra.mxu0 %v741
      %2286 = vmatprep.subr.mxu0 %v734
      %2287 = vmatpush1.msra.mxu0 %v733
      %2288 = vmatprep.subr.mxu0 %v726
      %2289 = vmatpush1.msra.mxu0 %v725
      %2290 = vmatprep.subr.mxu0 %v718
      %2291 = vmatpush1.msra.mxu0 %v717
      %2292 = vmatprep.subr.mxu0 %v710
      %2293 = vmatpush1.msra.mxu0 %v709
      %2294 = vmatprep.subr.mxu0 %v702
      %2295 = vmatpush1.msra.mxu0 %v701
      %2296 = vmatprep.subr.mxu0 %v694
      %2297 = vmatpush1.msra.mxu0 %v693
      %2298 = vmatprep.subr.mxu0 %v686
      %2299 = vmatpush1.msra.mxu0 %v685
      %2300 = vmatprep.subr.mxu0 %v934
      %2301 = vmatpush2.msra.mxu0 %v933
      %2302 = vmatprep.subr.mxu0 %v926
      %2303 = vmatpush2.msra.mxu0 %v925
      %2304 = vmatprep.subr.mxu0 %v918
      %2305 = vmatpush2.msra.mxu0 %v917
      %2306 = vmatprep.subr.mxu0 %v910
      %2307 = vmatpush2.msra.mxu0 %v909
      %2308 = vmatprep.subr.mxu0 %v902
      %2309 = vmatpush2.msra.mxu0 %v901
      %2310 = vmatprep.subr.mxu0 %v894
      %2311 = vmatpush2.msra.mxu0 %v893
      %2312 = vmatprep.subr.mxu0 %v886
      %2313 = vmatpush2.msra.mxu0 %v885
      %2314 = vmatprep.subr.mxu0 %v878
      %2315 = vmatpush2.msra.mxu0 %v877
      %2316 = vmatprep.subr.mxu0 %v870
      %2317 = vmatpush2.msra.mxu0 %v869
      %2318 = vmatprep.subr.mxu0 %v862
      %2319 = vmatpush2.msra.mxu0 %v861
      %2320 = vmatprep.subr.mxu0 %v854
      %2321 = vmatpush2.msra.mxu0 %v853
      %2322 = vmatprep.subr.mxu0 %v846
      %2323 = vmatpush2.msra.mxu0 %v845
      %2324 = vmatprep.subr.mxu0 %v838
      %2325 = vmatpush2.msra.mxu0 %v837
      %2326 = vmatprep.subr.mxu0 %v830
      %2327 = vmatpush2.msra.mxu0 %v829
      %2328 = vmatprep.subr.mxu0 %v822
      %2329 = vmatpush2.msra.mxu0 %v821
      %2330 = vmatprep.subr.mxu0 %v814
      %2331 = vmatpush2.msra.mxu0 %v813
      %2332 = vmatprep.mubr.f32.mxu0 %v1216
      %2333 = vmatmul.mubr.f32.gmra.mxu0 %v1212
      %v2334 = vpop.f32.mrf.mxu0
      %v2335 = vadd.f32 %v2264, %v2334
      %v2336 = vpop.f32.mrf.mxu0
      %v2337 = vadd.f32 %v2266, %v2336
      %2338 = vdwg.mxu0
      %2339 = vmatprep.subr.mxu0 %v1062
      %2340 = vmatpush1.msra.mxu0 %v1061
      %2341 = vmatprep.subr.mxu0 %v1054
      %2342 = vmatpush1.msra.mxu0 %v1053
      %2343 = vmatprep.subr.mxu0 %v1046
      %2344 = vmatpush1.msra.mxu0 %v1045
      %2345 = vmatprep.subr.mxu0 %v1038
      %2346 = vmatpush1.msra.mxu0 %v1037
      %2347 = vmatprep.subr.mxu0 %v1030
      %2348 = vmatpush1.msra.mxu0 %v1029
      %2349 = vmatprep.subr.mxu0 %v1022
      %2350 = vmatpush1.msra.mxu0 %v1021
      %2351 = vmatprep.subr.mxu0 %v1014
      %2352 = vmatpush1.msra.mxu0 %v1013
      %2353 = vmatprep.subr.mxu0 %v1006
      %2354 = vmatpush1.msra.mxu0 %v1005
      %2355 = vmatprep.subr.mxu0 %v998
      %2356 = vmatpush1.msra.mxu0 %v997
      %2357 = vmatprep.subr.mxu0 %v990
      %2358 = vmatpush1.msra.mxu0 %v989
      %2359 = vmatprep.subr.mxu0 %v982
      %2360 = vmatpush1.msra.mxu0 %v981
      %2361 = vmatprep.subr.mxu0 %v974
      %2362 = vmatpush1.msra.mxu0 %v973
      %2363 = vmatprep.subr.mxu0 %v966
      %2364 = vmatpush1.msra.mxu0 %v965
      %2365 = vmatprep.subr.mxu0 %v958
      %2366 = vmatpush1.msra.mxu0 %v957
      %2367 = vmatprep.subr.mxu0 %v950
      %2368 = vmatpush1.msra.mxu0 %v949
      %2369 = vmatprep.subr.mxu0 %v942
      %2370 = vmatpush1.msra.mxu0 %v941
      %2371 = vmatprep.subr.mxu0 %v1190
      %2372 = vmatpush2.msra.mxu0 %v1189
      %2373 = vmatprep.subr.mxu0 %v1182
      %2374 = vmatpush2.msra.mxu0 %v1181
      %2375 = vmatprep.subr.mxu0 %v1174
      %2376 = vmatpush2.msra.mxu0 %v1173
      %2377 = vmatprep.subr.mxu0 %v1166
      %2378 = vmatpush2.msra.mxu0 %v1165
      %2379 = vmatprep.subr.mxu0 %v1158
      %2380 = vmatpush2.msra.mxu0 %v1157
      %2381 = vmatprep.subr.mxu0 %v1150
      %2382 = vmatpush2.msra.mxu0 %v1149
      %2383 = vmatprep.subr.mxu0 %v1142
      %2384 = vmatpush2.msra.mxu0 %v1141
      %2385 = vmatprep.subr.mxu0 %v1134
      %2386 = vmatpush2.msra.mxu0 %v1133
      %2387 = vmatprep.subr.mxu0 %v1126
      %2388 = vmatpush2.msra.mxu0 %v1125
      %2389 = vmatprep.subr.mxu0 %v1118
      %2390 = vmatpush2.msra.mxu0 %v1117
      %2391 = vmatprep.subr.mxu0 %v1110
      %2392 = vmatpush2.msra.mxu0 %v1109
      %2393 = vmatprep.subr.mxu0 %v1102
      %2394 = vmatpush2.msra.mxu0 %v1101
      %2395 = vmatprep.subr.mxu0 %v1094
      %2396 = vmatpush2.msra.mxu0 %v1093
      %2397 = vmatprep.subr.mxu0 %v1086
      %2398 = vmatpush2.msra.mxu0 %v1085
      %2399 = vmatprep.subr.mxu0 %v1078
      %2400 = vmatpush2.msra.mxu0 %v1077
      %2401 = vmatprep.subr.mxu0 %v1070
      %2402 = vmatpush2.msra.mxu0 %v1069
      %2403 = vmatprep.mubr.f32.mxu0 %v1224
      %2404 = vmatmul.mubr.f32.gmra.mxu0 %v1220
      %v2405 = vpop.f32.mrf.mxu0
      %v2406 = vadd.f32 %v2335, %v2405
      %v2407 = vpop.f32.mrf.mxu0
      %v2408 = vadd.f32 %v2337, %v2407
      %2409 = vdwg.mxu0
      %vm2410 = vcmp.ge.f32.partialorder %v1554, 0.0
      %vm2411 = vcmp.ge.f32.partialorder %v1556, 0.0
      %vm2412 = vcmp.ge.f32.partialorder %v1838, 0.0
      %vm2413 = vcmp.ge.f32.partialorder %v1840, 0.0
      %vm2414 = vcmp.ge.f32.partialorder %v2122, 0.0
      %vm2415 = vcmp.ge.f32.partialorder %v2124, 0.0
      %vm2416 = vcmp.ge.f32.partialorder %v2406, 0.0
      %vm2417 = vcmp.ge.f32.partialorder %v2408, 0.0
      %v2418 = vmul.f32 %v1554, 0.1
      %v2419 = vmul.f32 %v1556, 0.1
      %v2420 = vmul.f32 %v1838, 0.1
      %v2421 = vmul.f32 %v1840, 0.1
      %v2422 = vmul.f32 %v2122, 0.1
      %v2423 = vmul.f32 %v2124, 0.1
      %v2424 = vmul.f32 %v2406, 0.1
      %v2425 = vmul.f32 %v2408, 0.1
      %v2426 = vsel %vm2410, %v1554, %v2418
      %v2427 = vsel %vm2411, %v1556, %v2419
      %v2428 = vsel %vm2412, %v1838, %v2420
      %v2429 = vsel %vm2413, %v1840, %v2421
      %v2430 = vsel %vm2414, %v2122, %v2422
      %v2431 = vsel %vm2415, %v2124, %v2423
      %v2432 = vsel %vm2416, %v2406, %v2424
      %v2433 = vsel %vm2417, %v2408, %v2425
      %v2442 = vcombine.low %v2426, %v2427
      %v2443 = vcombine.low %v2428, %v2429
      %v2444 = vcombine.low %v2430, %v2431
      %v2445 = vcombine.low %v2432, %v2433
      %v2447 = vunpack.c.l.s4 1966171168
      %v2448 = vunpack.c.0.s8 %v2447
      %v2449 = vlaneseq
      %v2450 = vshrl.u32 %v2449, 7
      %v2451 = vsub.s32 %v2448, %v2450
      %v2452 = vrot.slane %v2442, %v2451
      %v2454 = vunpack.c.l.s4 1966171168
      %v2455 = vunpack.c.0.s8 %v2454
      %v2456 = vlaneseq
      %v2457 = vshrl.u32 %v2456, 7
      %v2458 = vsub.s32 %v2455, %v2457
      %v2459 = vrot.slane %v2443, %v2458
      %v2461 = vunpack.c.l.s4 1966171168
      %v2462 = vunpack.c.0.s8 %v2461
      %v2463 = vlaneseq
      %v2464 = vshrl.u32 %v2463, 7
      %v2465 = vsub.s32 %v2462, %v2464
      %v2466 = vrot.slane %v2444, %v2465
      %v2468 = vunpack.c.l.s4 1966171168
      %v2469 = vunpack.c.0.s8 %v2468
      %v2470 = vlaneseq
      %v2471 = vshrl.u32 %v2470, 7
      %v2472 = vsub.s32 %v2469, %v2471
      %v2473 = vrot.slane %v2445, %v2472
      %v2474 = vcombine.low %v2452, %v2459
      %v2475 = vcombine.low %v2466, %v2473
      %v2477 = vunpack.c.l.s4 1966171168
      %v2478 = vunpack.c.0.s8 %v2477
      %v2479 = vlaneseq
      %v2480 = vshrl.u32 %v2479, 7
      %v2481 = vsub.s32 %v2478, %v2480
      %v2482 = vrot.slane %v2474, %v2481
      %v2484 = vunpack.c.l.s4 1966171168
      %v2485 = vunpack.c.0.s8 %v2484
      %v2486 = vlaneseq
      %v2487 = vshrl.u32 %v2486, 7
      %v2488 = vsub.s32 %v2485, %v2487
      %v2489 = vrot.slane %v2475, %v2488
      %v2490 = vcombine.low %v2482, %v2489
      %2492 = vst [vmem:[%s165] sm:$0xff] %v2490
      %p2493 = scmp.lt.s32.totalorder %s14, 1
      %s2494 = scalar_select %p2493, %s14, 1
      %s2495 = smul.addr %s2494, 8
      %s2496 = scalar_lea.vmem %s3, %s2495
      // Predicated region
      $region33: #{discriminator_s_forward.12} parent=31 // pred_check
        %p2497 = pneg %p100
      $region34: #{discriminator_s_forward.12} parent=31 // pred_check_branch
        %2499 = sbr.rel (%p2497) target = $region36
      $region35: #{discriminator_s_forward.12} parent=31 // pred_region
        _
      $region36: #{discriminator_s_forward.12} parent=31 // pred_fallthru
        _
    $region32: #{discriminator_s_forward.12} parent=5 // pred_fallthru
      _
    %p2500 = scmp.le.s32.totalorder 2, %s9
    // Predicated region
    $region37: #{discriminator_s_forward.12} parent=5 // pred_check
      %p2501 = pneg %p2500
    $region38: #{discriminator_s_forward.12} parent=5 // pred_check_branch
      %2503 = sbr.rel (%p2501) target = $region40
    $region39: #{discriminator_s_forward.12} parent=5 // pred_region
      %s2504 = ssub.s32 %s9, 2
      // Predicated region
      $region41: #{discriminator_s_forward.12} parent=39 // pred_check
        %p2505 = pneg %p106
      $region42: #{discriminator_s_forward.12} parent=39 // pred_check_branch
        %2507 = sbr.rel (%p2505) target = $region44
      $region43: #{discriminator_s_forward.12} parent=39 // pred_region
        %p2508 = scmp.lt.s32.totalorder %s15, 1
        %s2509 = scalar_select %p2508, %s15, 1
        %s2510 = smul.addr %s2509, 8
        %s2511 = scalar_lea.vmem %s3, %s2510
      $region44: #{discriminator_s_forward.12} parent=39 // pred_fallthru
        _
    $region40: #{discriminator_s_forward.12} parent=5 // pred_fallthru
      _
  $region6: #{discriminator_s_forward.12} parent=0 // loop_footer
    %s13 = sadd.s32 1, %s9
  $region7: #{discriminator_s_forward.12} parent=0 // loop_footer_branch
    %8 = sbr.rel target = $region3
  $region8: #{discriminator_s_forward.12} parent=0 // loop_exit
    _

</llo_original>
